<compile_context>
chip_gen: v6e
topology: v6e:2x2x1
jax: 0.10.0
libtpu: 0.0.40
codegen_flags: <defaults>
</compile_context>

<pallas_src>
import numpy as np

import jax
import jax.numpy as jnp
from jax.experimental import pallas as pl
from jax.experimental.pallas import tpu as pltpu

POOL_K = 5
POOL_S = 3
POOL_OUT = 5                      # 17x17 aux input -> 5x5 pooled map
S_POS = POOL_OUT * POOL_OUT       # 25 pooled spatial positions
C_MID = 128                       # conv0 output channels (fixed by the module)
C_CONV1 = 768                     # conv1 output channels (fixed by the module)
BN_EPS = 1e-3


def _make_pool_matrix(H, W):
    """(H*W, 25) selection matrix: column oh*5+ow holds 1/25 over its 5x5 window."""
    P = np.zeros((H * W, S_POS), np.float32)
    for oh in range(POOL_OUT):
        for ow in range(POOL_OUT):
            s = oh * POOL_OUT + ow
            for kh in range(POOL_K):
                for kw in range(POOL_K):
                    P[(oh * POOL_S + kh) * W + (ow * POOL_S + kw), s] = 1.0 / (POOL_K * POOL_K)
    return jnp.asarray(P)


def _aux_kernel(x_ref, p_ref, w0_ref, s0_ref, b0_ref, w1_ref, s1_ref, b1_ref,
                wf_ref, bf_ref, o_ref):
    """Fused avg_pool(5,3) -> conv0(1x1)+BN+ReLU -> conv1(5x5 full)+BN+ReLU
    -> global-avg-pool (identity on a 1x1 map) -> fc, for one batch block."""
    nb = x_ref.shape[0]

    p_mat = p_ref[...]                         # (HW, 25)  f32
    w0 = w0_ref[...]                           # (128, C)  f32
    s0 = s0_ref[...]                           # (1, 128)  folded-BN scale
    b0 = b0_ref[...]                           # (1, 128)  folded-BN shift

    # ---- pooling + conv0 (+BN, ReLU), per sample (two tiny MXU matmuls) ----
    h0_list = []
    for n in range(nb):
        pooled = jnp.dot(x_ref[n], p_mat, preferred_element_type=jnp.float32)   # (C, 25)
        z0 = jnp.dot(w0, pooled, preferred_element_type=jnp.float32)            # (128, 25)
        # Transpose the small (128,25) tile so channels are lane-dense; BN then
        # uses (1,128) row vectors (sublane broadcast).
        h0_list.append(jnp.maximum(z0.T * s0 + b0, 0.0))                         # (25, 128)
    h0_all = jnp.stack(h0_list, axis=0)                                          # (nb, 25, 128)

    # ---- conv1 as 25 accumulated (nb,128)@(128,768) bf16 matmuls -----------
    z1 = jnp.zeros((nb, C_CONV1), jnp.float32)
    for s in range(S_POS):
        h0_s = h0_all[:, s, :].astype(jnp.bfloat16)                              # (nb, 128)
        z1 = z1 + jnp.dot(h0_s, w1_ref[s], preferred_element_type=jnp.float32)   # (nb, 768)
    h1 = jnp.maximum(z1 * s1_ref[...] + b1_ref[...], 0.0)                         # (nb, 768)

    # ---- adaptive_avg_pool2d((1,1)) + flatten are identities on a 1x1 map ---
    logits = jnp.dot(h1.astype(jnp.bfloat16), wf_ref[...],
                     preferred_element_type=jnp.float32) + bf_ref[...]
    o_ref[...] = logits


def inception_aux_forward(x, params, block_n=8):
    w0 = params["w0"]; s0 = params["s0"]; b0 = params["b0"]
    w1s = params["w1s"]; s1 = params["s1"]; b1 = params["b1"]
    wf = params["wf"]; bf = params["bf"]

    N, C, H, W = x.shape
    oh = (H - POOL_K) // POOL_S + 1
    ow = (W - POOL_K) // POOL_S + 1
    assert oh == POOL_OUT and ow == POOL_OUT, "kernel assumes the 17x17 aux-head geometry"
    num_classes = wf.shape[1]
    HW = H * W

    # (N, C, H, W) -> (N, C, H*W): spatial positions on the lane axis.
    x3 = x.reshape(N, C, HW)

    nb = min(block_n, N)
    n_pad = ((N + nb - 1) // nb) * nb
    if n_pad != N:
        x3 = jnp.pad(x3, ((0, n_pad - N), (0, 0), (0, 0)))

    p_mat = _make_pool_matrix(H, W)

    logits = pl.pallas_call(
        _aux_kernel,
        out_shape=jax.ShapeDtypeStruct((n_pad, num_classes), jnp.float32),
        grid=(n_pad // nb,),
        in_specs=[
            pl.BlockSpec((nb, C, HW), lambda i: (i, 0, 0)),                 # x block
            pl.BlockSpec((HW, S_POS), lambda i: (0, 0)),                    # pooling matrix
            pl.BlockSpec((C_MID, C), lambda i: (0, 0)),                     # w0 (f32)
            pl.BlockSpec((1, C_MID), lambda i: (0, 0)),                     # BN0 scale
            pl.BlockSpec((1, C_MID), lambda i: (0, 0)),                     # BN0 shift
            pl.BlockSpec((S_POS, C_MID, C_CONV1), lambda i: (0, 0, 0)),     # w1 (bf16)
            pl.BlockSpec((1, C_CONV1), lambda i: (0, 0)),                   # BN1 scale
            pl.BlockSpec((1, C_CONV1), lambda i: (0, 0)),                   # BN1 shift
            pl.BlockSpec((C_CONV1, num_classes), lambda i: (0, 0)),         # fc weight (bf16)
            pl.BlockSpec((1, num_classes), lambda i: (0, 0)),               # fc bias
        ],
        out_specs=pl.BlockSpec((nb, num_classes), lambda i: (i, 0)),
        compiler_params=pltpu.CompilerParams(
            dimension_semantics=("parallel",),
        ),
    )(x3, p_mat, w0, s0, b0, w1s, s1, b1, wf, bf)
    return logits[:N]


def make_params(key, in_channels, num_classes):
    """Deterministic synthetic parameters (shapes per InceptionAux.__init__)."""
    ks = jax.random.split(key, 10)

    # conv0: Conv2d(in_channels, 128, kernel_size=1, bias=False)
    w0 = 0.1 * jax.random.normal(ks[0], (C_MID, in_channels), jnp.float32)
    g0 = 1.0 + 0.1 * jax.random.normal(ks[1], (C_MID,), jnp.float32)
    be0 = 0.1 * jax.random.normal(ks[2], (C_MID,), jnp.float32)
    rm0 = 0.1 * jax.random.normal(ks[3], (C_MID,), jnp.float32)
    rv0 = 1.0 + 0.5 * jax.random.uniform(ks[4], (C_MID,), jnp.float32)
    s0 = g0 / jnp.sqrt(rv0 + BN_EPS)
    b0 = be0 - rm0 * s0

    # conv1: Conv2d(128, 768, kernel_size=5, bias=False), stddev hint = 0.01
    w1 = 0.01 * jax.random.normal(ks[5], (C_CONV1, C_MID, POOL_K, POOL_K), jnp.float32)
    g1 = 1.0 + 0.1 * jax.random.normal(ks[6], (C_CONV1,), jnp.float32)
    be1 = 0.1 * jax.random.normal(ks[7], (C_CONV1,), jnp.float32)
    rm1 = 0.01 * jax.random.normal(ks[8], (C_CONV1,), jnp.float32)
    rv1 = 1.0 + 0.5 * jax.random.uniform(ks[9], (C_CONV1,), jnp.float32)
    s1 = g1 / jnp.sqrt(rv1 + BN_EPS)
    b1 = be1 - rm1 * s1

    # fc: Linear(768, num_classes), stddev hint = 0.001
    kf = jax.random.split(jax.random.fold_in(key, 1), 2)
    fc_w = 0.001 * jax.random.normal(kf[0], (num_classes, C_CONV1), jnp.float32)
    fc_b = 0.001 * jax.random.normal(kf[1], (num_classes,), jnp.float32)

    # Big weights stored as bf16 (halves the dominant HBM stream); the pure-JAX
    # reference uses the same bf16-rounded values so the comparison stays tight.
    w1_q = w1.astype(jnp.bfloat16).astype(jnp.float32)
    fc_w_q = fc_w.astype(jnp.bfloat16).astype(jnp.float32)

    params = dict(
        w0=w0,                                   # (128, C) f32
        s0=s0.reshape(1, C_MID),
        b0=b0.reshape(1, C_MID),
        # w1s[kh*5+kw, c, oc] = W1_torch[oc, c, kh, kw]
        w1s=jnp.transpose(w1, (2, 3, 1, 0)).reshape(S_POS, C_MID, C_CONV1).astype(jnp.bfloat16),
        s1=s1.reshape(1, C_CONV1),
        b1=b1.reshape(1, C_CONV1),
        wf=fc_w.T.astype(jnp.bfloat16),          # (768, num_classes)
        bf=fc_b.reshape(1, num_classes),
    )
    torch_like = dict(w0=w0, s0=s0, b0=b0, w1=w1_q, s1=s1, b1=b1,
                      fc_w=fc_w_q, fc_b=fc_b)
    return params, torch_like


def ref_forward(x, t):
    """Pure-JAX reference reproducing the PyTorch forward (eval-mode BN)."""
    hi = jax.lax.Precision.HIGHEST
    pooled = jax.lax.reduce_window(
        x, 0.0, jax.lax.add,
        (1, 1, POOL_K, POOL_K), (1, 1, POOL_S, POOL_S), "VALID") / (POOL_K * POOL_K)
    z0 = jnp.einsum("nchw,oc->nohw", pooled, t["w0"], precision=hi)
    h0 = jax.nn.relu(z0 * t["s0"][None, :, None, None] + t["b0"][None, :, None, None])
    z1 = jnp.einsum("nchw,ochw->no", h0, t["w1"], precision=hi)
    h1 = jax.nn.relu(z1 * t["s1"][None, :] + t["b1"][None, :])
    # adaptive_avg_pool2d to (1,1) on a 1x1 map + flatten are identities here
    return jnp.dot(h1, t["fc_w"].T, precision=hi) + t["fc_b"][None, :]


if __name__ == "__main__":
    key = jax.random.PRNGKey(0)
    kx, kp = jax.random.split(key)

    N, C_in, H, W = 2, 8, 17, 17     # small in_channels; 17x17 is the aux-head geometry
    num_classes = 10

    x = jax.random.normal(kx, (N, C_in, H, W), jnp.float32)
    params, torch_like = make_params(kp, C_in, num_classes)

    fwd = jax.jit(inception_aux_forward)
    out = jax.block_until_ready(fwd(x, params))

    ref = ref_forward(x, torch_like)
    assert out.shape == (N, num_classes)
    assert jnp.allclose(out, ref, rtol=2e-2, atol=5e-4), (out, ref)
    print("KERNEL_OK")
</pallas_src>

<mosaic_0001>
module attributes {stable_mosaic.version = 11 : i64} {
  func.func @_aux_kernel(%arg0: i32, %arg1: memref<2x8x289xf32, #tpu.memory_space<vmem>>, %arg2: memref<289x25xf32, #tpu.memory_space<vmem>>, %arg3: memref<128x8xf32, #tpu.memory_space<vmem>>, %arg4: memref<1x128xf32, #tpu.memory_space<vmem>>, %arg5: memref<1x128xf32, #tpu.memory_space<vmem>>, %arg6: memref<25x128x768xbf16, #tpu.memory_space<vmem>>, %arg7: memref<1x768xf32, #tpu.memory_space<vmem>>, %arg8: memref<1x768xf32, #tpu.memory_space<vmem>>, %arg9: memref<768x10xbf16, #tpu.memory_space<vmem>>, %arg10: memref<1x10xf32, #tpu.memory_space<vmem>>, %arg11: memref<2x10xf32, #tpu.memory_space<vmem>>) attributes {dimension_semantics = [#tpu.dimension_semantics<parallel>], iteration_bounds = array<i64: 1>, scalar_prefetch = 0 : i64, scratch_operands = 0 : i64, tpu.core_type = #tpu.core_type<tc>, window_params = [{transform_indices = @transform_0, window_bounds = array<i64: 2, 8, 289>}, {pipeline_mode = #tpu.pipeline_mode<synchronous>, transform_indices = @transform_1, window_bounds = array<i64: 289, 25>}, {pipeline_mode = #tpu.pipeline_mode<synchronous>, transform_indices = @transform_2, window_bounds = array<i64: 128, 8>}, {pipeline_mode = #tpu.pipeline_mode<synchronous>, transform_indices = @transform_3, window_bounds = array<i64: 1, 128>}, {pipeline_mode = #tpu.pipeline_mode<synchronous>, transform_indices = @transform_4, window_bounds = array<i64: 1, 128>}, {pipeline_mode = #tpu.pipeline_mode<synchronous>, transform_indices = @transform_5, window_bounds = array<i64: 25, 128, 768>}, {pipeline_mode = #tpu.pipeline_mode<synchronous>, transform_indices = @transform_6, window_bounds = array<i64: 1, 768>}, {pipeline_mode = #tpu.pipeline_mode<synchronous>, transform_indices = @transform_7, window_bounds = array<i64: 1, 768>}, {pipeline_mode = #tpu.pipeline_mode<synchronous>, transform_indices = @transform_8, window_bounds = array<i64: 768, 10>}, {pipeline_mode = #tpu.pipeline_mode<synchronous>, transform_indices = @transform_9, window_bounds = array<i64: 1, 10>}, {transform_indices = @transform_10, window_bounds = array<i64: 2, 10>}]} {
    %c0 = arith.constant 0 : index
    %c0_0 = arith.constant 0 : index
    %0 = vector.load %arg2[%c0, %c0_0] : memref<289x25xf32, #tpu.memory_space<vmem>>, vector<289x25xf32>
    %c0_1 = arith.constant 0 : index
    %c0_2 = arith.constant 0 : index
    %1 = vector.load %arg3[%c0_1, %c0_2] : memref<128x8xf32, #tpu.memory_space<vmem>>, vector<128x8xf32>
    %c0_3 = arith.constant 0 : index
    %c0_4 = arith.constant 0 : index
    %2 = vector.load %arg4[%c0_3, %c0_4] : memref<1x128xf32, #tpu.memory_space<vmem>>, vector<1x128xf32>
    %c0_5 = arith.constant 0 : index
    %c0_6 = arith.constant 0 : index
    %3 = vector.load %arg5[%c0_5, %c0_6] : memref<1x128xf32, #tpu.memory_space<vmem>>, vector<1x128xf32>
    %c0_7 = arith.constant 0 : index
    %c0_8 = arith.constant 0 : index
    %c0_9 = arith.constant 0 : index
    %4 = vector.load %arg1[%c0_7, %c0_8, %c0_9] : memref<2x8x289xf32, #tpu.memory_space<vmem>>, vector<1x8x289xf32>
    %5 = vector.shape_cast %4 : vector<1x8x289xf32> to vector<8x289xf32>
    %cst = arith.constant dense<0.000000e+00> : vector<8x25xf32>
    %6 = tpu.matmul %5, %0, %cst {dimension_numbers = #tpu.dot_dimension_numbers<[1], [0], [0], [1], [0, 0, 1, 1], [], []>} : vector<8x289xf32>, vector<289x25xf32>, vector<8x25xf32> -> vector<8x25xf32>
    %cst_10 = arith.constant dense<0.000000e+00> : vector<128x25xf32>
    %7 = tpu.matmul %1, %6, %cst_10 {dimension_numbers = #tpu.dot_dimension_numbers<[1], [0], [0], [1], [0, 0, 1, 1], [], []>} : vector<128x8xf32>, vector<8x25xf32>, vector<128x25xf32> -> vector<128x25xf32>
    %8 = tpu.transpose %7, [1, 0] : vector<128x25xf32> -> vector<25x128xf32>
    %9 = vector.broadcast %2 : vector<1x128xf32> to vector<25x128xf32>
    %10 = arith.mulf %8, %9 : vector<25x128xf32>
    %11 = vector.broadcast %3 : vector<1x128xf32> to vector<25x128xf32>
    %12 = arith.addf %10, %11 : vector<25x128xf32>
    %cst_11 = arith.constant 0.000000e+00 : f32
    %13 = vector.broadcast %cst_11 : f32 to vector<25x128xf32>
    %14 = arith.maximumf %12, %13 : vector<25x128xf32>
    %c1 = arith.constant 1 : index
    %c0_12 = arith.constant 0 : index
    %c0_13 = arith.constant 0 : index
    %15 = vector.load %arg1[%c1, %c0_12, %c0_13] : memref<2x8x289xf32, #tpu.memory_space<vmem>>, vector<1x8x289xf32>
    %16 = vector.shape_cast %15 : vector<1x8x289xf32> to vector<8x289xf32>
    %cst_14 = arith.constant dense<0.000000e+00> : vector<8x25xf32>
    %17 = tpu.matmul %16, %0, %cst_14 {dimension_numbers = #tpu.dot_dimension_numbers<[1], [0], [0], [1], [0, 0, 1, 1], [], []>} : vector<8x289xf32>, vector<289x25xf32>, vector<8x25xf32> -> vector<8x25xf32>
    %cst_15 = arith.constant dense<0.000000e+00> : vector<128x25xf32>
    %18 = tpu.matmul %1, %17, %cst_15 {dimension_numbers = #tpu.dot_dimension_numbers<[1], [0], [0], [1], [0, 0, 1, 1], [], []>} : vector<128x8xf32>, vector<8x25xf32>, vector<128x25xf32> -> vector<128x25xf32>
    %19 = tpu.transpose %18, [1, 0] : vector<128x25xf32> -> vector<25x128xf32>
    %20 = vector.broadcast %2 : vector<1x128xf32> to vector<25x128xf32>
    %21 = arith.mulf %19, %20 : vector<25x128xf32>
    %22 = vector.broadcast %3 : vector<1x128xf32> to vector<25x128xf32>
    %23 = arith.addf %21, %22 : vector<25x128xf32>
    %cst_16 = arith.constant 0.000000e+00 : f32
    %24 = vector.broadcast %cst_16 : f32 to vector<25x128xf32>
    %25 = arith.maximumf %23, %24 : vector<25x128xf32>
    %26 = vector.shape_cast %14 : vector<25x128xf32> to vector<1x25x128xf32>
    %27 = vector.shape_cast %25 : vector<25x128xf32> to vector<1x25x128xf32>
    %28 = tpu.concatenate %26, %27 in 0 : vector<1x25x128xf32>, vector<1x25x128xf32> -> vector<2x25x128xf32>
    %cst_17 = arith.constant 0.000000e+00 : f32
    %29 = vector.broadcast %cst_17 : f32 to vector<2x768xf32>
    %30 = vector.extract_strided_slice %28 {offsets = [0, 0, 0], sizes = [2, 1, 128], strides = [1, 1, 1]} : vector<2x25x128xf32> to vector<2x1x128xf32>
    %31 = vector.shape_cast %30 : vector<2x1x128xf32> to vector<2x128xf32>
    %32 = arith.truncf %31 : vector<2x128xf32> to vector<2x128xbf16>
    %c0_18 = arith.constant 0 : index
    %c0_19 = arith.constant 0 : index
    %c0_20 = arith.constant 0 : index
    %33 = vector.load %arg6[%c0_18, %c0_19, %c0_20] : memref<25x128x768xbf16, #tpu.memory_space<vmem>>, vector<1x128x768xbf16>
    %34 = vector.shape_cast %33 : vector<1x128x768xbf16> to vector<128x768xbf16>
    %cst_21 = arith.constant dense<0.000000e+00> : vector<2x768xf32>
    %35 = tpu.matmul %32, %34, %cst_21 {dimension_numbers = #tpu.dot_dimension_numbers<[1], [0], [0], [1], [0, 0, 1, 1], [], []>} : vector<2x128xbf16>, vector<128x768xbf16>, vector<2x768xf32> -> vector<2x768xf32>
    %36 = arith.addf %29, %35 : vector<2x768xf32>
    %37 = vector.extract_strided_slice %28 {offsets = [0, 1, 0], sizes = [2, 1, 128], strides = [1, 1, 1]} : vector<2x25x128xf32> to vector<2x1x128xf32>
    %38 = vector.shape_cast %37 : vector<2x1x128xf32> to vector<2x128xf32>
    %39 = arith.truncf %38 : vector<2x128xf32> to vector<2x128xbf16>
    %c1_22 = arith.constant 1 : index
    %c0_23 = arith.constant 0 : index
    %c0_24 = arith.constant 0 : index
    %40 = vector.load %arg6[%c1_22, %c0_23, %c0_24] : memref<25x128x768xbf16, #tpu.memory_space<vmem>>, vector<1x128x768xbf16>
    %41 = vector.shape_cast %40 : vector<1x128x768xbf16> to vector<128x768xbf16>
    %cst_25 = arith.constant dense<0.000000e+00> : vector<2x768xf32>
    %42 = tpu.matmul %39, %41, %cst_25 {dimension_numbers = #tpu.dot_dimension_numbers<[1], [0], [0], [1], [0, 0, 1, 1], [], []>} : vector<2x128xbf16>, vector<128x768xbf16>, vector<2x768xf32> -> vector<2x768xf32>
    %43 = arith.addf %36, %42 : vector<2x768xf32>
    %44 = vector.extract_strided_slice %28 {offsets = [0, 2, 0], sizes = [2, 1, 128], strides = [1, 1, 1]} : vector<2x25x128xf32> to vector<2x1x128xf32>
    %45 = vector.shape_cast %44 : vector<2x1x128xf32> to vector<2x128xf32>
    %46 = arith.truncf %45 : vector<2x128xf32> to vector<2x128xbf16>
    %c2 = arith.constant 2 : index
    %c0_26 = arith.constant 0 : index
    %c0_27 = arith.constant 0 : index
    %47 = vector.load %arg6[%c2, %c0_26, %c0_27] : memref<25x128x768xbf16, #tpu.memory_space<vmem>>, vector<1x128x768xbf16>
    %48 = vector.shape_cast %47 : vector<1x128x768xbf16> to vector<128x768xbf16>
    %cst_28 = arith.constant dense<0.000000e+00> : vector<2x768xf32>
    %49 = tpu.matmul %46, %48, %cst_28 {dimension_numbers = #tpu.dot_dimension_numbers<[1], [0], [0], [1], [0, 0, 1, 1], [], []>} : vector<2x128xbf16>, vector<128x768xbf16>, vector<2x768xf32> -> vector<2x768xf32>
    %50 = arith.addf %43, %49 : vector<2x768xf32>
    %51 = vector.extract_strided_slice %28 {offsets = [0, 3, 0], sizes = [2, 1, 128], strides = [1, 1, 1]} : vector<2x25x128xf32> to vector<2x1x128xf32>
    %52 = vector.shape_cast %51 : vector<2x1x128xf32> to vector<2x128xf32>
    %53 = arith.truncf %52 : vector<2x128xf32> to vector<2x128xbf16>
    %c3 = arith.constant 3 : index
    %c0_29 = arith.constant 0 : index
    %c0_30 = arith.constant 0 : index
    %54 = vector.load %arg6[%c3, %c0_29, %c0_30] : memref<25x128x768xbf16, #tpu.memory_space<vmem>>, vector<1x128x768xbf16>
    %55 = vector.shape_cast %54 : vector<1x128x768xbf16> to vector<128x768xbf16>
    %cst_31 = arith.constant dense<0.000000e+00> : vector<2x768xf32>
    %56 = tpu.matmul %53, %55, %cst_31 {dimension_numbers = #tpu.dot_dimension_numbers<[1], [0], [0], [1], [0, 0, 1, 1], [], []>} : vector<2x128xbf16>, vector<128x768xbf16>, vector<2x768xf32> -> vector<2x768xf32>
    %57 = arith.addf %50, %56 : vector<2x768xf32>
    %58 = vector.extract_strided_slice %28 {offsets = [0, 4, 0], sizes = [2, 1, 128], strides = [1, 1, 1]} : vector<2x25x128xf32> to vector<2x1x128xf32>
    %59 = vector.shape_cast %58 : vector<2x1x128xf32> to vector<2x128xf32>
    %60 = arith.truncf %59 : vector<2x128xf32> to vector<2x128xbf16>
    %c4 = arith.constant 4 : index
    %c0_32 = arith.constant 0 : index
    %c0_33 = arith.constant 0 : index
    %61 = vector.load %arg6[%c4, %c0_32, %c0_33] : memref<25x128x768xbf16, #tpu.memory_space<vmem>>, vector<1x128x768xbf16>
    %62 = vector.shape_cast %61 : vector<1x128x768xbf16> to vector<128x768xbf16>
    %cst_34 = arith.constant dense<0.000000e+00> : vector<2x768xf32>
    %63 = tpu.matmul %60, %62, %cst_34 {dimension_numbers = #tpu.dot_dimension_numbers<[1], [0], [0], [1], [0, 0, 1, 1], [], []>} : vector<2x128xbf16>, vector<128x768xbf16>, vector<2x768xf32> -> vector<2x768xf32>
    %64 = arith.addf %57, %63 : vector<2x768xf32>
    %65 = vector.extract_strided_slice %28 {offsets = [0, 5, 0], sizes = [2, 1, 128], strides = [1, 1, 1]} : vector<2x25x128xf32> to vector<2x1x128xf32>
    %66 = vector.shape_cast %65 : vector<2x1x128xf32> to vector<2x128xf32>
    %67 = arith.truncf %66 : vector<2x128xf32> to vector<2x128xbf16>
    %c5 = arith.constant 5 : index
    %c0_35 = arith.constant 0 : index
    %c0_36 = arith.constant 0 : index
    %68 = vector.load %arg6[%c5, %c0_35, %c0_36] : memref<25x128x768xbf16, #tpu.memory_space<vmem>>, vector<1x128x768xbf16>
    %69 = vector.shape_cast %68 : vector<1x128x768xbf16> to vector<128x768xbf16>
    %cst_37 = arith.constant dense<0.000000e+00> : vector<2x768xf32>
    %70 = tpu.matmul %67, %69, %cst_37 {dimension_numbers = #tpu.dot_dimension_numbers<[1], [0], [0], [1], [0, 0, 1, 1], [], []>} : vector<2x128xbf16>, vector<128x768xbf16>, vector<2x768xf32> -> vector<2x768xf32>
    %71 = arith.addf %64, %70 : vector<2x768xf32>
    %72 = vector.extract_strided_slice %28 {offsets = [0, 6, 0], sizes = [2, 1, 128], strides = [1, 1, 1]} : vector<2x25x128xf32> to vector<2x1x128xf32>
    %73 = vector.shape_cast %72 : vector<2x1x128xf32> to vector<2x128xf32>
    %74 = arith.truncf %73 : vector<2x128xf32> to vector<2x128xbf16>
    %c6 = arith.constant 6 : index
    %c0_38 = arith.constant 0 : index
    %c0_39 = arith.constant 0 : index
    %75 = vector.load %arg6[%c6, %c0_38, %c0_39] : memref<25x128x768xbf16, #tpu.memory_space<vmem>>, vector<1x128x768xbf16>
    %76 = vector.shape_cast %75 : vector<1x128x768xbf16> to vector<128x768xbf16>
    %cst_40 = arith.constant dense<0.000000e+00> : vector<2x768xf32>
    %77 = tpu.matmul %74, %76, %cst_40 {dimension_numbers = #tpu.dot_dimension_numbers<[1], [0], [0], [1], [0, 0, 1, 1], [], []>} : vector<2x128xbf16>, vector<128x768xbf16>, vector<2x768xf32> -> vector<2x768xf32>
    %78 = arith.addf %71, %77 : vector<2x768xf32>
    %79 = vector.extract_strided_slice %28 {offsets = [0, 7, 0], sizes = [2, 1, 128], strides = [1, 1, 1]} : vector<2x25x128xf32> to vector<2x1x128xf32>
    %80 = vector.shape_cast %79 : vector<2x1x128xf32> to vector<2x128xf32>
    %81 = arith.truncf %80 : vector<2x128xf32> to vector<2x128xbf16>
    %c7 = arith.constant 7 : index
    %c0_41 = arith.constant 0 : index
    %c0_42 = arith.constant 0 : index
    %82 = vector.load %arg6[%c7, %c0_41, %c0_42] : memref<25x128x768xbf16, #tpu.memory_space<vmem>>, vector<1x128x768xbf16>
    %83 = vector.shape_cast %82 : vector<1x128x768xbf16> to vector<128x768xbf16>
    %cst_43 = arith.constant dense<0.000000e+00> : vector<2x768xf32>
    %84 = tpu.matmul %81, %83, %cst_43 {dimension_numbers = #tpu.dot_dimension_numbers<[1], [0], [0], [1], [0, 0, 1, 1], [], []>} : vector<2x128xbf16>, vector<128x768xbf16>, vector<2x768xf32> -> vector<2x768xf32>
    %85 = arith.addf %78, %84 : vector<2x768xf32>
    %86 = vector.extract_strided_slice %28 {offsets = [0, 8, 0], sizes = [2, 1, 128], strides = [1, 1, 1]} : vector<2x25x128xf32> to vector<2x1x128xf32>
    %87 = vector.shape_cast %86 : vector<2x1x128xf32> to vector<2x128xf32>
    %88 = arith.truncf %87 : vector<2x128xf32> to vector<2x128xbf16>
    %c8 = arith.constant 8 : index
    %c0_44 = arith.constant 0 : index
    %c0_45 = arith.constant 0 : index
    %89 = vector.load %arg6[%c8, %c0_44, %c0_45] : memref<25x128x768xbf16, #tpu.memory_space<vmem>>, vector<1x128x768xbf16>
    %90 = vector.shape_cast %89 : vector<1x128x768xbf16> to vector<128x768xbf16>
    %cst_46 = arith.constant dense<0.000000e+00> : vector<2x768xf32>
    %91 = tpu.matmul %88, %90, %cst_46 {dimension_numbers = #tpu.dot_dimension_numbers<[1], [0], [0], [1], [0, 0, 1, 1], [], []>} : vector<2x128xbf16>, vector<128x768xbf16>, vector<2x768xf32> -> vector<2x768xf32>
    %92 = arith.addf %85, %91 : vector<2x768xf32>
    %93 = vector.extract_strided_slice %28 {offsets = [0, 9, 0], sizes = [2, 1, 128], strides = [1, 1, 1]} : vector<2x25x128xf32> to vector<2x1x128xf32>
    %94 = vector.shape_cast %93 : vector<2x1x128xf32> to vector<2x128xf32>
    %95 = arith.truncf %94 : vector<2x128xf32> to vector<2x128xbf16>
    %c9 = arith.constant 9 : index
    %c0_47 = arith.constant 0 : index
    %c0_48 = arith.constant 0 : index
    %96 = vector.load %arg6[%c9, %c0_47, %c0_48] : memref<25x128x768xbf16, #tpu.memory_space<vmem>>, vector<1x128x768xbf16>
    %97 = vector.shape_cast %96 : vector<1x128x768xbf16> to vector<128x768xbf16>
    %cst_49 = arith.constant dense<0.000000e+00> : vector<2x768xf32>
    %98 = tpu.matmul %95, %97, %cst_49 {dimension_numbers = #tpu.dot_dimension_numbers<[1], [0], [0], [1], [0, 0, 1, 1], [], []>} : vector<2x128xbf16>, vector<128x768xbf16>, vector<2x768xf32> -> vector<2x768xf32>
    %99 = arith.addf %92, %98 : vector<2x768xf32>
    %100 = vector.extract_strided_slice %28 {offsets = [0, 10, 0], sizes = [2, 1, 128], strides = [1, 1, 1]} : vector<2x25x128xf32> to vector<2x1x128xf32>
    %101 = vector.shape_cast %100 : vector<2x1x128xf32> to vector<2x128xf32>
    %102 = arith.truncf %101 : vector<2x128xf32> to vector<2x128xbf16>
    %c10 = arith.constant 10 : index
    %c0_50 = arith.constant 0 : index
    %c0_51 = arith.constant 0 : index
    %103 = vector.load %arg6[%c10, %c0_50, %c0_51] : memref<25x128x768xbf16, #tpu.memory_space<vmem>>, vector<1x128x768xbf16>
    %104 = vector.shape_cast %103 : vector<1x128x768xbf16> to vector<128x768xbf16>
    %cst_52 = arith.constant dense<0.000000e+00> : vector<2x768xf32>
    %105 = tpu.matmul %102, %104, %cst_52 {dimension_numbers = #tpu.dot_dimension_numbers<[1], [0], [0], [1], [0, 0, 1, 1], [], []>} : vector<2x128xbf16>, vector<128x768xbf16>, vector<2x768xf32> -> vector<2x768xf32>
    %106 = arith.addf %99, %105 : vector<2x768xf32>
    %107 = vector.extract_strided_slice %28 {offsets = [0, 11, 0], sizes = [2, 1, 128], strides = [1, 1, 1]} : vector<2x25x128xf32> to vector<2x1x128xf32>
    %108 = vector.shape_cast %107 : vector<2x1x128xf32> to vector<2x128xf32>
    %109 = arith.truncf %108 : vector<2x128xf32> to vector<2x128xbf16>
    %c11 = arith.constant 11 : index
    %c0_53 = arith.constant 0 : index
    %c0_54 = arith.constant 0 : index
    %110 = vector.load %arg6[%c11, %c0_53, %c0_54] : memref<25x128x768xbf16, #tpu.memory_space<vmem>>, vector<1x128x768xbf16>
    %111 = vector.shape_cast %110 : vector<1x128x768xbf16> to vector<128x768xbf16>
    %cst_55 = arith.constant dense<0.000000e+00> : vector<2x768xf32>
    %112 = tpu.matmul %109, %111, %cst_55 {dimension_numbers = #tpu.dot_dimension_numbers<[1], [0], [0], [1], [0, 0, 1, 1], [], []>} : vector<2x128xbf16>, vector<128x768xbf16>, vector<2x768xf32> -> vector<2x768xf32>
    %113 = arith.addf %106, %112 : vector<2x768xf32>
    %114 = vector.extract_strided_slice %28 {offsets = [0, 12, 0], sizes = [2, 1, 128], strides = [1, 1, 1]} : vector<2x25x128xf32> to vector<2x1x128xf32>
    %115 = vector.shape_cast %114 : vector<2x1x128xf32> to vector<2x128xf32>
    %116 = arith.truncf %115 : vector<2x128xf32> to vector<2x128xbf16>
    %c12 = arith.constant 12 : index
    %c0_56 = arith.constant 0 : index
    %c0_57 = arith.constant 0 : index
    %117 = vector.load %arg6[%c12, %c0_56, %c0_57] : memref<25x128x768xbf16, #tpu.memory_space<vmem>>, vector<1x128x768xbf16>
    %118 = vector.shape_cast %117 : vector<1x128x768xbf16> to vector<128x768xbf16>
    %cst_58 = arith.constant dense<0.000000e+00> : vector<2x768xf32>
    %119 = tpu.matmul %116, %118, %cst_58 {dimension_numbers = #tpu.dot_dimension_numbers<[1], [0], [0], [1], [0, 0, 1, 1], [], []>} : vector<2x128xbf16>, vector<128x768xbf16>, vector<2x768xf32> -> vector<2x768xf32>
    %120 = arith.addf %113, %119 : vector<2x768xf32>
    %121 = vector.extract_strided_slice %28 {offsets = [0, 13, 0], sizes = [2, 1, 128], strides = [1, 1, 1]} : vector<2x25x128xf32> to vector<2x1x128xf32>
    %122 = vector.shape_cast %121 : vector<2x1x128xf32> to vector<2x128xf32>
    %123 = arith.truncf %122 : vector<2x128xf32> to vector<2x128xbf16>
    %c13 = arith.constant 13 : index
    %c0_59 = arith.constant 0 : index
    %c0_60 = arith.constant 0 : index
    %124 = vector.load %arg6[%c13, %c0_59, %c0_60] : memref<25x128x768xbf16, #tpu.memory_space<vmem>>, vector<1x128x768xbf16>
    %125 = vector.shape_cast %124 : vector<1x128x768xbf16> to vector<128x768xbf16>
    %cst_61 = arith.constant dense<0.000000e+00> : vector<2x768xf32>
    %126 = tpu.matmul %123, %125, %cst_61 {dimension_numbers = #tpu.dot_dimension_numbers<[1], [0], [0], [1], [0, 0, 1, 1], [], []>} : vector<2x128xbf16>, vector<128x768xbf16>, vector<2x768xf32> -> vector<2x768xf32>
    %127 = arith.addf %120, %126 : vector<2x768xf32>
    %128 = vector.extract_strided_slice %28 {offsets = [0, 14, 0], sizes = [2, 1, 128], strides = [1, 1, 1]} : vector<2x25x128xf32> to vector<2x1x128xf32>
    %129 = vector.shape_cast %128 : vector<2x1x128xf32> to vector<2x128xf32>
    %130 = arith.truncf %129 : vector<2x128xf32> to vector<2x128xbf16>
    %c14 = arith.constant 14 : index
    %c0_62 = arith.constant 0 : index
    %c0_63 = arith.constant 0 : index
    %131 = vector.load %arg6[%c14, %c0_62, %c0_63] : memref<25x128x768xbf16, #tpu.memory_space<vmem>>, vector<1x128x768xbf16>
    %132 = vector.shape_cast %131 : vector<1x128x768xbf16> to vector<128x768xbf16>
    %cst_64 = arith.constant dense<0.000000e+00> : vector<2x768xf32>
    %133 = tpu.matmul %130, %132, %cst_64 {dimension_numbers = #tpu.dot_dimension_numbers<[1], [0], [0], [1], [0, 0, 1, 1], [], []>} : vector<2x128xbf16>, vector<128x768xbf16>, vector<2x768xf32> -> vector<2x768xf32>
    %134 = arith.addf %127, %133 : vector<2x768xf32>
    %135 = vector.extract_strided_slice %28 {offsets = [0, 15, 0], sizes = [2, 1, 128], strides = [1, 1, 1]} : vector<2x25x128xf32> to vector<2x1x128xf32>
    %136 = vector.shape_cast %135 : vector<2x1x128xf32> to vector<2x128xf32>
    %137 = arith.truncf %136 : vector<2x128xf32> to vector<2x128xbf16>
    %c15 = arith.constant 15 : index
    %c0_65 = arith.constant 0 : index
    %c0_66 = arith.constant 0 : index
    %138 = vector.load %arg6[%c15, %c0_65, %c0_66] : memref<25x128x768xbf16, #tpu.memory_space<vmem>>, vector<1x128x768xbf16>
    %139 = vector.shape_cast %138 : vector<1x128x768xbf16> to vector<128x768xbf16>
    %cst_67 = arith.constant dense<0.000000e+00> : vector<2x768xf32>
    %140 = tpu.matmul %137, %139, %cst_67 {dimension_numbers = #tpu.dot_dimension_numbers<[1], [0], [0], [1], [0, 0, 1, 1], [], []>} : vector<2x128xbf16>, vector<128x768xbf16>, vector<2x768xf32> -> vector<2x768xf32>
    %141 = arith.addf %134, %140 : vector<2x768xf32>
    %142 = vector.extract_strided_slice %28 {offsets = [0, 16, 0], sizes = [2, 1, 128], strides = [1, 1, 1]} : vector<2x25x128xf32> to vector<2x1x128xf32>
    %143 = vector.shape_cast %142 : vector<2x1x128xf32> to vector<2x128xf32>
    %144 = arith.truncf %143 : vector<2x128xf32> to vector<2x128xbf16>
    %c16 = arith.constant 16 : index
    %c0_68 = arith.constant 0 : index
    %c0_69 = arith.constant 0 : index
    %145 = vector.load %arg6[%c16, %c0_68, %c0_69] : memref<25x128x768xbf16, #tpu.memory_space<vmem>>, vector<1x128x768xbf16>
    %146 = vector.shape_cast %145 : vector<1x128x768xbf16> to vector<128x768xbf16>
    %cst_70 = arith.constant dense<0.000000e+00> : vector<2x768xf32>
    %147 = tpu.matmul %144, %146, %cst_70 {dimension_numbers = #tpu.dot_dimension_numbers<[1], [0], [0], [1], [0, 0, 1, 1], [], []>} : vector<2x128xbf16>, vector<128x768xbf16>, vector<2x768xf32> -> vector<2x768xf32>
    %148 = arith.addf %141, %147 : vector<2x768xf32>
    %149 = vector.extract_strided_slice %28 {offsets = [0, 17, 0], sizes = [2, 1, 128], strides = [1, 1, 1]} : vector<2x25x128xf32> to vector<2x1x128xf32>
    %150 = vector.shape_cast %149 : vector<2x1x128xf32> to vector<2x128xf32>
    %151 = arith.truncf %150 : vector<2x128xf32> to vector<2x128xbf16>
    %c17 = arith.constant 17 : index
    %c0_71 = arith.constant 0 : index
    %c0_72 = arith.constant 0 : index
    %152 = vector.load %arg6[%c17, %c0_71, %c0_72] : memref<25x128x768xbf16, #tpu.memory_space<vmem>>, vector<1x128x768xbf16>
    %153 = vector.shape_cast %152 : vector<1x128x768xbf16> to vector<128x768xbf16>
    %cst_73 = arith.constant dense<0.000000e+00> : vector<2x768xf32>
    %154 = tpu.matmul %151, %153, %cst_73 {dimension_numbers = #tpu.dot_dimension_numbers<[1], [0], [0], [1], [0, 0, 1, 1], [], []>} : vector<2x128xbf16>, vector<128x768xbf16>, vector<2x768xf32> -> vector<2x768xf32>
    %155 = arith.addf %148, %154 : vector<2x768xf32>
    %156 = vector.extract_strided_slice %28 {offsets = [0, 18, 0], sizes = [2, 1, 128], strides = [1, 1, 1]} : vector<2x25x128xf32> to vector<2x1x128xf32>
    %157 = vector.shape_cast %156 : vector<2x1x128xf32> to vector<2x128xf32>
    %158 = arith.truncf %157 : vector<2x128xf32> to vector<2x128xbf16>
    %c18 = arith.constant 18 : index
    %c0_74 = arith.constant 0 : index
    %c0_75 = arith.constant 0 : index
    %159 = vector.load %arg6[%c18, %c0_74, %c0_75] : memref<25x128x768xbf16, #tpu.memory_space<vmem>>, vector<1x128x768xbf16>
    %160 = vector.shape_cast %159 : vector<1x128x768xbf16> to vector<128x768xbf16>
    %cst_76 = arith.constant dense<0.000000e+00> : vector<2x768xf32>
    %161 = tpu.matmul %158, %160, %cst_76 {dimension_numbers = #tpu.dot_dimension_numbers<[1], [0], [0], [1], [0, 0, 1, 1], [], []>} : vector<2x128xbf16>, vector<128x768xbf16>, vector<2x768xf32> -> vector<2x768xf32>
    %162 = arith.addf %155, %161 : vector<2x768xf32>
    %163 = vector.extract_strided_slice %28 {offsets = [0, 19, 0], sizes = [2, 1, 128], strides = [1, 1, 1]} : vector<2x25x128xf32> to vector<2x1x128xf32>
    %164 = vector.shape_cast %163 : vector<2x1x128xf32> to vector<2x128xf32>
    %165 = arith.truncf %164 : vector<2x128xf32> to vector<2x128xbf16>
    %c19 = arith.constant 19 : index
    %c0_77 = arith.constant 0 : index
    %c0_78 = arith.constant 0 : index
    %166 = vector.load %arg6[%c19, %c0_77, %c0_78] : memref<25x128x768xbf16, #tpu.memory_space<vmem>>, vector<1x128x768xbf16>
    %167 = vector.shape_cast %166 : vector<1x128x768xbf16> to vector<128x768xbf16>
    %cst_79 = arith.constant dense<0.000000e+00> : vector<2x768xf32>
    %168 = tpu.matmul %165, %167, %cst_79 {dimension_numbers = #tpu.dot_dimension_numbers<[1], [0], [0], [1], [0, 0, 1, 1], [], []>} : vector<2x128xbf16>, vector<128x768xbf16>, vector<2x768xf32> -> vector<2x768xf32>
    %169 = arith.addf %162, %168 : vector<2x768xf32>
    %170 = vector.extract_strided_slice %28 {offsets = [0, 20, 0], sizes = [2, 1, 128], strides = [1, 1, 1]} : vector<2x25x128xf32> to vector<2x1x128xf32>
    %171 = vector.shape_cast %170 : vector<2x1x128xf32> to vector<2x128xf32>
    %172 = arith.truncf %171 : vector<2x128xf32> to vector<2x128xbf16>
    %c20 = arith.constant 20 : index
    %c0_80 = arith.constant 0 : index
    %c0_81 = arith.constant 0 : index
    %173 = vector.load %arg6[%c20, %c0_80, %c0_81] : memref<25x128x768xbf16, #tpu.memory_space<vmem>>, vector<1x128x768xbf16>
    %174 = vector.shape_cast %173 : vector<1x128x768xbf16> to vector<128x768xbf16>
    %cst_82 = arith.constant dense<0.000000e+00> : vector<2x768xf32>
    %175 = tpu.matmul %172, %174, %cst_82 {dimension_numbers = #tpu.dot_dimension_numbers<[1], [0], [0], [1], [0, 0, 1, 1], [], []>} : vector<2x128xbf16>, vector<128x768xbf16>, vector<2x768xf32> -> vector<2x768xf32>
    %176 = arith.addf %169, %175 : vector<2x768xf32>
    %177 = vector.extract_strided_slice %28 {offsets = [0, 21, 0], sizes = [2, 1, 128], strides = [1, 1, 1]} : vector<2x25x128xf32> to vector<2x1x128xf32>
    %178 = vector.shape_cast %177 : vector<2x1x128xf32> to vector<2x128xf32>
    %179 = arith.truncf %178 : vector<2x128xf32> to vector<2x128xbf16>
    %c21 = arith.constant 21 : index
    %c0_83 = arith.constant 0 : index
    %c0_84 = arith.constant 0 : index
    %180 = vector.load %arg6[%c21, %c0_83, %c0_84] : memref<25x128x768xbf16, #tpu.memory_space<vmem>>, vector<1x128x768xbf16>
    %181 = vector.shape_cast %180 : vector<1x128x768xbf16> to vector<128x768xbf16>
    %cst_85 = arith.constant dense<0.000000e+00> : vector<2x768xf32>
    %182 = tpu.matmul %179, %181, %cst_85 {dimension_numbers = #tpu.dot_dimension_numbers<[1], [0], [0], [1], [0, 0, 1, 1], [], []>} : vector<2x128xbf16>, vector<128x768xbf16>, vector<2x768xf32> -> vector<2x768xf32>
    %183 = arith.addf %176, %182 : vector<2x768xf32>
    %184 = vector.extract_strided_slice %28 {offsets = [0, 22, 0], sizes = [2, 1, 128], strides = [1, 1, 1]} : vector<2x25x128xf32> to vector<2x1x128xf32>
    %185 = vector.shape_cast %184 : vector<2x1x128xf32> to vector<2x128xf32>
    %186 = arith.truncf %185 : vector<2x128xf32> to vector<2x128xbf16>
    %c22 = arith.constant 22 : index
    %c0_86 = arith.constant 0 : index
    %c0_87 = arith.constant 0 : index
    %187 = vector.load %arg6[%c22, %c0_86, %c0_87] : memref<25x128x768xbf16, #tpu.memory_space<vmem>>, vector<1x128x768xbf16>
    %188 = vector.shape_cast %187 : vector<1x128x768xbf16> to vector<128x768xbf16>
    %cst_88 = arith.constant dense<0.000000e+00> : vector<2x768xf32>
    %189 = tpu.matmul %186, %188, %cst_88 {dimension_numbers = #tpu.dot_dimension_numbers<[1], [0], [0], [1], [0, 0, 1, 1], [], []>} : vector<2x128xbf16>, vector<128x768xbf16>, vector<2x768xf32> -> vector<2x768xf32>
    %190 = arith.addf %183, %189 : vector<2x768xf32>
    %191 = vector.extract_strided_slice %28 {offsets = [0, 23, 0], sizes = [2, 1, 128], strides = [1, 1, 1]} : vector<2x25x128xf32> to vector<2x1x128xf32>
    %192 = vector.shape_cast %191 : vector<2x1x128xf32> to vector<2x128xf32>
    %193 = arith.truncf %192 : vector<2x128xf32> to vector<2x128xbf16>
    %c23 = arith.constant 23 : index
    %c0_89 = arith.constant 0 : index
    %c0_90 = arith.constant 0 : index
    %194 = vector.load %arg6[%c23, %c0_89, %c0_90] : memref<25x128x768xbf16, #tpu.memory_space<vmem>>, vector<1x128x768xbf16>
    %195 = vector.shape_cast %194 : vector<1x128x768xbf16> to vector<128x768xbf16>
    %cst_91 = arith.constant dense<0.000000e+00> : vector<2x768xf32>
    %196 = tpu.matmul %193, %195, %cst_91 {dimension_numbers = #tpu.dot_dimension_numbers<[1], [0], [0], [1], [0, 0, 1, 1], [], []>} : vector<2x128xbf16>, vector<128x768xbf16>, vector<2x768xf32> -> vector<2x768xf32>
    %197 = arith.addf %190, %196 : vector<2x768xf32>
    %198 = vector.extract_strided_slice %28 {offsets = [0, 24, 0], sizes = [2, 1, 128], strides = [1, 1, 1]} : vector<2x25x128xf32> to vector<2x1x128xf32>
    %199 = vector.shape_cast %198 : vector<2x1x128xf32> to vector<2x128xf32>
    %200 = arith.truncf %199 : vector<2x128xf32> to vector<2x128xbf16>
    %c24 = arith.constant 24 : index
    %c0_92 = arith.constant 0 : index
    %c0_93 = arith.constant 0 : index
    %201 = vector.load %arg6[%c24, %c0_92, %c0_93] : memref<25x128x768xbf16, #tpu.memory_space<vmem>>, vector<1x128x768xbf16>
    %202 = vector.shape_cast %201 : vector<1x128x768xbf16> to vector<128x768xbf16>
    %cst_94 = arith.constant dense<0.000000e+00> : vector<2x768xf32>
    %203 = tpu.matmul %200, %202, %cst_94 {dimension_numbers = #tpu.dot_dimension_numbers<[1], [0], [0], [1], [0, 0, 1, 1], [], []>} : vector<2x128xbf16>, vector<128x768xbf16>, vector<2x768xf32> -> vector<2x768xf32>
    %204 = arith.addf %197, %203 : vector<2x768xf32>
    %c0_95 = arith.constant 0 : index
    %c0_96 = arith.constant 0 : index
    %205 = vector.load %arg7[%c0_95, %c0_96] : memref<1x768xf32, #tpu.memory_space<vmem>>, vector<1x768xf32>
    %206 = vector.broadcast %205 : vector<1x768xf32> to vector<2x768xf32>
    %207 = arith.mulf %204, %206 : vector<2x768xf32>
    %c0_97 = arith.constant 0 : index
    %c0_98 = arith.constant 0 : index
    %208 = vector.load %arg8[%c0_97, %c0_98] : memref<1x768xf32, #tpu.memory_space<vmem>>, vector<1x768xf32>
    %209 = vector.broadcast %208 : vector<1x768xf32> to vector<2x768xf32>
    %210 = arith.addf %207, %209 : vector<2x768xf32>
    %cst_99 = arith.constant 0.000000e+00 : f32
    %211 = vector.broadcast %cst_99 : f32 to vector<2x768xf32>
    %212 = arith.maximumf %210, %211 : vector<2x768xf32>
    %213 = arith.truncf %212 : vector<2x768xf32> to vector<2x768xbf16>
    %c0_100 = arith.constant 0 : index
    %c0_101 = arith.constant 0 : index
    %214 = vector.load %arg9[%c0_100, %c0_101] : memref<768x10xbf16, #tpu.memory_space<vmem>>, vector<768x10xbf16>
    %cst_102 = arith.constant dense<0.000000e+00> : vector<2x10xf32>
    %215 = tpu.matmul %213, %214, %cst_102 {dimension_numbers = #tpu.dot_dimension_numbers<[1], [0], [0], [1], [0, 0, 1, 1], [], []>} : vector<2x768xbf16>, vector<768x10xbf16>, vector<2x10xf32> -> vector<2x10xf32>
    %c0_103 = arith.constant 0 : index
    %c0_104 = arith.constant 0 : index
    %216 = vector.load %arg10[%c0_103, %c0_104] : memref<1x10xf32, #tpu.memory_space<vmem>>, vector<1x10xf32>
    %217 = vector.broadcast %216 : vector<1x10xf32> to vector<2x10xf32>
    %218 = arith.addf %215, %217 : vector<2x10xf32>
    %c0_105 = arith.constant 0 : index
    %c0_106 = arith.constant 0 : index
    %219 = vector.load %arg11[%c0_105, %c0_106] : memref<2x10xf32, #tpu.memory_space<vmem>>, vector<2x10xf32>
    tpu.vector_store %arg11[%c0_105, %c0_106], %218 {strides = array<i32>} : memref<2x10xf32, #tpu.memory_space<vmem>>, vector<2x10xf32>,
    return
  }
  func.func @transform_0(%arg0: i32) -> (i32, i32, i32) {
    %c0_i32 = arith.constant 0 : i32
    %c0_i32_0 = arith.constant 0 : i32
    %c0_i32_1 = arith.constant 0 : i32
    return %arg0, %c0_i32, %c0_i32_0 : i32, i32, i32
  }
  func.func @transform_1(%arg0: i32) -> (i32, i32) {
    %c0_i32 = arith.constant 0 : i32
    %c0_i32_0 = arith.constant 0 : i32
    %c0_i32_1 = arith.constant 0 : i32
    return %c0_i32, %c0_i32_0 : i32, i32
  }
  func.func @transform_2(%arg0: i32) -> (i32, i32) {
    %c0_i32 = arith.constant 0 : i32
    %c0_i32_0 = arith.constant 0 : i32
    %c0_i32_1 = arith.constant 0 : i32
    return %c0_i32, %c0_i32_0 : i32, i32
  }
  func.func @transform_3(%arg0: i32) -> (i32, i32) {
    %c0_i32 = arith.constant 0 : i32
    %c0_i32_0 = arith.constant 0 : i32
    %c0_i32_1 = arith.constant 0 : i32
    return %c0_i32, %c0_i32_0 : i32, i32
  }
  func.func @transform_4(%arg0: i32) -> (i32, i32) {
    %c0_i32 = arith.constant 0 : i32
    %c0_i32_0 = arith.constant 0 : i32
    %c0_i32_1 = arith.constant 0 : i32
    return %c0_i32, %c0_i32_0 : i32, i32
  }
  func.func @transform_5(%arg0: i32) -> (i32, i32, i32) {
    %c0_i32 = arith.constant 0 : i32
    %c0_i32_0 = arith.constant 0 : i32
    %c0_i32_1 = arith.constant 0 : i32
    %c0_i32_2 = arith.constant 0 : i32
    return %c0_i32, %c0_i32_0, %c0_i32_1 : i32, i32, i32
  }
  func.func @transform_6(%arg0: i32) -> (i32, i32) {
    %c0_i32 = arith.constant 0 : i32
    %c0_i32_0 = arith.constant 0 : i32
    %c0_i32_1 = arith.constant 0 : i32
    return %c0_i32, %c0_i32_0 : i32, i32
  }
  func.func @transform_7(%arg0: i32) -> (i32, i32) {
    %c0_i32 = arith.constant 0 : i32
    %c0_i32_0 = arith.constant 0 : i32
    %c0_i32_1 = arith.constant 0 : i32
    return %c0_i32, %c0_i32_0 : i32, i32
  }
  func.func @transform_8(%arg0: i32) -> (i32, i32) {
    %c0_i32 = arith.constant 0 : i32
    %c0_i32_0 = arith.constant 0 : i32
    %c0_i32_1 = arith.constant 0 : i32
    return %c0_i32, %c0_i32_0 : i32, i32
  }
  func.func @transform_9(%arg0: i32) -> (i32, i32) {
    %c0_i32 = arith.constant 0 : i32
    %c0_i32_0 = arith.constant 0 : i32
    %c0_i32_1 = arith.constant 0 : i32
    return %c0_i32, %c0_i32_0 : i32, i32
  }
  func.func @transform_10(%arg0: i32) -> (i32, i32) {
    %c0_i32 = arith.constant 0 : i32
    %c0_i32_0 = arith.constant 0 : i32
    return %arg0, %c0_i32 : i32, i32
  }
}

</mosaic_0001>

<llo_original>
// kernel: inception_aux_forward.1
$region0: #{inception_aux_forward.1}
  #allocation0 [shape = 'u32[]', space=smem, size = 0x4, offset = 0x4, fixed_abs, tag = 'smem constant byte address 0x4 - core index']
  #allocation1 [shape = 'u32[144,128]{1,0:T(1,128)}', space=vmem, size = 0x12000, scoped, tag = 'internal scratch']
  %s0 = inlined_call_operand.vmem [shape: f32[2,8,289], index: 0, kind: input, shape index: {}]
  %s1 = inlined_call_operand.hbm [shape: f32[289,25], index: 1, kind: input, shape index: {}]
  %s2 = inlined_call_operand.vmem [shape: f32[128,8], index: 2, kind: input, shape index: {}]
  %s3 = inlined_call_operand.hbm [shape: f32[1,128], index: 3, kind: input, shape index: {}]
  %s4 = inlined_call_operand.hbm [shape: f32[1,128], index: 4, kind: input, shape index: {}]
  %s5 = inlined_call_operand.hbm [shape: bf16[25,128,768], index: 5, kind: input, shape index: {}]
  %s6 = inlined_call_operand.hbm [shape: f32[1,768], index: 6, kind: input, shape index: {}]
  %s7 = inlined_call_operand.hbm [shape: f32[1,768], index: 7, kind: input, shape index: {}]
  %s8 = inlined_call_operand.vmem [shape: bf16[768,10], index: 8, kind: input, shape index: {}]
  %s9 = inlined_call_operand.hbm [shape: f32[1,10], index: 9, kind: input, shape index: {}]
  %s10 = inlined_call_operand.hbm [shape: f32[2,10], index: 10, kind: output, shape index: {}]
  %s11 = sld [smem:[#allocation0]]
  $region78: #{inception_aux_forward.1} parent=0
    _
  %s13 = ssub.s32 1, %s11
  %s14 = scalar_select 0, %s13, %s11
  $region1: #{inception_aux_forward.1} parent=0
    #allocation2 [shape = 'u8[151552]{0}', space=vmem, size = 0x25000, scoped, tag = 'input window, operand 1, single buffered']
    #allocation3 [shape = 's32[1]{0}', space=sflag, size = 0x4, scoped, tag = 'scoped memory for inception_aux_forward.1']
    #allocation4 [shape = 's32[1]{0}', space=sflag, size = 0x4, scoped, tag = 'scoped memory for inception_aux_forward.1']
    #allocation5 [shape = 'u8[512]{0}', space=vmem, size = 0x400, scoped, tag = 'input window, operand 3, single buffered']
    #allocation6 [shape = 's32[1]{0}', space=sflag, size = 0x4, scoped, tag = 'scoped memory for inception_aux_forward.1']
    #allocation7 [shape = 'u8[512]{0}', space=vmem, size = 0x400, scoped, tag = 'input window, operand 4, single buffered']
    #allocation8 [shape = 'u8[4915200]{0}', space=vmem, size = 0x4b0000, scoped, tag = 'input window, operand 5, single buffered']
    #allocation9 [shape = 's32[1]{0}', space=sflag, size = 0x4, scoped, tag = 'scoped memory for inception_aux_forward.1']
    #allocation10 [shape = 'u8[3072]{0}', space=vmem, size = 0xc00, scoped, tag = 'input window, operand 6, single buffered']
    #allocation11 [shape = 'u8[3072]{0}', space=vmem, size = 0xc00, scoped, tag = 'input window, operand 7, single buffered']
    #allocation12 [shape = 's32[1]{0}', space=sflag, size = 0x4, scoped, tag = 'scoped memory for inception_aux_forward.1']
    #allocation13 [shape = 'u8[512]{0}', space=vmem, size = 0x400, scoped, tag = 'input window, operand 9, single buffered']
    #allocation14 [shape = 'u8[1024]{0}', space=vmem, size = 0x400, scoped, tag = 'output window, operand 0, single buffered']
    %15 = vsyncpa [#allocation3], 0
    %16 = vsyncpa [#allocation6], 0
    %17 = vsyncpa [#allocation9], 0
    %18 = vsyncpa [#allocation12], 0
    %19 = vsyncpa [#allocation4], 0
    // Predicated region
    $region2: #{inception_aux_forward.1} parent=1 // pred_check
      _
    $region3: #{inception_aux_forward.1} parent=1 // pred_check_branch
      %21 = sbr.rel (0) target = $region5
    $region4: #{inception_aux_forward.1} parent=1 // pred_region
      _
    $region5: #{inception_aux_forward.1} parent=1 // pred_fallthru
      _
    // Predicated region
    $region6: #{inception_aux_forward.1} parent=1 // pred_check
      _
    $region7: #{inception_aux_forward.1} parent=1 // pred_check_branch
      %23 = sbr.rel (0) target = $region9
    $region8: #{inception_aux_forward.1} parent=1 // pred_region
      %s25 = ssub.s32 4736, 4736
      %26 = vsyncadd [#allocation3], %s25
      %s27 = sshll.u32 [#allocation2], 4
      %s28 = int_to_ptr.vmem [resolvable:$true] %s27
      %33 = dma.hbm_to_vmem [thread:$0]  %s1, 4736, %s28, [#allocation3], 128, 128, 8
    $region9: #{inception_aux_forward.1} parent=1 // pred_fallthru
      _
    // Predicated region
    $region10: #{inception_aux_forward.1} parent=1 // pred_check
      _
    $region11: #{inception_aux_forward.1} parent=1 // pred_check_branch
      %35 = sbr.rel (0) target = $region13
    $region12: #{inception_aux_forward.1} parent=1 // pred_region
      _
    $region13: #{inception_aux_forward.1} parent=1 // pred_fallthru
      _
    // Predicated region
    $region14: #{inception_aux_forward.1} parent=1 // pred_check
      _
    $region15: #{inception_aux_forward.1} parent=1 // pred_check_branch
      %37 = sbr.rel (0) target = $region17
    $region16: #{inception_aux_forward.1} parent=1 // pred_region
      %s39 = ssub.s32 16, 16
      %40 = vsyncadd [#allocation6], %s39
      %s42 = sshll.u32 [#allocation5], 4
      %s43 = int_to_ptr.vmem [resolvable:$true] %s42
      %45 = dma.hbm_to_vmem [thread:$0]  %s3, 16, %s43, [#allocation6]
    $region17: #{inception_aux_forward.1} parent=1 // pred_fallthru
      _
    // Predicated region
    $region18: #{inception_aux_forward.1} parent=1 // pred_check
      _
    $region19: #{inception_aux_forward.1} parent=1 // pred_check_branch
      %47 = sbr.rel (0) target = $region21
    $region20: #{inception_aux_forward.1} parent=1 // pred_region
      %s49 = ssub.s32 16, 16
      %50 = vsyncadd [#allocation6], %s49
      %s52 = sshll.u32 [#allocation7], 4
      %s53 = int_to_ptr.vmem [resolvable:$true] %s52
      %55 = dma.hbm_to_vmem [thread:$0]  %s4, 16, %s53, [#allocation6]
    $region21: #{inception_aux_forward.1} parent=1 // pred_fallthru
      _
    // Predicated region
    $region22: #{inception_aux_forward.1} parent=1 // pred_check
      _
    $region23: #{inception_aux_forward.1} parent=1 // pred_check_branch
      %57 = sbr.rel (0) target = $region25
    $region24: #{inception_aux_forward.1} parent=1 // pred_region
      %s59 = ssub.s32 153600, 153600
      %60 = vsyncadd [#allocation9], %s59
      %s61 = sshll.u32 [#allocation8], 4
      %s62 = int_to_ptr.vmem [resolvable:$true] %s61
      %67 = dma.hbm_to_vmem [thread:$0]  %s5, 153600, %s62, [#allocation9], 384, 384, 24
    $region25: #{inception_aux_forward.1} parent=1 // pred_fallthru
      _
    // Predicated region
    $region26: #{inception_aux_forward.1} parent=1 // pred_check
      _
    $region27: #{inception_aux_forward.1} parent=1 // pred_check_branch
      %69 = sbr.rel (0) target = $region29
    $region28: #{inception_aux_forward.1} parent=1 // pred_region
      %s71 = ssub.s32 96, 96
      %72 = vsyncadd [#allocation9], %s71
      %s74 = sshll.u32 [#allocation10], 4
      %s75 = int_to_ptr.vmem [resolvable:$true] %s74
      %77 = dma.hbm_to_vmem [thread:$0]  %s6, 96, %s75, [#allocation9]
    $region29: #{inception_aux_forward.1} parent=1 // pred_fallthru
      _
    // Predicated region
    $region30: #{inception_aux_forward.1} parent=1 // pred_check
      _
    $region31: #{inception_aux_forward.1} parent=1 // pred_check_branch
      %79 = sbr.rel (0) target = $region33
    $region32: #{inception_aux_forward.1} parent=1 // pred_region
      %s81 = ssub.s32 96, 96
      %82 = vsyncadd [#allocation12], %s81
      %s84 = sshll.u32 [#allocation11], 4
      %s85 = int_to_ptr.vmem [resolvable:$true] %s84
      %87 = dma.hbm_to_vmem [thread:$0]  %s7, 96, %s85, [#allocation12]
    $region33: #{inception_aux_forward.1} parent=1 // pred_fallthru
      _
    // Predicated region
    $region34: #{inception_aux_forward.1} parent=1 // pred_check
      _
    $region35: #{inception_aux_forward.1} parent=1 // pred_check_branch
      %89 = sbr.rel (0) target = $region37
    $region36: #{inception_aux_forward.1} parent=1 // pred_region
      _
    $region37: #{inception_aux_forward.1} parent=1 // pred_fallthru
      _
    // Predicated region
    $region38: #{inception_aux_forward.1} parent=1 // pred_check
      _
    $region39: #{inception_aux_forward.1} parent=1 // pred_check_branch
      %91 = sbr.rel (0) target = $region41
    $region40: #{inception_aux_forward.1} parent=1 // pred_region
      %s93 = ssub.s32 16, 16
      %94 = vsyncadd [#allocation12], %s93
      %s96 = sshll.u32 [#allocation13], 4
      %s97 = int_to_ptr.vmem [resolvable:$true] %s96
      %99 = dma.hbm_to_vmem [thread:$0]  %s9, 16, %s97, [#allocation12]
    $region41: #{inception_aux_forward.1} parent=1 // pred_fallthru
      _
    // Predicated region
    $region42: #{inception_aux_forward.1} parent=1 // pred_check
      _
    $region43: #{inception_aux_forward.1} parent=1 // pred_check_branch
      %101 = sbr.rel (0) target = $region45
    $region44: #{inception_aux_forward.1} parent=1 // pred_region
      %102 = dma.done [#allocation3], 4736
    $region45: #{inception_aux_forward.1} parent=1 // pred_fallthru
      _
    // Predicated region
    $region46: #{inception_aux_forward.1} parent=1 // pred_check
      _
    $region47: #{inception_aux_forward.1} parent=1 // pred_check_branch
      %104 = sbr.rel (0) target = $region49
    $region48: #{inception_aux_forward.1} parent=1 // pred_region
      %105 = dma.done [#allocation6], 16
    $region49: #{inception_aux_forward.1} parent=1 // pred_fallthru
      _
    // Predicated region
    $region50: #{inception_aux_forward.1} parent=1 // pred_check
      _
    $region51: #{inception_aux_forward.1} parent=1 // pred_check_branch
      %107 = sbr.rel (0) target = $region53
    $region52: #{inception_aux_forward.1} parent=1 // pred_region
      %108 = dma.done [#allocation6], 16
    $region53: #{inception_aux_forward.1} parent=1 // pred_fallthru
      _
    // Predicated region
    $region54: #{inception_aux_forward.1} parent=1 // pred_check
      _
    $region55: #{inception_aux_forward.1} parent=1 // pred_check_branch
      %110 = sbr.rel (0) target = $region57
    $region56: #{inception_aux_forward.1} parent=1 // pred_region
      %111 = dma.done [#allocation9], 153600
    $region57: #{inception_aux_forward.1} parent=1 // pred_fallthru
      _
    // Predicated region
    $region58: #{inception_aux_forward.1} parent=1 // pred_check
      _
    $region59: #{inception_aux_forward.1} parent=1 // pred_check_branch
      %113 = sbr.rel (0) target = $region61
    $region60: #{inception_aux_forward.1} parent=1 // pred_region
      %114 = dma.done [#allocation9], 96
    $region61: #{inception_aux_forward.1} parent=1 // pred_fallthru
      _
    // Predicated region
    $region62: #{inception_aux_forward.1} parent=1 // pred_check
      _
    $region63: #{inception_aux_forward.1} parent=1 // pred_check_branch
      %116 = sbr.rel (0) target = $region65
    $region64: #{inception_aux_forward.1} parent=1 // pred_region
      %117 = dma.done [#allocation12], 96
    $region65: #{inception_aux_forward.1} parent=1 // pred_fallthru
      _
    // Predicated region
    $region66: #{inception_aux_forward.1} parent=1 // pred_check
      _
    $region67: #{inception_aux_forward.1} parent=1 // pred_check_branch
      %119 = sbr.rel (0) target = $region69
    $region68: #{inception_aux_forward.1} parent=1 // pred_region
      %120 = dma.done [#allocation12], 16
    $region69: #{inception_aux_forward.1} parent=1 // pred_fallthru
      _
    %v122 = vld [vmem:[#allocation2] sm:$0xff]
    %v123 = vld [vmem:[#allocation2 + $0x8] sm:$0xff]
    %v124 = vld [vmem:[#allocation2 + $0x10] sm:$0xff]
    %v125 = vld [vmem:[#allocation2 + $0x18] sm:$0xff]
    %v126 = vld [vmem:[#allocation2 + $0x20] sm:$0xff]
    %v127 = vld [vmem:[#allocation2 + $0x28] sm:$0xff]
    %v128 = vld [vmem:[#allocation2 + $0x30] sm:$0xff]
    %v129 = vld [vmem:[#allocation2 + $0x38] sm:$0xff]
    %v130 = vld [vmem:[#allocation2 + $0x40] sm:$0xff]
    %v131 = vld [vmem:[#allocation2 + $0x48] sm:$0xff]
    %v132 = vld [vmem:[#allocation2 + $0x50] sm:$0xff]
    %v133 = vld [vmem:[#allocation2 + $0x58] sm:$0xff]
    %v134 = vld [vmem:[#allocation2 + $0x60] sm:$0xff]
    %v135 = vld [vmem:[#allocation2 + $0x68] sm:$0xff]
    %v136 = vld [vmem:[#allocation2 + $0x70] sm:$0xff]
    %v137 = vld [vmem:[#allocation2 + $0x78] sm:$0xff]
    %v138 = vld [vmem:[#allocation2 + $0x80] sm:$0xff]
    %v139 = vld [vmem:[#allocation2 + $0x88] sm:$0xff]
    %v140 = vld [vmem:[#allocation2 + $0x90] sm:$0xff]
    %v141 = vld [vmem:[#allocation2 + $0x98] sm:$0xff]
    %v142 = vld [vmem:[#allocation2 + $0xa0] sm:$0xff]
    %v143 = vld [vmem:[#allocation2 + $0xa8] sm:$0xff]
    %v144 = vld [vmem:[#allocation2 + $0xb0] sm:$0xff]
    %v145 = vld [vmem:[#allocation2 + $0xb8] sm:$0xff]
    %v146 = vld [vmem:[#allocation2 + $0xc0] sm:$0xff]
    %v147 = vld [vmem:[#allocation2 + $0xc8] sm:$0xff]
    %v148 = vld [vmem:[#allocation2 + $0xd0] sm:$0xff]
    %v149 = vld [vmem:[#allocation2 + $0xd8] sm:$0xff]
    %v150 = vld [vmem:[#allocation2 + $0xe0] sm:$0xff]
    %v151 = vld [vmem:[#allocation2 + $0xe8] sm:$0xff]
    %v152 = vld [vmem:[#allocation2 + $0xf0] sm:$0xff]
    %v153 = vld [vmem:[#allocation2 + $0xf8] sm:$0xff]
    %v154 = vld [vmem:[#allocation2 + $0x100] sm:$0xff]
    %v155 = vld [vmem:[#allocation2 + $0x108] sm:$0xff]
    %v156 = vld [vmem:[#allocation2 + $0x110] sm:$0xff]
    %v157 = vld [vmem:[#allocation2 + $0x118] sm:$0xff]
    %v158 = vld [vmem:[#allocation2 + $0x120] sm:$0x1]
    %v159 = vld [vmem:[%s2] sm:$0xff]
    %v160 = vld [vmem:[%s2 + $0x8] sm:$0xff]
    %v161 = vld [vmem:[%s2 + $0x10] sm:$0xff]
    %v162 = vld [vmem:[%s2 + $0x18] sm:$0xff]
    %v163 = vld [vmem:[%s2 + $0x20] sm:$0xff]
    %v164 = vld [vmem:[%s2 + $0x28] sm:$0xff]
    %v165 = vld [vmem:[%s2 + $0x30] sm:$0xff]
    %v166 = vld [vmem:[%s2 + $0x38] sm:$0xff]
    %v167 = vld [vmem:[%s2 + $0x40] sm:$0xff]
    %v168 = vld [vmem:[%s2 + $0x48] sm:$0xff]
    %v169 = vld [vmem:[%s2 + $0x50] sm:$0xff]
    %v170 = vld [vmem:[%s2 + $0x58] sm:$0xff]
    %v171 = vld [vmem:[%s2 + $0x60] sm:$0xff]
    %v172 = vld [vmem:[%s2 + $0x68] sm:$0xff]
    %v173 = vld [vmem:[%s2 + $0x70] sm:$0xff]
    %v174 = vld [vmem:[%s2 + $0x78] sm:$0xff]
    %v175 = vld [vmem:[#allocation5] sm:$0x1]
    %v176 = vld [vmem:[#allocation7] sm:$0x1]
    %v177 = vld [vmem:[%s0] sm:$0xff]
    %v178 = vld [vmem:[%s0 + $0x8] sm:$0xff]
    %v179 = vld [vmem:[%s0 + $0x10] sm:$0xff]
    %vm180 = vcmask 269312
    %v182 = vsel %vm180, %v179, 0
    %vm184 = vcmask 1040384
    %v186 = vsel %vm184, %v158, 0
    %188 = vmatprep.subr.mxu0 0.0
    %189 = vmatpush1.msra.mxu0 %v137
    %190 = vmatprep.subr.mxu0 0.0
    %191 = vmatpush1.msra.mxu0 %v136
    %192 = vmatprep.subr.mxu0 0.0
    %193 = vmatpush1.msra.mxu0 %v135
    %194 = vmatprep.subr.mxu0 0.0
    %195 = vmatpush1.msra.mxu0 %v134
    %196 = vmatprep.subr.mxu0 0.0
    %197 = vmatpush1.msra.mxu0 %v133
    %198 = vmatprep.subr.mxu0 0.0
    %199 = vmatpush1.msra.mxu0 %v132
    %200 = vmatprep.subr.mxu0 0.0
    %201 = vmatpush1.msra.mxu0 %v131
    %202 = vmatprep.subr.mxu0 0.0
    %203 = vmatpush1.msra.mxu0 %v130
    %204 = vmatprep.subr.mxu0 0.0
    %205 = vmatpush1.msra.mxu0 %v129
    %206 = vmatprep.subr.mxu0 0.0
    %207 = vmatpush1.msra.mxu0 %v128
    %208 = vmatprep.subr.mxu0 0.0
    %209 = vmatpush1.msra.mxu0 %v127
    %210 = vmatprep.subr.mxu0 0.0
    %211 = vmatpush1.msra.mxu0 %v126
    %212 = vmatprep.subr.mxu0 0.0
    %213 = vmatpush1.msra.mxu0 %v125
    %214 = vmatprep.subr.mxu0 0.0
    %215 = vmatpush1.msra.mxu0 %v124
    %216 = vmatprep.subr.mxu0 0.0
    %217 = vmatpush1.msra.mxu0 %v123
    %218 = vmatprep.subr.mxu0 0.0
    %219 = vmatpush1.msra.mxu0 %v122
    %220 = vmatprep.subr.mxu0 0.0
    %221 = vmatpush2.msra.mxu0 %v153
    %222 = vmatprep.subr.mxu0 0.0
    %223 = vmatpush2.msra.mxu0 %v152
    %224 = vmatprep.subr.mxu0 0.0
    %225 = vmatpush2.msra.mxu0 %v151
    %226 = vmatprep.subr.mxu0 0.0
    %227 = vmatpush2.msra.mxu0 %v150
    %228 = vmatprep.subr.mxu0 0.0
    %229 = vmatpush2.msra.mxu0 %v149
    %230 = vmatprep.subr.mxu0 0.0
    %231 = vmatpush2.msra.mxu0 %v148
    %232 = vmatprep.subr.mxu0 0.0
    %233 = vmatpush2.msra.mxu0 %v147
    %234 = vmatprep.subr.mxu0 0.0
    %235 = vmatpush2.msra.mxu0 %v146
    %236 = vmatprep.subr.mxu0 0.0
    %237 = vmatpush2.msra.mxu0 %v145
    %238 = vmatprep.subr.mxu0 0.0
    %239 = vmatpush2.msra.mxu0 %v144
    %240 = vmatprep.subr.mxu0 0.0
    %241 = vmatpush2.msra.mxu0 %v143
    %242 = vmatprep.subr.mxu0 0.0
    %243 = vmatpush2.msra.mxu0 %v142
    %244 = vmatprep.subr.mxu0 0.0
    %245 = vmatpush2.msra.mxu0 %v141
    %246 = vmatprep.subr.mxu0 0.0
    %247 = vmatpush2.msra.mxu0 %v140
    %248 = vmatprep.subr.mxu0 0.0
    %249 = vmatpush2.msra.mxu0 %v139
    %250 = vmatprep.subr.mxu0 0.0
    %251 = vmatpush2.msra.mxu0 %v138
    %252 = vmatprep.mubr.f32.mxu0 %v178
    %253 = vmatmul.mubr.f32.gmra.mxu0 %v177
    %v254 = vpop.f32.mrf.mxu0
    %v255 = vadd.f32 0.0, %v254
    %v256 = vpop.f32.mrf.mxu0
    %257 = vdwg.mxu0
    %258 = vmatprep.subr.mxu0 0.0
    %259 = vmatpush1.msra.mxu0 0.0
    %260 = vmatprep.subr.mxu0 0.0
    %261 = vmatpush1.msra.mxu0 0.0
    %262 = vmatprep.subr.mxu0 0.0
    %263 = vmatpush1.msra.mxu0 0.0
    %264 = vmatprep.subr.mxu0 0.0
    %265 = vmatpush1.msra.mxu0 0.0
    %266 = vmatprep.subr.mxu0 0.0
    %267 = vmatpush1.msra.mxu0 0.0
    %268 = vmatprep.subr.mxu0 0.0
    %269 = vmatpush1.msra.mxu0 0.0
    %270 = vmatprep.subr.mxu0 0.0
    %271 = vmatpush1.msra.mxu0 0.0
    %272 = vmatprep.subr.mxu0 0.0
    %273 = vmatpush1.msra.mxu0 0.0
    %274 = vmatprep.subr.mxu0 0.0
    %275 = vmatpush1.msra.mxu0 0.0
    %276 = vmatprep.subr.mxu0 0.0
    %277 = vmatpush1.msra.mxu0 0.0
    %278 = vmatprep.subr.mxu0 0.0
    %279 = vmatpush1.msra.mxu0 0.0
    %280 = vmatprep.subr.mxu0 0.0
    %281 = vmatpush1.msra.mxu0 %v186
    %282 = vmatprep.subr.mxu0 0.0
    %283 = vmatpush1.msra.mxu0 %v157
    %284 = vmatprep.subr.mxu0 0.0
    %285 = vmatpush1.msra.mxu0 %v156
    %286 = vmatprep.subr.mxu0 0.0
    %287 = vmatpush1.msra.mxu0 %v155
    %288 = vmatprep.subr.mxu0 0.0
    %289 = vmatpush1.msra.mxu0 %v154
    %290 = vmatprep.subr.mxu0 0.0
    %291 = vmatpush2.msra.mxu0 0.0
    %292 = vmatprep.subr.mxu0 0.0
    %293 = vmatpush2.msra.mxu0 0.0
    %294 = vmatprep.subr.mxu0 0.0
    %295 = vmatpush2.msra.mxu0 0.0
    %296 = vmatprep.subr.mxu0 0.0
    %297 = vmatpush2.msra.mxu0 0.0
    %298 = vmatprep.subr.mxu0 0.0
    %299 = vmatpush2.msra.mxu0 0.0
    %300 = vmatprep.subr.mxu0 0.0
    %301 = vmatpush2.msra.mxu0 0.0
    %302 = vmatprep.subr.mxu0 0.0
    %303 = vmatpush2.msra.mxu0 0.0
    %304 = vmatprep.subr.mxu0 0.0
    %305 = vmatpush2.msra.mxu0 0.0
    %306 = vmatprep.subr.mxu0 0.0
    %307 = vmatpush2.msra.mxu0 0.0
    %308 = vmatprep.subr.mxu0 0.0
    %309 = vmatpush2.msra.mxu0 0.0
    %310 = vmatprep.subr.mxu0 0.0
    %311 = vmatpush2.msra.mxu0 0.0
    %312 = vmatprep.subr.mxu0 0.0
    %313 = vmatpush2.msra.mxu0 0.0
    %314 = vmatprep.subr.mxu0 0.0
    %315 = vmatpush2.msra.mxu0 0.0
    %316 = vmatprep.subr.mxu0 0.0
    %317 = vmatpush2.msra.mxu0 0.0
    %318 = vmatprep.subr.mxu0 0.0
    %319 = vmatpush2.msra.mxu0 0.0
    %320 = vmatprep.subr.mxu0 0.0
    %321 = vmatpush2.msra.mxu0 0.0
    %322 = vmatprep.mubr.f32.mxu0 0.0
    %323 = vmatmul.mubr.f32.gmra.mxu0 %v182
    %v324 = vpop.f32.mrf.mxu0
    %v325 = vadd.f32 %v255, %v324
    %v326 = vpop.f32.mrf.mxu0
    %327 = vdwg.mxu0
    %vm328 = vcmask 64512
    %v330 = vsel %vm328, %v159, 0
    %v333 = vsel %vm328, %v160, 0
    %v336 = vsel %vm328, %v161, 0
    %v339 = vsel %vm328, %v162, 0
    %v342 = vsel %vm328, %v163, 0
    %v345 = vsel %vm328, %v164, 0
    %v348 = vsel %vm328, %v165, 0
    %v351 = vsel %vm328, %v166, 0
    %v354 = vsel %vm328, %v167, 0
    %v357 = vsel %vm328, %v168, 0
    %v360 = vsel %vm328, %v169, 0
    %v363 = vsel %vm328, %v170, 0
    %v366 = vsel %vm328, %v171, 0
    %v369 = vsel %vm328, %v172, 0
    %v372 = vsel %vm328, %v173, 0
    %v375 = vsel %vm328, %v174, 0
    %377 = vmatprep.subr.mxu0 0.0
    %378 = vmatpush1.msra.mxu0 0.0
    %379 = vmatprep.subr.mxu0 0.0
    %380 = vmatpush1.msra.mxu0 0.0
    %381 = vmatprep.subr.mxu0 0.0
    %382 = vmatpush1.msra.mxu0 0.0
    %383 = vmatprep.subr.mxu0 0.0
    %384 = vmatpush1.msra.mxu0 0.0
    %385 = vmatprep.subr.mxu0 0.0
    %386 = vmatpush1.msra.mxu0 0.0
    %387 = vmatprep.subr.mxu0 0.0
    %388 = vmatpush1.msra.mxu0 0.0
    %389 = vmatprep.subr.mxu0 0.0
    %390 = vmatpush1.msra.mxu0 0.0
    %391 = vmatprep.subr.mxu0 0.0
    %392 = vmatpush1.msra.mxu0 0.0
    %393 = vmatprep.subr.mxu0 0.0
    %394 = vmatpush1.msra.mxu0 0.0
    %395 = vmatprep.subr.mxu0 0.0
    %396 = vmatpush1.msra.mxu0 0.0
    %397 = vmatprep.subr.mxu0 0.0
    %398 = vmatpush1.msra.mxu0 0.0
    %399 = vmatprep.subr.mxu0 0.0
    %400 = vmatpush1.msra.mxu0 0.0
    %401 = vmatprep.subr.mxu0 0.0
    %402 = vmatpush1.msra.mxu0 0.0
    %403 = vmatprep.subr.mxu0 0.0
    %404 = vmatpush1.msra.mxu0 0.0
    %405 = vmatprep.subr.mxu0 0.0
    %406 = vmatpush1.msra.mxu0 0.0
    %407 = vmatprep.subr.mxu0 0.0
    %408 = vmatpush1.msra.mxu0 %v325
    %409 = vmatprep.subr.mxu0 0.0
    %410 = vmatpush2.msra.mxu0 0.0
    %411 = vmatprep.subr.mxu0 0.0
    %412 = vmatpush2.msra.mxu0 0.0
    %413 = vmatprep.subr.mxu0 0.0
    %414 = vmatpush2.msra.mxu0 0.0
    %415 = vmatprep.subr.mxu0 0.0
    %416 = vmatpush2.msra.mxu0 0.0
    %417 = vmatprep.subr.mxu0 0.0
    %418 = vmatpush2.msra.mxu0 0.0
    %419 = vmatprep.subr.mxu0 0.0
    %420 = vmatpush2.msra.mxu0 0.0
    %421 = vmatprep.subr.mxu0 0.0
    %422 = vmatpush2.msra.mxu0 0.0
    %423 = vmatprep.subr.mxu0 0.0
    %424 = vmatpush2.msra.mxu0 0.0
    %425 = vmatprep.subr.mxu0 0.0
    %426 = vmatpush2.msra.mxu0 0.0
    %427 = vmatprep.subr.mxu0 0.0
    %428 = vmatpush2.msra.mxu0 0.0
    %429 = vmatprep.subr.mxu0 0.0
    %430 = vmatpush2.msra.mxu0 0.0
    %431 = vmatprep.subr.mxu0 0.0
    %432 = vmatpush2.msra.mxu0 0.0
    %433 = vmatprep.subr.mxu0 0.0
    %434 = vmatpush2.msra.mxu0 0.0
    %435 = vmatprep.subr.mxu0 0.0
    %436 = vmatpush2.msra.mxu0 0.0
    %437 = vmatprep.subr.mxu0 0.0
    %438 = vmatpush2.msra.mxu0 0.0
    %439 = vmatprep.subr.mxu0 0.0
    %440 = vmatpush2.msra.mxu0 0.0
    %441 = vmatprep.mubr.f32.mxu0 0.0
    %442 = vmatmul.mubr.f32.gmra.mxu0 %v330
    %v443 = vpop.f32.mrf.mxu0
    %v444 = vadd.f32 0.0, %v443
    %v445 = vpop.f32.mrf.mxu0
    %446 = vmatprep.mubr.f32.mxu0 0.0
    %447 = vmatmul.mubr.f32.gmra.mxu0 %v333
    %v448 = vpop.f32.mrf.mxu0
    %v449 = vadd.f32 0.0, %v448
    %v450 = vpop.f32.mrf.mxu0
    %451 = vmatprep.mubr.f32.mxu0 0.0
    %452 = vmatmul.mubr.f32.gmra.mxu0 %v336
    %v453 = vpop.f32.mrf.mxu0
    %v454 = vadd.f32 0.0, %v453
    %v455 = vpop.f32.mrf.mxu0
    %456 = vmatprep.mubr.f32.mxu0 0.0
    %457 = vmatmul.mubr.f32.gmra.mxu0 %v339
    %v458 = vpop.f32.mrf.mxu0
    %v459 = vadd.f32 0.0, %v458
    %v460 = vpop.f32.mrf.mxu0
    %461 = vmatprep.mubr.f32.mxu0 0.0
    %462 = vmatmul.mubr.f32.gmra.mxu0 %v342
    %v463 = vpop.f32.mrf.mxu0
    %v464 = vadd.f32 0.0, %v463
    %v465 = vpop.f32.mrf.mxu0
    %466 = vmatprep.mubr.f32.mxu0 0.0
    %467 = vmatmul.mubr.f32.gmra.mxu0 %v345
    %v468 = vpop.f32.mrf.mxu0
    %v469 = vadd.f32 0.0, %v468
    %v470 = vpop.f32.mrf.mxu0
    %471 = vmatprep.mubr.f32.mxu0 0.0
    %472 = vmatmul.mubr.f32.gmra.mxu0 %v348
    %v473 = vpop.f32.mrf.mxu0
    %v474 = vadd.f32 0.0, %v473
    %v475 = vpop.f32.mrf.mxu0
    %476 = vmatprep.mubr.f32.mxu0 0.0
    %477 = vmatmul.mubr.f32.gmra.mxu0 %v351
    %v478 = vpop.f32.mrf.mxu0
    %v479 = vadd.f32 0.0, %v478
    %v480 = vpop.f32.mrf.mxu0
    %481 = vmatprep.mubr.f32.mxu0 0.0
    %482 = vmatmul.mubr.f32.gmra.mxu0 %v354
    %v483 = vpop.f32.mrf.mxu0
    %v484 = vadd.f32 0.0, %v483
    %v485 = vpop.f32.mrf.mxu0
    %486 = vmatprep.mubr.f32.mxu0 0.0
    %487 = vmatmul.mubr.f32.gmra.mxu0 %v357
    %v488 = vpop.f32.mrf.mxu0
    %v489 = vadd.f32 0.0, %v488
    %v490 = vpop.f32.mrf.mxu0
    %491 = vmatprep.mubr.f32.mxu0 0.0
    %492 = vmatmul.mubr.f32.gmra.mxu0 %v360
    %v493 = vpop.f32.mrf.mxu0
    %v494 = vadd.f32 0.0, %v493
    %v495 = vpop.f32.mrf.mxu0
    %496 = vmatprep.mubr.f32.mxu0 0.0
    %497 = vmatmul.mubr.f32.gmra.mxu0 %v363
    %v498 = vpop.f32.mrf.mxu0
    %v499 = vadd.f32 0.0, %v498
    %v500 = vpop.f32.mrf.mxu0
    %501 = vmatprep.mubr.f32.mxu0 0.0
    %502 = vmatmul.mubr.f32.gmra.mxu0 %v366
    %v503 = vpop.f32.mrf.mxu0
    %v504 = vadd.f32 0.0, %v503
    %v505 = vpop.f32.mrf.mxu0
    %506 = vmatprep.mubr.f32.mxu0 0.0
    %507 = vmatmul.mubr.f32.gmra.mxu0 %v369
    %v508 = vpop.f32.mrf.mxu0
    %v509 = vadd.f32 0.0, %v508
    %v510 = vpop.f32.mrf.mxu0
    %511 = vmatprep.mubr.f32.mxu0 0.0
    %512 = vmatmul.mubr.f32.gmra.mxu0 %v372
    %v513 = vpop.f32.mrf.mxu0
    %v514 = vadd.f32 0.0, %v513
    %v515 = vpop.f32.mrf.mxu0
    %516 = vmatprep.mubr.f32.mxu0 0.0
    %517 = vmatmul.mubr.f32.gmra.mxu0 %v375
    %v518 = vpop.f32.mrf.mxu0
    %v519 = vadd.f32 0.0, %v518
    %v520 = vpop.f32.mrf.mxu0
    %521 = vdwg.mxu0
    %522 = vxpose.xlu0.b32.start [1/16] %v444, 128
    %523 = vxpose.xlu0.b32.cont [2/16] %v449, 128
    %524 = vxpose.xlu0.b32.cont [3/16] %v454, 128
    %525 = vxpose.xlu0.b32.cont [4/16] %v459, 128
    %526 = vxpose.xlu0.b32.cont [5/16] %v464, 128
    %527 = vxpose.xlu0.b32.cont [6/16] %v469, 128
    %528 = vxpose.xlu0.b32.cont [7/16] %v474, 128
    %529 = vxpose.xlu0.b32.cont [8/16] %v479, 128
    %530 = vxpose.xlu0.b32.cont [9/16] %v484, 128
    %531 = vxpose.xlu0.b32.cont [10/16] %v489, 128
    %532 = vxpose.xlu0.b32.cont [11/16] %v494, 128
    %533 = vxpose.xlu0.b32.cont [12/16] %v499, 128
    %534 = vxpose.xlu0.b32.cont [13/16] %v504, 128
    %535 = vxpose.xlu0.b32.cont [14/16] %v509, 128
    %536 = vxpose.xlu0.b32.cont [15/16] %v514, 128
    %537 = vxpose.xlu0.b32.end [16/16] %v519, 128
    %v538 = vpop.trf.xlu0
    %v539 = vpop.trf.xlu0
    %v540 = vpop.trf.xlu0
    %v541 = vpop.trf.xlu0
    %v542 = vpop.trf.xlu0
    %v543 = vpop.trf.xlu0
    %v544 = vpop.trf.xlu0
    %v545 = vpop.trf.xlu0
    %v546 = vpop.trf.xlu0
    %v547 = vpop.trf.xlu0
    %v548 = vpop.trf.xlu0
    %v549 = vpop.trf.xlu0
    %v550 = vpop.trf.xlu0
    %v551 = vpop.trf.xlu0
    %v552 = vpop.trf.xlu0
    %v553 = vpop.trf.xlu0
    %v555 = vlaneseq
    %v556 = vshrl.u32 %v555, 7
    %v557 = vsub.s32 0, %v556
    %v558 = vrot.slane %v175, %v557
    %v560 = vmul.f32 %v538, %v558
    %v561 = vmul.f32 %v539, %v558
    %v562 = vmul.f32 %v540, %v558
    %v563 = vmul.f32 %v541, %v558
    %v565 = vlaneseq
    %v566 = vshrl.u32 %v565, 7
    %v567 = vsub.s32 0, %v566
    %v568 = vrot.slane %v176, %v567
    %v570 = vadd.f32 %v560, %v568
    %v571 = vadd.f32 %v561, %v568
    %v572 = vadd.f32 %v562, %v568
    %v573 = vadd.f32 %v563, %v568
    %v574 = vmax.f32 %v570, 0.0
    %v575 = vmax.f32 %v571, 0.0
    %v576 = vmax.f32 %v572, 0.0
    %v577 = vmax.f32 %v573, 0.0
    %s578 = scalar_lea.vmem %s0, 24
    %v579 = vld [vmem:[%s578] sm:$0xff]
    %v580 = vld [vmem:[%s578 + $0x8] sm:$0xff]
    %v581 = vld [vmem:[%s578 + $0x10] sm:$0xff]
    %v583 = vsel %vm180, %v581, 0
    %585 = vmatprep.subr.mxu0 0.0
    %586 = vmatpush1.msra.mxu0 %v137
    %587 = vmatprep.subr.mxu0 0.0
    %588 = vmatpush1.msra.mxu0 %v136
    %589 = vmatprep.subr.mxu0 0.0
    %590 = vmatpush1.msra.mxu0 %v135
    %591 = vmatprep.subr.mxu0 0.0
    %592 = vmatpush1.msra.mxu0 %v134
    %593 = vmatprep.subr.mxu0 0.0
    %594 = vmatpush1.msra.mxu0 %v133
    %595 = vmatprep.subr.mxu0 0.0
    %596 = vmatpush1.msra.mxu0 %v132
    %597 = vmatprep.subr.mxu0 0.0
    %598 = vmatpush1.msra.mxu0 %v131
    %599 = vmatprep.subr.mxu0 0.0
    %600 = vmatpush1.msra.mxu0 %v130
    %601 = vmatprep.subr.mxu0 0.0
    %602 = vmatpush1.msra.mxu0 %v129
    %603 = vmatprep.subr.mxu0 0.0
    %604 = vmatpush1.msra.mxu0 %v128
    %605 = vmatprep.subr.mxu0 0.0
    %606 = vmatpush1.msra.mxu0 %v127
    %607 = vmatprep.subr.mxu0 0.0
    %608 = vmatpush1.msra.mxu0 %v126
    %609 = vmatprep.subr.mxu0 0.0
    %610 = vmatpush1.msra.mxu0 %v125
    %611 = vmatprep.subr.mxu0 0.0
    %612 = vmatpush1.msra.mxu0 %v124
    %613 = vmatprep.subr.mxu0 0.0
    %614 = vmatpush1.msra.mxu0 %v123
    %615 = vmatprep.subr.mxu0 0.0
    %616 = vmatpush1.msra.mxu0 %v122
    %617 = vmatprep.subr.mxu0 0.0
    %618 = vmatpush2.msra.mxu0 %v153
    %619 = vmatprep.subr.mxu0 0.0
    %620 = vmatpush2.msra.mxu0 %v152
    %621 = vmatprep.subr.mxu0 0.0
    %622 = vmatpush2.msra.mxu0 %v151
    %623 = vmatprep.subr.mxu0 0.0
    %624 = vmatpush2.msra.mxu0 %v150
    %625 = vmatprep.subr.mxu0 0.0
    %626 = vmatpush2.msra.mxu0 %v149
    %627 = vmatprep.subr.mxu0 0.0
    %628 = vmatpush2.msra.mxu0 %v148
    %629 = vmatprep.subr.mxu0 0.0
    %630 = vmatpush2.msra.mxu0 %v147
    %631 = vmatprep.subr.mxu0 0.0
    %632 = vmatpush2.msra.mxu0 %v146
    %633 = vmatprep.subr.mxu0 0.0
    %634 = vmatpush2.msra.mxu0 %v145
    %635 = vmatprep.subr.mxu0 0.0
    %636 = vmatpush2.msra.mxu0 %v144
    %637 = vmatprep.subr.mxu0 0.0
    %638 = vmatpush2.msra.mxu0 %v143
    %639 = vmatprep.subr.mxu0 0.0
    %640 = vmatpush2.msra.mxu0 %v142
    %641 = vmatprep.subr.mxu0 0.0
    %642 = vmatpush2.msra.mxu0 %v141
    %643 = vmatprep.subr.mxu0 0.0
    %644 = vmatpush2.msra.mxu0 %v140
    %645 = vmatprep.subr.mxu0 0.0
    %646 = vmatpush2.msra.mxu0 %v139
    %647 = vmatprep.subr.mxu0 0.0
    %648 = vmatpush2.msra.mxu0 %v138
    %649 = vmatprep.mubr.f32.mxu0 %v580
    %650 = vmatmul.mubr.f32.gmra.mxu0 %v579
    %v651 = vpop.f32.mrf.mxu0
    %v652 = vadd.f32 0.0, %v651
    %v653 = vpop.f32.mrf.mxu0
    %654 = vdwg.mxu0
    %655 = vmatprep.subr.mxu0 0.0
    %656 = vmatpush1.msra.mxu0 0.0
    %657 = vmatprep.subr.mxu0 0.0
    %658 = vmatpush1.msra.mxu0 0.0
    %659 = vmatprep.subr.mxu0 0.0
    %660 = vmatpush1.msra.mxu0 0.0
    %661 = vmatprep.subr.mxu0 0.0
    %662 = vmatpush1.msra.mxu0 0.0
    %663 = vmatprep.subr.mxu0 0.0
    %664 = vmatpush1.msra.mxu0 0.0
    %665 = vmatprep.subr.mxu0 0.0
    %666 = vmatpush1.msra.mxu0 0.0
    %667 = vmatprep.subr.mxu0 0.0
    %668 = vmatpush1.msra.mxu0 0.0
    %669 = vmatprep.subr.mxu0 0.0
    %670 = vmatpush1.msra.mxu0 0.0
    %671 = vmatprep.subr.mxu0 0.0
    %672 = vmatpush1.msra.mxu0 0.0
    %673 = vmatprep.subr.mxu0 0.0
    %674 = vmatpush1.msra.mxu0 0.0
    %675 = vmatprep.subr.mxu0 0.0
    %676 = vmatpush1.msra.mxu0 0.0
    %677 = vmatprep.subr.mxu0 0.0
    %678 = vmatpush1.msra.mxu0 %v186
    %679 = vmatprep.subr.mxu0 0.0
    %680 = vmatpush1.msra.mxu0 %v157
    %681 = vmatprep.subr.mxu0 0.0
    %682 = vmatpush1.msra.mxu0 %v156
    %683 = vmatprep.subr.mxu0 0.0
    %684 = vmatpush1.msra.mxu0 %v155
    %685 = vmatprep.subr.mxu0 0.0
    %686 = vmatpush1.msra.mxu0 %v154
    %687 = vmatprep.subr.mxu0 0.0
    %688 = vmatpush2.msra.mxu0 0.0
    %689 = vmatprep.subr.mxu0 0.0
    %690 = vmatpush2.msra.mxu0 0.0
    %691 = vmatprep.subr.mxu0 0.0
    %692 = vmatpush2.msra.mxu0 0.0
    %693 = vmatprep.subr.mxu0 0.0
    %694 = vmatpush2.msra.mxu0 0.0
    %695 = vmatprep.subr.mxu0 0.0
    %696 = vmatpush2.msra.mxu0 0.0
    %697 = vmatprep.subr.mxu0 0.0
    %698 = vmatpush2.msra.mxu0 0.0
    %699 = vmatprep.subr.mxu0 0.0
    %700 = vmatpush2.msra.mxu0 0.0
    %701 = vmatprep.subr.mxu0 0.0
    %702 = vmatpush2.msra.mxu0 0.0
    %703 = vmatprep.subr.mxu0 0.0
    %704 = vmatpush2.msra.mxu0 0.0
    %705 = vmatprep.subr.mxu0 0.0
    %706 = vmatpush2.msra.mxu0 0.0
    %707 = vmatprep.subr.mxu0 0.0
    %708 = vmatpush2.msra.mxu0 0.0
    %709 = vmatprep.subr.mxu0 0.0
    %710 = vmatpush2.msra.mxu0 0.0
    %711 = vmatprep.subr.mxu0 0.0
    %712 = vmatpush2.msra.mxu0 0.0
    %713 = vmatprep.subr.mxu0 0.0
    %714 = vmatpush2.msra.mxu0 0.0
    %715 = vmatprep.subr.mxu0 0.0
    %716 = vmatpush2.msra.mxu0 0.0
    %717 = vmatprep.subr.mxu0 0.0
    %718 = vmatpush2.msra.mxu0 0.0
    %719 = vmatprep.mubr.f32.mxu0 0.0
    %720 = vmatmul.mubr.f32.gmra.mxu0 %v583
    %v721 = vpop.f32.mrf.mxu0
    %v722 = vadd.f32 %v652, %v721
    %v723 = vpop.f32.mrf.mxu0
    %724 = vdwg.mxu0
    %725 = vmatprep.subr.mxu0 0.0
    %726 = vmatpush1.msra.mxu0 0.0
    %727 = vmatprep.subr.mxu0 0.0
    %728 = vmatpush1.msra.mxu0 0.0
    %729 = vmatprep.subr.mxu0 0.0
    %730 = vmatpush1.msra.mxu0 0.0
    %731 = vmatprep.subr.mxu0 0.0
    %732 = vmatpush1.msra.mxu0 0.0
    %733 = vmatprep.subr.mxu0 0.0
    %734 = vmatpush1.msra.mxu0 0.0
    %735 = vmatprep.subr.mxu0 0.0
    %736 = vmatpush1.msra.mxu0 0.0
    %737 = vmatprep.subr.mxu0 0.0
    %738 = vmatpush1.msra.mxu0 0.0
    %739 = vmatprep.subr.mxu0 0.0
    %740 = vmatpush1.msra.mxu0 0.0
    %741 = vmatprep.subr.mxu0 0.0
    %742 = vmatpush1.msra.mxu0 0.0
    %743 = vmatprep.subr.mxu0 0.0
    %744 = vmatpush1.msra.mxu0 0.0
    %745 = vmatprep.subr.mxu0 0.0
    %746 = vmatpush1.msra.mxu0 0.0
    %747 = vmatprep.subr.mxu0 0.0
    %748 = vmatpush1.msra.mxu0 0.0
    %749 = vmatprep.subr.mxu0 0.0
    %750 = vmatpush1.msra.mxu0 0.0
    %751 = vmatprep.subr.mxu0 0.0
    %752 = vmatpush1.msra.mxu0 0.0
    %753 = vmatprep.subr.mxu0 0.0
    %754 = vmatpush1.msra.mxu0 0.0
    %755 = vmatprep.subr.mxu0 0.0
    %756 = vmatpush1.msra.mxu0 %v722
    %757 = vmatprep.subr.mxu0 0.0
    %758 = vmatpush2.msra.mxu0 0.0
    %759 = vmatprep.subr.mxu0 0.0
    %760 = vmatpush2.msra.mxu0 0.0
    %761 = vmatprep.subr.mxu0 0.0
    %762 = vmatpush2.msra.mxu0 0.0
    %763 = vmatprep.subr.mxu0 0.0
    %764 = vmatpush2.msra.mxu0 0.0
    %765 = vmatprep.subr.mxu0 0.0
    %766 = vmatpush2.msra.mxu0 0.0
    %767 = vmatprep.subr.mxu0 0.0
    %768 = vmatpush2.msra.mxu0 0.0
    %769 = vmatprep.subr.mxu0 0.0
    %770 = vmatpush2.msra.mxu0 0.0
    %771 = vmatprep.subr.mxu0 0.0
    %772 = vmatpush2.msra.mxu0 0.0
    %773 = vmatprep.subr.mxu0 0.0
    %774 = vmatpush2.msra.mxu0 0.0
    %775 = vmatprep.subr.mxu0 0.0
    %776 = vmatpush2.msra.mxu0 0.0
    %777 = vmatprep.subr.mxu0 0.0
    %778 = vmatpush2.msra.mxu0 0.0
    %779 = vmatprep.subr.mxu0 0.0
    %780 = vmatpush2.msra.mxu0 0.0
    %781 = vmatprep.subr.mxu0 0.0
    %782 = vmatpush2.msra.mxu0 0.0
    %783 = vmatprep.subr.mxu0 0.0
    %784 = vmatpush2.msra.mxu0 0.0
    %785 = vmatprep.subr.mxu0 0.0
    %786 = vmatpush2.msra.mxu0 0.0
    %787 = vmatprep.subr.mxu0 0.0
    %788 = vmatpush2.msra.mxu0 0.0
    %789 = vmatprep.mubr.f32.mxu0 0.0
    %790 = vmatmul.mubr.f32.gmra.mxu0 %v330
    %v791 = vpop.f32.mrf.mxu0
    %v792 = vadd.f32 0.0, %v791
    %v793 = vpop.f32.mrf.mxu0
    %794 = vmatprep.mubr.f32.mxu0 0.0
    %795 = vmatmul.mubr.f32.gmra.mxu0 %v333
    %v796 = vpop.f32.mrf.mxu0
    %v797 = vadd.f32 0.0, %v796
    %v798 = vpop.f32.mrf.mxu0
    %799 = vmatprep.mubr.f32.mxu0 0.0
    %800 = vmatmul.mubr.f32.gmra.mxu0 %v336
    %v801 = vpop.f32.mrf.mxu0
    %v802 = vadd.f32 0.0, %v801
    %v803 = vpop.f32.mrf.mxu0
    %804 = vmatprep.mubr.f32.mxu0 0.0
    %805 = vmatmul.mubr.f32.gmra.mxu0 %v339
    %v806 = vpop.f32.mrf.mxu0
    %v807 = vadd.f32 0.0, %v806
    %v808 = vpop.f32.mrf.mxu0
    %809 = vmatprep.mubr.f32.mxu0 0.0
    %810 = vmatmul.mubr.f32.gmra.mxu0 %v342
    %v811 = vpop.f32.mrf.mxu0
    %v812 = vadd.f32 0.0, %v811
    %v813 = vpop.f32.mrf.mxu0
    %814 = vmatprep.mubr.f32.mxu0 0.0
    %815 = vmatmul.mubr.f32.gmra.mxu0 %v345
    %v816 = vpop.f32.mrf.mxu0
    %v817 = vadd.f32 0.0, %v816
    %v818 = vpop.f32.mrf.mxu0
    %819 = vmatprep.mubr.f32.mxu0 0.0
    %820 = vmatmul.mubr.f32.gmra.mxu0 %v348
    %v821 = vpop.f32.mrf.mxu0
    %v822 = vadd.f32 0.0, %v821
    %v823 = vpop.f32.mrf.mxu0
    %824 = vmatprep.mubr.f32.mxu0 0.0
    %825 = vmatmul.mubr.f32.gmra.mxu0 %v351
    %v826 = vpop.f32.mrf.mxu0
    %v827 = vadd.f32 0.0, %v826
    %v828 = vpop.f32.mrf.mxu0
    %829 = vmatprep.mubr.f32.mxu0 0.0
    %830 = vmatmul.mubr.f32.gmra.mxu0 %v354
    %v831 = vpop.f32.mrf.mxu0
    %v832 = vadd.f32 0.0, %v831
    %v833 = vpop.f32.mrf.mxu0
    %834 = vmatprep.mubr.f32.mxu0 0.0
    %835 = vmatmul.mubr.f32.gmra.mxu0 %v357
    %v836 = vpop.f32.mrf.mxu0
    %v837 = vadd.f32 0.0, %v836
    %v838 = vpop.f32.mrf.mxu0
    %839 = vmatprep.mubr.f32.mxu0 0.0
    %840 = vmatmul.mubr.f32.gmra.mxu0 %v360
    %v841 = vpop.f32.mrf.mxu0
    %v842 = vadd.f32 0.0, %v841
    %v843 = vpop.f32.mrf.mxu0
    %844 = vmatprep.mubr.f32.mxu0 0.0
    %845 = vmatmul.mubr.f32.gmra.mxu0 %v363
    %v846 = vpop.f32.mrf.mxu0
    %v847 = vadd.f32 0.0, %v846
    %v848 = vpop.f32.mrf.mxu0
    %849 = vmatprep.mubr.f32.mxu0 0.0
    %850 = vmatmul.mubr.f32.gmra.mxu0 %v366
    %v851 = vpop.f32.mrf.mxu0
    %v852 = vadd.f32 0.0, %v851
    %v853 = vpop.f32.mrf.mxu0
    %854 = vmatprep.mubr.f32.mxu0 0.0
    %855 = vmatmul.mubr.f32.gmra.mxu0 %v369
    %v856 = vpop.f32.mrf.mxu0
    %v857 = vadd.f32 0.0, %v856
    %v858 = vpop.f32.mrf.mxu0
    %859 = vmatprep.mubr.f32.mxu0 0.0
    %860 = vmatmul.mubr.f32.gmra.mxu0 %v372
    %v861 = vpop.f32.mrf.mxu0
    %v862 = vadd.f32 0.0, %v861
    %v863 = vpop.f32.mrf.mxu0
    %864 = vmatprep.mubr.f32.mxu0 0.0
    %865 = vmatmul.mubr.f32.gmra.mxu0 %v375
    %v866 = vpop.f32.mrf.mxu0
    %v867 = vadd.f32 0.0, %v866
    %v868 = vpop.f32.mrf.mxu0
    %869 = vdwg.mxu0
    %870 = vxpose.xlu0.b32.start [1/16] %v792, 128
    %871 = vxpose.xlu0.b32.cont [2/16] %v797, 128
    %872 = vxpose.xlu0.b32.cont [3/16] %v802, 128
    %873 = vxpose.xlu0.b32.cont [4/16] %v807, 128
    %874 = vxpose.xlu0.b32.cont [5/16] %v812, 128
    %875 = vxpose.xlu0.b32.cont [6/16] %v817, 128
    %876 = vxpose.xlu0.b32.cont [7/16] %v822, 128
    %877 = vxpose.xlu0.b32.cont [8/16] %v827, 128
    %878 = vxpose.xlu0.b32.cont [9/16] %v832, 128
    %879 = vxpose.xlu0.b32.cont [10/16] %v837, 128
    %880 = vxpose.xlu0.b32.cont [11/16] %v842, 128
    %881 = vxpose.xlu0.b32.cont [12/16] %v847, 128
    %882 = vxpose.xlu0.b32.cont [13/16] %v852, 128
    %883 = vxpose.xlu0.b32.cont [14/16] %v857, 128
    %884 = vxpose.xlu0.b32.cont [15/16] %v862, 128
    %885 = vxpose.xlu0.b32.end [16/16] %v867, 128
    %v886 = vpop.trf.xlu0
    %v887 = vpop.trf.xlu0
    %v888 = vpop.trf.xlu0
    %v889 = vpop.trf.xlu0
    %v890 = vpop.trf.xlu0
    %v891 = vpop.trf.xlu0
    %v892 = vpop.trf.xlu0
    %v893 = vpop.trf.xlu0
    %v894 = vpop.trf.xlu0
    %v895 = vpop.trf.xlu0
    %v896 = vpop.trf.xlu0
    %v897 = vpop.trf.xlu0
    %v898 = vpop.trf.xlu0
    %v899 = vpop.trf.xlu0
    %v900 = vpop.trf.xlu0
    %v901 = vpop.trf.xlu0
    %v902 = vmul.f32 %v886, %v558
    %v903 = vmul.f32 %v887, %v558
    %v904 = vmul.f32 %v888, %v558
    %v905 = vmul.f32 %v889, %v558
    %v906 = vadd.f32 %v902, %v568
    %v907 = vadd.f32 %v903, %v568
    %v908 = vadd.f32 %v904, %v568
    %v909 = vadd.f32 %v905, %v568
    %v910 = vmax.f32 %v906, 0.0
    %v911 = vmax.f32 %v907, 0.0
    %v912 = vmax.f32 %v908, 0.0
    %v913 = vmax.f32 %v909, 0.0
    %v914 = vpack.c.bf16 %v574, %v574
    %v915 = vpack.c.bf16 %v910, %v910
    %v916 = vld [vmem:[#allocation8] sm:$0xff]
    %v917 = vld [vmem:[#allocation8 + $0x8] sm:$0xff]
    %v918 = vld [vmem:[#allocation8 + $0x10] sm:$0xff]
    %v919 = vld [vmem:[#allocation8 + $0x18] sm:$0xff]
    %v920 = vld [vmem:[#allocation8 + $0x20] sm:$0xff]
    %v921 = vld [vmem:[#allocation8 + $0x28] sm:$0xff]
    %v922 = vld [vmem:[#allocation8 + $0x30] sm:$0xff]
    %v923 = vld [vmem:[#allocation8 + $0x38] sm:$0xff]
    %v924 = vld [vmem:[#allocation8 + $0x40] sm:$0xff]
    %v925 = vld [vmem:[#allocation8 + $0x48] sm:$0xff]
    %v926 = vld [vmem:[#allocation8 + $0x50] sm:$0xff]
    %v927 = vld [vmem:[#allocation8 + $0x58] sm:$0xff]
    %v928 = vld [vmem:[#allocation8 + $0x60] sm:$0xff]
    %v929 = vld [vmem:[#allocation8 + $0x68] sm:$0xff]
    %v930 = vld [vmem:[#allocation8 + $0x70] sm:$0xff]
    %v931 = vld [vmem:[#allocation8 + $0x78] sm:$0xff]
    %v932 = vld [vmem:[#allocation8 + $0x80] sm:$0xff]
    %v933 = vld [vmem:[#allocation8 + $0x88] sm:$0xff]
    %v934 = vld [vmem:[#allocation8 + $0x90] sm:$0xff]
    %v935 = vld [vmem:[#allocation8 + $0x98] sm:$0xff]
    %v936 = vld [vmem:[#allocation8 + $0xa0] sm:$0xff]
    %v937 = vld [vmem:[#allocation8 + $0xa8] sm:$0xff]
    %v938 = vld [vmem:[#allocation8 + $0xb0] sm:$0xff]
    %v939 = vld [vmem:[#allocation8 + $0xb8] sm:$0xff]
    %v940 = vld [vmem:[#allocation8 + $0xc0] sm:$0xff]
    %v941 = vld [vmem:[#allocation8 + $0xc8] sm:$0xff]
    %v942 = vld [vmem:[#allocation8 + $0xd0] sm:$0xff]
    %v943 = vld [vmem:[#allocation8 + $0xd8] sm:$0xff]
    %v944 = vld [vmem:[#allocation8 + $0xe0] sm:$0xff]
    %v945 = vld [vmem:[#allocation8 + $0xe8] sm:$0xff]
    %v946 = vld [vmem:[#allocation8 + $0xf0] sm:$0xff]
    %v947 = vld [vmem:[#allocation8 + $0xf8] sm:$0xff]
    %v948 = vld [vmem:[#allocation8 + $0x100] sm:$0xff]
    %v949 = vld [vmem:[#allocation8 + $0x108] sm:$0xff]
    %v950 = vld [vmem:[#allocation8 + $0x110] sm:$0xff]
    %v951 = vld [vmem:[#allocation8 + $0x118] sm:$0xff]
    %v952 = vld [vmem:[#allocation8 + $0x120] sm:$0xff]
    %v953 = vld [vmem:[#allocation8 + $0x128] sm:$0xff]
    %v954 = vld [vmem:[#allocation8 + $0x130] sm:$0xff]
    %v955 = vld [vmem:[#allocation8 + $0x138] sm:$0xff]
    %v956 = vld [vmem:[#allocation8 + $0x140] sm:$0xff]
    %v957 = vld [vmem:[#allocation8 + $0x148] sm:$0xff]
    %v958 = vld [vmem:[#allocation8 + $0x150] sm:$0xff]
    %v959 = vld [vmem:[#allocation8 + $0x158] sm:$0xff]
    %v960 = vld [vmem:[#allocation8 + $0x160] sm:$0xff]
    %v961 = vld [vmem:[#allocation8 + $0x168] sm:$0xff]
    %v962 = vld [vmem:[#allocation8 + $0x170] sm:$0xff]
    %v963 = vld [vmem:[#allocation8 + $0x178] sm:$0xff]
    %s964 = scalar_lea.vmem [#allocation8], 384
    %v965 = vld [vmem:[%s964] sm:$0xff]
    %v966 = vld [vmem:[%s964 + $0x8] sm:$0xff]
    %v967 = vld [vmem:[%s964 + $0x10] sm:$0xff]
    %v968 = vld [vmem:[%s964 + $0x18] sm:$0xff]
    %v969 = vld [vmem:[%s964 + $0x20] sm:$0xff]
    %v970 = vld [vmem:[%s964 + $0x28] sm:$0xff]
    %v971 = vld [vmem:[%s964 + $0x30] sm:$0xff]
    %v972 = vld [vmem:[%s964 + $0x38] sm:$0xff]
    %v973 = vld [vmem:[%s964 + $0x40] sm:$0xff]
    %v974 = vld [vmem:[%s964 + $0x48] sm:$0xff]
    %v975 = vld [vmem:[%s964 + $0x50] sm:$0xff]
    %v976 = vld [vmem:[%s964 + $0x58] sm:$0xff]
    %v977 = vld [vmem:[%s964 + $0x60] sm:$0xff]
    %v978 = vld [vmem:[%s964 + $0x68] sm:$0xff]
    %v979 = vld [vmem:[%s964 + $0x70] sm:$0xff]
    %v980 = vld [vmem:[%s964 + $0x78] sm:$0xff]
    %v981 = vld [vmem:[%s964 + $0x80] sm:$0xff]
    %v982 = vld [vmem:[%s964 + $0x88] sm:$0xff]
    %v983 = vld [vmem:[%s964 + $0x90] sm:$0xff]
    %v984 = vld [vmem:[%s964 + $0x98] sm:$0xff]
    %v985 = vld [vmem:[%s964 + $0xa0] sm:$0xff]
    %v986 = vld [vmem:[%s964 + $0xa8] sm:$0xff]
    %v987 = vld [vmem:[%s964 + $0xb0] sm:$0xff]
    %v988 = vld [vmem:[%s964 + $0xb8] sm:$0xff]
    %v989 = vld [vmem:[%s964 + $0xc0] sm:$0xff]
    %v990 = vld [vmem:[%s964 + $0xc8] sm:$0xff]
    %v991 = vld [vmem:[%s964 + $0xd0] sm:$0xff]
    %v992 = vld [vmem:[%s964 + $0xd8] sm:$0xff]
    %v993 = vld [vmem:[%s964 + $0xe0] sm:$0xff]
    %v994 = vld [vmem:[%s964 + $0xe8] sm:$0xff]
    %v995 = vld [vmem:[%s964 + $0xf0] sm:$0xff]
    %v996 = vld [vmem:[%s964 + $0xf8] sm:$0xff]
    %v997 = vld [vmem:[%s964 + $0x100] sm:$0xff]
    %v998 = vld [vmem:[%s964 + $0x108] sm:$0xff]
    %v999 = vld [vmem:[%s964 + $0x110] sm:$0xff]
    %v1000 = vld [vmem:[%s964 + $0x118] sm:$0xff]
    %v1001 = vld [vmem:[%s964 + $0x120] sm:$0xff]
    %v1002 = vld [vmem:[%s964 + $0x128] sm:$0xff]
    %v1003 = vld [vmem:[%s964 + $0x130] sm:$0xff]
    %v1004 = vld [vmem:[%s964 + $0x138] sm:$0xff]
    %v1005 = vld [vmem:[%s964 + $0x140] sm:$0xff]
    %v1006 = vld [vmem:[%s964 + $0x148] sm:$0xff]
    %v1007 = vld [vmem:[%s964 + $0x150] sm:$0xff]
    %v1008 = vld [vmem:[%s964 + $0x158] sm:$0xff]
    %v1009 = vld [vmem:[%s964 + $0x160] sm:$0xff]
    %v1010 = vld [vmem:[%s964 + $0x168] sm:$0xff]
    %v1011 = vld [vmem:[%s964 + $0x170] sm:$0xff]
    %v1012 = vld [vmem:[%s964 + $0x178] sm:$0xff]
    %v1015 = vunpack.c.l.b16 %v914
    %v1016 = vunpack.c.l.b16 %v915
    %v1017 = vrot.slane %v1015, 1
    %vm1018 = vcmask 1041409
    %v1019 = vsel %vm1018, %v1016, %v1017
    %v1020 = vpack.c.b16 %v1019, %v1019
    %v1070 = vunpack.c.l.b16 %v965
    %v1071 = vunpack.c.h.b16 %v965
    %v1072 = vunpack.c.l.b16 %v966
    %v1073 = vunpack.c.h.b16 %v966
    %v1074 = vunpack.c.l.b16 %v967
    %v1075 = vunpack.c.h.b16 %v967
    %v1076 = vunpack.c.l.b16 %v968
    %v1077 = vunpack.c.h.b16 %v968
    %v1078 = vunpack.c.l.b16 %v969
    %v1079 = vunpack.c.h.b16 %v969
    %v1080 = vunpack.c.l.b16 %v970
    %v1081 = vunpack.c.h.b16 %v970
    %v1082 = vunpack.c.l.b16 %v971
    %v1083 = vunpack.c.h.b16 %v971
    %v1084 = vunpack.c.l.b16 %v972
    %v1085 = vunpack.c.h.b16 %v972
    %v1086 = vunpack.c.l.b16 %v973
    %v1087 = vunpack.c.h.b16 %v973
    %v1088 = vunpack.c.l.b16 %v974
    %v1089 = vunpack.c.h.b16 %v974
    %v1090 = vunpack.c.l.b16 %v975
    %v1091 = vunpack.c.h.b16 %v975
    %v1092 = vunpack.c.l.b16 %v976
    %v1093 = vunpack.c.h.b16 %v976
    %v1094 = vunpack.c.l.b16 %v977
    %v1095 = vunpack.c.h.b16 %v977
    %v1096 = vunpack.c.l.b16 %v978
    %v1097 = vunpack.c.h.b16 %v978
    %v1098 = vunpack.c.l.b16 %v979
    %v1099 = vunpack.c.h.b16 %v979
    %v1100 = vunpack.c.l.b16 %v980
    %v1101 = vunpack.c.h.b16 %v980
    %v1102 = vunpack.c.l.b16 %v981
    %v1103 = vunpack.c.h.b16 %v981
    %v1104 = vunpack.c.l.b16 %v982
    %v1105 = vunpack.c.h.b16 %v982
    %v1106 = vunpack.c.l.b16 %v983
    %v1107 = vunpack.c.h.b16 %v983
    %v1108 = vunpack.c.l.b16 %v984
    %v1109 = vunpack.c.h.b16 %v984
    %v1110 = vunpack.c.l.b16 %v985
    %v1111 = vunpack.c.h.b16 %v985
    %v1112 = vunpack.c.l.b16 %v986
    %v1113 = vunpack.c.h.b16 %v986
    %v1114 = vunpack.c.l.b16 %v987
    %v1115 = vunpack.c.h.b16 %v987
    %v1116 = vunpack.c.l.b16 %v988
    %v1117 = vunpack.c.h.b16 %v988
    %v1118 = vunpack.c.l.b16 %v989
    %v1119 = vunpack.c.h.b16 %v989
    %v1120 = vunpack.c.l.b16 %v990
    %v1121 = vunpack.c.h.b16 %v990
    %v1122 = vunpack.c.l.b16 %v991
    %v1123 = vunpack.c.h.b16 %v991
    %v1124 = vunpack.c.l.b16 %v992
    %v1125 = vunpack.c.h.b16 %v992
    %v1126 = vunpack.c.l.b16 %v993
    %v1127 = vunpack.c.h.b16 %v993
    %v1128 = vunpack.c.l.b16 %v994
    %v1129 = vunpack.c.h.b16 %v994
    %v1130 = vunpack.c.l.b16 %v995
    %v1131 = vunpack.c.h.b16 %v995
    %v1132 = vunpack.c.l.b16 %v996
    %v1133 = vunpack.c.h.b16 %v996
    %v1134 = vunpack.c.l.b16 %v997
    %v1135 = vunpack.c.h.b16 %v997
    %v1136 = vunpack.c.l.b16 %v998
    %v1137 = vunpack.c.h.b16 %v998
    %v1138 = vunpack.c.l.b16 %v999
    %v1139 = vunpack.c.h.b16 %v999
    %v1140 = vunpack.c.l.b16 %v1000
    %v1141 = vunpack.c.h.b16 %v1000
    %v1142 = vunpack.c.l.b16 %v1001
    %v1143 = vunpack.c.h.b16 %v1001
    %v1144 = vunpack.c.l.b16 %v1002
    %v1145 = vunpack.c.h.b16 %v1002
    %v1146 = vunpack.c.l.b16 %v1003
    %v1147 = vunpack.c.h.b16 %v1003
    %v1148 = vunpack.c.l.b16 %v1004
    %v1149 = vunpack.c.h.b16 %v1004
    %v1150 = vunpack.c.l.b16 %v1005
    %v1151 = vunpack.c.h.b16 %v1005
    %v1152 = vunpack.c.l.b16 %v1006
    %v1153 = vunpack.c.h.b16 %v1006
    %v1154 = vunpack.c.l.b16 %v1007
    %v1155 = vunpack.c.h.b16 %v1007
    %v1156 = vunpack.c.l.b16 %v1008
    %v1157 = vunpack.c.h.b16 %v1008
    %v1158 = vunpack.c.l.b16 %v1009
    %v1159 = vunpack.c.h.b16 %v1009
    %v1160 = vunpack.c.l.b16 %v1010
    %v1161 = vunpack.c.h.b16 %v1010
    %v1162 = vunpack.c.l.b16 %v1011
    %v1163 = vunpack.c.h.b16 %v1011
    %v1164 = vunpack.c.l.b16 %v1012
    %v1165 = vunpack.c.h.b16 %v1012
    %v1166 = vpack.c.b16 %v1076, %v1070
    %v1167 = vpack.c.b16 %v1077, %v1071
    %v1168 = vpack.c.b16 %v1078, %v1072
    %v1169 = vpack.c.b16 %v1079, %v1073
    %v1170 = vpack.c.b16 %v1080, %v1074
    %v1171 = vpack.c.b16 %v1081, %v1075
    %v1172 = vpack.c.b16 %v1088, %v1082
    %v1173 = vpack.c.b16 %v1089, %v1083
    %v1174 = vpack.c.b16 %v1090, %v1084
    %v1175 = vpack.c.b16 %v1091, %v1085
    %v1176 = vpack.c.b16 %v1092, %v1086
    %v1177 = vpack.c.b16 %v1093, %v1087
    %v1178 = vpack.c.b16 %v1100, %v1094
    %v1179 = vpack.c.b16 %v1101, %v1095
    %v1180 = vpack.c.b16 %v1102, %v1096
    %v1181 = vpack.c.b16 %v1103, %v1097
    %v1182 = vpack.c.b16 %v1104, %v1098
    %v1183 = vpack.c.b16 %v1105, %v1099
    %v1184 = vpack.c.b16 %v1112, %v1106
    %v1185 = vpack.c.b16 %v1113, %v1107
    %v1186 = vpack.c.b16 %v1114, %v1108
    %v1187 = vpack.c.b16 %v1115, %v1109
    %v1188 = vpack.c.b16 %v1116, %v1110
    %v1189 = vpack.c.b16 %v1117, %v1111
    %v1190 = vpack.c.b16 %v1124, %v1118
    %v1191 = vpack.c.b16 %v1125, %v1119
    %v1192 = vpack.c.b16 %v1126, %v1120
    %v1193 = vpack.c.b16 %v1127, %v1121
    %v1194 = vpack.c.b16 %v1128, %v1122
    %v1195 = vpack.c.b16 %v1129, %v1123
    %v1196 = vpack.c.b16 %v1136, %v1130
    %v1197 = vpack.c.b16 %v1137, %v1131
    %v1198 = vpack.c.b16 %v1138, %v1132
    %v1199 = vpack.c.b16 %v1139, %v1133
    %v1200 = vpack.c.b16 %v1140, %v1134
    %v1201 = vpack.c.b16 %v1141, %v1135
    %v1202 = vpack.c.b16 %v1148, %v1142
    %v1203 = vpack.c.b16 %v1149, %v1143
    %v1204 = vpack.c.b16 %v1150, %v1144
    %v1205 = vpack.c.b16 %v1151, %v1145
    %v1206 = vpack.c.b16 %v1152, %v1146
    %v1207 = vpack.c.b16 %v1153, %v1147
    %v1208 = vpack.c.b16 %v1160, %v1154
    %v1209 = vpack.c.b16 %v1161, %v1155
    %v1210 = vpack.c.b16 %v1162, %v1156
    %v1211 = vpack.c.b16 %v1163, %v1157
    %v1212 = vpack.c.b16 %v1164, %v1158
    %v1213 = vpack.c.b16 %v1165, %v1159
    %1262 = vmatprep.subr.bf16.mxu0 %v1209
    %1263 = vmatpush1.bf16.msra.mxu0 %v1208
    %1264 = vmatprep.subr.bf16.mxu0 %v1203
    %1265 = vmatpush1.bf16.msra.mxu0 %v1202
    %1266 = vmatprep.subr.bf16.mxu0 %v1197
    %1267 = vmatpush1.bf16.msra.mxu0 %v1196
    %1268 = vmatprep.subr.bf16.mxu0 %v1191
    %1269 = vmatpush1.bf16.msra.mxu0 %v1190
    %1270 = vmatprep.subr.bf16.mxu0 %v1185
    %1271 = vmatpush1.bf16.msra.mxu0 %v1184
    %1272 = vmatprep.subr.bf16.mxu0 %v1179
    %1273 = vmatpush1.bf16.msra.mxu0 %v1178
    %1274 = vmatprep.subr.bf16.mxu0 %v1173
    %1275 = vmatpush1.bf16.msra.mxu0 %v1172
    %1276 = vmatprep.subr.bf16.mxu0 %v1167
    %1277 = vmatpush1.bf16.msra.mxu0 %v1166
    %1278 = vmatprep.subr.bf16.mxu0 0
    %1279 = vmatpush2.bf16.msra.mxu0 0
    %1280 = vmatprep.subr.bf16.mxu0 0
    %1281 = vmatpush2.bf16.msra.mxu0 0
    %1282 = vmatprep.subr.bf16.mxu0 0
    %1283 = vmatpush2.bf16.msra.mxu0 0
    %1284 = vmatprep.subr.bf16.mxu0 0
    %1285 = vmatpush2.bf16.msra.mxu0 0
    %1286 = vmatprep.subr.bf16.mxu0 0
    %1287 = vmatpush2.bf16.msra.mxu0 0
    %1288 = vmatprep.subr.bf16.mxu0 0
    %1289 = vmatpush2.bf16.msra.mxu0 0
    %1290 = vmatprep.subr.bf16.mxu0 0
    %1291 = vmatpush2.bf16.msra.mxu0 0
    %1292 = vmatprep.subr.bf16.mxu0 0
    %1293 = vmatpush2.bf16.msra.mxu0 0
    %1294 = vmatprep.mubr.bf16.mxu0 0
    %1295 = vmatmul.mubr.bf16.gmra.mxu0 %v1020
    %v1296 = vpop.f32.mrf.mxu0
    %v1297 = vadd.f32 0.0, %v1296
    %v1298 = vpop.f32.mrf.mxu0
    %v1299 = vadd.f32 0.0, %v1298
    %v1300 = vpop.f32.mrf.mxu0
    %v1301 = vpop.f32.mrf.mxu0
    %1302 = vdwg.mxu0
    %1303 = vmatprep.subr.bf16.mxu0 %v1211
    %1304 = vmatpush1.bf16.msra.mxu0 %v1210
    %1305 = vmatprep.subr.bf16.mxu0 %v1205
    %1306 = vmatpush1.bf16.msra.mxu0 %v1204
    %1307 = vmatprep.subr.bf16.mxu0 %v1199
    %1308 = vmatpush1.bf16.msra.mxu0 %v1198
    %1309 = vmatprep.subr.bf16.mxu0 %v1193
    %1310 = vmatpush1.bf16.msra.mxu0 %v1192
    %1311 = vmatprep.subr.bf16.mxu0 %v1187
    %1312 = vmatpush1.bf16.msra.mxu0 %v1186
    %1313 = vmatprep.subr.bf16.mxu0 %v1181
    %1314 = vmatpush1.bf16.msra.mxu0 %v1180
    %1315 = vmatprep.subr.bf16.mxu0 %v1175
    %1316 = vmatpush1.bf16.msra.mxu0 %v1174
    %1317 = vmatprep.subr.bf16.mxu0 %v1169
    %1318 = vmatpush1.bf16.msra.mxu0 %v1168
    %1319 = vmatprep.subr.bf16.mxu0 0
    %1320 = vmatpush2.bf16.msra.mxu0 0
    %1321 = vmatprep.subr.bf16.mxu0 0
    %1322 = vmatpush2.bf16.msra.mxu0 0
    %1323 = vmatprep.subr.bf16.mxu0 0
    %1324 = vmatpush2.bf16.msra.mxu0 0
    %1325 = vmatprep.subr.bf16.mxu0 0
    %1326 = vmatpush2.bf16.msra.mxu0 0
    %1327 = vmatprep.subr.bf16.mxu0 0
    %1328 = vmatpush2.bf16.msra.mxu0 0
    %1329 = vmatprep.subr.bf16.mxu0 0
    %1330 = vmatpush2.bf16.msra.mxu0 0
    %1331 = vmatprep.subr.bf16.mxu0 0
    %1332 = vmatpush2.bf16.msra.mxu0 0
    %1333 = vmatprep.subr.bf16.mxu0 0
    %1334 = vmatpush2.bf16.msra.mxu0 0
    %1335 = vmatprep.mubr.bf16.mxu0 0
    %1336 = vmatmul.mubr.bf16.gmra.mxu0 %v1020
    %v1337 = vpop.f32.mrf.mxu0
    %v1338 = vadd.f32 0.0, %v1337
    %v1339 = vpop.f32.mrf.mxu0
    %v1340 = vadd.f32 0.0, %v1339
    %v1341 = vpop.f32.mrf.mxu0
    %v1342 = vpop.f32.mrf.mxu0
    %1343 = vdwg.mxu0
    %1344 = vmatprep.subr.bf16.mxu0 %v1213
    %1345 = vmatpush1.bf16.msra.mxu0 %v1212
    %1346 = vmatprep.subr.bf16.mxu0 %v1207
    %1347 = vmatpush1.bf16.msra.mxu0 %v1206
    %1348 = vmatprep.subr.bf16.mxu0 %v1201
    %1349 = vmatpush1.bf16.msra.mxu0 %v1200
    %1350 = vmatprep.subr.bf16.mxu0 %v1195
    %1351 = vmatpush1.bf16.msra.mxu0 %v1194
    %1352 = vmatprep.subr.bf16.mxu0 %v1189
    %1353 = vmatpush1.bf16.msra.mxu0 %v1188
    %1354 = vmatprep.subr.bf16.mxu0 %v1183
    %1355 = vmatpush1.bf16.msra.mxu0 %v1182
    %1356 = vmatprep.subr.bf16.mxu0 %v1177
    %1357 = vmatpush1.bf16.msra.mxu0 %v1176
    %1358 = vmatprep.subr.bf16.mxu0 %v1171
    %1359 = vmatpush1.bf16.msra.mxu0 %v1170
    %1360 = vmatprep.subr.bf16.mxu0 0
    %1361 = vmatpush2.bf16.msra.mxu0 0
    %1362 = vmatprep.subr.bf16.mxu0 0
    %1363 = vmatpush2.bf16.msra.mxu0 0
    %1364 = vmatprep.subr.bf16.mxu0 0
    %1365 = vmatpush2.bf16.msra.mxu0 0
    %1366 = vmatprep.subr.bf16.mxu0 0
    %1367 = vmatpush2.bf16.msra.mxu0 0
    %1368 = vmatprep.subr.bf16.mxu0 0
    %1369 = vmatpush2.bf16.msra.mxu0 0
    %1370 = vmatprep.subr.bf16.mxu0 0
    %1371 = vmatpush2.bf16.msra.mxu0 0
    %1372 = vmatprep.subr.bf16.mxu0 0
    %1373 = vmatpush2.bf16.msra.mxu0 0
    %1374 = vmatprep.subr.bf16.mxu0 0
    %1375 = vmatpush2.bf16.msra.mxu0 0
    %1376 = vmatprep.mubr.bf16.mxu0 0
    %1377 = vmatmul.mubr.bf16.gmra.mxu0 %v1020
    %v1378 = vpop.f32.mrf.mxu0
    %v1379 = vadd.f32 0.0, %v1378
    %v1380 = vpop.f32.mrf.mxu0
    %v1381 = vadd.f32 0.0, %v1380
    %v1382 = vpop.f32.mrf.mxu0
    %v1383 = vpop.f32.mrf.mxu0
    %1384 = vdwg.mxu0
    %v1385 = vrot.slane %v1016, 7
    %v1386 = vsel %vm1018, %v1385, %v1015
    %v1387 = vpack.c.b16 %v1386, %v1386
    %v1437 = vunpack.c.l.b16 %v916
    %v1438 = vunpack.c.h.b16 %v916
    %v1439 = vunpack.c.l.b16 %v917
    %v1440 = vunpack.c.h.b16 %v917
    %v1441 = vunpack.c.l.b16 %v918
    %v1442 = vunpack.c.h.b16 %v918
    %v1443 = vunpack.c.l.b16 %v919
    %v1444 = vunpack.c.h.b16 %v919
    %v1445 = vunpack.c.l.b16 %v920
    %v1446 = vunpack.c.h.b16 %v920
    %v1447 = vunpack.c.l.b16 %v921
    %v1448 = vunpack.c.h.b16 %v921
    %v1449 = vunpack.c.l.b16 %v922
    %v1450 = vunpack.c.h.b16 %v922
    %v1451 = vunpack.c.l.b16 %v923
    %v1452 = vunpack.c.h.b16 %v923
    %v1453 = vunpack.c.l.b16 %v924
    %v1454 = vunpack.c.h.b16 %v924
    %v1455 = vunpack.c.l.b16 %v925
    %v1456 = vunpack.c.h.b16 %v925
    %v1457 = vunpack.c.l.b16 %v926
    %v1458 = vunpack.c.h.b16 %v926
    %v1459 = vunpack.c.l.b16 %v927
    %v1460 = vunpack.c.h.b16 %v927
    %v1461 = vunpack.c.l.b16 %v928
    %v1462 = vunpack.c.h.b16 %v928
    %v1463 = vunpack.c.l.b16 %v929
    %v1464 = vunpack.c.h.b16 %v929
    %v1465 = vunpack.c.l.b16 %v930
    %v1466 = vunpack.c.h.b16 %v930
    %v1467 = vunpack.c.l.b16 %v931
    %v1468 = vunpack.c.h.b16 %v931
    %v1469 = vunpack.c.l.b16 %v932
    %v1470 = vunpack.c.h.b16 %v932
    %v1471 = vunpack.c.l.b16 %v933
    %v1472 = vunpack.c.h.b16 %v933
    %v1473 = vunpack.c.l.b16 %v934
    %v1474 = vunpack.c.h.b16 %v934
    %v1475 = vunpack.c.l.b16 %v935
    %v1476 = vunpack.c.h.b16 %v935
    %v1477 = vunpack.c.l.b16 %v936
    %v1478 = vunpack.c.h.b16 %v936
    %v1479 = vunpack.c.l.b16 %v937
    %v1480 = vunpack.c.h.b16 %v937
    %v1481 = vunpack.c.l.b16 %v938
    %v1482 = vunpack.c.h.b16 %v938
    %v1483 = vunpack.c.l.b16 %v939
    %v1484 = vunpack.c.h.b16 %v939
    %v1485 = vunpack.c.l.b16 %v940
    %v1486 = vunpack.c.h.b16 %v940
    %v1487 = vunpack.c.l.b16 %v941
    %v1488 = vunpack.c.h.b16 %v941
    %v1489 = vunpack.c.l.b16 %v942
    %v1490 = vunpack.c.h.b16 %v942
    %v1491 = vunpack.c.l.b16 %v943
    %v1492 = vunpack.c.h.b16 %v943
    %v1493 = vunpack.c.l.b16 %v944
    %v1494 = vunpack.c.h.b16 %v944
    %v1495 = vunpack.c.l.b16 %v945
    %v1496 = vunpack.c.h.b16 %v945
    %v1497 = vunpack.c.l.b16 %v946
    %v1498 = vunpack.c.h.b16 %v946
    %v1499 = vunpack.c.l.b16 %v947
    %v1500 = vunpack.c.h.b16 %v947
    %v1501 = vunpack.c.l.b16 %v948
    %v1502 = vunpack.c.h.b16 %v948
    %v1503 = vunpack.c.l.b16 %v949
    %v1504 = vunpack.c.h.b16 %v949
    %v1505 = vunpack.c.l.b16 %v950
    %v1506 = vunpack.c.h.b16 %v950
    %v1507 = vunpack.c.l.b16 %v951
    %v1508 = vunpack.c.h.b16 %v951
    %v1509 = vunpack.c.l.b16 %v952
    %v1510 = vunpack.c.h.b16 %v952
    %v1511 = vunpack.c.l.b16 %v953
    %v1512 = vunpack.c.h.b16 %v953
    %v1513 = vunpack.c.l.b16 %v954
    %v1514 = vunpack.c.h.b16 %v954
    %v1515 = vunpack.c.l.b16 %v955
    %v1516 = vunpack.c.h.b16 %v955
    %v1517 = vunpack.c.l.b16 %v956
    %v1518 = vunpack.c.h.b16 %v956
    %v1519 = vunpack.c.l.b16 %v957
    %v1520 = vunpack.c.h.b16 %v957
    %v1521 = vunpack.c.l.b16 %v958
    %v1522 = vunpack.c.h.b16 %v958
    %v1523 = vunpack.c.l.b16 %v959
    %v1524 = vunpack.c.h.b16 %v959
    %v1525 = vunpack.c.l.b16 %v960
    %v1526 = vunpack.c.h.b16 %v960
    %v1527 = vunpack.c.l.b16 %v961
    %v1528 = vunpack.c.h.b16 %v961
    %v1529 = vunpack.c.l.b16 %v962
    %v1530 = vunpack.c.h.b16 %v962
    %v1531 = vunpack.c.l.b16 %v963
    %v1532 = vunpack.c.h.b16 %v963
    %v1533 = vpack.c.b16 %v1443, %v1437
    %v1534 = vpack.c.b16 %v1444, %v1438
    %v1535 = vpack.c.b16 %v1445, %v1439
    %v1536 = vpack.c.b16 %v1446, %v1440
    %v1537 = vpack.c.b16 %v1447, %v1441
    %v1538 = vpack.c.b16 %v1448, %v1442
    %v1539 = vpack.c.b16 %v1455, %v1449
    %v1540 = vpack.c.b16 %v1456, %v1450
    %v1541 = vpack.c.b16 %v1457, %v1451
    %v1542 = vpack.c.b16 %v1458, %v1452
    %v1543 = vpack.c.b16 %v1459, %v1453
    %v1544 = vpack.c.b16 %v1460, %v1454
    %v1545 = vpack.c.b16 %v1467, %v1461
    %v1546 = vpack.c.b16 %v1468, %v1462
    %v1547 = vpack.c.b16 %v1469, %v1463
    %v1548 = vpack.c.b16 %v1470, %v1464
    %v1549 = vpack.c.b16 %v1471, %v1465
    %v1550 = vpack.c.b16 %v1472, %v1466
    %v1551 = vpack.c.b16 %v1479, %v1473
    %v1552 = vpack.c.b16 %v1480, %v1474
    %v1553 = vpack.c.b16 %v1481, %v1475
    %v1554 = vpack.c.b16 %v1482, %v1476
    %v1555 = vpack.c.b16 %v1483, %v1477
    %v1556 = vpack.c.b16 %v1484, %v1478
    %v1557 = vpack.c.b16 %v1491, %v1485
    %v1558 = vpack.c.b16 %v1492, %v1486
    %v1559 = vpack.c.b16 %v1493, %v1487
    %v1560 = vpack.c.b16 %v1494, %v1488
    %v1561 = vpack.c.b16 %v1495, %v1489
    %v1562 = vpack.c.b16 %v1496, %v1490
    %v1563 = vpack.c.b16 %v1503, %v1497
    %v1564 = vpack.c.b16 %v1504, %v1498
    %v1565 = vpack.c.b16 %v1505, %v1499
    %v1566 = vpack.c.b16 %v1506, %v1500
    %v1567 = vpack.c.b16 %v1507, %v1501
    %v1568 = vpack.c.b16 %v1508, %v1502
    %v1569 = vpack.c.b16 %v1515, %v1509
    %v1570 = vpack.c.b16 %v1516, %v1510
    %v1571 = vpack.c.b16 %v1517, %v1511
    %v1572 = vpack.c.b16 %v1518, %v1512
    %v1573 = vpack.c.b16 %v1519, %v1513
    %v1574 = vpack.c.b16 %v1520, %v1514
    %v1575 = vpack.c.b16 %v1527, %v1521
    %v1576 = vpack.c.b16 %v1528, %v1522
    %v1577 = vpack.c.b16 %v1529, %v1523
    %v1578 = vpack.c.b16 %v1530, %v1524
    %v1579 = vpack.c.b16 %v1531, %v1525
    %v1580 = vpack.c.b16 %v1532, %v1526
    %1629 = vmatprep.subr.bf16.mxu0 %v1576
    %1630 = vmatpush1.bf16.msra.mxu0 %v1575
    %1631 = vmatprep.subr.bf16.mxu0 %v1570
    %1632 = vmatpush1.bf16.msra.mxu0 %v1569
    %1633 = vmatprep.subr.bf16.mxu0 %v1564
    %1634 = vmatpush1.bf16.msra.mxu0 %v1563
    %1635 = vmatprep.subr.bf16.mxu0 %v1558
    %1636 = vmatpush1.bf16.msra.mxu0 %v1557
    %1637 = vmatprep.subr.bf16.mxu0 %v1552
    %1638 = vmatpush1.bf16.msra.mxu0 %v1551
    %1639 = vmatprep.subr.bf16.mxu0 %v1546
    %1640 = vmatpush1.bf16.msra.mxu0 %v1545
    %1641 = vmatprep.subr.bf16.mxu0 %v1540
    %1642 = vmatpush1.bf16.msra.mxu0 %v1539
    %1643 = vmatprep.subr.bf16.mxu0 %v1534
    %1644 = vmatpush1.bf16.msra.mxu0 %v1533
    %1645 = vmatprep.subr.bf16.mxu0 0
    %1646 = vmatpush2.bf16.msra.mxu0 0
    %1647 = vmatprep.subr.bf16.mxu0 0
    %1648 = vmatpush2.bf16.msra.mxu0 0
    %1649 = vmatprep.subr.bf16.mxu0 0
    %1650 = vmatpush2.bf16.msra.mxu0 0
    %1651 = vmatprep.subr.bf16.mxu0 0
    %1652 = vmatpush2.bf16.msra.mxu0 0
    %1653 = vmatprep.subr.bf16.mxu0 0
    %1654 = vmatpush2.bf16.msra.mxu0 0
    %1655 = vmatprep.subr.bf16.mxu0 0
    %1656 = vmatpush2.bf16.msra.mxu0 0
    %1657 = vmatprep.subr.bf16.mxu0 0
    %1658 = vmatpush2.bf16.msra.mxu0 0
    %1659 = vmatprep.subr.bf16.mxu0 0
    %1660 = vmatpush2.bf16.msra.mxu0 0
    %1661 = vmatprep.mubr.bf16.mxu0 0
    %1662 = vmatmul.mubr.bf16.gmra.mxu0 %v1387
    %v1663 = vpop.f32.mrf.mxu0
    %v1664 = vadd.f32 %v1297, %v1663
    %v1665 = vpop.f32.mrf.mxu0
    %v1666 = vadd.f32 %v1299, %v1665
    %v1667 = vpop.f32.mrf.mxu0
    %v1668 = vpop.f32.mrf.mxu0
    %1669 = vdwg.mxu0
    %1670 = vmatprep.subr.bf16.mxu0 %v1578
    %1671 = vmatpush1.bf16.msra.mxu0 %v1577
    %1672 = vmatprep.subr.bf16.mxu0 %v1572
    %1673 = vmatpush1.bf16.msra.mxu0 %v1571
    %1674 = vmatprep.subr.bf16.mxu0 %v1566
    %1675 = vmatpush1.bf16.msra.mxu0 %v1565
    %1676 = vmatprep.subr.bf16.mxu0 %v1560
    %1677 = vmatpush1.bf16.msra.mxu0 %v1559
    %1678 = vmatprep.subr.bf16.mxu0 %v1554
    %1679 = vmatpush1.bf16.msra.mxu0 %v1553
    %1680 = vmatprep.subr.bf16.mxu0 %v1548
    %1681 = vmatpush1.bf16.msra.mxu0 %v1547
    %1682 = vmatprep.subr.bf16.mxu0 %v1542
    %1683 = vmatpush1.bf16.msra.mxu0 %v1541
    %1684 = vmatprep.subr.bf16.mxu0 %v1536
    %1685 = vmatpush1.bf16.msra.mxu0 %v1535
    %1686 = vmatprep.subr.bf16.mxu0 0
    %1687 = vmatpush2.bf16.msra.mxu0 0
    %1688 = vmatprep.subr.bf16.mxu0 0
    %1689 = vmatpush2.bf16.msra.mxu0 0
    %1690 = vmatprep.subr.bf16.mxu0 0
    %1691 = vmatpush2.bf16.msra.mxu0 0
    %1692 = vmatprep.subr.bf16.mxu0 0
    %1693 = vmatpush2.bf16.msra.mxu0 0
    %1694 = vmatprep.subr.bf16.mxu0 0
    %1695 = vmatpush2.bf16.msra.mxu0 0
    %1696 = vmatprep.subr.bf16.mxu0 0
    %1697 = vmatpush2.bf16.msra.mxu0 0
    %1698 = vmatprep.subr.bf16.mxu0 0
    %1699 = vmatpush2.bf16.msra.mxu0 0
    %1700 = vmatprep.subr.bf16.mxu0 0
    %1701 = vmatpush2.bf16.msra.mxu0 0
    %1702 = vmatprep.mubr.bf16.mxu0 0
    %1703 = vmatmul.mubr.bf16.gmra.mxu0 %v1387
    %v1704 = vpop.f32.mrf.mxu0
    %v1705 = vadd.f32 %v1338, %v1704
    %v1706 = vpop.f32.mrf.mxu0
    %v1707 = vadd.f32 %v1340, %v1706
    %v1708 = vpop.f32.mrf.mxu0
    %v1709 = vpop.f32.mrf.mxu0
    %1710 = vdwg.mxu0
    %1711 = vmatprep.subr.bf16.mxu0 %v1580
    %1712 = vmatpush1.bf16.msra.mxu0 %v1579
    %1713 = vmatprep.subr.bf16.mxu0 %v1574
    %1714 = vmatpush1.bf16.msra.mxu0 %v1573
    %1715 = vmatprep.subr.bf16.mxu0 %v1568
    %1716 = vmatpush1.bf16.msra.mxu0 %v1567
    %1717 = vmatprep.subr.bf16.mxu0 %v1562
    %1718 = vmatpush1.bf16.msra.mxu0 %v1561
    %1719 = vmatprep.subr.bf16.mxu0 %v1556
    %1720 = vmatpush1.bf16.msra.mxu0 %v1555
    %1721 = vmatprep.subr.bf16.mxu0 %v1550
    %1722 = vmatpush1.bf16.msra.mxu0 %v1549
    %1723 = vmatprep.subr.bf16.mxu0 %v1544
    %1724 = vmatpush1.bf16.msra.mxu0 %v1543
    %1725 = vmatprep.subr.bf16.mxu0 %v1538
    %1726 = vmatpush1.bf16.msra.mxu0 %v1537
    %1727 = vmatprep.subr.bf16.mxu0 0
    %1728 = vmatpush2.bf16.msra.mxu0 0
    %1729 = vmatprep.subr.bf16.mxu0 0
    %1730 = vmatpush2.bf16.msra.mxu0 0
    %1731 = vmatprep.subr.bf16.mxu0 0
    %1732 = vmatpush2.bf16.msra.mxu0 0
    %1733 = vmatprep.subr.bf16.mxu0 0
    %1734 = vmatpush2.bf16.msra.mxu0 0
    %1735 = vmatprep.subr.bf16.mxu0 0
    %1736 = vmatpush2.bf16.msra.mxu0 0
    %1737 = vmatprep.subr.bf16.mxu0 0
    %1738 = vmatpush2.bf16.msra.mxu0 0
    %1739 = vmatprep.subr.bf16.mxu0 0
    %1740 = vmatpush2.bf16.msra.mxu0 0
    %1741 = vmatprep.subr.bf16.mxu0 0
    %1742 = vmatpush2.bf16.msra.mxu0 0
    %1743 = vmatprep.mubr.bf16.mxu0 0
    %1744 = vmatmul.mubr.bf16.gmra.mxu0 %v1387
    %v1745 = vpop.f32.mrf.mxu0
    %v1746 = vadd.f32 %v1379, %v1745
    %v1747 = vpop.f32.mrf.mxu0
    %v1748 = vadd.f32 %v1381, %v1747
    %v1749 = vpop.f32.mrf.mxu0
    %v1750 = vpop.f32.mrf.mxu0
    %1751 = vdwg.mxu0
    %s1752 = scalar_lea.vmem [#allocation8], 768
    %v1753 = vld [vmem:[%s1752] sm:$0xff]
    %v1754 = vld [vmem:[%s1752 + $0x8] sm:$0xff]
    %v1755 = vld [vmem:[%s1752 + $0x10] sm:$0xff]
    %v1756 = vld [vmem:[%s1752 + $0x18] sm:$0xff]
    %v1757 = vld [vmem:[%s1752 + $0x20] sm:$0xff]
    %v1758 = vld [vmem:[%s1752 + $0x28] sm:$0xff]
    %v1759 = vld [vmem:[%s1752 + $0x30] sm:$0xff]
    %v1760 = vld [vmem:[%s1752 + $0x38] sm:$0xff]
    %v1761 = vld [vmem:[%s1752 + $0x40] sm:$0xff]
    %v1762 = vld [vmem:[%s1752 + $0x48] sm:$0xff]
    %v1763 = vld [vmem:[%s1752 + $0x50] sm:$0xff]
    %v1764 = vld [vmem:[%s1752 + $0x58] sm:$0xff]
    %v1765 = vld [vmem:[%s1752 + $0x60] sm:$0xff]
    %v1766 = vld [vmem:[%s1752 + $0x68] sm:$0xff]
    %v1767 = vld [vmem:[%s1752 + $0x70] sm:$0xff]
    %v1768 = vld [vmem:[%s1752 + $0x78] sm:$0xff]
    %v1769 = vld [vmem:[%s1752 + $0x80] sm:$0xff]
    %v1770 = vld [vmem:[%s1752 + $0x88] sm:$0xff]
    %v1771 = vld [vmem:[%s1752 + $0x90] sm:$0xff]
    %v1772 = vld [vmem:[%s1752 + $0x98] sm:$0xff]
    %v1773 = vld [vmem:[%s1752 + $0xa0] sm:$0xff]
    %v1774 = vld [vmem:[%s1752 + $0xa8] sm:$0xff]
    %v1775 = vld [vmem:[%s1752 + $0xb0] sm:$0xff]
    %v1776 = vld [vmem:[%s1752 + $0xb8] sm:$0xff]
    %v1777 = vld [vmem:[%s1752 + $0xc0] sm:$0xff]
    %v1778 = vld [vmem:[%s1752 + $0xc8] sm:$0xff]
    %v1779 = vld [vmem:[%s1752 + $0xd0] sm:$0xff]
    %v1780 = vld [vmem:[%s1752 + $0xd8] sm:$0xff]
    %v1781 = vld [vmem:[%s1752 + $0xe0] sm:$0xff]
    %v1782 = vld [vmem:[%s1752 + $0xe8] sm:$0xff]
    %v1783 = vld [vmem:[%s1752 + $0xf0] sm:$0xff]
    %v1784 = vld [vmem:[%s1752 + $0xf8] sm:$0xff]
    %v1785 = vld [vmem:[%s1752 + $0x100] sm:$0xff]
    %v1786 = vld [vmem:[%s1752 + $0x108] sm:$0xff]
    %v1787 = vld [vmem:[%s1752 + $0x110] sm:$0xff]
    %v1788 = vld [vmem:[%s1752 + $0x118] sm:$0xff]
    %v1789 = vld [vmem:[%s1752 + $0x120] sm:$0xff]
    %v1790 = vld [vmem:[%s1752 + $0x128] sm:$0xff]
    %v1791 = vld [vmem:[%s1752 + $0x130] sm:$0xff]
    %v1792 = vld [vmem:[%s1752 + $0x138] sm:$0xff]
    %v1793 = vld [vmem:[%s1752 + $0x140] sm:$0xff]
    %v1794 = vld [vmem:[%s1752 + $0x148] sm:$0xff]
    %v1795 = vld [vmem:[%s1752 + $0x150] sm:$0xff]
    %v1796 = vld [vmem:[%s1752 + $0x158] sm:$0xff]
    %v1797 = vld [vmem:[%s1752 + $0x160] sm:$0xff]
    %v1798 = vld [vmem:[%s1752 + $0x168] sm:$0xff]
    %v1799 = vld [vmem:[%s1752 + $0x170] sm:$0xff]
    %v1800 = vld [vmem:[%s1752 + $0x178] sm:$0xff]
    %v1801 = vrot.slane %v1015, 2
    %v1802 = vrot.slane %v1016, 1
    %v1803 = vsel %vm1018, %v1802, %v1801
    %v1804 = vpack.c.b16 %v1803, %v1803
    %v1854 = vunpack.c.l.b16 %v1753
    %v1855 = vunpack.c.h.b16 %v1753
    %v1856 = vunpack.c.l.b16 %v1754
    %v1857 = vunpack.c.h.b16 %v1754
    %v1858 = vunpack.c.l.b16 %v1755
    %v1859 = vunpack.c.h.b16 %v1755
    %v1860 = vunpack.c.l.b16 %v1756
    %v1861 = vunpack.c.h.b16 %v1756
    %v1862 = vunpack.c.l.b16 %v1757
    %v1863 = vunpack.c.h.b16 %v1757
    %v1864 = vunpack.c.l.b16 %v1758
    %v1865 = vunpack.c.h.b16 %v1758
    %v1866 = vunpack.c.l.b16 %v1759
    %v1867 = vunpack.c.h.b16 %v1759
    %v1868 = vunpack.c.l.b16 %v1760
    %v1869 = vunpack.c.h.b16 %v1760
    %v1870 = vunpack.c.l.b16 %v1761
    %v1871 = vunpack.c.h.b16 %v1761
    %v1872 = vunpack.c.l.b16 %v1762
    %v1873 = vunpack.c.h.b16 %v1762
    %v1874 = vunpack.c.l.b16 %v1763
    %v1875 = vunpack.c.h.b16 %v1763
    %v1876 = vunpack.c.l.b16 %v1764
    %v1877 = vunpack.c.h.b16 %v1764
    %v1878 = vunpack.c.l.b16 %v1765
    %v1879 = vunpack.c.h.b16 %v1765
    %v1880 = vunpack.c.l.b16 %v1766
    %v1881 = vunpack.c.h.b16 %v1766
    %v1882 = vunpack.c.l.b16 %v1767
    %v1883 = vunpack.c.h.b16 %v1767
    %v1884 = vunpack.c.l.b16 %v1768
    %v1885 = vunpack.c.h.b16 %v1768
    %v1886 = vunpack.c.l.b16 %v1769
    %v1887 = vunpack.c.h.b16 %v1769
    %v1888 = vunpack.c.l.b16 %v1770
    %v1889 = vunpack.c.h.b16 %v1770
    %v1890 = vunpack.c.l.b16 %v1771
    %v1891 = vunpack.c.h.b16 %v1771
    %v1892 = vunpack.c.l.b16 %v1772
    %v1893 = vunpack.c.h.b16 %v1772
    %v1894 = vunpack.c.l.b16 %v1773
    %v1895 = vunpack.c.h.b16 %v1773
    %v1896 = vunpack.c.l.b16 %v1774
    %v1897 = vunpack.c.h.b16 %v1774
    %v1898 = vunpack.c.l.b16 %v1775
    %v1899 = vunpack.c.h.b16 %v1775
    %v1900 = vunpack.c.l.b16 %v1776
    %v1901 = vunpack.c.h.b16 %v1776
    %v1902 = vunpack.c.l.b16 %v1777
    %v1903 = vunpack.c.h.b16 %v1777
    %v1904 = vunpack.c.l.b16 %v1778
    %v1905 = vunpack.c.h.b16 %v1778
    %v1906 = vunpack.c.l.b16 %v1779
    %v1907 = vunpack.c.h.b16 %v1779
    %v1908 = vunpack.c.l.b16 %v1780
    %v1909 = vunpack.c.h.b16 %v1780
    %v1910 = vunpack.c.l.b16 %v1781
    %v1911 = vunpack.c.h.b16 %v1781
    %v1912 = vunpack.c.l.b16 %v1782
    %v1913 = vunpack.c.h.b16 %v1782
    %v1914 = vunpack.c.l.b16 %v1783
    %v1915 = vunpack.c.h.b16 %v1783
    %v1916 = vunpack.c.l.b16 %v1784
    %v1917 = vunpack.c.h.b16 %v1784
    %v1918 = vunpack.c.l.b16 %v1785
    %v1919 = vunpack.c.h.b16 %v1785
    %v1920 = vunpack.c.l.b16 %v1786
    %v1921 = vunpack.c.h.b16 %v1786
    %v1922 = vunpack.c.l.b16 %v1787
    %v1923 = vunpack.c.h.b16 %v1787
    %v1924 = vunpack.c.l.b16 %v1788
    %v1925 = vunpack.c.h.b16 %v1788
    %v1926 = vunpack.c.l.b16 %v1789
    %v1927 = vunpack.c.h.b16 %v1789
    %v1928 = vunpack.c.l.b16 %v1790
    %v1929 = vunpack.c.h.b16 %v1790
    %v1930 = vunpack.c.l.b16 %v1791
    %v1931 = vunpack.c.h.b16 %v1791
    %v1932 = vunpack.c.l.b16 %v1792
    %v1933 = vunpack.c.h.b16 %v1792
    %v1934 = vunpack.c.l.b16 %v1793
    %v1935 = vunpack.c.h.b16 %v1793
    %v1936 = vunpack.c.l.b16 %v1794
    %v1937 = vunpack.c.h.b16 %v1794
    %v1938 = vunpack.c.l.b16 %v1795
    %v1939 = vunpack.c.h.b16 %v1795
    %v1940 = vunpack.c.l.b16 %v1796
    %v1941 = vunpack.c.h.b16 %v1796
    %v1942 = vunpack.c.l.b16 %v1797
    %v1943 = vunpack.c.h.b16 %v1797
    %v1944 = vunpack.c.l.b16 %v1798
    %v1945 = vunpack.c.h.b16 %v1798
    %v1946 = vunpack.c.l.b16 %v1799
    %v1947 = vunpack.c.h.b16 %v1799
    %v1948 = vunpack.c.l.b16 %v1800
    %v1949 = vunpack.c.h.b16 %v1800
    %v1950 = vpack.c.b16 %v1860, %v1854
    %v1951 = vpack.c.b16 %v1861, %v1855
    %v1952 = vpack.c.b16 %v1862, %v1856
    %v1953 = vpack.c.b16 %v1863, %v1857
    %v1954 = vpack.c.b16 %v1864, %v1858
    %v1955 = vpack.c.b16 %v1865, %v1859
    %v1956 = vpack.c.b16 %v1872, %v1866
    %v1957 = vpack.c.b16 %v1873, %v1867
    %v1958 = vpack.c.b16 %v1874, %v1868
    %v1959 = vpack.c.b16 %v1875, %v1869
    %v1960 = vpack.c.b16 %v1876, %v1870
    %v1961 = vpack.c.b16 %v1877, %v1871
    %v1962 = vpack.c.b16 %v1884, %v1878
    %v1963 = vpack.c.b16 %v1885, %v1879
    %v1964 = vpack.c.b16 %v1886, %v1880
    %v1965 = vpack.c.b16 %v1887, %v1881
    %v1966 = vpack.c.b16 %v1888, %v1882
    %v1967 = vpack.c.b16 %v1889, %v1883
    %v1968 = vpack.c.b16 %v1896, %v1890
    %v1969 = vpack.c.b16 %v1897, %v1891
    %v1970 = vpack.c.b16 %v1898, %v1892
    %v1971 = vpack.c.b16 %v1899, %v1893
    %v1972 = vpack.c.b16 %v1900, %v1894
    %v1973 = vpack.c.b16 %v1901, %v1895
    %v1974 = vpack.c.b16 %v1908, %v1902
    %v1975 = vpack.c.b16 %v1909, %v1903
    %v1976 = vpack.c.b16 %v1910, %v1904
    %v1977 = vpack.c.b16 %v1911, %v1905
    %v1978 = vpack.c.b16 %v1912, %v1906
    %v1979 = vpack.c.b16 %v1913, %v1907
    %v1980 = vpack.c.b16 %v1920, %v1914
    %v1981 = vpack.c.b16 %v1921, %v1915
    %v1982 = vpack.c.b16 %v1922, %v1916
    %v1983 = vpack.c.b16 %v1923, %v1917
    %v1984 = vpack.c.b16 %v1924, %v1918
    %v1985 = vpack.c.b16 %v1925, %v1919
    %v1986 = vpack.c.b16 %v1932, %v1926
    %v1987 = vpack.c.b16 %v1933, %v1927
    %v1988 = vpack.c.b16 %v1934, %v1928
    %v1989 = vpack.c.b16 %v1935, %v1929
    %v1990 = vpack.c.b16 %v1936, %v1930
    %v1991 = vpack.c.b16 %v1937, %v1931
    %v1992 = vpack.c.b16 %v1944, %v1938
    %v1993 = vpack.c.b16 %v1945, %v1939
    %v1994 = vpack.c.b16 %v1946, %v1940
    %v1995 = vpack.c.b16 %v1947, %v1941
    %v1996 = vpack.c.b16 %v1948, %v1942
    %v1997 = vpack.c.b16 %v1949, %v1943
    %2046 = vmatprep.subr.bf16.mxu0 %v1993
    %2047 = vmatpush1.bf16.msra.mxu0 %v1992
    %2048 = vmatprep.subr.bf16.mxu0 %v1987
    %2049 = vmatpush1.bf16.msra.mxu0 %v1986
    %2050 = vmatprep.subr.bf16.mxu0 %v1981
    %2051 = vmatpush1.bf16.msra.mxu0 %v1980
    %2052 = vmatprep.subr.bf16.mxu0 %v1975
    %2053 = vmatpush1.bf16.msra.mxu0 %v1974
    %2054 = vmatprep.subr.bf16.mxu0 %v1969
    %2055 = vmatpush1.bf16.msra.mxu0 %v1968
    %2056 = vmatprep.subr.bf16.mxu0 %v1963
    %2057 = vmatpush1.bf16.msra.mxu0 %v1962
    %2058 = vmatprep.subr.bf16.mxu0 %v1957
    %2059 = vmatpush1.bf16.msra.mxu0 %v1956
    %2060 = vmatprep.subr.bf16.mxu0 %v1951
    %2061 = vmatpush1.bf16.msra.mxu0 %v1950
    %2062 = vmatprep.subr.bf16.mxu0 0
    %2063 = vmatpush2.bf16.msra.mxu0 0
    %2064 = vmatprep.subr.bf16.mxu0 0
    %2065 = vmatpush2.bf16.msra.mxu0 0
    %2066 = vmatprep.subr.bf16.mxu0 0
    %2067 = vmatpush2.bf16.msra.mxu0 0
    %2068 = vmatprep.subr.bf16.mxu0 0
    %2069 = vmatpush2.bf16.msra.mxu0 0
    %2070 = vmatprep.subr.bf16.mxu0 0
    %2071 = vmatpush2.bf16.msra.mxu0 0
    %2072 = vmatprep.subr.bf16.mxu0 0
    %2073 = vmatpush2.bf16.msra.mxu0 0
    %2074 = vmatprep.subr.bf16.mxu0 0
    %2075 = vmatpush2.bf16.msra.mxu0 0
    %2076 = vmatprep.subr.bf16.mxu0 0
    %2077 = vmatpush2.bf16.msra.mxu0 0
    %2078 = vmatprep.mubr.bf16.mxu0 0
    %2079 = vmatmul.mubr.bf16.gmra.mxu0 %v1804
    %v2080 = vpop.f32.mrf.mxu0
    %v2081 = vadd.f32 0.0, %v2080
    %v2082 = vpop.f32.mrf.mxu0
    %v2083 = vadd.f32 0.0, %v2082
    %v2084 = vpop.f32.mrf.mxu0
    %v2085 = vpop.f32.mrf.mxu0
    %2086 = vdwg.mxu0
    %2087 = vmatprep.subr.bf16.mxu0 %v1995
    %2088 = vmatpush1.bf16.msra.mxu0 %v1994
    %2089 = vmatprep.subr.bf16.mxu0 %v1989
    %2090 = vmatpush1.bf16.msra.mxu0 %v1988
    %2091 = vmatprep.subr.bf16.mxu0 %v1983
    %2092 = vmatpush1.bf16.msra.mxu0 %v1982
    %2093 = vmatprep.subr.bf16.mxu0 %v1977
    %2094 = vmatpush1.bf16.msra.mxu0 %v1976
    %2095 = vmatprep.subr.bf16.mxu0 %v1971
    %2096 = vmatpush1.bf16.msra.mxu0 %v1970
    %2097 = vmatprep.subr.bf16.mxu0 %v1965
    %2098 = vmatpush1.bf16.msra.mxu0 %v1964
    %2099 = vmatprep.subr.bf16.mxu0 %v1959
    %2100 = vmatpush1.bf16.msra.mxu0 %v1958
    %2101 = vmatprep.subr.bf16.mxu0 %v1953
    %2102 = vmatpush1.bf16.msra.mxu0 %v1952
    %2103 = vmatprep.subr.bf16.mxu0 0
    %2104 = vmatpush2.bf16.msra.mxu0 0
    %2105 = vmatprep.subr.bf16.mxu0 0
    %2106 = vmatpush2.bf16.msra.mxu0 0
    %2107 = vmatprep.subr.bf16.mxu0 0
    %2108 = vmatpush2.bf16.msra.mxu0 0
    %2109 = vmatprep.subr.bf16.mxu0 0
    %2110 = vmatpush2.bf16.msra.mxu0 0
    %2111 = vmatprep.subr.bf16.mxu0 0
    %2112 = vmatpush2.bf16.msra.mxu0 0
    %2113 = vmatprep.subr.bf16.mxu0 0
    %2114 = vmatpush2.bf16.msra.mxu0 0
    %2115 = vmatprep.subr.bf16.mxu0 0
    %2116 = vmatpush2.bf16.msra.mxu0 0
    %2117 = vmatprep.subr.bf16.mxu0 0
    %2118 = vmatpush2.bf16.msra.mxu0 0
    %2119 = vmatprep.mubr.bf16.mxu0 0
    %2120 = vmatmul.mubr.bf16.gmra.mxu0 %v1804
    %v2121 = vpop.f32.mrf.mxu0
    %v2122 = vadd.f32 0.0, %v2121
    %v2123 = vpop.f32.mrf.mxu0
    %v2124 = vadd.f32 0.0, %v2123
    %v2125 = vpop.f32.mrf.mxu0
    %v2126 = vpop.f32.mrf.mxu0
    %2127 = vdwg.mxu0
    %2128 = vmatprep.subr.bf16.mxu0 %v1997
    %2129 = vmatpush1.bf16.msra.mxu0 %v1996
    %2130 = vmatprep.subr.bf16.mxu0 %v1991
    %2131 = vmatpush1.bf16.msra.mxu0 %v1990
    %2132 = vmatprep.subr.bf16.mxu0 %v1985
    %2133 = vmatpush1.bf16.msra.mxu0 %v1984
    %2134 = vmatprep.subr.bf16.mxu0 %v1979
    %2135 = vmatpush1.bf16.msra.mxu0 %v1978
    %2136 = vmatprep.subr.bf16.mxu0 %v1973
    %2137 = vmatpush1.bf16.msra.mxu0 %v1972
    %2138 = vmatprep.subr.bf16.mxu0 %v1967
    %2139 = vmatpush1.bf16.msra.mxu0 %v1966
    %2140 = vmatprep.subr.bf16.mxu0 %v1961
    %2141 = vmatpush1.bf16.msra.mxu0 %v1960
    %2142 = vmatprep.subr.bf16.mxu0 %v1955
    %2143 = vmatpush1.bf16.msra.mxu0 %v1954
    %2144 = vmatprep.subr.bf16.mxu0 0
    %2145 = vmatpush2.bf16.msra.mxu0 0
    %2146 = vmatprep.subr.bf16.mxu0 0
    %2147 = vmatpush2.bf16.msra.mxu0 0
    %2148 = vmatprep.subr.bf16.mxu0 0
    %2149 = vmatpush2.bf16.msra.mxu0 0
    %2150 = vmatprep.subr.bf16.mxu0 0
    %2151 = vmatpush2.bf16.msra.mxu0 0
    %2152 = vmatprep.subr.bf16.mxu0 0
    %2153 = vmatpush2.bf16.msra.mxu0 0
    %2154 = vmatprep.subr.bf16.mxu0 0
    %2155 = vmatpush2.bf16.msra.mxu0 0
    %2156 = vmatprep.subr.bf16.mxu0 0
    %2157 = vmatpush2.bf16.msra.mxu0 0
    %2158 = vmatprep.subr.bf16.mxu0 0
    %2159 = vmatpush2.bf16.msra.mxu0 0
    %2160 = vmatprep.mubr.bf16.mxu0 0
    %2161 = vmatmul.mubr.bf16.gmra.mxu0 %v1804
    %v2162 = vpop.f32.mrf.mxu0
    %v2163 = vadd.f32 0.0, %v2162
    %v2164 = vpop.f32.mrf.mxu0
    %v2165 = vadd.f32 0.0, %v2164
    %v2166 = vpop.f32.mrf.mxu0
    %v2167 = vpop.f32.mrf.mxu0
    %2168 = vdwg.mxu0
    %v2169 = vadd.f32 %v1664, %v2081
    %v2170 = vadd.f32 %v1666, %v2083
    %v2171 = vadd.f32 %v1705, %v2122
    %v2172 = vadd.f32 %v1707, %v2124
    %v2173 = vadd.f32 %v1746, %v2163
    %v2174 = vadd.f32 %v1748, %v2165
    %s2175 = scalar_lea.vmem [#allocation8], 1152
    %v2176 = vld [vmem:[%s2175] sm:$0xff]
    %v2177 = vld [vmem:[%s2175 + $0x8] sm:$0xff]
    %v2178 = vld [vmem:[%s2175 + $0x10] sm:$0xff]
    %v2179 = vld [vmem:[%s2175 + $0x18] sm:$0xff]
    %v2180 = vld [vmem:[%s2175 + $0x20] sm:$0xff]
    %v2181 = vld [vmem:[%s2175 + $0x28] sm:$0xff]
    %v2182 = vld [vmem:[%s2175 + $0x30] sm:$0xff]
    %v2183 = vld [vmem:[%s2175 + $0x38] sm:$0xff]
    %v2184 = vld [vmem:[%s2175 + $0x40] sm:$0xff]
    %v2185 = vld [vmem:[%s2175 + $0x48] sm:$0xff]
    %v2186 = vld [vmem:[%s2175 + $0x50] sm:$0xff]
    %v2187 = vld [vmem:[%s2175 + $0x58] sm:$0xff]
    %v2188 = vld [vmem:[%s2175 + $0x60] sm:$0xff]
    %v2189 = vld [vmem:[%s2175 + $0x68] sm:$0xff]
    %v2190 = vld [vmem:[%s2175 + $0x70] sm:$0xff]
    %v2191 = vld [vmem:[%s2175 + $0x78] sm:$0xff]
    %v2192 = vld [vmem:[%s2175 + $0x80] sm:$0xff]
    %v2193 = vld [vmem:[%s2175 + $0x88] sm:$0xff]
    %v2194 = vld [vmem:[%s2175 + $0x90] sm:$0xff]
    %v2195 = vld [vmem:[%s2175 + $0x98] sm:$0xff]
    %v2196 = vld [vmem:[%s2175 + $0xa0] sm:$0xff]
    %v2197 = vld [vmem:[%s2175 + $0xa8] sm:$0xff]
    %v2198 = vld [vmem:[%s2175 + $0xb0] sm:$0xff]
    %v2199 = vld [vmem:[%s2175 + $0xb8] sm:$0xff]
    %v2200 = vld [vmem:[%s2175 + $0xc0] sm:$0xff]
    %v2201 = vld [vmem:[%s2175 + $0xc8] sm:$0xff]
    %v2202 = vld [vmem:[%s2175 + $0xd0] sm:$0xff]
    %v2203 = vld [vmem:[%s2175 + $0xd8] sm:$0xff]
    %v2204 = vld [vmem:[%s2175 + $0xe0] sm:$0xff]
    %v2205 = vld [vmem:[%s2175 + $0xe8] sm:$0xff]
    %v2206 = vld [vmem:[%s2175 + $0xf0] sm:$0xff]
    %v2207 = vld [vmem:[%s2175 + $0xf8] sm:$0xff]
    %v2208 = vld [vmem:[%s2175 + $0x100] sm:$0xff]
    %v2209 = vld [vmem:[%s2175 + $0x108] sm:$0xff]
    %v2210 = vld [vmem:[%s2175 + $0x110] sm:$0xff]
    %v2211 = vld [vmem:[%s2175 + $0x118] sm:$0xff]
    %v2212 = vld [vmem:[%s2175 + $0x120] sm:$0xff]
    %v2213 = vld [vmem:[%s2175 + $0x128] sm:$0xff]
    %v2214 = vld [vmem:[%s2175 + $0x130] sm:$0xff]
    %v2215 = vld [vmem:[%s2175 + $0x138] sm:$0xff]
    %v2216 = vld [vmem:[%s2175 + $0x140] sm:$0xff]
    %v2217 = vld [vmem:[%s2175 + $0x148] sm:$0xff]
    %v2218 = vld [vmem:[%s2175 + $0x150] sm:$0xff]
    %v2219 = vld [vmem:[%s2175 + $0x158] sm:$0xff]
    %v2220 = vld [vmem:[%s2175 + $0x160] sm:$0xff]
    %v2221 = vld [vmem:[%s2175 + $0x168] sm:$0xff]
    %v2222 = vld [vmem:[%s2175 + $0x170] sm:$0xff]
    %v2223 = vld [vmem:[%s2175 + $0x178] sm:$0xff]
    %v2224 = vrot.slane %v1015, 3
    %v2225 = vrot.slane %v1016, 2
    %v2226 = vsel %vm1018, %v2225, %v2224
    %v2227 = vpack.c.b16 %v2226, %v2226
    %v2277 = vunpack.c.l.b16 %v2176
    %v2278 = vunpack.c.h.b16 %v2176
    %v2279 = vunpack.c.l.b16 %v2177
    %v2280 = vunpack.c.h.b16 %v2177
    %v2281 = vunpack.c.l.b16 %v2178
    %v2282 = vunpack.c.h.b16 %v2178
    %v2283 = vunpack.c.l.b16 %v2179
    %v2284 = vunpack.c.h.b16 %v2179
    %v2285 = vunpack.c.l.b16 %v2180
    %v2286 = vunpack.c.h.b16 %v2180
    %v2287 = vunpack.c.l.b16 %v2181
    %v2288 = vunpack.c.h.b16 %v2181
    %v2289 = vunpack.c.l.b16 %v2182
    %v2290 = vunpack.c.h.b16 %v2182
    %v2291 = vunpack.c.l.b16 %v2183
    %v2292 = vunpack.c.h.b16 %v2183
    %v2293 = vunpack.c.l.b16 %v2184
    %v2294 = vunpack.c.h.b16 %v2184
    %v2295 = vunpack.c.l.b16 %v2185
    %v2296 = vunpack.c.h.b16 %v2185
    %v2297 = vunpack.c.l.b16 %v2186
    %v2298 = vunpack.c.h.b16 %v2186
    %v2299 = vunpack.c.l.b16 %v2187
    %v2300 = vunpack.c.h.b16 %v2187
    %v2301 = vunpack.c.l.b16 %v2188
    %v2302 = vunpack.c.h.b16 %v2188
    %v2303 = vunpack.c.l.b16 %v2189
    %v2304 = vunpack.c.h.b16 %v2189
    %v2305 = vunpack.c.l.b16 %v2190
    %v2306 = vunpack.c.h.b16 %v2190
    %v2307 = vunpack.c.l.b16 %v2191
    %v2308 = vunpack.c.h.b16 %v2191
    %v2309 = vunpack.c.l.b16 %v2192
    %v2310 = vunpack.c.h.b16 %v2192
    %v2311 = vunpack.c.l.b16 %v2193
    %v2312 = vunpack.c.h.b16 %v2193
    %v2313 = vunpack.c.l.b16 %v2194
    %v2314 = vunpack.c.h.b16 %v2194
    %v2315 = vunpack.c.l.b16 %v2195
    %v2316 = vunpack.c.h.b16 %v2195
    %v2317 = vunpack.c.l.b16 %v2196
    %v2318 = vunpack.c.h.b16 %v2196
    %v2319 = vunpack.c.l.b16 %v2197
    %v2320 = vunpack.c.h.b16 %v2197
    %v2321 = vunpack.c.l.b16 %v2198
    %v2322 = vunpack.c.h.b16 %v2198
    %v2323 = vunpack.c.l.b16 %v2199
    %v2324 = vunpack.c.h.b16 %v2199
    %v2325 = vunpack.c.l.b16 %v2200
    %v2326 = vunpack.c.h.b16 %v2200
    %v2327 = vunpack.c.l.b16 %v2201
    %v2328 = vunpack.c.h.b16 %v2201
    %v2329 = vunpack.c.l.b16 %v2202
    %v2330 = vunpack.c.h.b16 %v2202
    %v2331 = vunpack.c.l.b16 %v2203
    %v2332 = vunpack.c.h.b16 %v2203
    %v2333 = vunpack.c.l.b16 %v2204
    %v2334 = vunpack.c.h.b16 %v2204
    %v2335 = vunpack.c.l.b16 %v2205
    %v2336 = vunpack.c.h.b16 %v2205
    %v2337 = vunpack.c.l.b16 %v2206
    %v2338 = vunpack.c.h.b16 %v2206
    %v2339 = vunpack.c.l.b16 %v2207
    %v2340 = vunpack.c.h.b16 %v2207
    %v2341 = vunpack.c.l.b16 %v2208
    %v2342 = vunpack.c.h.b16 %v2208
    %v2343 = vunpack.c.l.b16 %v2209
    %v2344 = vunpack.c.h.b16 %v2209
    %v2345 = vunpack.c.l.b16 %v2210
    %v2346 = vunpack.c.h.b16 %v2210
    %v2347 = vunpack.c.l.b16 %v2211
    %v2348 = vunpack.c.h.b16 %v2211
    %v2349 = vunpack.c.l.b16 %v2212
    %v2350 = vunpack.c.h.b16 %v2212
    %v2351 = vunpack.c.l.b16 %v2213
    %v2352 = vunpack.c.h.b16 %v2213
    %v2353 = vunpack.c.l.b16 %v2214
    %v2354 = vunpack.c.h.b16 %v2214
    %v2355 = vunpack.c.l.b16 %v2215
    %v2356 = vunpack.c.h.b16 %v2215
    %v2357 = vunpack.c.l.b16 %v2216
    %v2358 = vunpack.c.h.b16 %v2216
    %v2359 = vunpack.c.l.b16 %v2217
    %v2360 = vunpack.c.h.b16 %v2217
    %v2361 = vunpack.c.l.b16 %v2218
    %v2362 = vunpack.c.h.b16 %v2218
    %v2363 = vunpack.c.l.b16 %v2219
    %v2364 = vunpack.c.h.b16 %v2219
    %v2365 = vunpack.c.l.b16 %v2220
    %v2366 = vunpack.c.h.b16 %v2220
    %v2367 = vunpack.c.l.b16 %v2221
    %v2368 = vunpack.c.h.b16 %v2221
    %v2369 = vunpack.c.l.b16 %v2222
    %v2370 = vunpack.c.h.b16 %v2222
    %v2371 = vunpack.c.l.b16 %v2223
    %v2372 = vunpack.c.h.b16 %v2223
    %v2373 = vpack.c.b16 %v2283, %v2277
    %v2374 = vpack.c.b16 %v2284, %v2278
    %v2375 = vpack.c.b16 %v2285, %v2279
    %v2376 = vpack.c.b16 %v2286, %v2280
    %v2377 = vpack.c.b16 %v2287, %v2281
    %v2378 = vpack.c.b16 %v2288, %v2282
    %v2379 = vpack.c.b16 %v2295, %v2289
    %v2380 = vpack.c.b16 %v2296, %v2290
    %v2381 = vpack.c.b16 %v2297, %v2291
    %v2382 = vpack.c.b16 %v2298, %v2292
    %v2383 = vpack.c.b16 %v2299, %v2293
    %v2384 = vpack.c.b16 %v2300, %v2294
    %v2385 = vpack.c.b16 %v2307, %v2301
    %v2386 = vpack.c.b16 %v2308, %v2302
    %v2387 = vpack.c.b16 %v2309, %v2303
    %v2388 = vpack.c.b16 %v2310, %v2304
    %v2389 = vpack.c.b16 %v2311, %v2305
    %v2390 = vpack.c.b16 %v2312, %v2306
    %v2391 = vpack.c.b16 %v2319, %v2313
    %v2392 = vpack.c.b16 %v2320, %v2314
    %v2393 = vpack.c.b16 %v2321, %v2315
    %v2394 = vpack.c.b16 %v2322, %v2316
    %v2395 = vpack.c.b16 %v2323, %v2317
    %v2396 = vpack.c.b16 %v2324, %v2318
    %v2397 = vpack.c.b16 %v2331, %v2325
    %v2398 = vpack.c.b16 %v2332, %v2326
    %v2399 = vpack.c.b16 %v2333, %v2327
    %v2400 = vpack.c.b16 %v2334, %v2328
    %v2401 = vpack.c.b16 %v2335, %v2329
    %v2402 = vpack.c.b16 %v2336, %v2330
    %v2403 = vpack.c.b16 %v2343, %v2337
    %v2404 = vpack.c.b16 %v2344, %v2338
    %v2405 = vpack.c.b16 %v2345, %v2339
    %v2406 = vpack.c.b16 %v2346, %v2340
    %v2407 = vpack.c.b16 %v2347, %v2341
    %v2408 = vpack.c.b16 %v2348, %v2342
    %v2409 = vpack.c.b16 %v2355, %v2349
    %v2410 = vpack.c.b16 %v2356, %v2350
    %v2411 = vpack.c.b16 %v2357, %v2351
    %v2412 = vpack.c.b16 %v2358, %v2352
    %v2413 = vpack.c.b16 %v2359, %v2353
    %v2414 = vpack.c.b16 %v2360, %v2354
    %v2415 = vpack.c.b16 %v2367, %v2361
    %v2416 = vpack.c.b16 %v2368, %v2362
    %v2417 = vpack.c.b16 %v2369, %v2363
    %v2418 = vpack.c.b16 %v2370, %v2364
    %v2419 = vpack.c.b16 %v2371, %v2365
    %v2420 = vpack.c.b16 %v2372, %v2366
    %2469 = vmatprep.subr.bf16.mxu0 %v2416
    %2470 = vmatpush1.bf16.msra.mxu0 %v2415
    %2471 = vmatprep.subr.bf16.mxu0 %v2410
    %2472 = vmatpush1.bf16.msra.mxu0 %v2409
    %2473 = vmatprep.subr.bf16.mxu0 %v2404
    %2474 = vmatpush1.bf16.msra.mxu0 %v2403
    %2475 = vmatprep.subr.bf16.mxu0 %v2398
    %2476 = vmatpush1.bf16.msra.mxu0 %v2397
    %2477 = vmatprep.subr.bf16.mxu0 %v2392
    %2478 = vmatpush1.bf16.msra.mxu0 %v2391
    %2479 = vmatprep.subr.bf16.mxu0 %v2386
    %2480 = vmatpush1.bf16.msra.mxu0 %v2385
    %2481 = vmatprep.subr.bf16.mxu0 %v2380
    %2482 = vmatpush1.bf16.msra.mxu0 %v2379
    %2483 = vmatprep.subr.bf16.mxu0 %v2374
    %2484 = vmatpush1.bf16.msra.mxu0 %v2373
    %2485 = vmatprep.subr.bf16.mxu0 0
    %2486 = vmatpush2.bf16.msra.mxu0 0
    %2487 = vmatprep.subr.bf16.mxu0 0
    %2488 = vmatpush2.bf16.msra.mxu0 0
    %2489 = vmatprep.subr.bf16.mxu0 0
    %2490 = vmatpush2.bf16.msra.mxu0 0
    %2491 = vmatprep.subr.bf16.mxu0 0
    %2492 = vmatpush2.bf16.msra.mxu0 0
    %2493 = vmatprep.subr.bf16.mxu0 0
    %2494 = vmatpush2.bf16.msra.mxu0 0
    %2495 = vmatprep.subr.bf16.mxu0 0
    %2496 = vmatpush2.bf16.msra.mxu0 0
    %2497 = vmatprep.subr.bf16.mxu0 0
    %2498 = vmatpush2.bf16.msra.mxu0 0
    %2499 = vmatprep.subr.bf16.mxu0 0
    %2500 = vmatpush2.bf16.msra.mxu0 0
    %2501 = vmatprep.mubr.bf16.mxu0 0
    %2502 = vmatmul.mubr.bf16.gmra.mxu0 %v2227
    %v2503 = vpop.f32.mrf.mxu0
    %v2504 = vadd.f32 0.0, %v2503
    %v2505 = vpop.f32.mrf.mxu0
    %v2506 = vadd.f32 0.0, %v2505
    %v2507 = vpop.f32.mrf.mxu0
    %v2508 = vpop.f32.mrf.mxu0
    %2509 = vdwg.mxu0
    %2510 = vmatprep.subr.bf16.mxu0 %v2418
    %2511 = vmatpush1.bf16.msra.mxu0 %v2417
    %2512 = vmatprep.subr.bf16.mxu0 %v2412
    %2513 = vmatpush1.bf16.msra.mxu0 %v2411
    %2514 = vmatprep.subr.bf16.mxu0 %v2406
    %2515 = vmatpush1.bf16.msra.mxu0 %v2405
    %2516 = vmatprep.subr.bf16.mxu0 %v2400
    %2517 = vmatpush1.bf16.msra.mxu0 %v2399
    %2518 = vmatprep.subr.bf16.mxu0 %v2394
    %2519 = vmatpush1.bf16.msra.mxu0 %v2393
    %2520 = vmatprep.subr.bf16.mxu0 %v2388
    %2521 = vmatpush1.bf16.msra.mxu0 %v2387
    %2522 = vmatprep.subr.bf16.mxu0 %v2382
    %2523 = vmatpush1.bf16.msra.mxu0 %v2381
    %2524 = vmatprep.subr.bf16.mxu0 %v2376
    %2525 = vmatpush1.bf16.msra.mxu0 %v2375
    %2526 = vmatprep.subr.bf16.mxu0 0
    %2527 = vmatpush2.bf16.msra.mxu0 0
    %2528 = vmatprep.subr.bf16.mxu0 0
    %2529 = vmatpush2.bf16.msra.mxu0 0
    %2530 = vmatprep.subr.bf16.mxu0 0
    %2531 = vmatpush2.bf16.msra.mxu0 0
    %2532 = vmatprep.subr.bf16.mxu0 0
    %2533 = vmatpush2.bf16.msra.mxu0 0
    %2534 = vmatprep.subr.bf16.mxu0 0
    %2535 = vmatpush2.bf16.msra.mxu0 0
    %2536 = vmatprep.subr.bf16.mxu0 0
    %2537 = vmatpush2.bf16.msra.mxu0 0
    %2538 = vmatprep.subr.bf16.mxu0 0
    %2539 = vmatpush2.bf16.msra.mxu0 0
    %2540 = vmatprep.subr.bf16.mxu0 0
    %2541 = vmatpush2.bf16.msra.mxu0 0
    %2542 = vmatprep.mubr.bf16.mxu0 0
    %2543 = vmatmul.mubr.bf16.gmra.mxu0 %v2227
    %v2544 = vpop.f32.mrf.mxu0
    %v2545 = vadd.f32 0.0, %v2544
    %v2546 = vpop.f32.mrf.mxu0
    %v2547 = vadd.f32 0.0, %v2546
    %v2548 = vpop.f32.mrf.mxu0
    %v2549 = vpop.f32.mrf.mxu0
    %2550 = vdwg.mxu0
    %2551 = vmatprep.subr.bf16.mxu0 %v2420
    %2552 = vmatpush1.bf16.msra.mxu0 %v2419
    %2553 = vmatprep.subr.bf16.mxu0 %v2414
    %2554 = vmatpush1.bf16.msra.mxu0 %v2413
    %2555 = vmatprep.subr.bf16.mxu0 %v2408
    %2556 = vmatpush1.bf16.msra.mxu0 %v2407
    %2557 = vmatprep.subr.bf16.mxu0 %v2402
    %2558 = vmatpush1.bf16.msra.mxu0 %v2401
    %2559 = vmatprep.subr.bf16.mxu0 %v2396
    %2560 = vmatpush1.bf16.msra.mxu0 %v2395
    %2561 = vmatprep.subr.bf16.mxu0 %v2390
    %2562 = vmatpush1.bf16.msra.mxu0 %v2389
    %2563 = vmatprep.subr.bf16.mxu0 %v2384
    %2564 = vmatpush1.bf16.msra.mxu0 %v2383
    %2565 = vmatprep.subr.bf16.mxu0 %v2378
    %2566 = vmatpush1.bf16.msra.mxu0 %v2377
    %2567 = vmatprep.subr.bf16.mxu0 0
    %2568 = vmatpush2.bf16.msra.mxu0 0
    %2569 = vmatprep.subr.bf16.mxu0 0
    %2570 = vmatpush2.bf16.msra.mxu0 0
    %2571 = vmatprep.subr.bf16.mxu0 0
    %2572 = vmatpush2.bf16.msra.mxu0 0
    %2573 = vmatprep.subr.bf16.mxu0 0
    %2574 = vmatpush2.bf16.msra.mxu0 0
    %2575 = vmatprep.subr.bf16.mxu0 0
    %2576 = vmatpush2.bf16.msra.mxu0 0
    %2577 = vmatprep.subr.bf16.mxu0 0
    %2578 = vmatpush2.bf16.msra.mxu0 0
    %2579 = vmatprep.subr.bf16.mxu0 0
    %2580 = vmatpush2.bf16.msra.mxu0 0
    %2581 = vmatprep.subr.bf16.mxu0 0
    %2582 = vmatpush2.bf16.msra.mxu0 0
    %2583 = vmatprep.mubr.bf16.mxu0 0
    %2584 = vmatmul.mubr.bf16.gmra.mxu0 %v2227
    %v2585 = vpop.f32.mrf.mxu0
    %v2586 = vadd.f32 0.0, %v2585
    %v2587 = vpop.f32.mrf.mxu0
    %v2588 = vadd.f32 0.0, %v2587
    %v2589 = vpop.f32.mrf.mxu0
    %v2590 = vpop.f32.mrf.mxu0
    %2591 = vdwg.mxu0
    %v2592 = vadd.f32 %v2169, %v2504
    %v2593 = vadd.f32 %v2170, %v2506
    %v2594 = vadd.f32 %v2171, %v2545
    %v2595 = vadd.f32 %v2172, %v2547
    %v2596 = vadd.f32 %v2173, %v2586
    %v2597 = vadd.f32 %v2174, %v2588
    %s2598 = scalar_lea.vmem [#allocation8], 1536
    %v2599 = vld [vmem:[%s2598] sm:$0xff]
    %v2600 = vld [vmem:[%s2598 + $0x8] sm:$0xff]
    %v2601 = vld [vmem:[%s2598 + $0x10] sm:$0xff]
    %v2602 = vld [vmem:[%s2598 + $0x18] sm:$0xff]
    %v2603 = vld [vmem:[%s2598 + $0x20] sm:$0xff]
    %v2604 = vld [vmem:[%s2598 + $0x28] sm:$0xff]
    %v2605 = vld [vmem:[%s2598 + $0x30] sm:$0xff]
    %v2606 = vld [vmem:[%s2598 + $0x38] sm:$0xff]
    %v2607 = vld [vmem:[%s2598 + $0x40] sm:$0xff]
    %v2608 = vld [vmem:[%s2598 + $0x48] sm:$0xff]
    %v2609 = vld [vmem:[%s2598 + $0x50] sm:$0xff]
    %v2610 = vld [vmem:[%s2598 + $0x58] sm:$0xff]
    %v2611 = vld [vmem:[%s2598 + $0x60] sm:$0xff]
    %v2612 = vld [vmem:[%s2598 + $0x68] sm:$0xff]
    %v2613 = vld [vmem:[%s2598 + $0x70] sm:$0xff]
    %v2614 = vld [vmem:[%s2598 + $0x78] sm:$0xff]
    %v2615 = vld [vmem:[%s2598 + $0x80] sm:$0xff]
    %v2616 = vld [vmem:[%s2598 + $0x88] sm:$0xff]
    %v2617 = vld [vmem:[%s2598 + $0x90] sm:$0xff]
    %v2618 = vld [vmem:[%s2598 + $0x98] sm:$0xff]
    %v2619 = vld [vmem:[%s2598 + $0xa0] sm:$0xff]
    %v2620 = vld [vmem:[%s2598 + $0xa8] sm:$0xff]
    %v2621 = vld [vmem:[%s2598 + $0xb0] sm:$0xff]
    %v2622 = vld [vmem:[%s2598 + $0xb8] sm:$0xff]
    %v2623 = vld [vmem:[%s2598 + $0xc0] sm:$0xff]
    %v2624 = vld [vmem:[%s2598 + $0xc8] sm:$0xff]
    %v2625 = vld [vmem:[%s2598 + $0xd0] sm:$0xff]
    %v2626 = vld [vmem:[%s2598 + $0xd8] sm:$0xff]
    %v2627 = vld [vmem:[%s2598 + $0xe0] sm:$0xff]
    %v2628 = vld [vmem:[%s2598 + $0xe8] sm:$0xff]
    %v2629 = vld [vmem:[%s2598 + $0xf0] sm:$0xff]
    %v2630 = vld [vmem:[%s2598 + $0xf8] sm:$0xff]
    %v2631 = vld [vmem:[%s2598 + $0x100] sm:$0xff]
    %v2632 = vld [vmem:[%s2598 + $0x108] sm:$0xff]
    %v2633 = vld [vmem:[%s2598 + $0x110] sm:$0xff]
    %v2634 = vld [vmem:[%s2598 + $0x118] sm:$0xff]
    %v2635 = vld [vmem:[%s2598 + $0x120] sm:$0xff]
    %v2636 = vld [vmem:[%s2598 + $0x128] sm:$0xff]
    %v2637 = vld [vmem:[%s2598 + $0x130] sm:$0xff]
    %v2638 = vld [vmem:[%s2598 + $0x138] sm:$0xff]
    %v2639 = vld [vmem:[%s2598 + $0x140] sm:$0xff]
    %v2640 = vld [vmem:[%s2598 + $0x148] sm:$0xff]
    %v2641 = vld [vmem:[%s2598 + $0x150] sm:$0xff]
    %v2642 = vld [vmem:[%s2598 + $0x158] sm:$0xff]
    %v2643 = vld [vmem:[%s2598 + $0x160] sm:$0xff]
    %v2644 = vld [vmem:[%s2598 + $0x168] sm:$0xff]
    %v2645 = vld [vmem:[%s2598 + $0x170] sm:$0xff]
    %v2646 = vld [vmem:[%s2598 + $0x178] sm:$0xff]
    %v2647 = vrot.slane %v1015, 4
    %v2648 = vrot.slane %v1016, 3
    %v2649 = vsel %vm1018, %v2648, %v2647
    %v2650 = vpack.c.b16 %v2649, %v2649
    %v2700 = vunpack.c.l.b16 %v2599
    %v2701 = vunpack.c.h.b16 %v2599
    %v2702 = vunpack.c.l.b16 %v2600
    %v2703 = vunpack.c.h.b16 %v2600
    %v2704 = vunpack.c.l.b16 %v2601
    %v2705 = vunpack.c.h.b16 %v2601
    %v2706 = vunpack.c.l.b16 %v2602
    %v2707 = vunpack.c.h.b16 %v2602
    %v2708 = vunpack.c.l.b16 %v2603
    %v2709 = vunpack.c.h.b16 %v2603
    %v2710 = vunpack.c.l.b16 %v2604
    %v2711 = vunpack.c.h.b16 %v2604
    %v2712 = vunpack.c.l.b16 %v2605
    %v2713 = vunpack.c.h.b16 %v2605
    %v2714 = vunpack.c.l.b16 %v2606
    %v2715 = vunpack.c.h.b16 %v2606
    %v2716 = vunpack.c.l.b16 %v2607
    %v2717 = vunpack.c.h.b16 %v2607
    %v2718 = vunpack.c.l.b16 %v2608
    %v2719 = vunpack.c.h.b16 %v2608
    %v2720 = vunpack.c.l.b16 %v2609
    %v2721 = vunpack.c.h.b16 %v2609
    %v2722 = vunpack.c.l.b16 %v2610
    %v2723 = vunpack.c.h.b16 %v2610
    %v2724 = vunpack.c.l.b16 %v2611
    %v2725 = vunpack.c.h.b16 %v2611
    %v2726 = vunpack.c.l.b16 %v2612
    %v2727 = vunpack.c.h.b16 %v2612
    %v2728 = vunpack.c.l.b16 %v2613
    %v2729 = vunpack.c.h.b16 %v2613
    %v2730 = vunpack.c.l.b16 %v2614
    %v2731 = vunpack.c.h.b16 %v2614
    %v2732 = vunpack.c.l.b16 %v2615
    %v2733 = vunpack.c.h.b16 %v2615
    %v2734 = vunpack.c.l.b16 %v2616
    %v2735 = vunpack.c.h.b16 %v2616
    %v2736 = vunpack.c.l.b16 %v2617
    %v2737 = vunpack.c.h.b16 %v2617
    %v2738 = vunpack.c.l.b16 %v2618
    %v2739 = vunpack.c.h.b16 %v2618
    %v2740 = vunpack.c.l.b16 %v2619
    %v2741 = vunpack.c.h.b16 %v2619
    %v2742 = vunpack.c.l.b16 %v2620
    %v2743 = vunpack.c.h.b16 %v2620
    %v2744 = vunpack.c.l.b16 %v2621
    %v2745 = vunpack.c.h.b16 %v2621
    %v2746 = vunpack.c.l.b16 %v2622
    %v2747 = vunpack.c.h.b16 %v2622
    %v2748 = vunpack.c.l.b16 %v2623
    %v2749 = vunpack.c.h.b16 %v2623
    %v2750 = vunpack.c.l.b16 %v2624
    %v2751 = vunpack.c.h.b16 %v2624
    %v2752 = vunpack.c.l.b16 %v2625
    %v2753 = vunpack.c.h.b16 %v2625
    %v2754 = vunpack.c.l.b16 %v2626
    %v2755 = vunpack.c.h.b16 %v2626
    %v2756 = vunpack.c.l.b16 %v2627
    %v2757 = vunpack.c.h.b16 %v2627
    %v2758 = vunpack.c.l.b16 %v2628
    %v2759 = vunpack.c.h.b16 %v2628
    %v2760 = vunpack.c.l.b16 %v2629
    %v2761 = vunpack.c.h.b16 %v2629
    %v2762 = vunpack.c.l.b16 %v2630
    %v2763 = vunpack.c.h.b16 %v2630
    %v2764 = vunpack.c.l.b16 %v2631
    %v2765 = vunpack.c.h.b16 %v2631
    %v2766 = vunpack.c.l.b16 %v2632
    %v2767 = vunpack.c.h.b16 %v2632
    %v2768 = vunpack.c.l.b16 %v2633
    %v2769 = vunpack.c.h.b16 %v2633
    %v2770 = vunpack.c.l.b16 %v2634
    %v2771 = vunpack.c.h.b16 %v2634
    %v2772 = vunpack.c.l.b16 %v2635
    %v2773 = vunpack.c.h.b16 %v2635
    %v2774 = vunpack.c.l.b16 %v2636
    %v2775 = vunpack.c.h.b16 %v2636
    %v2776 = vunpack.c.l.b16 %v2637
    %v2777 = vunpack.c.h.b16 %v2637
    %v2778 = vunpack.c.l.b16 %v2638
    %v2779 = vunpack.c.h.b16 %v2638
    %v2780 = vunpack.c.l.b16 %v2639
    %v2781 = vunpack.c.h.b16 %v2639
    %v2782 = vunpack.c.l.b16 %v2640
    %v2783 = vunpack.c.h.b16 %v2640
    %v2784 = vunpack.c.l.b16 %v2641
    %v2785 = vunpack.c.h.b16 %v2641
    %v2786 = vunpack.c.l.b16 %v2642
    %v2787 = vunpack.c.h.b16 %v2642
    %v2788 = vunpack.c.l.b16 %v2643
    %v2789 = vunpack.c.h.b16 %v2643
    %v2790 = vunpack.c.l.b16 %v2644
    %v2791 = vunpack.c.h.b16 %v2644
    %v2792 = vunpack.c.l.b16 %v2645
    %v2793 = vunpack.c.h.b16 %v2645
    %v2794 = vunpack.c.l.b16 %v2646
    %v2795 = vunpack.c.h.b16 %v2646
    %v2796 = vpack.c.b16 %v2706, %v2700
    %v2797 = vpack.c.b16 %v2707, %v2701
    %v2798 = vpack.c.b16 %v2708, %v2702
    %v2799 = vpack.c.b16 %v2709, %v2703
    %v2800 = vpack.c.b16 %v2710, %v2704
    %v2801 = vpack.c.b16 %v2711, %v2705
    %v2802 = vpack.c.b16 %v2718, %v2712
    %v2803 = vpack.c.b16 %v2719, %v2713
    %v2804 = vpack.c.b16 %v2720, %v2714
    %v2805 = vpack.c.b16 %v2721, %v2715
    %v2806 = vpack.c.b16 %v2722, %v2716
    %v2807 = vpack.c.b16 %v2723, %v2717
    %v2808 = vpack.c.b16 %v2730, %v2724
    %v2809 = vpack.c.b16 %v2731, %v2725
    %v2810 = vpack.c.b16 %v2732, %v2726
    %v2811 = vpack.c.b16 %v2733, %v2727
    %v2812 = vpack.c.b16 %v2734, %v2728
    %v2813 = vpack.c.b16 %v2735, %v2729
    %v2814 = vpack.c.b16 %v2742, %v2736
    %v2815 = vpack.c.b16 %v2743, %v2737
    %v2816 = vpack.c.b16 %v2744, %v2738
    %v2817 = vpack.c.b16 %v2745, %v2739
    %v2818 = vpack.c.b16 %v2746, %v2740
    %v2819 = vpack.c.b16 %v2747, %v2741
    %v2820 = vpack.c.b16 %v2754, %v2748
    %v2821 = vpack.c.b16 %v2755, %v2749
    %v2822 = vpack.c.b16 %v2756, %v2750
    %v2823 = vpack.c.b16 %v2757, %v2751
    %v2824 = vpack.c.b16 %v2758, %v2752
    %v2825 = vpack.c.b16 %v2759, %v2753
    %v2826 = vpack.c.b16 %v2766, %v2760
    %v2827 = vpack.c.b16 %v2767, %v2761
    %v2828 = vpack.c.b16 %v2768, %v2762
    %v2829 = vpack.c.b16 %v2769, %v2763
    %v2830 = vpack.c.b16 %v2770, %v2764
    %v2831 = vpack.c.b16 %v2771, %v2765
    %v2832 = vpack.c.b16 %v2778, %v2772
    %v2833 = vpack.c.b16 %v2779, %v2773
    %v2834 = vpack.c.b16 %v2780, %v2774
    %v2835 = vpack.c.b16 %v2781, %v2775
    %v2836 = vpack.c.b16 %v2782, %v2776
    %v2837 = vpack.c.b16 %v2783, %v2777
    %v2838 = vpack.c.b16 %v2790, %v2784
    %v2839 = vpack.c.b16 %v2791, %v2785
    %v2840 = vpack.c.b16 %v2792, %v2786
    %v2841 = vpack.c.b16 %v2793, %v2787
    %v2842 = vpack.c.b16 %v2794, %v2788
    %v2843 = vpack.c.b16 %v2795, %v2789
    %2892 = vmatprep.subr.bf16.mxu0 %v2839
    %2893 = vmatpush1.bf16.msra.mxu0 %v2838
    %2894 = vmatprep.subr.bf16.mxu0 %v2833
    %2895 = vmatpush1.bf16.msra.mxu0 %v2832
    %2896 = vmatprep.subr.bf16.mxu0 %v2827
    %2897 = vmatpush1.bf16.msra.mxu0 %v2826
    %2898 = vmatprep.subr.bf16.mxu0 %v2821
    %2899 = vmatpush1.bf16.msra.mxu0 %v2820
    %2900 = vmatprep.subr.bf16.mxu0 %v2815
    %2901 = vmatpush1.bf16.msra.mxu0 %v2814
    %2902 = vmatprep.subr.bf16.mxu0 %v2809
    %2903 = vmatpush1.bf16.msra.mxu0 %v2808
    %2904 = vmatprep.subr.bf16.mxu0 %v2803
    %2905 = vmatpush1.bf16.msra.mxu0 %v2802
    %2906 = vmatprep.subr.bf16.mxu0 %v2797
    %2907 = vmatpush1.bf16.msra.mxu0 %v2796
    %2908 = vmatprep.subr.bf16.mxu0 0
    %2909 = vmatpush2.bf16.msra.mxu0 0
    %2910 = vmatprep.subr.bf16.mxu0 0
    %2911 = vmatpush2.bf16.msra.mxu0 0
    %2912 = vmatprep.subr.bf16.mxu0 0
    %2913 = vmatpush2.bf16.msra.mxu0 0
    %2914 = vmatprep.subr.bf16.mxu0 0
    %2915 = vmatpush2.bf16.msra.mxu0 0
    %2916 = vmatprep.subr.bf16.mxu0 0
    %2917 = vmatpush2.bf16.msra.mxu0 0
    %2918 = vmatprep.subr.bf16.mxu0 0
    %2919 = vmatpush2.bf16.msra.mxu0 0
    %2920 = vmatprep.subr.bf16.mxu0 0
    %2921 = vmatpush2.bf16.msra.mxu0 0
    %2922 = vmatprep.subr.bf16.mxu0 0
    %2923 = vmatpush2.bf16.msra.mxu0 0
    %2924 = vmatprep.mubr.bf16.mxu0 0
    %2925 = vmatmul.mubr.bf16.gmra.mxu0 %v2650
    %v2926 = vpop.f32.mrf.mxu0
    %v2927 = vadd.f32 0.0, %v2926
    %v2928 = vpop.f32.mrf.mxu0
    %v2929 = vadd.f32 0.0, %v2928
    %v2930 = vpop.f32.mrf.mxu0
    %v2931 = vpop.f32.mrf.mxu0
    %2932 = vdwg.mxu0
    %2933 = vmatprep.subr.bf16.mxu0 %v2841
    %2934 = vmatpush1.bf16.msra.mxu0 %v2840
    %2935 = vmatprep.subr.bf16.mxu0 %v2835
    %2936 = vmatpush1.bf16.msra.mxu0 %v2834
    %2937 = vmatprep.subr.bf16.mxu0 %v2829
    %2938 = vmatpush1.bf16.msra.mxu0 %v2828
    %2939 = vmatprep.subr.bf16.mxu0 %v2823
    %2940 = vmatpush1.bf16.msra.mxu0 %v2822
    %2941 = vmatprep.subr.bf16.mxu0 %v2817
    %2942 = vmatpush1.bf16.msra.mxu0 %v2816
    %2943 = vmatprep.subr.bf16.mxu0 %v2811
    %2944 = vmatpush1.bf16.msra.mxu0 %v2810
    %2945 = vmatprep.subr.bf16.mxu0 %v2805
    %2946 = vmatpush1.bf16.msra.mxu0 %v2804
    %2947 = vmatprep.subr.bf16.mxu0 %v2799
    %2948 = vmatpush1.bf16.msra.mxu0 %v2798
    %2949 = vmatprep.subr.bf16.mxu0 0
    %2950 = vmatpush2.bf16.msra.mxu0 0
    %2951 = vmatprep.subr.bf16.mxu0 0
    %2952 = vmatpush2.bf16.msra.mxu0 0
    %2953 = vmatprep.subr.bf16.mxu0 0
    %2954 = vmatpush2.bf16.msra.mxu0 0
    %2955 = vmatprep.subr.bf16.mxu0 0
    %2956 = vmatpush2.bf16.msra.mxu0 0
    %2957 = vmatprep.subr.bf16.mxu0 0
    %2958 = vmatpush2.bf16.msra.mxu0 0
    %2959 = vmatprep.subr.bf16.mxu0 0
    %2960 = vmatpush2.bf16.msra.mxu0 0
    %2961 = vmatprep.subr.bf16.mxu0 0
    %2962 = vmatpush2.bf16.msra.mxu0 0
    %2963 = vmatprep.subr.bf16.mxu0 0
    %2964 = vmatpush2.bf16.msra.mxu0 0
    %2965 = vmatprep.mubr.bf16.mxu0 0
    %2966 = vmatmul.mubr.bf16.gmra.mxu0 %v2650
    %v2967 = vpop.f32.mrf.mxu0
    %v2968 = vadd.f32 0.0, %v2967
    %v2969 = vpop.f32.mrf.mxu0
    %v2970 = vadd.f32 0.0, %v2969
    %v2971 = vpop.f32.mrf.mxu0
    %v2972 = vpop.f32.mrf.mxu0
    %2973 = vdwg.mxu0
    %2974 = vmatprep.subr.bf16.mxu0 %v2843
    %2975 = vmatpush1.bf16.msra.mxu0 %v2842
    %2976 = vmatprep.subr.bf16.mxu0 %v2837
    %2977 = vmatpush1.bf16.msra.mxu0 %v2836
    %2978 = vmatprep.subr.bf16.mxu0 %v2831
    %2979 = vmatpush1.bf16.msra.mxu0 %v2830
    %2980 = vmatprep.subr.bf16.mxu0 %v2825
    %2981 = vmatpush1.bf16.msra.mxu0 %v2824
    %2982 = vmatprep.subr.bf16.mxu0 %v2819
    %2983 = vmatpush1.bf16.msra.mxu0 %v2818
    %2984 = vmatprep.subr.bf16.mxu0 %v2813
    %2985 = vmatpush1.bf16.msra.mxu0 %v2812
    %2986 = vmatprep.subr.bf16.mxu0 %v2807
    %2987 = vmatpush1.bf16.msra.mxu0 %v2806
    %2988 = vmatprep.subr.bf16.mxu0 %v2801
    %2989 = vmatpush1.bf16.msra.mxu0 %v2800
    %2990 = vmatprep.subr.bf16.mxu0 0
    %2991 = vmatpush2.bf16.msra.mxu0 0
    %2992 = vmatprep.subr.bf16.mxu0 0
    %2993 = vmatpush2.bf16.msra.mxu0 0
    %2994 = vmatprep.subr.bf16.mxu0 0
    %2995 = vmatpush2.bf16.msra.mxu0 0
    %2996 = vmatprep.subr.bf16.mxu0 0
    %2997 = vmatpush2.bf16.msra.mxu0 0
    %2998 = vmatprep.subr.bf16.mxu0 0
    %2999 = vmatpush2.bf16.msra.mxu0 0
    %3000 = vmatprep.subr.bf16.mxu0 0
    %3001 = vmatpush2.bf16.msra.mxu0 0
    %3002 = vmatprep.subr.bf16.mxu0 0
    %3003 = vmatpush2.bf16.msra.mxu0 0
    %3004 = vmatprep.subr.bf16.mxu0 0
    %3005 = vmatpush2.bf16.msra.mxu0 0
    %3006 = vmatprep.mubr.bf16.mxu0 0
    %3007 = vmatmul.mubr.bf16.gmra.mxu0 %v2650
    %v3008 = vpop.f32.mrf.mxu0
    %v3009 = vadd.f32 0.0, %v3008
    %v3010 = vpop.f32.mrf.mxu0
    %v3011 = vadd.f32 0.0, %v3010
    %v3012 = vpop.f32.mrf.mxu0
    %v3013 = vpop.f32.mrf.mxu0
    %3014 = vdwg.mxu0
    %v3015 = vadd.f32 %v2592, %v2927
    %v3016 = vadd.f32 %v2593, %v2929
    %v3017 = vadd.f32 %v2594, %v2968
    %v3018 = vadd.f32 %v2595, %v2970
    %v3019 = vadd.f32 %v2596, %v3009
    %v3020 = vadd.f32 %v2597, %v3011
    %s3021 = scalar_lea.vmem [#allocation8], 1920
    %v3022 = vld [vmem:[%s3021] sm:$0xff]
    %v3023 = vld [vmem:[%s3021 + $0x8] sm:$0xff]
    %v3024 = vld [vmem:[%s3021 + $0x10] sm:$0xff]
    %v3025 = vld [vmem:[%s3021 + $0x18] sm:$0xff]
    %v3026 = vld [vmem:[%s3021 + $0x20] sm:$0xff]
    %v3027 = vld [vmem:[%s3021 + $0x28] sm:$0xff]
    %v3028 = vld [vmem:[%s3021 + $0x30] sm:$0xff]
    %v3029 = vld [vmem:[%s3021 + $0x38] sm:$0xff]
    %v3030 = vld [vmem:[%s3021 + $0x40] sm:$0xff]
    %v3031 = vld [vmem:[%s3021 + $0x48] sm:$0xff]
    %v3032 = vld [vmem:[%s3021 + $0x50] sm:$0xff]
    %v3033 = vld [vmem:[%s3021 + $0x58] sm:$0xff]
    %v3034 = vld [vmem:[%s3021 + $0x60] sm:$0xff]
    %v3035 = vld [vmem:[%s3021 + $0x68] sm:$0xff]
    %v3036 = vld [vmem:[%s3021 + $0x70] sm:$0xff]
    %v3037 = vld [vmem:[%s3021 + $0x78] sm:$0xff]
    %v3038 = vld [vmem:[%s3021 + $0x80] sm:$0xff]
    %v3039 = vld [vmem:[%s3021 + $0x88] sm:$0xff]
    %v3040 = vld [vmem:[%s3021 + $0x90] sm:$0xff]
    %v3041 = vld [vmem:[%s3021 + $0x98] sm:$0xff]
    %v3042 = vld [vmem:[%s3021 + $0xa0] sm:$0xff]
    %v3043 = vld [vmem:[%s3021 + $0xa8] sm:$0xff]
    %v3044 = vld [vmem:[%s3021 + $0xb0] sm:$0xff]
    %v3045 = vld [vmem:[%s3021 + $0xb8] sm:$0xff]
    %v3046 = vld [vmem:[%s3021 + $0xc0] sm:$0xff]
    %v3047 = vld [vmem:[%s3021 + $0xc8] sm:$0xff]
    %v3048 = vld [vmem:[%s3021 + $0xd0] sm:$0xff]
    %v3049 = vld [vmem:[%s3021 + $0xd8] sm:$0xff]
    %v3050 = vld [vmem:[%s3021 + $0xe0] sm:$0xff]
    %v3051 = vld [vmem:[%s3021 + $0xe8] sm:$0xff]
    %v3052 = vld [vmem:[%s3021 + $0xf0] sm:$0xff]
    %v3053 = vld [vmem:[%s3021 + $0xf8] sm:$0xff]
    %v3054 = vld [vmem:[%s3021 + $0x100] sm:$0xff]
    %v3055 = vld [vmem:[%s3021 + $0x108] sm:$0xff]
    %v3056 = vld [vmem:[%s3021 + $0x110] sm:$0xff]
    %v3057 = vld [vmem:[%s3021 + $0x118] sm:$0xff]
    %v3058 = vld [vmem:[%s3021 + $0x120] sm:$0xff]
    %v3059 = vld [vmem:[%s3021 + $0x128] sm:$0xff]
    %v3060 = vld [vmem:[%s3021 + $0x130] sm:$0xff]
    %v3061 = vld [vmem:[%s3021 + $0x138] sm:$0xff]
    %v3062 = vld [vmem:[%s3021 + $0x140] sm:$0xff]
    %v3063 = vld [vmem:[%s3021 + $0x148] sm:$0xff]
    %v3064 = vld [vmem:[%s3021 + $0x150] sm:$0xff]
    %v3065 = vld [vmem:[%s3021 + $0x158] sm:$0xff]
    %v3066 = vld [vmem:[%s3021 + $0x160] sm:$0xff]
    %v3067 = vld [vmem:[%s3021 + $0x168] sm:$0xff]
    %v3068 = vld [vmem:[%s3021 + $0x170] sm:$0xff]
    %v3069 = vld [vmem:[%s3021 + $0x178] sm:$0xff]
    %v3070 = vrot.slane %v1015, 5
    %v3071 = vrot.slane %v1016, 4
    %v3072 = vsel %vm1018, %v3071, %v3070
    %v3073 = vpack.c.b16 %v3072, %v3072
    %v3123 = vunpack.c.l.b16 %v3022
    %v3124 = vunpack.c.h.b16 %v3022
    %v3125 = vunpack.c.l.b16 %v3023
    %v3126 = vunpack.c.h.b16 %v3023
    %v3127 = vunpack.c.l.b16 %v3024
    %v3128 = vunpack.c.h.b16 %v3024
    %v3129 = vunpack.c.l.b16 %v3025
    %v3130 = vunpack.c.h.b16 %v3025
    %v3131 = vunpack.c.l.b16 %v3026
    %v3132 = vunpack.c.h.b16 %v3026
    %v3133 = vunpack.c.l.b16 %v3027
    %v3134 = vunpack.c.h.b16 %v3027
    %v3135 = vunpack.c.l.b16 %v3028
    %v3136 = vunpack.c.h.b16 %v3028
    %v3137 = vunpack.c.l.b16 %v3029
    %v3138 = vunpack.c.h.b16 %v3029
    %v3139 = vunpack.c.l.b16 %v3030
    %v3140 = vunpack.c.h.b16 %v3030
    %v3141 = vunpack.c.l.b16 %v3031
    %v3142 = vunpack.c.h.b16 %v3031
    %v3143 = vunpack.c.l.b16 %v3032
    %v3144 = vunpack.c.h.b16 %v3032
    %v3145 = vunpack.c.l.b16 %v3033
    %v3146 = vunpack.c.h.b16 %v3033
    %v3147 = vunpack.c.l.b16 %v3034
    %v3148 = vunpack.c.h.b16 %v3034
    %v3149 = vunpack.c.l.b16 %v3035
    %v3150 = vunpack.c.h.b16 %v3035
    %v3151 = vunpack.c.l.b16 %v3036
    %v3152 = vunpack.c.h.b16 %v3036
    %v3153 = vunpack.c.l.b16 %v3037
    %v3154 = vunpack.c.h.b16 %v3037
    %v3155 = vunpack.c.l.b16 %v3038
    %v3156 = vunpack.c.h.b16 %v3038
    %v3157 = vunpack.c.l.b16 %v3039
    %v3158 = vunpack.c.h.b16 %v3039
    %v3159 = vunpack.c.l.b16 %v3040
    %v3160 = vunpack.c.h.b16 %v3040
    %v3161 = vunpack.c.l.b16 %v3041
    %v3162 = vunpack.c.h.b16 %v3041
    %v3163 = vunpack.c.l.b16 %v3042
    %v3164 = vunpack.c.h.b16 %v3042
    %v3165 = vunpack.c.l.b16 %v3043
    %v3166 = vunpack.c.h.b16 %v3043
    %v3167 = vunpack.c.l.b16 %v3044
    %v3168 = vunpack.c.h.b16 %v3044
    %v3169 = vunpack.c.l.b16 %v3045
    %v3170 = vunpack.c.h.b16 %v3045
    %v3171 = vunpack.c.l.b16 %v3046
    %v3172 = vunpack.c.h.b16 %v3046
    %v3173 = vunpack.c.l.b16 %v3047
    %v3174 = vunpack.c.h.b16 %v3047
    %v3175 = vunpack.c.l.b16 %v3048
    %v3176 = vunpack.c.h.b16 %v3048
    %v3177 = vunpack.c.l.b16 %v3049
    %v3178 = vunpack.c.h.b16 %v3049
    %v3179 = vunpack.c.l.b16 %v3050
    %v3180 = vunpack.c.h.b16 %v3050
    %v3181 = vunpack.c.l.b16 %v3051
    %v3182 = vunpack.c.h.b16 %v3051
    %v3183 = vunpack.c.l.b16 %v3052
    %v3184 = vunpack.c.h.b16 %v3052
    %v3185 = vunpack.c.l.b16 %v3053
    %v3186 = vunpack.c.h.b16 %v3053
    %v3187 = vunpack.c.l.b16 %v3054
    %v3188 = vunpack.c.h.b16 %v3054
    %v3189 = vunpack.c.l.b16 %v3055
    %v3190 = vunpack.c.h.b16 %v3055
    %v3191 = vunpack.c.l.b16 %v3056
    %v3192 = vunpack.c.h.b16 %v3056
    %v3193 = vunpack.c.l.b16 %v3057
    %v3194 = vunpack.c.h.b16 %v3057
    %v3195 = vunpack.c.l.b16 %v3058
    %v3196 = vunpack.c.h.b16 %v3058
    %v3197 = vunpack.c.l.b16 %v3059
    %v3198 = vunpack.c.h.b16 %v3059
    %v3199 = vunpack.c.l.b16 %v3060
    %v3200 = vunpack.c.h.b16 %v3060
    %v3201 = vunpack.c.l.b16 %v3061
    %v3202 = vunpack.c.h.b16 %v3061
    %v3203 = vunpack.c.l.b16 %v3062
    %v3204 = vunpack.c.h.b16 %v3062
    %v3205 = vunpack.c.l.b16 %v3063
    %v3206 = vunpack.c.h.b16 %v3063
    %v3207 = vunpack.c.l.b16 %v3064
    %v3208 = vunpack.c.h.b16 %v3064
    %v3209 = vunpack.c.l.b16 %v3065
    %v3210 = vunpack.c.h.b16 %v3065
    %v3211 = vunpack.c.l.b16 %v3066
    %v3212 = vunpack.c.h.b16 %v3066
    %v3213 = vunpack.c.l.b16 %v3067
    %v3214 = vunpack.c.h.b16 %v3067
    %v3215 = vunpack.c.l.b16 %v3068
    %v3216 = vunpack.c.h.b16 %v3068
    %v3217 = vunpack.c.l.b16 %v3069
    %v3218 = vunpack.c.h.b16 %v3069
    %v3219 = vpack.c.b16 %v3129, %v3123
    %v3220 = vpack.c.b16 %v3130, %v3124
    %v3221 = vpack.c.b16 %v3131, %v3125
    %v3222 = vpack.c.b16 %v3132, %v3126
    %v3223 = vpack.c.b16 %v3133, %v3127
    %v3224 = vpack.c.b16 %v3134, %v3128
    %v3225 = vpack.c.b16 %v3141, %v3135
    %v3226 = vpack.c.b16 %v3142, %v3136
    %v3227 = vpack.c.b16 %v3143, %v3137
    %v3228 = vpack.c.b16 %v3144, %v3138
    %v3229 = vpack.c.b16 %v3145, %v3139
    %v3230 = vpack.c.b16 %v3146, %v3140
    %v3231 = vpack.c.b16 %v3153, %v3147
    %v3232 = vpack.c.b16 %v3154, %v3148
    %v3233 = vpack.c.b16 %v3155, %v3149
    %v3234 = vpack.c.b16 %v3156, %v3150
    %v3235 = vpack.c.b16 %v3157, %v3151
    %v3236 = vpack.c.b16 %v3158, %v3152
    %v3237 = vpack.c.b16 %v3165, %v3159
    %v3238 = vpack.c.b16 %v3166, %v3160
    %v3239 = vpack.c.b16 %v3167, %v3161
    %v3240 = vpack.c.b16 %v3168, %v3162
    %v3241 = vpack.c.b16 %v3169, %v3163
    %v3242 = vpack.c.b16 %v3170, %v3164
    %v3243 = vpack.c.b16 %v3177, %v3171
    %v3244 = vpack.c.b16 %v3178, %v3172
    %v3245 = vpack.c.b16 %v3179, %v3173
    %v3246 = vpack.c.b16 %v3180, %v3174
    %v3247 = vpack.c.b16 %v3181, %v3175
    %v3248 = vpack.c.b16 %v3182, %v3176
    %v3249 = vpack.c.b16 %v3189, %v3183
    %v3250 = vpack.c.b16 %v3190, %v3184
    %v3251 = vpack.c.b16 %v3191, %v3185
    %v3252 = vpack.c.b16 %v3192, %v3186
    %v3253 = vpack.c.b16 %v3193, %v3187
    %v3254 = vpack.c.b16 %v3194, %v3188
    %v3255 = vpack.c.b16 %v3201, %v3195
    %v3256 = vpack.c.b16 %v3202, %v3196
    %v3257 = vpack.c.b16 %v3203, %v3197
    %v3258 = vpack.c.b16 %v3204, %v3198
    %v3259 = vpack.c.b16 %v3205, %v3199
    %v3260 = vpack.c.b16 %v3206, %v3200
    %v3261 = vpack.c.b16 %v3213, %v3207
    %v3262 = vpack.c.b16 %v3214, %v3208
    %v3263 = vpack.c.b16 %v3215, %v3209
    %v3264 = vpack.c.b16 %v3216, %v3210
    %v3265 = vpack.c.b16 %v3217, %v3211
    %v3266 = vpack.c.b16 %v3218, %v3212
    %3315 = vmatprep.subr.bf16.mxu0 %v3262
    %3316 = vmatpush1.bf16.msra.mxu0 %v3261
    %3317 = vmatprep.subr.bf16.mxu0 %v3256
    %3318 = vmatpush1.bf16.msra.mxu0 %v3255
    %3319 = vmatprep.subr.bf16.mxu0 %v3250
    %3320 = vmatpush1.bf16.msra.mxu0 %v3249
    %3321 = vmatprep.subr.bf16.mxu0 %v3244
    %3322 = vmatpush1.bf16.msra.mxu0 %v3243
    %3323 = vmatprep.subr.bf16.mxu0 %v3238
    %3324 = vmatpush1.bf16.msra.mxu0 %v3237
    %3325 = vmatprep.subr.bf16.mxu0 %v3232
    %3326 = vmatpush1.bf16.msra.mxu0 %v3231
    %3327 = vmatprep.subr.bf16.mxu0 %v3226
    %3328 = vmatpush1.bf16.msra.mxu0 %v3225
    %3329 = vmatprep.subr.bf16.mxu0 %v3220
    %3330 = vmatpush1.bf16.msra.mxu0 %v3219
    %3331 = vmatprep.subr.bf16.mxu0 0
    %3332 = vmatpush2.bf16.msra.mxu0 0
    %3333 = vmatprep.subr.bf16.mxu0 0
    %3334 = vmatpush2.bf16.msra.mxu0 0
    %3335 = vmatprep.subr.bf16.mxu0 0
    %3336 = vmatpush2.bf16.msra.mxu0 0
    %3337 = vmatprep.subr.bf16.mxu0 0
    %3338 = vmatpush2.bf16.msra.mxu0 0
    %3339 = vmatprep.subr.bf16.mxu0 0
    %3340 = vmatpush2.bf16.msra.mxu0 0
    %3341 = vmatprep.subr.bf16.mxu0 0
    %3342 = vmatpush2.bf16.msra.mxu0 0
    %3343 = vmatprep.subr.bf16.mxu0 0
    %3344 = vmatpush2.bf16.msra.mxu0 0
    %3345 = vmatprep.subr.bf16.mxu0 0
    %3346 = vmatpush2.bf16.msra.mxu0 0
    %3347 = vmatprep.mubr.bf16.mxu0 0
    %3348 = vmatmul.mubr.bf16.gmra.mxu0 %v3073
    %v3349 = vpop.f32.mrf.mxu0
    %v3350 = vadd.f32 0.0, %v3349
    %v3351 = vpop.f32.mrf.mxu0
    %v3352 = vadd.f32 0.0, %v3351
    %v3353 = vpop.f32.mrf.mxu0
    %v3354 = vpop.f32.mrf.mxu0
    %3355 = vdwg.mxu0
    %3356 = vmatprep.subr.bf16.mxu0 %v3264
    %3357 = vmatpush1.bf16.msra.mxu0 %v3263
    %3358 = vmatprep.subr.bf16.mxu0 %v3258
    %3359 = vmatpush1.bf16.msra.mxu0 %v3257
    %3360 = vmatprep.subr.bf16.mxu0 %v3252
    %3361 = vmatpush1.bf16.msra.mxu0 %v3251
    %3362 = vmatprep.subr.bf16.mxu0 %v3246
    %3363 = vmatpush1.bf16.msra.mxu0 %v3245
    %3364 = vmatprep.subr.bf16.mxu0 %v3240
    %3365 = vmatpush1.bf16.msra.mxu0 %v3239
    %3366 = vmatprep.subr.bf16.mxu0 %v3234
    %3367 = vmatpush1.bf16.msra.mxu0 %v3233
    %3368 = vmatprep.subr.bf16.mxu0 %v3228
    %3369 = vmatpush1.bf16.msra.mxu0 %v3227
    %3370 = vmatprep.subr.bf16.mxu0 %v3222
    %3371 = vmatpush1.bf16.msra.mxu0 %v3221
    %3372 = vmatprep.subr.bf16.mxu0 0
    %3373 = vmatpush2.bf16.msra.mxu0 0
    %3374 = vmatprep.subr.bf16.mxu0 0
    %3375 = vmatpush2.bf16.msra.mxu0 0
    %3376 = vmatprep.subr.bf16.mxu0 0
    %3377 = vmatpush2.bf16.msra.mxu0 0
    %3378 = vmatprep.subr.bf16.mxu0 0
    %3379 = vmatpush2.bf16.msra.mxu0 0
    %3380 = vmatprep.subr.bf16.mxu0 0
    %3381 = vmatpush2.bf16.msra.mxu0 0
    %3382 = vmatprep.subr.bf16.mxu0 0
    %3383 = vmatpush2.bf16.msra.mxu0 0
    %3384 = vmatprep.subr.bf16.mxu0 0
    %3385 = vmatpush2.bf16.msra.mxu0 0
    %3386 = vmatprep.subr.bf16.mxu0 0
    %3387 = vmatpush2.bf16.msra.mxu0 0
    %3388 = vmatprep.mubr.bf16.mxu0 0
    %3389 = vmatmul.mubr.bf16.gmra.mxu0 %v3073
    %v3390 = vpop.f32.mrf.mxu0
    %v3391 = vadd.f32 0.0, %v3390
    %v3392 = vpop.f32.mrf.mxu0
    %v3393 = vadd.f32 0.0, %v3392
    %v3394 = vpop.f32.mrf.mxu0
    %v3395 = vpop.f32.mrf.mxu0
    %3396 = vdwg.mxu0
    %3397 = vmatprep.subr.bf16.mxu0 %v3266
    %3398 = vmatpush1.bf16.msra.mxu0 %v3265
    %3399 = vmatprep.subr.bf16.mxu0 %v3260
    %3400 = vmatpush1.bf16.msra.mxu0 %v3259
    %3401 = vmatprep.subr.bf16.mxu0 %v3254
    %3402 = vmatpush1.bf16.msra.mxu0 %v3253
    %3403 = vmatprep.subr.bf16.mxu0 %v3248
    %3404 = vmatpush1.bf16.msra.mxu0 %v3247
    %3405 = vmatprep.subr.bf16.mxu0 %v3242
    %3406 = vmatpush1.bf16.msra.mxu0 %v3241
    %3407 = vmatprep.subr.bf16.mxu0 %v3236
    %3408 = vmatpush1.bf16.msra.mxu0 %v3235
    %3409 = vmatprep.subr.bf16.mxu0 %v3230
    %3410 = vmatpush1.bf16.msra.mxu0 %v3229
    %3411 = vmatprep.subr.bf16.mxu0 %v3224
    %3412 = vmatpush1.bf16.msra.mxu0 %v3223
    %3413 = vmatprep.subr.bf16.mxu0 0
    %3414 = vmatpush2.bf16.msra.mxu0 0
    %3415 = vmatprep.subr.bf16.mxu0 0
    %3416 = vmatpush2.bf16.msra.mxu0 0
    %3417 = vmatprep.subr.bf16.mxu0 0
    %3418 = vmatpush2.bf16.msra.mxu0 0
    %3419 = vmatprep.subr.bf16.mxu0 0
    %3420 = vmatpush2.bf16.msra.mxu0 0
    %3421 = vmatprep.subr.bf16.mxu0 0
    %3422 = vmatpush2.bf16.msra.mxu0 0
    %3423 = vmatprep.subr.bf16.mxu0 0
    %3424 = vmatpush2.bf16.msra.mxu0 0
    %3425 = vmatprep.subr.bf16.mxu0 0
    %3426 = vmatpush2.bf16.msra.mxu0 0
    %3427 = vmatprep.subr.bf16.mxu0 0
    %3428 = vmatpush2.bf16.msra.mxu0 0
    %3429 = vmatprep.mubr.bf16.mxu0 0
    %3430 = vmatmul.mubr.bf16.gmra.mxu0 %v3073
    %v3431 = vpop.f32.mrf.mxu0
    %v3432 = vadd.f32 0.0, %v3431
    %v3433 = vpop.f32.mrf.mxu0
    %v3434 = vadd.f32 0.0, %v3433
    %v3435 = vpop.f32.mrf.mxu0
    %v3436 = vpop.f32.mrf.mxu0
    %3437 = vdwg.mxu0
    %v3438 = vadd.f32 %v3015, %v3350
    %v3439 = vadd.f32 %v3016, %v3352
    %v3440 = vadd.f32 %v3017, %v3391
    %v3441 = vadd.f32 %v3018, %v3393
    %v3442 = vadd.f32 %v3019, %v3432
    %v3443 = vadd.f32 %v3020, %v3434
    %s3444 = scalar_lea.vmem [#allocation8], 2304
    %v3445 = vld [vmem:[%s3444] sm:$0xff]
    %v3446 = vld [vmem:[%s3444 + $0x8] sm:$0xff]
    %v3447 = vld [vmem:[%s3444 + $0x10] sm:$0xff]
    %v3448 = vld [vmem:[%s3444 + $0x18] sm:$0xff]
    %v3449 = vld [vmem:[%s3444 + $0x20] sm:$0xff]
    %v3450 = vld [vmem:[%s3444 + $0x28] sm:$0xff]
    %v3451 = vld [vmem:[%s3444 + $0x30] sm:$0xff]
    %v3452 = vld [vmem:[%s3444 + $0x38] sm:$0xff]
    %v3453 = vld [vmem:[%s3444 + $0x40] sm:$0xff]
    %v3454 = vld [vmem:[%s3444 + $0x48] sm:$0xff]
    %v3455 = vld [vmem:[%s3444 + $0x50] sm:$0xff]
    %v3456 = vld [vmem:[%s3444 + $0x58] sm:$0xff]
    %v3457 = vld [vmem:[%s3444 + $0x60] sm:$0xff]
    %v3458 = vld [vmem:[%s3444 + $0x68] sm:$0xff]
    %v3459 = vld [vmem:[%s3444 + $0x70] sm:$0xff]
    %v3460 = vld [vmem:[%s3444 + $0x78] sm:$0xff]
    %v3461 = vld [vmem:[%s3444 + $0x80] sm:$0xff]
    %v3462 = vld [vmem:[%s3444 + $0x88] sm:$0xff]
    %v3463 = vld [vmem:[%s3444 + $0x90] sm:$0xff]
    %v3464 = vld [vmem:[%s3444 + $0x98] sm:$0xff]
    %v3465 = vld [vmem:[%s3444 + $0xa0] sm:$0xff]
    %v3466 = vld [vmem:[%s3444 + $0xa8] sm:$0xff]
    %v3467 = vld [vmem:[%s3444 + $0xb0] sm:$0xff]
    %v3468 = vld [vmem:[%s3444 + $0xb8] sm:$0xff]
    %v3469 = vld [vmem:[%s3444 + $0xc0] sm:$0xff]
    %v3470 = vld [vmem:[%s3444 + $0xc8] sm:$0xff]
    %v3471 = vld [vmem:[%s3444 + $0xd0] sm:$0xff]
    %v3472 = vld [vmem:[%s3444 + $0xd8] sm:$0xff]
    %v3473 = vld [vmem:[%s3444 + $0xe0] sm:$0xff]
    %v3474 = vld [vmem:[%s3444 + $0xe8] sm:$0xff]
    %v3475 = vld [vmem:[%s3444 + $0xf0] sm:$0xff]
    %v3476 = vld [vmem:[%s3444 + $0xf8] sm:$0xff]
    %v3477 = vld [vmem:[%s3444 + $0x100] sm:$0xff]
    %v3478 = vld [vmem:[%s3444 + $0x108] sm:$0xff]
    %v3479 = vld [vmem:[%s3444 + $0x110] sm:$0xff]
    %v3480 = vld [vmem:[%s3444 + $0x118] sm:$0xff]
    %v3481 = vld [vmem:[%s3444 + $0x120] sm:$0xff]
    %v3482 = vld [vmem:[%s3444 + $0x128] sm:$0xff]
    %v3483 = vld [vmem:[%s3444 + $0x130] sm:$0xff]
    %v3484 = vld [vmem:[%s3444 + $0x138] sm:$0xff]
    %v3485 = vld [vmem:[%s3444 + $0x140] sm:$0xff]
    %v3486 = vld [vmem:[%s3444 + $0x148] sm:$0xff]
    %v3487 = vld [vmem:[%s3444 + $0x150] sm:$0xff]
    %v3488 = vld [vmem:[%s3444 + $0x158] sm:$0xff]
    %v3489 = vld [vmem:[%s3444 + $0x160] sm:$0xff]
    %v3490 = vld [vmem:[%s3444 + $0x168] sm:$0xff]
    %v3491 = vld [vmem:[%s3444 + $0x170] sm:$0xff]
    %v3492 = vld [vmem:[%s3444 + $0x178] sm:$0xff]
    %v3493 = vrot.slane %v1015, 6
    %v3494 = vrot.slane %v1016, 5
    %v3495 = vsel %vm1018, %v3494, %v3493
    %v3496 = vpack.c.b16 %v3495, %v3495
    %v3546 = vunpack.c.l.b16 %v3445
    %v3547 = vunpack.c.h.b16 %v3445
    %v3548 = vunpack.c.l.b16 %v3446
    %v3549 = vunpack.c.h.b16 %v3446
    %v3550 = vunpack.c.l.b16 %v3447
    %v3551 = vunpack.c.h.b16 %v3447
    %v3552 = vunpack.c.l.b16 %v3448
    %v3553 = vunpack.c.h.b16 %v3448
    %v3554 = vunpack.c.l.b16 %v3449
    %v3555 = vunpack.c.h.b16 %v3449
    %v3556 = vunpack.c.l.b16 %v3450
    %v3557 = vunpack.c.h.b16 %v3450
    %v3558 = vunpack.c.l.b16 %v3451
    %v3559 = vunpack.c.h.b16 %v3451
    %v3560 = vunpack.c.l.b16 %v3452
    %v3561 = vunpack.c.h.b16 %v3452
    %v3562 = vunpack.c.l.b16 %v3453
    %v3563 = vunpack.c.h.b16 %v3453
    %v3564 = vunpack.c.l.b16 %v3454
    %v3565 = vunpack.c.h.b16 %v3454
    %v3566 = vunpack.c.l.b16 %v3455
    %v3567 = vunpack.c.h.b16 %v3455
    %v3568 = vunpack.c.l.b16 %v3456
    %v3569 = vunpack.c.h.b16 %v3456
    %v3570 = vunpack.c.l.b16 %v3457
    %v3571 = vunpack.c.h.b16 %v3457
    %v3572 = vunpack.c.l.b16 %v3458
    %v3573 = vunpack.c.h.b16 %v3458
    %v3574 = vunpack.c.l.b16 %v3459
    %v3575 = vunpack.c.h.b16 %v3459
    %v3576 = vunpack.c.l.b16 %v3460
    %v3577 = vunpack.c.h.b16 %v3460
    %v3578 = vunpack.c.l.b16 %v3461
    %v3579 = vunpack.c.h.b16 %v3461
    %v3580 = vunpack.c.l.b16 %v3462
    %v3581 = vunpack.c.h.b16 %v3462
    %v3582 = vunpack.c.l.b16 %v3463
    %v3583 = vunpack.c.h.b16 %v3463
    %v3584 = vunpack.c.l.b16 %v3464
    %v3585 = vunpack.c.h.b16 %v3464
    %v3586 = vunpack.c.l.b16 %v3465
    %v3587 = vunpack.c.h.b16 %v3465
    %v3588 = vunpack.c.l.b16 %v3466
    %v3589 = vunpack.c.h.b16 %v3466
    %v3590 = vunpack.c.l.b16 %v3467
    %v3591 = vunpack.c.h.b16 %v3467
    %v3592 = vunpack.c.l.b16 %v3468
    %v3593 = vunpack.c.h.b16 %v3468
    %v3594 = vunpack.c.l.b16 %v3469
    %v3595 = vunpack.c.h.b16 %v3469
    %v3596 = vunpack.c.l.b16 %v3470
    %v3597 = vunpack.c.h.b16 %v3470
    %v3598 = vunpack.c.l.b16 %v3471
    %v3599 = vunpack.c.h.b16 %v3471
    %v3600 = vunpack.c.l.b16 %v3472
    %v3601 = vunpack.c.h.b16 %v3472
    %v3602 = vunpack.c.l.b16 %v3473
    %v3603 = vunpack.c.h.b16 %v3473
    %v3604 = vunpack.c.l.b16 %v3474
    %v3605 = vunpack.c.h.b16 %v3474
    %v3606 = vunpack.c.l.b16 %v3475
    %v3607 = vunpack.c.h.b16 %v3475
    %v3608 = vunpack.c.l.b16 %v3476
    %v3609 = vunpack.c.h.b16 %v3476
    %v3610 = vunpack.c.l.b16 %v3477
    %v3611 = vunpack.c.h.b16 %v3477
    %v3612 = vunpack.c.l.b16 %v3478
    %v3613 = vunpack.c.h.b16 %v3478
    %v3614 = vunpack.c.l.b16 %v3479
    %v3615 = vunpack.c.h.b16 %v3479
    %v3616 = vunpack.c.l.b16 %v3480
    %v3617 = vunpack.c.h.b16 %v3480
    %v3618 = vunpack.c.l.b16 %v3481
    %v3619 = vunpack.c.h.b16 %v3481
    %v3620 = vunpack.c.l.b16 %v3482
    %v3621 = vunpack.c.h.b16 %v3482
    %v3622 = vunpack.c.l.b16 %v3483
    %v3623 = vunpack.c.h.b16 %v3483
    %v3624 = vunpack.c.l.b16 %v3484
    %v3625 = vunpack.c.h.b16 %v3484
    %v3626 = vunpack.c.l.b16 %v3485
    %v3627 = vunpack.c.h.b16 %v3485
    %v3628 = vunpack.c.l.b16 %v3486
    %v3629 = vunpack.c.h.b16 %v3486
    %v3630 = vunpack.c.l.b16 %v3487
    %v3631 = vunpack.c.h.b16 %v3487
    %v3632 = vunpack.c.l.b16 %v3488
    %v3633 = vunpack.c.h.b16 %v3488
    %v3634 = vunpack.c.l.b16 %v3489
    %v3635 = vunpack.c.h.b16 %v3489
    %v3636 = vunpack.c.l.b16 %v3490
    %v3637 = vunpack.c.h.b16 %v3490
    %v3638 = vunpack.c.l.b16 %v3491
    %v3639 = vunpack.c.h.b16 %v3491
    %v3640 = vunpack.c.l.b16 %v3492
    %v3641 = vunpack.c.h.b16 %v3492
    %v3642 = vpack.c.b16 %v3552, %v3546
    %v3643 = vpack.c.b16 %v3553, %v3547
    %v3644 = vpack.c.b16 %v3554, %v3548
    %v3645 = vpack.c.b16 %v3555, %v3549
    %v3646 = vpack.c.b16 %v3556, %v3550
    %v3647 = vpack.c.b16 %v3557, %v3551
    %v3648 = vpack.c.b16 %v3564, %v3558
    %v3649 = vpack.c.b16 %v3565, %v3559
    %v3650 = vpack.c.b16 %v3566, %v3560
    %v3651 = vpack.c.b16 %v3567, %v3561
    %v3652 = vpack.c.b16 %v3568, %v3562
    %v3653 = vpack.c.b16 %v3569, %v3563
    %v3654 = vpack.c.b16 %v3576, %v3570
    %v3655 = vpack.c.b16 %v3577, %v3571
    %v3656 = vpack.c.b16 %v3578, %v3572
    %v3657 = vpack.c.b16 %v3579, %v3573
    %v3658 = vpack.c.b16 %v3580, %v3574
    %v3659 = vpack.c.b16 %v3581, %v3575
    %v3660 = vpack.c.b16 %v3588, %v3582
    %v3661 = vpack.c.b16 %v3589, %v3583
    %v3662 = vpack.c.b16 %v3590, %v3584
    %v3663 = vpack.c.b16 %v3591, %v3585
    %v3664 = vpack.c.b16 %v3592, %v3586
    %v3665 = vpack.c.b16 %v3593, %v3587
    %v3666 = vpack.c.b16 %v3600, %v3594
    %v3667 = vpack.c.b16 %v3601, %v3595
    %v3668 = vpack.c.b16 %v3602, %v3596
    %v3669 = vpack.c.b16 %v3603, %v3597
    %v3670 = vpack.c.b16 %v3604, %v3598
    %v3671 = vpack.c.b16 %v3605, %v3599
    %v3672 = vpack.c.b16 %v3612, %v3606
    %v3673 = vpack.c.b16 %v3613, %v3607
    %v3674 = vpack.c.b16 %v3614, %v3608
    %v3675 = vpack.c.b16 %v3615, %v3609
    %v3676 = vpack.c.b16 %v3616, %v3610
    %v3677 = vpack.c.b16 %v3617, %v3611
    %v3678 = vpack.c.b16 %v3624, %v3618
    %v3679 = vpack.c.b16 %v3625, %v3619
    %v3680 = vpack.c.b16 %v3626, %v3620
    %v3681 = vpack.c.b16 %v3627, %v3621
    %v3682 = vpack.c.b16 %v3628, %v3622
    %v3683 = vpack.c.b16 %v3629, %v3623
    %v3684 = vpack.c.b16 %v3636, %v3630
    %v3685 = vpack.c.b16 %v3637, %v3631
    %v3686 = vpack.c.b16 %v3638, %v3632
    %v3687 = vpack.c.b16 %v3639, %v3633
    %v3688 = vpack.c.b16 %v3640, %v3634
    %v3689 = vpack.c.b16 %v3641, %v3635
    %3738 = vmatprep.subr.bf16.mxu0 %v3685
    %3739 = vmatpush1.bf16.msra.mxu0 %v3684
    %3740 = vmatprep.subr.bf16.mxu0 %v3679
    %3741 = vmatpush1.bf16.msra.mxu0 %v3678
    %3742 = vmatprep.subr.bf16.mxu0 %v3673
    %3743 = vmatpush1.bf16.msra.mxu0 %v3672
    %3744 = vmatprep.subr.bf16.mxu0 %v3667
    %3745 = vmatpush1.bf16.msra.mxu0 %v3666
    %3746 = vmatprep.subr.bf16.mxu0 %v3661
    %3747 = vmatpush1.bf16.msra.mxu0 %v3660
    %3748 = vmatprep.subr.bf16.mxu0 %v3655
    %3749 = vmatpush1.bf16.msra.mxu0 %v3654
    %3750 = vmatprep.subr.bf16.mxu0 %v3649
    %3751 = vmatpush1.bf16.msra.mxu0 %v3648
    %3752 = vmatprep.subr.bf16.mxu0 %v3643
    %3753 = vmatpush1.bf16.msra.mxu0 %v3642
    %3754 = vmatprep.subr.bf16.mxu0 0
    %3755 = vmatpush2.bf16.msra.mxu0 0
    %3756 = vmatprep.subr.bf16.mxu0 0
    %3757 = vmatpush2.bf16.msra.mxu0 0
    %3758 = vmatprep.subr.bf16.mxu0 0
    %3759 = vmatpush2.bf16.msra.mxu0 0
    %3760 = vmatprep.subr.bf16.mxu0 0
    %3761 = vmatpush2.bf16.msra.mxu0 0
    %3762 = vmatprep.subr.bf16.mxu0 0
    %3763 = vmatpush2.bf16.msra.mxu0 0
    %3764 = vmatprep.subr.bf16.mxu0 0
    %3765 = vmatpush2.bf16.msra.mxu0 0
    %3766 = vmatprep.subr.bf16.mxu0 0
    %3767 = vmatpush2.bf16.msra.mxu0 0
    %3768 = vmatprep.subr.bf16.mxu0 0
    %3769 = vmatpush2.bf16.msra.mxu0 0
    %3770 = vmatprep.mubr.bf16.mxu0 0
    %3771 = vmatmul.mubr.bf16.gmra.mxu0 %v3496
    %v3772 = vpop.f32.mrf.mxu0
    %v3773 = vadd.f32 0.0, %v3772
    %v3774 = vpop.f32.mrf.mxu0
    %v3775 = vadd.f32 0.0, %v3774
    %v3776 = vpop.f32.mrf.mxu0
    %v3777 = vpop.f32.mrf.mxu0
    %3778 = vdwg.mxu0
    %3779 = vmatprep.subr.bf16.mxu0 %v3687
    %3780 = vmatpush1.bf16.msra.mxu0 %v3686
    %3781 = vmatprep.subr.bf16.mxu0 %v3681
    %3782 = vmatpush1.bf16.msra.mxu0 %v3680
    %3783 = vmatprep.subr.bf16.mxu0 %v3675
    %3784 = vmatpush1.bf16.msra.mxu0 %v3674
    %3785 = vmatprep.subr.bf16.mxu0 %v3669
    %3786 = vmatpush1.bf16.msra.mxu0 %v3668
    %3787 = vmatprep.subr.bf16.mxu0 %v3663
    %3788 = vmatpush1.bf16.msra.mxu0 %v3662
    %3789 = vmatprep.subr.bf16.mxu0 %v3657
    %3790 = vmatpush1.bf16.msra.mxu0 %v3656
    %3791 = vmatprep.subr.bf16.mxu0 %v3651
    %3792 = vmatpush1.bf16.msra.mxu0 %v3650
    %3793 = vmatprep.subr.bf16.mxu0 %v3645
    %3794 = vmatpush1.bf16.msra.mxu0 %v3644
    %3795 = vmatprep.subr.bf16.mxu0 0
    %3796 = vmatpush2.bf16.msra.mxu0 0
    %3797 = vmatprep.subr.bf16.mxu0 0
    %3798 = vmatpush2.bf16.msra.mxu0 0
    %3799 = vmatprep.subr.bf16.mxu0 0
    %3800 = vmatpush2.bf16.msra.mxu0 0
    %3801 = vmatprep.subr.bf16.mxu0 0
    %3802 = vmatpush2.bf16.msra.mxu0 0
    %3803 = vmatprep.subr.bf16.mxu0 0
    %3804 = vmatpush2.bf16.msra.mxu0 0
    %3805 = vmatprep.subr.bf16.mxu0 0
    %3806 = vmatpush2.bf16.msra.mxu0 0
    %3807 = vmatprep.subr.bf16.mxu0 0
    %3808 = vmatpush2.bf16.msra.mxu0 0
    %3809 = vmatprep.subr.bf16.mxu0 0
    %3810 = vmatpush2.bf16.msra.mxu0 0
    %3811 = vmatprep.mubr.bf16.mxu0 0
    %3812 = vmatmul.mubr.bf16.gmra.mxu0 %v3496
    %v3813 = vpop.f32.mrf.mxu0
    %v3814 = vadd.f32 0.0, %v3813
    %v3815 = vpop.f32.mrf.mxu0
    %v3816 = vadd.f32 0.0, %v3815
    %v3817 = vpop.f32.mrf.mxu0
    %v3818 = vpop.f32.mrf.mxu0
    %3819 = vdwg.mxu0
    %3820 = vmatprep.subr.bf16.mxu0 %v3689
    %3821 = vmatpush1.bf16.msra.mxu0 %v3688
    %3822 = vmatprep.subr.bf16.mxu0 %v3683
    %3823 = vmatpush1.bf16.msra.mxu0 %v3682
    %3824 = vmatprep.subr.bf16.mxu0 %v3677
    %3825 = vmatpush1.bf16.msra.mxu0 %v3676
    %3826 = vmatprep.subr.bf16.mxu0 %v3671
    %3827 = vmatpush1.bf16.msra.mxu0 %v3670
    %3828 = vmatprep.subr.bf16.mxu0 %v3665
    %3829 = vmatpush1.bf16.msra.mxu0 %v3664
    %3830 = vmatprep.subr.bf16.mxu0 %v3659
    %3831 = vmatpush1.bf16.msra.mxu0 %v3658
    %3832 = vmatprep.subr.bf16.mxu0 %v3653
    %3833 = vmatpush1.bf16.msra.mxu0 %v3652
    %3834 = vmatprep.subr.bf16.mxu0 %v3647
    %3835 = vmatpush1.bf16.msra.mxu0 %v3646
    %3836 = vmatprep.subr.bf16.mxu0 0
    %3837 = vmatpush2.bf16.msra.mxu0 0
    %3838 = vmatprep.subr.bf16.mxu0 0
    %3839 = vmatpush2.bf16.msra.mxu0 0
    %3840 = vmatprep.subr.bf16.mxu0 0
    %3841 = vmatpush2.bf16.msra.mxu0 0
    %3842 = vmatprep.subr.bf16.mxu0 0
    %3843 = vmatpush2.bf16.msra.mxu0 0
    %3844 = vmatprep.subr.bf16.mxu0 0
    %3845 = vmatpush2.bf16.msra.mxu0 0
    %3846 = vmatprep.subr.bf16.mxu0 0
    %3847 = vmatpush2.bf16.msra.mxu0 0
    %3848 = vmatprep.subr.bf16.mxu0 0
    %3849 = vmatpush2.bf16.msra.mxu0 0
    %3850 = vmatprep.subr.bf16.mxu0 0
    %3851 = vmatpush2.bf16.msra.mxu0 0
    %3852 = vmatprep.mubr.bf16.mxu0 0
    %3853 = vmatmul.mubr.bf16.gmra.mxu0 %v3496
    %v3854 = vpop.f32.mrf.mxu0
    %v3855 = vadd.f32 0.0, %v3854
    %v3856 = vpop.f32.mrf.mxu0
    %v3857 = vadd.f32 0.0, %v3856
    %v3858 = vpop.f32.mrf.mxu0
    %v3859 = vpop.f32.mrf.mxu0
    %3860 = vdwg.mxu0
    %v3861 = vadd.f32 %v3438, %v3773
    %v3862 = vadd.f32 %v3439, %v3775
    %v3863 = vadd.f32 %v3440, %v3814
    %v3864 = vadd.f32 %v3441, %v3816
    %v3865 = vadd.f32 %v3442, %v3855
    %v3866 = vadd.f32 %v3443, %v3857
    %s3867 = scalar_lea.vmem [#allocation8], 2688
    %v3868 = vld [vmem:[%s3867] sm:$0xff]
    %v3869 = vld [vmem:[%s3867 + $0x8] sm:$0xff]
    %v3870 = vld [vmem:[%s3867 + $0x10] sm:$0xff]
    %v3871 = vld [vmem:[%s3867 + $0x18] sm:$0xff]
    %v3872 = vld [vmem:[%s3867 + $0x20] sm:$0xff]
    %v3873 = vld [vmem:[%s3867 + $0x28] sm:$0xff]
    %v3874 = vld [vmem:[%s3867 + $0x30] sm:$0xff]
    %v3875 = vld [vmem:[%s3867 + $0x38] sm:$0xff]
    %v3876 = vld [vmem:[%s3867 + $0x40] sm:$0xff]
    %v3877 = vld [vmem:[%s3867 + $0x48] sm:$0xff]
    %v3878 = vld [vmem:[%s3867 + $0x50] sm:$0xff]
    %v3879 = vld [vmem:[%s3867 + $0x58] sm:$0xff]
    %v3880 = vld [vmem:[%s3867 + $0x60] sm:$0xff]
    %v3881 = vld [vmem:[%s3867 + $0x68] sm:$0xff]
    %v3882 = vld [vmem:[%s3867 + $0x70] sm:$0xff]
    %v3883 = vld [vmem:[%s3867 + $0x78] sm:$0xff]
    %v3884 = vld [vmem:[%s3867 + $0x80] sm:$0xff]
    %v3885 = vld [vmem:[%s3867 + $0x88] sm:$0xff]
    %v3886 = vld [vmem:[%s3867 + $0x90] sm:$0xff]
    %v3887 = vld [vmem:[%s3867 + $0x98] sm:$0xff]
    %v3888 = vld [vmem:[%s3867 + $0xa0] sm:$0xff]
    %v3889 = vld [vmem:[%s3867 + $0xa8] sm:$0xff]
    %v3890 = vld [vmem:[%s3867 + $0xb0] sm:$0xff]
    %v3891 = vld [vmem:[%s3867 + $0xb8] sm:$0xff]
    %v3892 = vld [vmem:[%s3867 + $0xc0] sm:$0xff]
    %v3893 = vld [vmem:[%s3867 + $0xc8] sm:$0xff]
    %v3894 = vld [vmem:[%s3867 + $0xd0] sm:$0xff]
    %v3895 = vld [vmem:[%s3867 + $0xd8] sm:$0xff]
    %v3896 = vld [vmem:[%s3867 + $0xe0] sm:$0xff]
    %v3897 = vld [vmem:[%s3867 + $0xe8] sm:$0xff]
    %v3898 = vld [vmem:[%s3867 + $0xf0] sm:$0xff]
    %v3899 = vld [vmem:[%s3867 + $0xf8] sm:$0xff]
    %v3900 = vld [vmem:[%s3867 + $0x100] sm:$0xff]
    %v3901 = vld [vmem:[%s3867 + $0x108] sm:$0xff]
    %v3902 = vld [vmem:[%s3867 + $0x110] sm:$0xff]
    %v3903 = vld [vmem:[%s3867 + $0x118] sm:$0xff]
    %v3904 = vld [vmem:[%s3867 + $0x120] sm:$0xff]
    %v3905 = vld [vmem:[%s3867 + $0x128] sm:$0xff]
    %v3906 = vld [vmem:[%s3867 + $0x130] sm:$0xff]
    %v3907 = vld [vmem:[%s3867 + $0x138] sm:$0xff]
    %v3908 = vld [vmem:[%s3867 + $0x140] sm:$0xff]
    %v3909 = vld [vmem:[%s3867 + $0x148] sm:$0xff]
    %v3910 = vld [vmem:[%s3867 + $0x150] sm:$0xff]
    %v3911 = vld [vmem:[%s3867 + $0x158] sm:$0xff]
    %v3912 = vld [vmem:[%s3867 + $0x160] sm:$0xff]
    %v3913 = vld [vmem:[%s3867 + $0x168] sm:$0xff]
    %v3914 = vld [vmem:[%s3867 + $0x170] sm:$0xff]
    %v3915 = vld [vmem:[%s3867 + $0x178] sm:$0xff]
    %v3916 = vrot.slane %v1015, 7
    %v3917 = vrot.slane %v1016, 6
    %v3918 = vsel %vm1018, %v3917, %v3916
    %v3919 = vpack.c.b16 %v3918, %v3918
    %v3969 = vunpack.c.l.b16 %v3868
    %v3970 = vunpack.c.h.b16 %v3868
    %v3971 = vunpack.c.l.b16 %v3869
    %v3972 = vunpack.c.h.b16 %v3869
    %v3973 = vunpack.c.l.b16 %v3870
    %v3974 = vunpack.c.h.b16 %v3870
    %v3975 = vunpack.c.l.b16 %v3871
    %v3976 = vunpack.c.h.b16 %v3871
    %v3977 = vunpack.c.l.b16 %v3872
    %v3978 = vunpack.c.h.b16 %v3872
    %v3979 = vunpack.c.l.b16 %v3873
    %v3980 = vunpack.c.h.b16 %v3873
    %v3981 = vunpack.c.l.b16 %v3874
    %v3982 = vunpack.c.h.b16 %v3874
    %v3983 = vunpack.c.l.b16 %v3875
    %v3984 = vunpack.c.h.b16 %v3875
    %v3985 = vunpack.c.l.b16 %v3876
    %v3986 = vunpack.c.h.b16 %v3876
    %v3987 = vunpack.c.l.b16 %v3877
    %v3988 = vunpack.c.h.b16 %v3877
    %v3989 = vunpack.c.l.b16 %v3878
    %v3990 = vunpack.c.h.b16 %v3878
    %v3991 = vunpack.c.l.b16 %v3879
    %v3992 = vunpack.c.h.b16 %v3879
    %v3993 = vunpack.c.l.b16 %v3880
    %v3994 = vunpack.c.h.b16 %v3880
    %v3995 = vunpack.c.l.b16 %v3881
    %v3996 = vunpack.c.h.b16 %v3881
    %v3997 = vunpack.c.l.b16 %v3882
    %v3998 = vunpack.c.h.b16 %v3882
    %v3999 = vunpack.c.l.b16 %v3883
    %v4000 = vunpack.c.h.b16 %v3883
    %v4001 = vunpack.c.l.b16 %v3884
    %v4002 = vunpack.c.h.b16 %v3884
    %v4003 = vunpack.c.l.b16 %v3885
    %v4004 = vunpack.c.h.b16 %v3885
    %v4005 = vunpack.c.l.b16 %v3886
    %v4006 = vunpack.c.h.b16 %v3886
    %v4007 = vunpack.c.l.b16 %v3887
    %v4008 = vunpack.c.h.b16 %v3887
    %v4009 = vunpack.c.l.b16 %v3888
    %v4010 = vunpack.c.h.b16 %v3888
    %v4011 = vunpack.c.l.b16 %v3889
    %v4012 = vunpack.c.h.b16 %v3889
    %v4013 = vunpack.c.l.b16 %v3890
    %v4014 = vunpack.c.h.b16 %v3890
    %v4015 = vunpack.c.l.b16 %v3891
    %v4016 = vunpack.c.h.b16 %v3891
    %v4017 = vunpack.c.l.b16 %v3892
    %v4018 = vunpack.c.h.b16 %v3892
    %v4019 = vunpack.c.l.b16 %v3893
    %v4020 = vunpack.c.h.b16 %v3893
    %v4021 = vunpack.c.l.b16 %v3894
    %v4022 = vunpack.c.h.b16 %v3894
    %v4023 = vunpack.c.l.b16 %v3895
    %v4024 = vunpack.c.h.b16 %v3895
    %v4025 = vunpack.c.l.b16 %v3896
    %v4026 = vunpack.c.h.b16 %v3896
    %v4027 = vunpack.c.l.b16 %v3897
    %v4028 = vunpack.c.h.b16 %v3897
    %v4029 = vunpack.c.l.b16 %v3898
    %v4030 = vunpack.c.h.b16 %v3898
    %v4031 = vunpack.c.l.b16 %v3899
    %v4032 = vunpack.c.h.b16 %v3899
    %v4033 = vunpack.c.l.b16 %v3900
    %v4034 = vunpack.c.h.b16 %v3900
    %v4035 = vunpack.c.l.b16 %v3901
    %v4036 = vunpack.c.h.b16 %v3901
    %v4037 = vunpack.c.l.b16 %v3902
    %v4038 = vunpack.c.h.b16 %v3902
    %v4039 = vunpack.c.l.b16 %v3903
    %v4040 = vunpack.c.h.b16 %v3903
    %v4041 = vunpack.c.l.b16 %v3904
    %v4042 = vunpack.c.h.b16 %v3904
    %v4043 = vunpack.c.l.b16 %v3905
    %v4044 = vunpack.c.h.b16 %v3905
    %v4045 = vunpack.c.l.b16 %v3906
    %v4046 = vunpack.c.h.b16 %v3906
    %v4047 = vunpack.c.l.b16 %v3907
    %v4048 = vunpack.c.h.b16 %v3907
    %v4049 = vunpack.c.l.b16 %v3908
    %v4050 = vunpack.c.h.b16 %v3908
    %v4051 = vunpack.c.l.b16 %v3909
    %v4052 = vunpack.c.h.b16 %v3909
    %v4053 = vunpack.c.l.b16 %v3910
    %v4054 = vunpack.c.h.b16 %v3910
    %v4055 = vunpack.c.l.b16 %v3911
    %v4056 = vunpack.c.h.b16 %v3911
    %v4057 = vunpack.c.l.b16 %v3912
    %v4058 = vunpack.c.h.b16 %v3912
    %v4059 = vunpack.c.l.b16 %v3913
    %v4060 = vunpack.c.h.b16 %v3913
    %v4061 = vunpack.c.l.b16 %v3914
    %v4062 = vunpack.c.h.b16 %v3914
    %v4063 = vunpack.c.l.b16 %v3915
    %v4064 = vunpack.c.h.b16 %v3915
    %v4065 = vpack.c.b16 %v3975, %v3969
    %v4066 = vpack.c.b16 %v3976, %v3970
    %v4067 = vpack.c.b16 %v3977, %v3971
    %v4068 = vpack.c.b16 %v3978, %v3972
    %v4069 = vpack.c.b16 %v3979, %v3973
    %v4070 = vpack.c.b16 %v3980, %v3974
    %v4071 = vpack.c.b16 %v3987, %v3981
    %v4072 = vpack.c.b16 %v3988, %v3982
    %v4073 = vpack.c.b16 %v3989, %v3983
    %v4074 = vpack.c.b16 %v3990, %v3984
    %v4075 = vpack.c.b16 %v3991, %v3985
    %v4076 = vpack.c.b16 %v3992, %v3986
    %v4077 = vpack.c.b16 %v3999, %v3993
    %v4078 = vpack.c.b16 %v4000, %v3994
    %v4079 = vpack.c.b16 %v4001, %v3995
    %v4080 = vpack.c.b16 %v4002, %v3996
    %v4081 = vpack.c.b16 %v4003, %v3997
    %v4082 = vpack.c.b16 %v4004, %v3998
    %v4083 = vpack.c.b16 %v4011, %v4005
    %v4084 = vpack.c.b16 %v4012, %v4006
    %v4085 = vpack.c.b16 %v4013, %v4007
    %v4086 = vpack.c.b16 %v4014, %v4008
    %v4087 = vpack.c.b16 %v4015, %v4009
    %v4088 = vpack.c.b16 %v4016, %v4010
    %v4089 = vpack.c.b16 %v4023, %v4017
    %v4090 = vpack.c.b16 %v4024, %v4018
    %v4091 = vpack.c.b16 %v4025, %v4019
    %v4092 = vpack.c.b16 %v4026, %v4020
    %v4093 = vpack.c.b16 %v4027, %v4021
    %v4094 = vpack.c.b16 %v4028, %v4022
    %v4095 = vpack.c.b16 %v4035, %v4029
    %v4096 = vpack.c.b16 %v4036, %v4030
    %v4097 = vpack.c.b16 %v4037, %v4031
    %v4098 = vpack.c.b16 %v4038, %v4032
    %v4099 = vpack.c.b16 %v4039, %v4033
    %v4100 = vpack.c.b16 %v4040, %v4034
    %v4101 = vpack.c.b16 %v4047, %v4041
    %v4102 = vpack.c.b16 %v4048, %v4042
    %v4103 = vpack.c.b16 %v4049, %v4043
    %v4104 = vpack.c.b16 %v4050, %v4044
    %v4105 = vpack.c.b16 %v4051, %v4045
    %v4106 = vpack.c.b16 %v4052, %v4046
    %v4107 = vpack.c.b16 %v4059, %v4053
    %v4108 = vpack.c.b16 %v4060, %v4054
    %v4109 = vpack.c.b16 %v4061, %v4055
    %v4110 = vpack.c.b16 %v4062, %v4056
    %v4111 = vpack.c.b16 %v4063, %v4057
    %v4112 = vpack.c.b16 %v4064, %v4058
    %4161 = vmatprep.subr.bf16.mxu0 %v4108
    %4162 = vmatpush1.bf16.msra.mxu0 %v4107
    %4163 = vmatprep.subr.bf16.mxu0 %v4102
    %4164 = vmatpush1.bf16.msra.mxu0 %v4101
    %4165 = vmatprep.subr.bf16.mxu0 %v4096
    %4166 = vmatpush1.bf16.msra.mxu0 %v4095
    %4167 = vmatprep.subr.bf16.mxu0 %v4090
    %4168 = vmatpush1.bf16.msra.mxu0 %v4089
    %4169 = vmatprep.subr.bf16.mxu0 %v4084
    %4170 = vmatpush1.bf16.msra.mxu0 %v4083
    %4171 = vmatprep.subr.bf16.mxu0 %v4078
    %4172 = vmatpush1.bf16.msra.mxu0 %v4077
    %4173 = vmatprep.subr.bf16.mxu0 %v4072
    %4174 = vmatpush1.bf16.msra.mxu0 %v4071
    %4175 = vmatprep.subr.bf16.mxu0 %v4066
    %4176 = vmatpush1.bf16.msra.mxu0 %v4065
    %4177 = vmatprep.subr.bf16.mxu0 0
    %4178 = vmatpush2.bf16.msra.mxu0 0
    %4179 = vmatprep.subr.bf16.mxu0 0
    %4180 = vmatpush2.bf16.msra.mxu0 0
    %4181 = vmatprep.subr.bf16.mxu0 0
    %4182 = vmatpush2.bf16.msra.mxu0 0
    %4183 = vmatprep.subr.bf16.mxu0 0
    %4184 = vmatpush2.bf16.msra.mxu0 0
    %4185 = vmatprep.subr.bf16.mxu0 0
    %4186 = vmatpush2.bf16.msra.mxu0 0
    %4187 = vmatprep.subr.bf16.mxu0 0
    %4188 = vmatpush2.bf16.msra.mxu0 0
    %4189 = vmatprep.subr.bf16.mxu0 0
    %4190 = vmatpush2.bf16.msra.mxu0 0
    %4191 = vmatprep.subr.bf16.mxu0 0
    %4192 = vmatpush2.bf16.msra.mxu0 0
    %4193 = vmatprep.mubr.bf16.mxu0 0
    %4194 = vmatmul.mubr.bf16.gmra.mxu0 %v3919
    %v4195 = vpop.f32.mrf.mxu0
    %v4196 = vadd.f32 0.0, %v4195
    %v4197 = vpop.f32.mrf.mxu0
    %v4198 = vadd.f32 0.0, %v4197
    %v4199 = vpop.f32.mrf.mxu0
    %v4200 = vpop.f32.mrf.mxu0
    %4201 = vdwg.mxu0
    %4202 = vmatprep.subr.bf16.mxu0 %v4110
    %4203 = vmatpush1.bf16.msra.mxu0 %v4109
    %4204 = vmatprep.subr.bf16.mxu0 %v4104
    %4205 = vmatpush1.bf16.msra.mxu0 %v4103
    %4206 = vmatprep.subr.bf16.mxu0 %v4098
    %4207 = vmatpush1.bf16.msra.mxu0 %v4097
    %4208 = vmatprep.subr.bf16.mxu0 %v4092
    %4209 = vmatpush1.bf16.msra.mxu0 %v4091
    %4210 = vmatprep.subr.bf16.mxu0 %v4086
    %4211 = vmatpush1.bf16.msra.mxu0 %v4085
    %4212 = vmatprep.subr.bf16.mxu0 %v4080
    %4213 = vmatpush1.bf16.msra.mxu0 %v4079
    %4214 = vmatprep.subr.bf16.mxu0 %v4074
    %4215 = vmatpush1.bf16.msra.mxu0 %v4073
    %4216 = vmatprep.subr.bf16.mxu0 %v4068
    %4217 = vmatpush1.bf16.msra.mxu0 %v4067
    %4218 = vmatprep.subr.bf16.mxu0 0
    %4219 = vmatpush2.bf16.msra.mxu0 0
    %4220 = vmatprep.subr.bf16.mxu0 0
    %4221 = vmatpush2.bf16.msra.mxu0 0
    %4222 = vmatprep.subr.bf16.mxu0 0
    %4223 = vmatpush2.bf16.msra.mxu0 0
    %4224 = vmatprep.subr.bf16.mxu0 0
    %4225 = vmatpush2.bf16.msra.mxu0 0
    %4226 = vmatprep.subr.bf16.mxu0 0
    %4227 = vmatpush2.bf16.msra.mxu0 0
    %4228 = vmatprep.subr.bf16.mxu0 0
    %4229 = vmatpush2.bf16.msra.mxu0 0
    %4230 = vmatprep.subr.bf16.mxu0 0
    %4231 = vmatpush2.bf16.msra.mxu0 0
    %4232 = vmatprep.subr.bf16.mxu0 0
    %4233 = vmatpush2.bf16.msra.mxu0 0
    %4234 = vmatprep.mubr.bf16.mxu0 0
    %4235 = vmatmul.mubr.bf16.gmra.mxu0 %v3919
    %v4236 = vpop.f32.mrf.mxu0
    %v4237 = vadd.f32 0.0, %v4236
    %v4238 = vpop.f32.mrf.mxu0
    %v4239 = vadd.f32 0.0, %v4238
    %v4240 = vpop.f32.mrf.mxu0
    %v4241 = vpop.f32.mrf.mxu0
    %4242 = vdwg.mxu0
    %4243 = vmatprep.subr.bf16.mxu0 %v4112
    %4244 = vmatpush1.bf16.msra.mxu0 %v4111
    %4245 = vmatprep.subr.bf16.mxu0 %v4106
    %4246 = vmatpush1.bf16.msra.mxu0 %v4105
    %4247 = vmatprep.subr.bf16.mxu0 %v4100
    %4248 = vmatpush1.bf16.msra.mxu0 %v4099
    %4249 = vmatprep.subr.bf16.mxu0 %v4094
    %4250 = vmatpush1.bf16.msra.mxu0 %v4093
    %4251 = vmatprep.subr.bf16.mxu0 %v4088
    %4252 = vmatpush1.bf16.msra.mxu0 %v4087
    %4253 = vmatprep.subr.bf16.mxu0 %v4082
    %4254 = vmatpush1.bf16.msra.mxu0 %v4081
    %4255 = vmatprep.subr.bf16.mxu0 %v4076
    %4256 = vmatpush1.bf16.msra.mxu0 %v4075
    %4257 = vmatprep.subr.bf16.mxu0 %v4070
    %4258 = vmatpush1.bf16.msra.mxu0 %v4069
    %4259 = vmatprep.subr.bf16.mxu0 0
    %4260 = vmatpush2.bf16.msra.mxu0 0
    %4261 = vmatprep.subr.bf16.mxu0 0
    %4262 = vmatpush2.bf16.msra.mxu0 0
    %4263 = vmatprep.subr.bf16.mxu0 0
    %4264 = vmatpush2.bf16.msra.mxu0 0
    %4265 = vmatprep.subr.bf16.mxu0 0
    %4266 = vmatpush2.bf16.msra.mxu0 0
    %4267 = vmatprep.subr.bf16.mxu0 0
    %4268 = vmatpush2.bf16.msra.mxu0 0
    %4269 = vmatprep.subr.bf16.mxu0 0
    %4270 = vmatpush2.bf16.msra.mxu0 0
    %4271 = vmatprep.subr.bf16.mxu0 0
    %4272 = vmatpush2.bf16.msra.mxu0 0
    %4273 = vmatprep.subr.bf16.mxu0 0
    %4274 = vmatpush2.bf16.msra.mxu0 0
    %4275 = vmatprep.mubr.bf16.mxu0 0
    %4276 = vmatmul.mubr.bf16.gmra.mxu0 %v3919
    %v4277 = vpop.f32.mrf.mxu0
    %v4278 = vadd.f32 0.0, %v4277
    %v4279 = vpop.f32.mrf.mxu0
    %v4280 = vadd.f32 0.0, %v4279
    %v4281 = vpop.f32.mrf.mxu0
    %v4282 = vpop.f32.mrf.mxu0
    %4283 = vdwg.mxu0
    %v4284 = vadd.f32 %v3861, %v4196
    %v4285 = vadd.f32 %v3862, %v4198
    %v4286 = vadd.f32 %v3863, %v4237
    %v4287 = vadd.f32 %v3864, %v4239
    %v4288 = vadd.f32 %v3865, %v4278
    %v4289 = vadd.f32 %v3866, %v4280
    %v4290 = vpack.c.bf16 %v575, %v575
    %v4291 = vpack.c.bf16 %v911, %v911
    %s4292 = scalar_lea.vmem [#allocation8], 3072
    %v4293 = vld [vmem:[%s4292] sm:$0xff]
    %v4294 = vld [vmem:[%s4292 + $0x8] sm:$0xff]
    %v4295 = vld [vmem:[%s4292 + $0x10] sm:$0xff]
    %v4296 = vld [vmem:[%s4292 + $0x18] sm:$0xff]
    %v4297 = vld [vmem:[%s4292 + $0x20] sm:$0xff]
    %v4298 = vld [vmem:[%s4292 + $0x28] sm:$0xff]
    %v4299 = vld [vmem:[%s4292 + $0x30] sm:$0xff]
    %v4300 = vld [vmem:[%s4292 + $0x38] sm:$0xff]
    %v4301 = vld [vmem:[%s4292 + $0x40] sm:$0xff]
    %v4302 = vld [vmem:[%s4292 + $0x48] sm:$0xff]
    %v4303 = vld [vmem:[%s4292 + $0x50] sm:$0xff]
    %v4304 = vld [vmem:[%s4292 + $0x58] sm:$0xff]
    %v4305 = vld [vmem:[%s4292 + $0x60] sm:$0xff]
    %v4306 = vld [vmem:[%s4292 + $0x68] sm:$0xff]
    %v4307 = vld [vmem:[%s4292 + $0x70] sm:$0xff]
    %v4308 = vld [vmem:[%s4292 + $0x78] sm:$0xff]
    %v4309 = vld [vmem:[%s4292 + $0x80] sm:$0xff]
    %v4310 = vld [vmem:[%s4292 + $0x88] sm:$0xff]
    %v4311 = vld [vmem:[%s4292 + $0x90] sm:$0xff]
    %v4312 = vld [vmem:[%s4292 + $0x98] sm:$0xff]
    %v4313 = vld [vmem:[%s4292 + $0xa0] sm:$0xff]
    %v4314 = vld [vmem:[%s4292 + $0xa8] sm:$0xff]
    %v4315 = vld [vmem:[%s4292 + $0xb0] sm:$0xff]
    %v4316 = vld [vmem:[%s4292 + $0xb8] sm:$0xff]
    %v4317 = vld [vmem:[%s4292 + $0xc0] sm:$0xff]
    %v4318 = vld [vmem:[%s4292 + $0xc8] sm:$0xff]
    %v4319 = vld [vmem:[%s4292 + $0xd0] sm:$0xff]
    %v4320 = vld [vmem:[%s4292 + $0xd8] sm:$0xff]
    %v4321 = vld [vmem:[%s4292 + $0xe0] sm:$0xff]
    %v4322 = vld [vmem:[%s4292 + $0xe8] sm:$0xff]
    %v4323 = vld [vmem:[%s4292 + $0xf0] sm:$0xff]
    %v4324 = vld [vmem:[%s4292 + $0xf8] sm:$0xff]
    %v4325 = vld [vmem:[%s4292 + $0x100] sm:$0xff]
    %v4326 = vld [vmem:[%s4292 + $0x108] sm:$0xff]
    %v4327 = vld [vmem:[%s4292 + $0x110] sm:$0xff]
    %v4328 = vld [vmem:[%s4292 + $0x118] sm:$0xff]
    %v4329 = vld [vmem:[%s4292 + $0x120] sm:$0xff]
    %v4330 = vld [vmem:[%s4292 + $0x128] sm:$0xff]
    %v4331 = vld [vmem:[%s4292 + $0x130] sm:$0xff]
    %v4332 = vld [vmem:[%s4292 + $0x138] sm:$0xff]
    %v4333 = vld [vmem:[%s4292 + $0x140] sm:$0xff]
    %v4334 = vld [vmem:[%s4292 + $0x148] sm:$0xff]
    %v4335 = vld [vmem:[%s4292 + $0x150] sm:$0xff]
    %v4336 = vld [vmem:[%s4292 + $0x158] sm:$0xff]
    %v4337 = vld [vmem:[%s4292 + $0x160] sm:$0xff]
    %v4338 = vld [vmem:[%s4292 + $0x168] sm:$0xff]
    %v4339 = vld [vmem:[%s4292 + $0x170] sm:$0xff]
    %v4340 = vld [vmem:[%s4292 + $0x178] sm:$0xff]
    %v4343 = vunpack.c.l.b16 %v4290
    %v4344 = vunpack.c.l.b16 %v4291
    %v4345 = vrot.slane %v4344, 7
    %v4346 = vsel %vm1018, %v4345, %v4343
    %v4347 = vpack.c.b16 %v4346, %v4346
    %v4397 = vunpack.c.l.b16 %v4293
    %v4398 = vunpack.c.h.b16 %v4293
    %v4399 = vunpack.c.l.b16 %v4294
    %v4400 = vunpack.c.h.b16 %v4294
    %v4401 = vunpack.c.l.b16 %v4295
    %v4402 = vunpack.c.h.b16 %v4295
    %v4403 = vunpack.c.l.b16 %v4296
    %v4404 = vunpack.c.h.b16 %v4296
    %v4405 = vunpack.c.l.b16 %v4297
    %v4406 = vunpack.c.h.b16 %v4297
    %v4407 = vunpack.c.l.b16 %v4298
    %v4408 = vunpack.c.h.b16 %v4298
    %v4409 = vunpack.c.l.b16 %v4299
    %v4410 = vunpack.c.h.b16 %v4299
    %v4411 = vunpack.c.l.b16 %v4300
    %v4412 = vunpack.c.h.b16 %v4300
    %v4413 = vunpack.c.l.b16 %v4301
    %v4414 = vunpack.c.h.b16 %v4301
    %v4415 = vunpack.c.l.b16 %v4302
    %v4416 = vunpack.c.h.b16 %v4302
    %v4417 = vunpack.c.l.b16 %v4303
    %v4418 = vunpack.c.h.b16 %v4303
    %v4419 = vunpack.c.l.b16 %v4304
    %v4420 = vunpack.c.h.b16 %v4304
    %v4421 = vunpack.c.l.b16 %v4305
    %v4422 = vunpack.c.h.b16 %v4305
    %v4423 = vunpack.c.l.b16 %v4306
    %v4424 = vunpack.c.h.b16 %v4306
    %v4425 = vunpack.c.l.b16 %v4307
    %v4426 = vunpack.c.h.b16 %v4307
    %v4427 = vunpack.c.l.b16 %v4308
    %v4428 = vunpack.c.h.b16 %v4308
    %v4429 = vunpack.c.l.b16 %v4309
    %v4430 = vunpack.c.h.b16 %v4309
    %v4431 = vunpack.c.l.b16 %v4310
    %v4432 = vunpack.c.h.b16 %v4310
    %v4433 = vunpack.c.l.b16 %v4311
    %v4434 = vunpack.c.h.b16 %v4311
    %v4435 = vunpack.c.l.b16 %v4312
    %v4436 = vunpack.c.h.b16 %v4312
    %v4437 = vunpack.c.l.b16 %v4313
    %v4438 = vunpack.c.h.b16 %v4313
    %v4439 = vunpack.c.l.b16 %v4314
    %v4440 = vunpack.c.h.b16 %v4314
    %v4441 = vunpack.c.l.b16 %v4315
    %v4442 = vunpack.c.h.b16 %v4315
    %v4443 = vunpack.c.l.b16 %v4316
    %v4444 = vunpack.c.h.b16 %v4316
    %v4445 = vunpack.c.l.b16 %v4317
    %v4446 = vunpack.c.h.b16 %v4317
    %v4447 = vunpack.c.l.b16 %v4318
    %v4448 = vunpack.c.h.b16 %v4318
    %v4449 = vunpack.c.l.b16 %v4319
    %v4450 = vunpack.c.h.b16 %v4319
    %v4451 = vunpack.c.l.b16 %v4320
    %v4452 = vunpack.c.h.b16 %v4320
    %v4453 = vunpack.c.l.b16 %v4321
    %v4454 = vunpack.c.h.b16 %v4321
    %v4455 = vunpack.c.l.b16 %v4322
    %v4456 = vunpack.c.h.b16 %v4322
    %v4457 = vunpack.c.l.b16 %v4323
    %v4458 = vunpack.c.h.b16 %v4323
    %v4459 = vunpack.c.l.b16 %v4324
    %v4460 = vunpack.c.h.b16 %v4324
    %v4461 = vunpack.c.l.b16 %v4325
    %v4462 = vunpack.c.h.b16 %v4325
    %v4463 = vunpack.c.l.b16 %v4326
    %v4464 = vunpack.c.h.b16 %v4326
    %v4465 = vunpack.c.l.b16 %v4327
    %v4466 = vunpack.c.h.b16 %v4327
    %v4467 = vunpack.c.l.b16 %v4328
    %v4468 = vunpack.c.h.b16 %v4328
    %v4469 = vunpack.c.l.b16 %v4329
    %v4470 = vunpack.c.h.b16 %v4329
    %v4471 = vunpack.c.l.b16 %v4330
    %v4472 = vunpack.c.h.b16 %v4330
    %v4473 = vunpack.c.l.b16 %v4331
    %v4474 = vunpack.c.h.b16 %v4331
    %v4475 = vunpack.c.l.b16 %v4332
    %v4476 = vunpack.c.h.b16 %v4332
    %v4477 = vunpack.c.l.b16 %v4333
    %v4478 = vunpack.c.h.b16 %v4333
    %v4479 = vunpack.c.l.b16 %v4334
    %v4480 = vunpack.c.h.b16 %v4334
    %v4481 = vunpack.c.l.b16 %v4335
    %v4482 = vunpack.c.h.b16 %v4335
    %v4483 = vunpack.c.l.b16 %v4336
    %v4484 = vunpack.c.h.b16 %v4336
    %v4485 = vunpack.c.l.b16 %v4337
    %v4486 = vunpack.c.h.b16 %v4337
    %v4487 = vunpack.c.l.b16 %v4338
    %v4488 = vunpack.c.h.b16 %v4338
    %v4489 = vunpack.c.l.b16 %v4339
    %v4490 = vunpack.c.h.b16 %v4339
    %v4491 = vunpack.c.l.b16 %v4340
    %v4492 = vunpack.c.h.b16 %v4340
    %v4493 = vpack.c.b16 %v4403, %v4397
    %v4494 = vpack.c.b16 %v4404, %v4398
    %v4495 = vpack.c.b16 %v4405, %v4399
    %v4496 = vpack.c.b16 %v4406, %v4400
    %v4497 = vpack.c.b16 %v4407, %v4401
    %v4498 = vpack.c.b16 %v4408, %v4402
    %v4499 = vpack.c.b16 %v4415, %v4409
    %v4500 = vpack.c.b16 %v4416, %v4410
    %v4501 = vpack.c.b16 %v4417, %v4411
    %v4502 = vpack.c.b16 %v4418, %v4412
    %v4503 = vpack.c.b16 %v4419, %v4413
    %v4504 = vpack.c.b16 %v4420, %v4414
    %v4505 = vpack.c.b16 %v4427, %v4421
    %v4506 = vpack.c.b16 %v4428, %v4422
    %v4507 = vpack.c.b16 %v4429, %v4423
    %v4508 = vpack.c.b16 %v4430, %v4424
    %v4509 = vpack.c.b16 %v4431, %v4425
    %v4510 = vpack.c.b16 %v4432, %v4426
    %v4511 = vpack.c.b16 %v4439, %v4433
    %v4512 = vpack.c.b16 %v4440, %v4434
    %v4513 = vpack.c.b16 %v4441, %v4435
    %v4514 = vpack.c.b16 %v4442, %v4436
    %v4515 = vpack.c.b16 %v4443, %v4437
    %v4516 = vpack.c.b16 %v4444, %v4438
    %v4517 = vpack.c.b16 %v4451, %v4445
    %v4518 = vpack.c.b16 %v4452, %v4446
    %v4519 = vpack.c.b16 %v4453, %v4447
    %v4520 = vpack.c.b16 %v4454, %v4448
    %v4521 = vpack.c.b16 %v4455, %v4449
    %v4522 = vpack.c.b16 %v4456, %v4450
    %v4523 = vpack.c.b16 %v4463, %v4457
    %v4524 = vpack.c.b16 %v4464, %v4458
    %v4525 = vpack.c.b16 %v4465, %v4459
    %v4526 = vpack.c.b16 %v4466, %v4460
    %v4527 = vpack.c.b16 %v4467, %v4461
    %v4528 = vpack.c.b16 %v4468, %v4462
    %v4529 = vpack.c.b16 %v4475, %v4469
    %v4530 = vpack.c.b16 %v4476, %v4470
    %v4531 = vpack.c.b16 %v4477, %v4471
    %v4532 = vpack.c.b16 %v4478, %v4472
    %v4533 = vpack.c.b16 %v4479, %v4473
    %v4534 = vpack.c.b16 %v4480, %v4474
    %v4535 = vpack.c.b16 %v4487, %v4481
    %v4536 = vpack.c.b16 %v4488, %v4482
    %v4537 = vpack.c.b16 %v4489, %v4483
    %v4538 = vpack.c.b16 %v4490, %v4484
    %v4539 = vpack.c.b16 %v4491, %v4485
    %v4540 = vpack.c.b16 %v4492, %v4486
    %4589 = vmatprep.subr.bf16.mxu0 %v4536
    %4590 = vmatpush1.bf16.msra.mxu0 %v4535
    %4591 = vmatprep.subr.bf16.mxu0 %v4530
    %4592 = vmatpush1.bf16.msra.mxu0 %v4529
    %4593 = vmatprep.subr.bf16.mxu0 %v4524
    %4594 = vmatpush1.bf16.msra.mxu0 %v4523
    %4595 = vmatprep.subr.bf16.mxu0 %v4518
    %4596 = vmatpush1.bf16.msra.mxu0 %v4517
    %4597 = vmatprep.subr.bf16.mxu0 %v4512
    %4598 = vmatpush1.bf16.msra.mxu0 %v4511
    %4599 = vmatprep.subr.bf16.mxu0 %v4506
    %4600 = vmatpush1.bf16.msra.mxu0 %v4505
    %4601 = vmatprep.subr.bf16.mxu0 %v4500
    %4602 = vmatpush1.bf16.msra.mxu0 %v4499
    %4603 = vmatprep.subr.bf16.mxu0 %v4494
    %4604 = vmatpush1.bf16.msra.mxu0 %v4493
    %4605 = vmatprep.subr.bf16.mxu0 0
    %4606 = vmatpush2.bf16.msra.mxu0 0
    %4607 = vmatprep.subr.bf16.mxu0 0
    %4608 = vmatpush2.bf16.msra.mxu0 0
    %4609 = vmatprep.subr.bf16.mxu0 0
    %4610 = vmatpush2.bf16.msra.mxu0 0
    %4611 = vmatprep.subr.bf16.mxu0 0
    %4612 = vmatpush2.bf16.msra.mxu0 0
    %4613 = vmatprep.subr.bf16.mxu0 0
    %4614 = vmatpush2.bf16.msra.mxu0 0
    %4615 = vmatprep.subr.bf16.mxu0 0
    %4616 = vmatpush2.bf16.msra.mxu0 0
    %4617 = vmatprep.subr.bf16.mxu0 0
    %4618 = vmatpush2.bf16.msra.mxu0 0
    %4619 = vmatprep.subr.bf16.mxu0 0
    %4620 = vmatpush2.bf16.msra.mxu0 0
    %4621 = vmatprep.mubr.bf16.mxu0 0
    %4622 = vmatmul.mubr.bf16.gmra.mxu0 %v4347
    %v4623 = vpop.f32.mrf.mxu0
    %v4624 = vadd.f32 0.0, %v4623
    %v4625 = vpop.f32.mrf.mxu0
    %v4626 = vadd.f32 0.0, %v4625
    %v4627 = vpop.f32.mrf.mxu0
    %v4628 = vpop.f32.mrf.mxu0
    %4629 = vdwg.mxu0
    %4630 = vmatprep.subr.bf16.mxu0 %v4538
    %4631 = vmatpush1.bf16.msra.mxu0 %v4537
    %4632 = vmatprep.subr.bf16.mxu0 %v4532
    %4633 = vmatpush1.bf16.msra.mxu0 %v4531
    %4634 = vmatprep.subr.bf16.mxu0 %v4526
    %4635 = vmatpush1.bf16.msra.mxu0 %v4525
    %4636 = vmatprep.subr.bf16.mxu0 %v4520
    %4637 = vmatpush1.bf16.msra.mxu0 %v4519
    %4638 = vmatprep.subr.bf16.mxu0 %v4514
    %4639 = vmatpush1.bf16.msra.mxu0 %v4513
    %4640 = vmatprep.subr.bf16.mxu0 %v4508
    %4641 = vmatpush1.bf16.msra.mxu0 %v4507
    %4642 = vmatprep.subr.bf16.mxu0 %v4502
    %4643 = vmatpush1.bf16.msra.mxu0 %v4501
    %4644 = vmatprep.subr.bf16.mxu0 %v4496
    %4645 = vmatpush1.bf16.msra.mxu0 %v4495
    %4646 = vmatprep.subr.bf16.mxu0 0
    %4647 = vmatpush2.bf16.msra.mxu0 0
    %4648 = vmatprep.subr.bf16.mxu0 0
    %4649 = vmatpush2.bf16.msra.mxu0 0
    %4650 = vmatprep.subr.bf16.mxu0 0
    %4651 = vmatpush2.bf16.msra.mxu0 0
    %4652 = vmatprep.subr.bf16.mxu0 0
    %4653 = vmatpush2.bf16.msra.mxu0 0
    %4654 = vmatprep.subr.bf16.mxu0 0
    %4655 = vmatpush2.bf16.msra.mxu0 0
    %4656 = vmatprep.subr.bf16.mxu0 0
    %4657 = vmatpush2.bf16.msra.mxu0 0
    %4658 = vmatprep.subr.bf16.mxu0 0
    %4659 = vmatpush2.bf16.msra.mxu0 0
    %4660 = vmatprep.subr.bf16.mxu0 0
    %4661 = vmatpush2.bf16.msra.mxu0 0
    %4662 = vmatprep.mubr.bf16.mxu0 0
    %4663 = vmatmul.mubr.bf16.gmra.mxu0 %v4347
    %v4664 = vpop.f32.mrf.mxu0
    %v4665 = vadd.f32 0.0, %v4664
    %v4666 = vpop.f32.mrf.mxu0
    %v4667 = vadd.f32 0.0, %v4666
    %v4668 = vpop.f32.mrf.mxu0
    %v4669 = vpop.f32.mrf.mxu0
    %4670 = vdwg.mxu0
    %4671 = vmatprep.subr.bf16.mxu0 %v4540
    %4672 = vmatpush1.bf16.msra.mxu0 %v4539
    %4673 = vmatprep.subr.bf16.mxu0 %v4534
    %4674 = vmatpush1.bf16.msra.mxu0 %v4533
    %4675 = vmatprep.subr.bf16.mxu0 %v4528
    %4676 = vmatpush1.bf16.msra.mxu0 %v4527
    %4677 = vmatprep.subr.bf16.mxu0 %v4522
    %4678 = vmatpush1.bf16.msra.mxu0 %v4521
    %4679 = vmatprep.subr.bf16.mxu0 %v4516
    %4680 = vmatpush1.bf16.msra.mxu0 %v4515
    %4681 = vmatprep.subr.bf16.mxu0 %v4510
    %4682 = vmatpush1.bf16.msra.mxu0 %v4509
    %4683 = vmatprep.subr.bf16.mxu0 %v4504
    %4684 = vmatpush1.bf16.msra.mxu0 %v4503
    %4685 = vmatprep.subr.bf16.mxu0 %v4498
    %4686 = vmatpush1.bf16.msra.mxu0 %v4497
    %4687 = vmatprep.subr.bf16.mxu0 0
    %4688 = vmatpush2.bf16.msra.mxu0 0
    %4689 = vmatprep.subr.bf16.mxu0 0
    %4690 = vmatpush2.bf16.msra.mxu0 0
    %4691 = vmatprep.subr.bf16.mxu0 0
    %4692 = vmatpush2.bf16.msra.mxu0 0
    %4693 = vmatprep.subr.bf16.mxu0 0
    %4694 = vmatpush2.bf16.msra.mxu0 0
    %4695 = vmatprep.subr.bf16.mxu0 0
    %4696 = vmatpush2.bf16.msra.mxu0 0
    %4697 = vmatprep.subr.bf16.mxu0 0
    %4698 = vmatpush2.bf16.msra.mxu0 0
    %4699 = vmatprep.subr.bf16.mxu0 0
    %4700 = vmatpush2.bf16.msra.mxu0 0
    %4701 = vmatprep.subr.bf16.mxu0 0
    %4702 = vmatpush2.bf16.msra.mxu0 0
    %4703 = vmatprep.mubr.bf16.mxu0 0
    %4704 = vmatmul.mubr.bf16.gmra.mxu0 %v4347
    %v4705 = vpop.f32.mrf.mxu0
    %v4706 = vadd.f32 0.0, %v4705
    %v4707 = vpop.f32.mrf.mxu0
    %v4708 = vadd.f32 0.0, %v4707
    %v4709 = vpop.f32.mrf.mxu0
    %v4710 = vpop.f32.mrf.mxu0
    %4711 = vdwg.mxu0
    %v4712 = vadd.f32 %v4284, %v4624
    %v4713 = vadd.f32 %v4285, %v4626
    %v4714 = vadd.f32 %v4286, %v4665
    %v4715 = vadd.f32 %v4287, %v4667
    %v4716 = vadd.f32 %v4288, %v4706
    %v4717 = vadd.f32 %v4289, %v4708
    %s4718 = scalar_lea.vmem [#allocation8], 3456
    %v4719 = vld [vmem:[%s4718] sm:$0xff]
    %v4720 = vld [vmem:[%s4718 + $0x8] sm:$0xff]
    %v4721 = vld [vmem:[%s4718 + $0x10] sm:$0xff]
    %v4722 = vld [vmem:[%s4718 + $0x18] sm:$0xff]
    %v4723 = vld [vmem:[%s4718 + $0x20] sm:$0xff]
    %v4724 = vld [vmem:[%s4718 + $0x28] sm:$0xff]
    %v4725 = vld [vmem:[%s4718 + $0x30] sm:$0xff]
    %v4726 = vld [vmem:[%s4718 + $0x38] sm:$0xff]
    %v4727 = vld [vmem:[%s4718 + $0x40] sm:$0xff]
    %v4728 = vld [vmem:[%s4718 + $0x48] sm:$0xff]
    %v4729 = vld [vmem:[%s4718 + $0x50] sm:$0xff]
    %v4730 = vld [vmem:[%s4718 + $0x58] sm:$0xff]
    %v4731 = vld [vmem:[%s4718 + $0x60] sm:$0xff]
    %v4732 = vld [vmem:[%s4718 + $0x68] sm:$0xff]
    %v4733 = vld [vmem:[%s4718 + $0x70] sm:$0xff]
    %v4734 = vld [vmem:[%s4718 + $0x78] sm:$0xff]
    %v4735 = vld [vmem:[%s4718 + $0x80] sm:$0xff]
    %v4736 = vld [vmem:[%s4718 + $0x88] sm:$0xff]
    %v4737 = vld [vmem:[%s4718 + $0x90] sm:$0xff]
    %v4738 = vld [vmem:[%s4718 + $0x98] sm:$0xff]
    %v4739 = vld [vmem:[%s4718 + $0xa0] sm:$0xff]
    %v4740 = vld [vmem:[%s4718 + $0xa8] sm:$0xff]
    %v4741 = vld [vmem:[%s4718 + $0xb0] sm:$0xff]
    %v4742 = vld [vmem:[%s4718 + $0xb8] sm:$0xff]
    %v4743 = vld [vmem:[%s4718 + $0xc0] sm:$0xff]
    %v4744 = vld [vmem:[%s4718 + $0xc8] sm:$0xff]
    %v4745 = vld [vmem:[%s4718 + $0xd0] sm:$0xff]
    %v4746 = vld [vmem:[%s4718 + $0xd8] sm:$0xff]
    %v4747 = vld [vmem:[%s4718 + $0xe0] sm:$0xff]
    %v4748 = vld [vmem:[%s4718 + $0xe8] sm:$0xff]
    %v4749 = vld [vmem:[%s4718 + $0xf0] sm:$0xff]
    %v4750 = vld [vmem:[%s4718 + $0xf8] sm:$0xff]
    %v4751 = vld [vmem:[%s4718 + $0x100] sm:$0xff]
    %v4752 = vld [vmem:[%s4718 + $0x108] sm:$0xff]
    %v4753 = vld [vmem:[%s4718 + $0x110] sm:$0xff]
    %v4754 = vld [vmem:[%s4718 + $0x118] sm:$0xff]
    %v4755 = vld [vmem:[%s4718 + $0x120] sm:$0xff]
    %v4756 = vld [vmem:[%s4718 + $0x128] sm:$0xff]
    %v4757 = vld [vmem:[%s4718 + $0x130] sm:$0xff]
    %v4758 = vld [vmem:[%s4718 + $0x138] sm:$0xff]
    %v4759 = vld [vmem:[%s4718 + $0x140] sm:$0xff]
    %v4760 = vld [vmem:[%s4718 + $0x148] sm:$0xff]
    %v4761 = vld [vmem:[%s4718 + $0x150] sm:$0xff]
    %v4762 = vld [vmem:[%s4718 + $0x158] sm:$0xff]
    %v4763 = vld [vmem:[%s4718 + $0x160] sm:$0xff]
    %v4764 = vld [vmem:[%s4718 + $0x168] sm:$0xff]
    %v4765 = vld [vmem:[%s4718 + $0x170] sm:$0xff]
    %v4766 = vld [vmem:[%s4718 + $0x178] sm:$0xff]
    %v4767 = vrot.slane %v4343, 1
    %v4768 = vsel %vm1018, %v4344, %v4767
    %v4769 = vpack.c.b16 %v4768, %v4768
    %v4819 = vunpack.c.l.b16 %v4719
    %v4820 = vunpack.c.h.b16 %v4719
    %v4821 = vunpack.c.l.b16 %v4720
    %v4822 = vunpack.c.h.b16 %v4720
    %v4823 = vunpack.c.l.b16 %v4721
    %v4824 = vunpack.c.h.b16 %v4721
    %v4825 = vunpack.c.l.b16 %v4722
    %v4826 = vunpack.c.h.b16 %v4722
    %v4827 = vunpack.c.l.b16 %v4723
    %v4828 = vunpack.c.h.b16 %v4723
    %v4829 = vunpack.c.l.b16 %v4724
    %v4830 = vunpack.c.h.b16 %v4724
    %v4831 = vunpack.c.l.b16 %v4725
    %v4832 = vunpack.c.h.b16 %v4725
    %v4833 = vunpack.c.l.b16 %v4726
    %v4834 = vunpack.c.h.b16 %v4726
    %v4835 = vunpack.c.l.b16 %v4727
    %v4836 = vunpack.c.h.b16 %v4727
    %v4837 = vunpack.c.l.b16 %v4728
    %v4838 = vunpack.c.h.b16 %v4728
    %v4839 = vunpack.c.l.b16 %v4729
    %v4840 = vunpack.c.h.b16 %v4729
    %v4841 = vunpack.c.l.b16 %v4730
    %v4842 = vunpack.c.h.b16 %v4730
    %v4843 = vunpack.c.l.b16 %v4731
    %v4844 = vunpack.c.h.b16 %v4731
    %v4845 = vunpack.c.l.b16 %v4732
    %v4846 = vunpack.c.h.b16 %v4732
    %v4847 = vunpack.c.l.b16 %v4733
    %v4848 = vunpack.c.h.b16 %v4733
    %v4849 = vunpack.c.l.b16 %v4734
    %v4850 = vunpack.c.h.b16 %v4734
    %v4851 = vunpack.c.l.b16 %v4735
    %v4852 = vunpack.c.h.b16 %v4735
    %v4853 = vunpack.c.l.b16 %v4736
    %v4854 = vunpack.c.h.b16 %v4736
    %v4855 = vunpack.c.l.b16 %v4737
    %v4856 = vunpack.c.h.b16 %v4737
    %v4857 = vunpack.c.l.b16 %v4738
    %v4858 = vunpack.c.h.b16 %v4738
    %v4859 = vunpack.c.l.b16 %v4739
    %v4860 = vunpack.c.h.b16 %v4739
    %v4861 = vunpack.c.l.b16 %v4740
    %v4862 = vunpack.c.h.b16 %v4740
    %v4863 = vunpack.c.l.b16 %v4741
    %v4864 = vunpack.c.h.b16 %v4741
    %v4865 = vunpack.c.l.b16 %v4742
    %v4866 = vunpack.c.h.b16 %v4742
    %v4867 = vunpack.c.l.b16 %v4743
    %v4868 = vunpack.c.h.b16 %v4743
    %v4869 = vunpack.c.l.b16 %v4744
    %v4870 = vunpack.c.h.b16 %v4744
    %v4871 = vunpack.c.l.b16 %v4745
    %v4872 = vunpack.c.h.b16 %v4745
    %v4873 = vunpack.c.l.b16 %v4746
    %v4874 = vunpack.c.h.b16 %v4746
    %v4875 = vunpack.c.l.b16 %v4747
    %v4876 = vunpack.c.h.b16 %v4747
    %v4877 = vunpack.c.l.b16 %v4748
    %v4878 = vunpack.c.h.b16 %v4748
    %v4879 = vunpack.c.l.b16 %v4749
    %v4880 = vunpack.c.h.b16 %v4749
    %v4881 = vunpack.c.l.b16 %v4750
    %v4882 = vunpack.c.h.b16 %v4750
    %v4883 = vunpack.c.l.b16 %v4751
    %v4884 = vunpack.c.h.b16 %v4751
    %v4885 = vunpack.c.l.b16 %v4752
    %v4886 = vunpack.c.h.b16 %v4752
    %v4887 = vunpack.c.l.b16 %v4753
    %v4888 = vunpack.c.h.b16 %v4753
    %v4889 = vunpack.c.l.b16 %v4754
    %v4890 = vunpack.c.h.b16 %v4754
    %v4891 = vunpack.c.l.b16 %v4755
    %v4892 = vunpack.c.h.b16 %v4755
    %v4893 = vunpack.c.l.b16 %v4756
    %v4894 = vunpack.c.h.b16 %v4756
    %v4895 = vunpack.c.l.b16 %v4757
    %v4896 = vunpack.c.h.b16 %v4757
    %v4897 = vunpack.c.l.b16 %v4758
    %v4898 = vunpack.c.h.b16 %v4758
    %v4899 = vunpack.c.l.b16 %v4759
    %v4900 = vunpack.c.h.b16 %v4759
    %v4901 = vunpack.c.l.b16 %v4760
    %v4902 = vunpack.c.h.b16 %v4760
    %v4903 = vunpack.c.l.b16 %v4761
    %v4904 = vunpack.c.h.b16 %v4761
    %v4905 = vunpack.c.l.b16 %v4762
    %v4906 = vunpack.c.h.b16 %v4762
    %v4907 = vunpack.c.l.b16 %v4763
    %v4908 = vunpack.c.h.b16 %v4763
    %v4909 = vunpack.c.l.b16 %v4764
    %v4910 = vunpack.c.h.b16 %v4764
    %v4911 = vunpack.c.l.b16 %v4765
    %v4912 = vunpack.c.h.b16 %v4765
    %v4913 = vunpack.c.l.b16 %v4766
    %v4914 = vunpack.c.h.b16 %v4766
    %v4915 = vpack.c.b16 %v4825, %v4819
    %v4916 = vpack.c.b16 %v4826, %v4820
    %v4917 = vpack.c.b16 %v4827, %v4821
    %v4918 = vpack.c.b16 %v4828, %v4822
    %v4919 = vpack.c.b16 %v4829, %v4823
    %v4920 = vpack.c.b16 %v4830, %v4824
    %v4921 = vpack.c.b16 %v4837, %v4831
    %v4922 = vpack.c.b16 %v4838, %v4832
    %v4923 = vpack.c.b16 %v4839, %v4833
    %v4924 = vpack.c.b16 %v4840, %v4834
    %v4925 = vpack.c.b16 %v4841, %v4835
    %v4926 = vpack.c.b16 %v4842, %v4836
    %v4927 = vpack.c.b16 %v4849, %v4843
    %v4928 = vpack.c.b16 %v4850, %v4844
    %v4929 = vpack.c.b16 %v4851, %v4845
    %v4930 = vpack.c.b16 %v4852, %v4846
    %v4931 = vpack.c.b16 %v4853, %v4847
    %v4932 = vpack.c.b16 %v4854, %v4848
    %v4933 = vpack.c.b16 %v4861, %v4855
    %v4934 = vpack.c.b16 %v4862, %v4856
    %v4935 = vpack.c.b16 %v4863, %v4857
    %v4936 = vpack.c.b16 %v4864, %v4858
    %v4937 = vpack.c.b16 %v4865, %v4859
    %v4938 = vpack.c.b16 %v4866, %v4860
    %v4939 = vpack.c.b16 %v4873, %v4867
    %v4940 = vpack.c.b16 %v4874, %v4868
    %v4941 = vpack.c.b16 %v4875, %v4869
    %v4942 = vpack.c.b16 %v4876, %v4870
    %v4943 = vpack.c.b16 %v4877, %v4871
    %v4944 = vpack.c.b16 %v4878, %v4872
    %v4945 = vpack.c.b16 %v4885, %v4879
    %v4946 = vpack.c.b16 %v4886, %v4880
    %v4947 = vpack.c.b16 %v4887, %v4881
    %v4948 = vpack.c.b16 %v4888, %v4882
    %v4949 = vpack.c.b16 %v4889, %v4883
    %v4950 = vpack.c.b16 %v4890, %v4884
    %v4951 = vpack.c.b16 %v4897, %v4891
    %v4952 = vpack.c.b16 %v4898, %v4892
    %v4953 = vpack.c.b16 %v4899, %v4893
    %v4954 = vpack.c.b16 %v4900, %v4894
    %v4955 = vpack.c.b16 %v4901, %v4895
    %v4956 = vpack.c.b16 %v4902, %v4896
    %v4957 = vpack.c.b16 %v4909, %v4903
    %v4958 = vpack.c.b16 %v4910, %v4904
    %v4959 = vpack.c.b16 %v4911, %v4905
    %v4960 = vpack.c.b16 %v4912, %v4906
    %v4961 = vpack.c.b16 %v4913, %v4907
    %v4962 = vpack.c.b16 %v4914, %v4908
    %5011 = vmatprep.subr.bf16.mxu0 %v4958
    %5012 = vmatpush1.bf16.msra.mxu0 %v4957
    %5013 = vmatprep.subr.bf16.mxu0 %v4952
    %5014 = vmatpush1.bf16.msra.mxu0 %v4951
    %5015 = vmatprep.subr.bf16.mxu0 %v4946
    %5016 = vmatpush1.bf16.msra.mxu0 %v4945
    %5017 = vmatprep.subr.bf16.mxu0 %v4940
    %5018 = vmatpush1.bf16.msra.mxu0 %v4939
    %5019 = vmatprep.subr.bf16.mxu0 %v4934
    %5020 = vmatpush1.bf16.msra.mxu0 %v4933
    %5021 = vmatprep.subr.bf16.mxu0 %v4928
    %5022 = vmatpush1.bf16.msra.mxu0 %v4927
    %5023 = vmatprep.subr.bf16.mxu0 %v4922
    %5024 = vmatpush1.bf16.msra.mxu0 %v4921
    %5025 = vmatprep.subr.bf16.mxu0 %v4916
    %5026 = vmatpush1.bf16.msra.mxu0 %v4915
    %5027 = vmatprep.subr.bf16.mxu0 0
    %5028 = vmatpush2.bf16.msra.mxu0 0
    %5029 = vmatprep.subr.bf16.mxu0 0
    %5030 = vmatpush2.bf16.msra.mxu0 0
    %5031 = vmatprep.subr.bf16.mxu0 0
    %5032 = vmatpush2.bf16.msra.mxu0 0
    %5033 = vmatprep.subr.bf16.mxu0 0
    %5034 = vmatpush2.bf16.msra.mxu0 0
    %5035 = vmatprep.subr.bf16.mxu0 0
    %5036 = vmatpush2.bf16.msra.mxu0 0
    %5037 = vmatprep.subr.bf16.mxu0 0
    %5038 = vmatpush2.bf16.msra.mxu0 0
    %5039 = vmatprep.subr.bf16.mxu0 0
    %5040 = vmatpush2.bf16.msra.mxu0 0
    %5041 = vmatprep.subr.bf16.mxu0 0
    %5042 = vmatpush2.bf16.msra.mxu0 0
    %5043 = vmatprep.mubr.bf16.mxu0 0
    %5044 = vmatmul.mubr.bf16.gmra.mxu0 %v4769
    %v5045 = vpop.f32.mrf.mxu0
    %v5046 = vadd.f32 0.0, %v5045
    %v5047 = vpop.f32.mrf.mxu0
    %v5048 = vadd.f32 0.0, %v5047
    %v5049 = vpop.f32.mrf.mxu0
    %v5050 = vpop.f32.mrf.mxu0
    %5051 = vdwg.mxu0
    %5052 = vmatprep.subr.bf16.mxu0 %v4960
    %5053 = vmatpush1.bf16.msra.mxu0 %v4959
    %5054 = vmatprep.subr.bf16.mxu0 %v4954
    %5055 = vmatpush1.bf16.msra.mxu0 %v4953
    %5056 = vmatprep.subr.bf16.mxu0 %v4948
    %5057 = vmatpush1.bf16.msra.mxu0 %v4947
    %5058 = vmatprep.subr.bf16.mxu0 %v4942
    %5059 = vmatpush1.bf16.msra.mxu0 %v4941
    %5060 = vmatprep.subr.bf16.mxu0 %v4936
    %5061 = vmatpush1.bf16.msra.mxu0 %v4935
    %5062 = vmatprep.subr.bf16.mxu0 %v4930
    %5063 = vmatpush1.bf16.msra.mxu0 %v4929
    %5064 = vmatprep.subr.bf16.mxu0 %v4924
    %5065 = vmatpush1.bf16.msra.mxu0 %v4923
    %5066 = vmatprep.subr.bf16.mxu0 %v4918
    %5067 = vmatpush1.bf16.msra.mxu0 %v4917
    %5068 = vmatprep.subr.bf16.mxu0 0
    %5069 = vmatpush2.bf16.msra.mxu0 0
    %5070 = vmatprep.subr.bf16.mxu0 0
    %5071 = vmatpush2.bf16.msra.mxu0 0
    %5072 = vmatprep.subr.bf16.mxu0 0
    %5073 = vmatpush2.bf16.msra.mxu0 0
    %5074 = vmatprep.subr.bf16.mxu0 0
    %5075 = vmatpush2.bf16.msra.mxu0 0
    %5076 = vmatprep.subr.bf16.mxu0 0
    %5077 = vmatpush2.bf16.msra.mxu0 0
    %5078 = vmatprep.subr.bf16.mxu0 0
    %5079 = vmatpush2.bf16.msra.mxu0 0
    %5080 = vmatprep.subr.bf16.mxu0 0
    %5081 = vmatpush2.bf16.msra.mxu0 0
    %5082 = vmatprep.subr.bf16.mxu0 0
    %5083 = vmatpush2.bf16.msra.mxu0 0
    %5084 = vmatprep.mubr.bf16.mxu0 0
    %5085 = vmatmul.mubr.bf16.gmra.mxu0 %v4769
    %v5086 = vpop.f32.mrf.mxu0
    %v5087 = vadd.f32 0.0, %v5086
    %v5088 = vpop.f32.mrf.mxu0
    %v5089 = vadd.f32 0.0, %v5088
    %v5090 = vpop.f32.mrf.mxu0
    %v5091 = vpop.f32.mrf.mxu0
    %5092 = vdwg.mxu0
    %5093 = vmatprep.subr.bf16.mxu0 %v4962
    %5094 = vmatpush1.bf16.msra.mxu0 %v4961
    %5095 = vmatprep.subr.bf16.mxu0 %v4956
    %5096 = vmatpush1.bf16.msra.mxu0 %v4955
    %5097 = vmatprep.subr.bf16.mxu0 %v4950
    %5098 = vmatpush1.bf16.msra.mxu0 %v4949
    %5099 = vmatprep.subr.bf16.mxu0 %v4944
    %5100 = vmatpush1.bf16.msra.mxu0 %v4943
    %5101 = vmatprep.subr.bf16.mxu0 %v4938
    %5102 = vmatpush1.bf16.msra.mxu0 %v4937
    %5103 = vmatprep.subr.bf16.mxu0 %v4932
    %5104 = vmatpush1.bf16.msra.mxu0 %v4931
    %5105 = vmatprep.subr.bf16.mxu0 %v4926
    %5106 = vmatpush1.bf16.msra.mxu0 %v4925
    %5107 = vmatprep.subr.bf16.mxu0 %v4920
    %5108 = vmatpush1.bf16.msra.mxu0 %v4919
    %5109 = vmatprep.subr.bf16.mxu0 0
    %5110 = vmatpush2.bf16.msra.mxu0 0
    %5111 = vmatprep.subr.bf16.mxu0 0
    %5112 = vmatpush2.bf16.msra.mxu0 0
    %5113 = vmatprep.subr.bf16.mxu0 0
    %5114 = vmatpush2.bf16.msra.mxu0 0
    %5115 = vmatprep.subr.bf16.mxu0 0
    %5116 = vmatpush2.bf16.msra.mxu0 0
    %5117 = vmatprep.subr.bf16.mxu0 0
    %5118 = vmatpush2.bf16.msra.mxu0 0
    %5119 = vmatprep.subr.bf16.mxu0 0
    %5120 = vmatpush2.bf16.msra.mxu0 0
    %5121 = vmatprep.subr.bf16.mxu0 0
    %5122 = vmatpush2.bf16.msra.mxu0 0
    %5123 = vmatprep.subr.bf16.mxu0 0
    %5124 = vmatpush2.bf16.msra.mxu0 0
    %5125 = vmatprep.mubr.bf16.mxu0 0
    %5126 = vmatmul.mubr.bf16.gmra.mxu0 %v4769
    %v5127 = vpop.f32.mrf.mxu0
    %v5128 = vadd.f32 0.0, %v5127
    %v5129 = vpop.f32.mrf.mxu0
    %v5130 = vadd.f32 0.0, %v5129
    %v5131 = vpop.f32.mrf.mxu0
    %v5132 = vpop.f32.mrf.mxu0
    %5133 = vdwg.mxu0
    %v5134 = vadd.f32 %v4712, %v5046
    %v5135 = vadd.f32 %v4713, %v5048
    %v5136 = vadd.f32 %v4714, %v5087
    %v5137 = vadd.f32 %v4715, %v5089
    %v5138 = vadd.f32 %v4716, %v5128
    %v5139 = vadd.f32 %v4717, %v5130
    %s5140 = scalar_lea.vmem [#allocation8], 3840
    %v5141 = vld [vmem:[%s5140] sm:$0xff]
    %v5142 = vld [vmem:[%s5140 + $0x8] sm:$0xff]
    %v5143 = vld [vmem:[%s5140 + $0x10] sm:$0xff]
    %v5144 = vld [vmem:[%s5140 + $0x18] sm:$0xff]
    %v5145 = vld [vmem:[%s5140 + $0x20] sm:$0xff]
    %v5146 = vld [vmem:[%s5140 + $0x28] sm:$0xff]
    %v5147 = vld [vmem:[%s5140 + $0x30] sm:$0xff]
    %v5148 = vld [vmem:[%s5140 + $0x38] sm:$0xff]
    %v5149 = vld [vmem:[%s5140 + $0x40] sm:$0xff]
    %v5150 = vld [vmem:[%s5140 + $0x48] sm:$0xff]
    %v5151 = vld [vmem:[%s5140 + $0x50] sm:$0xff]
    %v5152 = vld [vmem:[%s5140 + $0x58] sm:$0xff]
    %v5153 = vld [vmem:[%s5140 + $0x60] sm:$0xff]
    %v5154 = vld [vmem:[%s5140 + $0x68] sm:$0xff]
    %v5155 = vld [vmem:[%s5140 + $0x70] sm:$0xff]
    %v5156 = vld [vmem:[%s5140 + $0x78] sm:$0xff]
    %v5157 = vld [vmem:[%s5140 + $0x80] sm:$0xff]
    %v5158 = vld [vmem:[%s5140 + $0x88] sm:$0xff]
    %v5159 = vld [vmem:[%s5140 + $0x90] sm:$0xff]
    %v5160 = vld [vmem:[%s5140 + $0x98] sm:$0xff]
    %v5161 = vld [vmem:[%s5140 + $0xa0] sm:$0xff]
    %v5162 = vld [vmem:[%s5140 + $0xa8] sm:$0xff]
    %v5163 = vld [vmem:[%s5140 + $0xb0] sm:$0xff]
    %v5164 = vld [vmem:[%s5140 + $0xb8] sm:$0xff]
    %v5165 = vld [vmem:[%s5140 + $0xc0] sm:$0xff]
    %v5166 = vld [vmem:[%s5140 + $0xc8] sm:$0xff]
    %v5167 = vld [vmem:[%s5140 + $0xd0] sm:$0xff]
    %v5168 = vld [vmem:[%s5140 + $0xd8] sm:$0xff]
    %v5169 = vld [vmem:[%s5140 + $0xe0] sm:$0xff]
    %v5170 = vld [vmem:[%s5140 + $0xe8] sm:$0xff]
    %v5171 = vld [vmem:[%s5140 + $0xf0] sm:$0xff]
    %v5172 = vld [vmem:[%s5140 + $0xf8] sm:$0xff]
    %v5173 = vld [vmem:[%s5140 + $0x100] sm:$0xff]
    %v5174 = vld [vmem:[%s5140 + $0x108] sm:$0xff]
    %v5175 = vld [vmem:[%s5140 + $0x110] sm:$0xff]
    %v5176 = vld [vmem:[%s5140 + $0x118] sm:$0xff]
    %v5177 = vld [vmem:[%s5140 + $0x120] sm:$0xff]
    %v5178 = vld [vmem:[%s5140 + $0x128] sm:$0xff]
    %v5179 = vld [vmem:[%s5140 + $0x130] sm:$0xff]
    %v5180 = vld [vmem:[%s5140 + $0x138] sm:$0xff]
    %v5181 = vld [vmem:[%s5140 + $0x140] sm:$0xff]
    %v5182 = vld [vmem:[%s5140 + $0x148] sm:$0xff]
    %v5183 = vld [vmem:[%s5140 + $0x150] sm:$0xff]
    %v5184 = vld [vmem:[%s5140 + $0x158] sm:$0xff]
    %v5185 = vld [vmem:[%s5140 + $0x160] sm:$0xff]
    %v5186 = vld [vmem:[%s5140 + $0x168] sm:$0xff]
    %v5187 = vld [vmem:[%s5140 + $0x170] sm:$0xff]
    %v5188 = vld [vmem:[%s5140 + $0x178] sm:$0xff]
    %v5189 = vrot.slane %v4343, 2
    %v5190 = vrot.slane %v4344, 1
    %v5191 = vsel %vm1018, %v5190, %v5189
    %v5192 = vpack.c.b16 %v5191, %v5191
    %v5242 = vunpack.c.l.b16 %v5141
    %v5243 = vunpack.c.h.b16 %v5141
    %v5244 = vunpack.c.l.b16 %v5142
    %v5245 = vunpack.c.h.b16 %v5142
    %v5246 = vunpack.c.l.b16 %v5143
    %v5247 = vunpack.c.h.b16 %v5143
    %v5248 = vunpack.c.l.b16 %v5144
    %v5249 = vunpack.c.h.b16 %v5144
    %v5250 = vunpack.c.l.b16 %v5145
    %v5251 = vunpack.c.h.b16 %v5145
    %v5252 = vunpack.c.l.b16 %v5146
    %v5253 = vunpack.c.h.b16 %v5146
    %v5254 = vunpack.c.l.b16 %v5147
    %v5255 = vunpack.c.h.b16 %v5147
    %v5256 = vunpack.c.l.b16 %v5148
    %v5257 = vunpack.c.h.b16 %v5148
    %v5258 = vunpack.c.l.b16 %v5149
    %v5259 = vunpack.c.h.b16 %v5149
    %v5260 = vunpack.c.l.b16 %v5150
    %v5261 = vunpack.c.h.b16 %v5150
    %v5262 = vunpack.c.l.b16 %v5151
    %v5263 = vunpack.c.h.b16 %v5151
    %v5264 = vunpack.c.l.b16 %v5152
    %v5265 = vunpack.c.h.b16 %v5152
    %v5266 = vunpack.c.l.b16 %v5153
    %v5267 = vunpack.c.h.b16 %v5153
    %v5268 = vunpack.c.l.b16 %v5154
    %v5269 = vunpack.c.h.b16 %v5154
    %v5270 = vunpack.c.l.b16 %v5155
    %v5271 = vunpack.c.h.b16 %v5155
    %v5272 = vunpack.c.l.b16 %v5156
    %v5273 = vunpack.c.h.b16 %v5156
    %v5274 = vunpack.c.l.b16 %v5157
    %v5275 = vunpack.c.h.b16 %v5157
    %v5276 = vunpack.c.l.b16 %v5158
    %v5277 = vunpack.c.h.b16 %v5158
    %v5278 = vunpack.c.l.b16 %v5159
    %v5279 = vunpack.c.h.b16 %v5159
    %v5280 = vunpack.c.l.b16 %v5160
    %v5281 = vunpack.c.h.b16 %v5160
    %v5282 = vunpack.c.l.b16 %v5161
    %v5283 = vunpack.c.h.b16 %v5161
    %v5284 = vunpack.c.l.b16 %v5162
    %v5285 = vunpack.c.h.b16 %v5162
    %v5286 = vunpack.c.l.b16 %v5163
    %v5287 = vunpack.c.h.b16 %v5163
    %v5288 = vunpack.c.l.b16 %v5164
    %v5289 = vunpack.c.h.b16 %v5164
    %v5290 = vunpack.c.l.b16 %v5165
    %v5291 = vunpack.c.h.b16 %v5165
    %v5292 = vunpack.c.l.b16 %v5166
    %v5293 = vunpack.c.h.b16 %v5166
    %v5294 = vunpack.c.l.b16 %v5167
    %v5295 = vunpack.c.h.b16 %v5167
    %v5296 = vunpack.c.l.b16 %v5168
    %v5297 = vunpack.c.h.b16 %v5168
    %v5298 = vunpack.c.l.b16 %v5169
    %v5299 = vunpack.c.h.b16 %v5169
    %v5300 = vunpack.c.l.b16 %v5170
    %v5301 = vunpack.c.h.b16 %v5170
    %v5302 = vunpack.c.l.b16 %v5171
    %v5303 = vunpack.c.h.b16 %v5171
    %v5304 = vunpack.c.l.b16 %v5172
    %v5305 = vunpack.c.h.b16 %v5172
    %v5306 = vunpack.c.l.b16 %v5173
    %v5307 = vunpack.c.h.b16 %v5173
    %v5308 = vunpack.c.l.b16 %v5174
    %v5309 = vunpack.c.h.b16 %v5174
    %v5310 = vunpack.c.l.b16 %v5175
    %v5311 = vunpack.c.h.b16 %v5175
    %v5312 = vunpack.c.l.b16 %v5176
    %v5313 = vunpack.c.h.b16 %v5176
    %v5314 = vunpack.c.l.b16 %v5177
    %v5315 = vunpack.c.h.b16 %v5177
    %v5316 = vunpack.c.l.b16 %v5178
    %v5317 = vunpack.c.h.b16 %v5178
    %v5318 = vunpack.c.l.b16 %v5179
    %v5319 = vunpack.c.h.b16 %v5179
    %v5320 = vunpack.c.l.b16 %v5180
    %v5321 = vunpack.c.h.b16 %v5180
    %v5322 = vunpack.c.l.b16 %v5181
    %v5323 = vunpack.c.h.b16 %v5181
    %v5324 = vunpack.c.l.b16 %v5182
    %v5325 = vunpack.c.h.b16 %v5182
    %v5326 = vunpack.c.l.b16 %v5183
    %v5327 = vunpack.c.h.b16 %v5183
    %v5328 = vunpack.c.l.b16 %v5184
    %v5329 = vunpack.c.h.b16 %v5184
    %v5330 = vunpack.c.l.b16 %v5185
    %v5331 = vunpack.c.h.b16 %v5185
    %v5332 = vunpack.c.l.b16 %v5186
    %v5333 = vunpack.c.h.b16 %v5186
    %v5334 = vunpack.c.l.b16 %v5187
    %v5335 = vunpack.c.h.b16 %v5187
    %v5336 = vunpack.c.l.b16 %v5188
    %v5337 = vunpack.c.h.b16 %v5188
    %v5338 = vpack.c.b16 %v5248, %v5242
    %v5339 = vpack.c.b16 %v5249, %v5243
    %v5340 = vpack.c.b16 %v5250, %v5244
    %v5341 = vpack.c.b16 %v5251, %v5245
    %v5342 = vpack.c.b16 %v5252, %v5246
    %v5343 = vpack.c.b16 %v5253, %v5247
    %v5344 = vpack.c.b16 %v5260, %v5254
    %v5345 = vpack.c.b16 %v5261, %v5255
    %v5346 = vpack.c.b16 %v5262, %v5256
    %v5347 = vpack.c.b16 %v5263, %v5257
    %v5348 = vpack.c.b16 %v5264, %v5258
    %v5349 = vpack.c.b16 %v5265, %v5259
    %v5350 = vpack.c.b16 %v5272, %v5266
    %v5351 = vpack.c.b16 %v5273, %v5267
    %v5352 = vpack.c.b16 %v5274, %v5268
    %v5353 = vpack.c.b16 %v5275, %v5269
    %v5354 = vpack.c.b16 %v5276, %v5270
    %v5355 = vpack.c.b16 %v5277, %v5271
    %v5356 = vpack.c.b16 %v5284, %v5278
    %v5357 = vpack.c.b16 %v5285, %v5279
    %v5358 = vpack.c.b16 %v5286, %v5280
    %v5359 = vpack.c.b16 %v5287, %v5281
    %v5360 = vpack.c.b16 %v5288, %v5282
    %v5361 = vpack.c.b16 %v5289, %v5283
    %v5362 = vpack.c.b16 %v5296, %v5290
    %v5363 = vpack.c.b16 %v5297, %v5291
    %v5364 = vpack.c.b16 %v5298, %v5292
    %v5365 = vpack.c.b16 %v5299, %v5293
    %v5366 = vpack.c.b16 %v5300, %v5294
    %v5367 = vpack.c.b16 %v5301, %v5295
    %v5368 = vpack.c.b16 %v5308, %v5302
    %v5369 = vpack.c.b16 %v5309, %v5303
    %v5370 = vpack.c.b16 %v5310, %v5304
    %v5371 = vpack.c.b16 %v5311, %v5305
    %v5372 = vpack.c.b16 %v5312, %v5306
    %v5373 = vpack.c.b16 %v5313, %v5307
    %v5374 = vpack.c.b16 %v5320, %v5314
    %v5375 = vpack.c.b16 %v5321, %v5315
    %v5376 = vpack.c.b16 %v5322, %v5316
    %v5377 = vpack.c.b16 %v5323, %v5317
    %v5378 = vpack.c.b16 %v5324, %v5318
    %v5379 = vpack.c.b16 %v5325, %v5319
    %v5380 = vpack.c.b16 %v5332, %v5326
    %v5381 = vpack.c.b16 %v5333, %v5327
    %v5382 = vpack.c.b16 %v5334, %v5328
    %v5383 = vpack.c.b16 %v5335, %v5329
    %v5384 = vpack.c.b16 %v5336, %v5330
    %v5385 = vpack.c.b16 %v5337, %v5331
    %5434 = vmatprep.subr.bf16.mxu0 %v5381
    %5435 = vmatpush1.bf16.msra.mxu0 %v5380
    %5436 = vmatprep.subr.bf16.mxu0 %v5375
    %5437 = vmatpush1.bf16.msra.mxu0 %v5374
    %5438 = vmatprep.subr.bf16.mxu0 %v5369
    %5439 = vmatpush1.bf16.msra.mxu0 %v5368
    %5440 = vmatprep.subr.bf16.mxu0 %v5363
    %5441 = vmatpush1.bf16.msra.mxu0 %v5362
    %5442 = vmatprep.subr.bf16.mxu0 %v5357
    %5443 = vmatpush1.bf16.msra.mxu0 %v5356
    %5444 = vmatprep.subr.bf16.mxu0 %v5351
    %5445 = vmatpush1.bf16.msra.mxu0 %v5350
    %5446 = vmatprep.subr.bf16.mxu0 %v5345
    %5447 = vmatpush1.bf16.msra.mxu0 %v5344
    %5448 = vmatprep.subr.bf16.mxu0 %v5339
    %5449 = vmatpush1.bf16.msra.mxu0 %v5338
    %5450 = vmatprep.subr.bf16.mxu0 0
    %5451 = vmatpush2.bf16.msra.mxu0 0
    %5452 = vmatprep.subr.bf16.mxu0 0
    %5453 = vmatpush2.bf16.msra.mxu0 0
    %5454 = vmatprep.subr.bf16.mxu0 0
    %5455 = vmatpush2.bf16.msra.mxu0 0
    %5456 = vmatprep.subr.bf16.mxu0 0
    %5457 = vmatpush2.bf16.msra.mxu0 0
    %5458 = vmatprep.subr.bf16.mxu0 0
    %5459 = vmatpush2.bf16.msra.mxu0 0
    %5460 = vmatprep.subr.bf16.mxu0 0
    %5461 = vmatpush2.bf16.msra.mxu0 0
    %5462 = vmatprep.subr.bf16.mxu0 0
    %5463 = vmatpush2.bf16.msra.mxu0 0
    %5464 = vmatprep.subr.bf16.mxu0 0
    %5465 = vmatpush2.bf16.msra.mxu0 0
    %5466 = vmatprep.mubr.bf16.mxu0 0
    %5467 = vmatmul.mubr.bf16.gmra.mxu0 %v5192
    %v5468 = vpop.f32.mrf.mxu0
    %v5469 = vadd.f32 0.0, %v5468
    %v5470 = vpop.f32.mrf.mxu0
    %v5471 = vadd.f32 0.0, %v5470
    %v5472 = vpop.f32.mrf.mxu0
    %v5473 = vpop.f32.mrf.mxu0
    %5474 = vdwg.mxu0
    %5475 = vmatprep.subr.bf16.mxu0 %v5383
    %5476 = vmatpush1.bf16.msra.mxu0 %v5382
    %5477 = vmatprep.subr.bf16.mxu0 %v5377
    %5478 = vmatpush1.bf16.msra.mxu0 %v5376
    %5479 = vmatprep.subr.bf16.mxu0 %v5371
    %5480 = vmatpush1.bf16.msra.mxu0 %v5370
    %5481 = vmatprep.subr.bf16.mxu0 %v5365
    %5482 = vmatpush1.bf16.msra.mxu0 %v5364
    %5483 = vmatprep.subr.bf16.mxu0 %v5359
    %5484 = vmatpush1.bf16.msra.mxu0 %v5358
    %5485 = vmatprep.subr.bf16.mxu0 %v5353
    %5486 = vmatpush1.bf16.msra.mxu0 %v5352
    %5487 = vmatprep.subr.bf16.mxu0 %v5347
    %5488 = vmatpush1.bf16.msra.mxu0 %v5346
    %5489 = vmatprep.subr.bf16.mxu0 %v5341
    %5490 = vmatpush1.bf16.msra.mxu0 %v5340
    %5491 = vmatprep.subr.bf16.mxu0 0
    %5492 = vmatpush2.bf16.msra.mxu0 0
    %5493 = vmatprep.subr.bf16.mxu0 0
    %5494 = vmatpush2.bf16.msra.mxu0 0
    %5495 = vmatprep.subr.bf16.mxu0 0
    %5496 = vmatpush2.bf16.msra.mxu0 0
    %5497 = vmatprep.subr.bf16.mxu0 0
    %5498 = vmatpush2.bf16.msra.mxu0 0
    %5499 = vmatprep.subr.bf16.mxu0 0
    %5500 = vmatpush2.bf16.msra.mxu0 0
    %5501 = vmatprep.subr.bf16.mxu0 0
    %5502 = vmatpush2.bf16.msra.mxu0 0
    %5503 = vmatprep.subr.bf16.mxu0 0
    %5504 = vmatpush2.bf16.msra.mxu0 0
    %5505 = vmatprep.subr.bf16.mxu0 0
    %5506 = vmatpush2.bf16.msra.mxu0 0
    %5507 = vmatprep.mubr.bf16.mxu0 0
    %5508 = vmatmul.mubr.bf16.gmra.mxu0 %v5192
    %v5509 = vpop.f32.mrf.mxu0
    %v5510 = vadd.f32 0.0, %v5509
    %v5511 = vpop.f32.mrf.mxu0
    %v5512 = vadd.f32 0.0, %v5511
    %v5513 = vpop.f32.mrf.mxu0
    %v5514 = vpop.f32.mrf.mxu0
    %5515 = vdwg.mxu0
    %5516 = vmatprep.subr.bf16.mxu0 %v5385
    %5517 = vmatpush1.bf16.msra.mxu0 %v5384
    %5518 = vmatprep.subr.bf16.mxu0 %v5379
    %5519 = vmatpush1.bf16.msra.mxu0 %v5378
    %5520 = vmatprep.subr.bf16.mxu0 %v5373
    %5521 = vmatpush1.bf16.msra.mxu0 %v5372
    %5522 = vmatprep.subr.bf16.mxu0 %v5367
    %5523 = vmatpush1.bf16.msra.mxu0 %v5366
    %5524 = vmatprep.subr.bf16.mxu0 %v5361
    %5525 = vmatpush1.bf16.msra.mxu0 %v5360
    %5526 = vmatprep.subr.bf16.mxu0 %v5355
    %5527 = vmatpush1.bf16.msra.mxu0 %v5354
    %5528 = vmatprep.subr.bf16.mxu0 %v5349
    %5529 = vmatpush1.bf16.msra.mxu0 %v5348
    %5530 = vmatprep.subr.bf16.mxu0 %v5343
    %5531 = vmatpush1.bf16.msra.mxu0 %v5342
    %5532 = vmatprep.subr.bf16.mxu0 0
    %5533 = vmatpush2.bf16.msra.mxu0 0
    %5534 = vmatprep.subr.bf16.mxu0 0
    %5535 = vmatpush2.bf16.msra.mxu0 0
    %5536 = vmatprep.subr.bf16.mxu0 0
    %5537 = vmatpush2.bf16.msra.mxu0 0
    %5538 = vmatprep.subr.bf16.mxu0 0
    %5539 = vmatpush2.bf16.msra.mxu0 0
    %5540 = vmatprep.subr.bf16.mxu0 0
    %5541 = vmatpush2.bf16.msra.mxu0 0
    %5542 = vmatprep.subr.bf16.mxu0 0
    %5543 = vmatpush2.bf16.msra.mxu0 0
    %5544 = vmatprep.subr.bf16.mxu0 0
    %5545 = vmatpush2.bf16.msra.mxu0 0
    %5546 = vmatprep.subr.bf16.mxu0 0
    %5547 = vmatpush2.bf16.msra.mxu0 0
    %5548 = vmatprep.mubr.bf16.mxu0 0
    %5549 = vmatmul.mubr.bf16.gmra.mxu0 %v5192
    %v5550 = vpop.f32.mrf.mxu0
    %v5551 = vadd.f32 0.0, %v5550
    %v5552 = vpop.f32.mrf.mxu0
    %v5553 = vadd.f32 0.0, %v5552
    %v5554 = vpop.f32.mrf.mxu0
    %v5555 = vpop.f32.mrf.mxu0
    %5556 = vdwg.mxu0
    %v5557 = vadd.f32 %v5134, %v5469
    %v5558 = vadd.f32 %v5135, %v5471
    %v5559 = vadd.f32 %v5136, %v5510
    %v5560 = vadd.f32 %v5137, %v5512
    %v5561 = vadd.f32 %v5138, %v5551
    %v5562 = vadd.f32 %v5139, %v5553
    %s5563 = scalar_lea.vmem [#allocation8], 4224
    %v5564 = vld [vmem:[%s5563] sm:$0xff]
    %v5565 = vld [vmem:[%s5563 + $0x8] sm:$0xff]
    %v5566 = vld [vmem:[%s5563 + $0x10] sm:$0xff]
    %v5567 = vld [vmem:[%s5563 + $0x18] sm:$0xff]
    %v5568 = vld [vmem:[%s5563 + $0x20] sm:$0xff]
    %v5569 = vld [vmem:[%s5563 + $0x28] sm:$0xff]
    %v5570 = vld [vmem:[%s5563 + $0x30] sm:$0xff]
    %v5571 = vld [vmem:[%s5563 + $0x38] sm:$0xff]
    %v5572 = vld [vmem:[%s5563 + $0x40] sm:$0xff]
    %v5573 = vld [vmem:[%s5563 + $0x48] sm:$0xff]
    %v5574 = vld [vmem:[%s5563 + $0x50] sm:$0xff]
    %v5575 = vld [vmem:[%s5563 + $0x58] sm:$0xff]
    %v5576 = vld [vmem:[%s5563 + $0x60] sm:$0xff]
    %v5577 = vld [vmem:[%s5563 + $0x68] sm:$0xff]
    %v5578 = vld [vmem:[%s5563 + $0x70] sm:$0xff]
    %v5579 = vld [vmem:[%s5563 + $0x78] sm:$0xff]
    %v5580 = vld [vmem:[%s5563 + $0x80] sm:$0xff]
    %v5581 = vld [vmem:[%s5563 + $0x88] sm:$0xff]
    %v5582 = vld [vmem:[%s5563 + $0x90] sm:$0xff]
    %v5583 = vld [vmem:[%s5563 + $0x98] sm:$0xff]
    %v5584 = vld [vmem:[%s5563 + $0xa0] sm:$0xff]
    %v5585 = vld [vmem:[%s5563 + $0xa8] sm:$0xff]
    %v5586 = vld [vmem:[%s5563 + $0xb0] sm:$0xff]
    %v5587 = vld [vmem:[%s5563 + $0xb8] sm:$0xff]
    %v5588 = vld [vmem:[%s5563 + $0xc0] sm:$0xff]
    %v5589 = vld [vmem:[%s5563 + $0xc8] sm:$0xff]
    %v5590 = vld [vmem:[%s5563 + $0xd0] sm:$0xff]
    %v5591 = vld [vmem:[%s5563 + $0xd8] sm:$0xff]
    %v5592 = vld [vmem:[%s5563 + $0xe0] sm:$0xff]
    %v5593 = vld [vmem:[%s5563 + $0xe8] sm:$0xff]
    %v5594 = vld [vmem:[%s5563 + $0xf0] sm:$0xff]
    %v5595 = vld [vmem:[%s5563 + $0xf8] sm:$0xff]
    %v5596 = vld [vmem:[%s5563 + $0x100] sm:$0xff]
    %v5597 = vld [vmem:[%s5563 + $0x108] sm:$0xff]
    %v5598 = vld [vmem:[%s5563 + $0x110] sm:$0xff]
    %v5599 = vld [vmem:[%s5563 + $0x118] sm:$0xff]
    %v5600 = vld [vmem:[%s5563 + $0x120] sm:$0xff]
    %v5601 = vld [vmem:[%s5563 + $0x128] sm:$0xff]
    %v5602 = vld [vmem:[%s5563 + $0x130] sm:$0xff]
    %v5603 = vld [vmem:[%s5563 + $0x138] sm:$0xff]
    %v5604 = vld [vmem:[%s5563 + $0x140] sm:$0xff]
    %v5605 = vld [vmem:[%s5563 + $0x148] sm:$0xff]
    %v5606 = vld [vmem:[%s5563 + $0x150] sm:$0xff]
    %v5607 = vld [vmem:[%s5563 + $0x158] sm:$0xff]
    %v5608 = vld [vmem:[%s5563 + $0x160] sm:$0xff]
    %v5609 = vld [vmem:[%s5563 + $0x168] sm:$0xff]
    %v5610 = vld [vmem:[%s5563 + $0x170] sm:$0xff]
    %v5611 = vld [vmem:[%s5563 + $0x178] sm:$0xff]
    %v5612 = vrot.slane %v4343, 3
    %v5613 = vrot.slane %v4344, 2
    %v5614 = vsel %vm1018, %v5613, %v5612
    %v5615 = vpack.c.b16 %v5614, %v5614
    %v5665 = vunpack.c.l.b16 %v5564
    %v5666 = vunpack.c.h.b16 %v5564
    %v5667 = vunpack.c.l.b16 %v5565
    %v5668 = vunpack.c.h.b16 %v5565
    %v5669 = vunpack.c.l.b16 %v5566
    %v5670 = vunpack.c.h.b16 %v5566
    %v5671 = vunpack.c.l.b16 %v5567
    %v5672 = vunpack.c.h.b16 %v5567
    %v5673 = vunpack.c.l.b16 %v5568
    %v5674 = vunpack.c.h.b16 %v5568
    %v5675 = vunpack.c.l.b16 %v5569
    %v5676 = vunpack.c.h.b16 %v5569
    %v5677 = vunpack.c.l.b16 %v5570
    %v5678 = vunpack.c.h.b16 %v5570
    %v5679 = vunpack.c.l.b16 %v5571
    %v5680 = vunpack.c.h.b16 %v5571
    %v5681 = vunpack.c.l.b16 %v5572
    %v5682 = vunpack.c.h.b16 %v5572
    %v5683 = vunpack.c.l.b16 %v5573
    %v5684 = vunpack.c.h.b16 %v5573
    %v5685 = vunpack.c.l.b16 %v5574
    %v5686 = vunpack.c.h.b16 %v5574
    %v5687 = vunpack.c.l.b16 %v5575
    %v5688 = vunpack.c.h.b16 %v5575
    %v5689 = vunpack.c.l.b16 %v5576
    %v5690 = vunpack.c.h.b16 %v5576
    %v5691 = vunpack.c.l.b16 %v5577
    %v5692 = vunpack.c.h.b16 %v5577
    %v5693 = vunpack.c.l.b16 %v5578
    %v5694 = vunpack.c.h.b16 %v5578
    %v5695 = vunpack.c.l.b16 %v5579
    %v5696 = vunpack.c.h.b16 %v5579
    %v5697 = vunpack.c.l.b16 %v5580
    %v5698 = vunpack.c.h.b16 %v5580
    %v5699 = vunpack.c.l.b16 %v5581
    %v5700 = vunpack.c.h.b16 %v5581
    %v5701 = vunpack.c.l.b16 %v5582
    %v5702 = vunpack.c.h.b16 %v5582
    %v5703 = vunpack.c.l.b16 %v5583
    %v5704 = vunpack.c.h.b16 %v5583
    %v5705 = vunpack.c.l.b16 %v5584
    %v5706 = vunpack.c.h.b16 %v5584
    %v5707 = vunpack.c.l.b16 %v5585
    %v5708 = vunpack.c.h.b16 %v5585
    %v5709 = vunpack.c.l.b16 %v5586
    %v5710 = vunpack.c.h.b16 %v5586
    %v5711 = vunpack.c.l.b16 %v5587
    %v5712 = vunpack.c.h.b16 %v5587
    %v5713 = vunpack.c.l.b16 %v5588
    %v5714 = vunpack.c.h.b16 %v5588
    %v5715 = vunpack.c.l.b16 %v5589
    %v5716 = vunpack.c.h.b16 %v5589
    %v5717 = vunpack.c.l.b16 %v5590
    %v5718 = vunpack.c.h.b16 %v5590
    %v5719 = vunpack.c.l.b16 %v5591
    %v5720 = vunpack.c.h.b16 %v5591
    %v5721 = vunpack.c.l.b16 %v5592
    %v5722 = vunpack.c.h.b16 %v5592
    %v5723 = vunpack.c.l.b16 %v5593
    %v5724 = vunpack.c.h.b16 %v5593
    %v5725 = vunpack.c.l.b16 %v5594
    %v5726 = vunpack.c.h.b16 %v5594
    %v5727 = vunpack.c.l.b16 %v5595
    %v5728 = vunpack.c.h.b16 %v5595
    %v5729 = vunpack.c.l.b16 %v5596
    %v5730 = vunpack.c.h.b16 %v5596
    %v5731 = vunpack.c.l.b16 %v5597
    %v5732 = vunpack.c.h.b16 %v5597
    %v5733 = vunpack.c.l.b16 %v5598
    %v5734 = vunpack.c.h.b16 %v5598
    %v5735 = vunpack.c.l.b16 %v5599
    %v5736 = vunpack.c.h.b16 %v5599
    %v5737 = vunpack.c.l.b16 %v5600
    %v5738 = vunpack.c.h.b16 %v5600
    %v5739 = vunpack.c.l.b16 %v5601
    %v5740 = vunpack.c.h.b16 %v5601
    %v5741 = vunpack.c.l.b16 %v5602
    %v5742 = vunpack.c.h.b16 %v5602
    %v5743 = vunpack.c.l.b16 %v5603
    %v5744 = vunpack.c.h.b16 %v5603
    %v5745 = vunpack.c.l.b16 %v5604
    %v5746 = vunpack.c.h.b16 %v5604
    %v5747 = vunpack.c.l.b16 %v5605
    %v5748 = vunpack.c.h.b16 %v5605
    %v5749 = vunpack.c.l.b16 %v5606
    %v5750 = vunpack.c.h.b16 %v5606
    %v5751 = vunpack.c.l.b16 %v5607
    %v5752 = vunpack.c.h.b16 %v5607
    %v5753 = vunpack.c.l.b16 %v5608
    %v5754 = vunpack.c.h.b16 %v5608
    %v5755 = vunpack.c.l.b16 %v5609
    %v5756 = vunpack.c.h.b16 %v5609
    %v5757 = vunpack.c.l.b16 %v5610
    %v5758 = vunpack.c.h.b16 %v5610
    %v5759 = vunpack.c.l.b16 %v5611
    %v5760 = vunpack.c.h.b16 %v5611
    %v5761 = vpack.c.b16 %v5671, %v5665
    %v5762 = vpack.c.b16 %v5672, %v5666
    %v5763 = vpack.c.b16 %v5673, %v5667
    %v5764 = vpack.c.b16 %v5674, %v5668
    %v5765 = vpack.c.b16 %v5675, %v5669
    %v5766 = vpack.c.b16 %v5676, %v5670
    %v5767 = vpack.c.b16 %v5683, %v5677
    %v5768 = vpack.c.b16 %v5684, %v5678
    %v5769 = vpack.c.b16 %v5685, %v5679
    %v5770 = vpack.c.b16 %v5686, %v5680
    %v5771 = vpack.c.b16 %v5687, %v5681
    %v5772 = vpack.c.b16 %v5688, %v5682
    %v5773 = vpack.c.b16 %v5695, %v5689
    %v5774 = vpack.c.b16 %v5696, %v5690
    %v5775 = vpack.c.b16 %v5697, %v5691
    %v5776 = vpack.c.b16 %v5698, %v5692
    %v5777 = vpack.c.b16 %v5699, %v5693
    %v5778 = vpack.c.b16 %v5700, %v5694
    %v5779 = vpack.c.b16 %v5707, %v5701
    %v5780 = vpack.c.b16 %v5708, %v5702
    %v5781 = vpack.c.b16 %v5709, %v5703
    %v5782 = vpack.c.b16 %v5710, %v5704
    %v5783 = vpack.c.b16 %v5711, %v5705
    %v5784 = vpack.c.b16 %v5712, %v5706
    %v5785 = vpack.c.b16 %v5719, %v5713
    %v5786 = vpack.c.b16 %v5720, %v5714
    %v5787 = vpack.c.b16 %v5721, %v5715
    %v5788 = vpack.c.b16 %v5722, %v5716
    %v5789 = vpack.c.b16 %v5723, %v5717
    %v5790 = vpack.c.b16 %v5724, %v5718
    %v5791 = vpack.c.b16 %v5731, %v5725
    %v5792 = vpack.c.b16 %v5732, %v5726
    %v5793 = vpack.c.b16 %v5733, %v5727
    %v5794 = vpack.c.b16 %v5734, %v5728
    %v5795 = vpack.c.b16 %v5735, %v5729
    %v5796 = vpack.c.b16 %v5736, %v5730
    %v5797 = vpack.c.b16 %v5743, %v5737
    %v5798 = vpack.c.b16 %v5744, %v5738
    %v5799 = vpack.c.b16 %v5745, %v5739
    %v5800 = vpack.c.b16 %v5746, %v5740
    %v5801 = vpack.c.b16 %v5747, %v5741
    %v5802 = vpack.c.b16 %v5748, %v5742
    %v5803 = vpack.c.b16 %v5755, %v5749
    %v5804 = vpack.c.b16 %v5756, %v5750
    %v5805 = vpack.c.b16 %v5757, %v5751
    %v5806 = vpack.c.b16 %v5758, %v5752
    %v5807 = vpack.c.b16 %v5759, %v5753
    %v5808 = vpack.c.b16 %v5760, %v5754
    %5857 = vmatprep.subr.bf16.mxu0 %v5804
    %5858 = vmatpush1.bf16.msra.mxu0 %v5803
    %5859 = vmatprep.subr.bf16.mxu0 %v5798
    %5860 = vmatpush1.bf16.msra.mxu0 %v5797
    %5861 = vmatprep.subr.bf16.mxu0 %v5792
    %5862 = vmatpush1.bf16.msra.mxu0 %v5791
    %5863 = vmatprep.subr.bf16.mxu0 %v5786
    %5864 = vmatpush1.bf16.msra.mxu0 %v5785
    %5865 = vmatprep.subr.bf16.mxu0 %v5780
    %5866 = vmatpush1.bf16.msra.mxu0 %v5779
    %5867 = vmatprep.subr.bf16.mxu0 %v5774
    %5868 = vmatpush1.bf16.msra.mxu0 %v5773
    %5869 = vmatprep.subr.bf16.mxu0 %v5768
    %5870 = vmatpush1.bf16.msra.mxu0 %v5767
    %5871 = vmatprep.subr.bf16.mxu0 %v5762
    %5872 = vmatpush1.bf16.msra.mxu0 %v5761
    %5873 = vmatprep.subr.bf16.mxu0 0
    %5874 = vmatpush2.bf16.msra.mxu0 0
    %5875 = vmatprep.subr.bf16.mxu0 0
    %5876 = vmatpush2.bf16.msra.mxu0 0
    %5877 = vmatprep.subr.bf16.mxu0 0
    %5878 = vmatpush2.bf16.msra.mxu0 0
    %5879 = vmatprep.subr.bf16.mxu0 0
    %5880 = vmatpush2.bf16.msra.mxu0 0
    %5881 = vmatprep.subr.bf16.mxu0 0
    %5882 = vmatpush2.bf16.msra.mxu0 0
    %5883 = vmatprep.subr.bf16.mxu0 0
    %5884 = vmatpush2.bf16.msra.mxu0 0
    %5885 = vmatprep.subr.bf16.mxu0 0
    %5886 = vmatpush2.bf16.msra.mxu0 0
    %5887 = vmatprep.subr.bf16.mxu0 0
    %5888 = vmatpush2.bf16.msra.mxu0 0
    %5889 = vmatprep.mubr.bf16.mxu0 0
    %5890 = vmatmul.mubr.bf16.gmra.mxu0 %v5615
    %v5891 = vpop.f32.mrf.mxu0
    %v5892 = vadd.f32 0.0, %v5891
    %v5893 = vpop.f32.mrf.mxu0
    %v5894 = vadd.f32 0.0, %v5893
    %v5895 = vpop.f32.mrf.mxu0
    %v5896 = vpop.f32.mrf.mxu0
    %5897 = vdwg.mxu0
    %5898 = vmatprep.subr.bf16.mxu0 %v5806
    %5899 = vmatpush1.bf16.msra.mxu0 %v5805
    %5900 = vmatprep.subr.bf16.mxu0 %v5800
    %5901 = vmatpush1.bf16.msra.mxu0 %v5799
    %5902 = vmatprep.subr.bf16.mxu0 %v5794
    %5903 = vmatpush1.bf16.msra.mxu0 %v5793
    %5904 = vmatprep.subr.bf16.mxu0 %v5788
    %5905 = vmatpush1.bf16.msra.mxu0 %v5787
    %5906 = vmatprep.subr.bf16.mxu0 %v5782
    %5907 = vmatpush1.bf16.msra.mxu0 %v5781
    %5908 = vmatprep.subr.bf16.mxu0 %v5776
    %5909 = vmatpush1.bf16.msra.mxu0 %v5775
    %5910 = vmatprep.subr.bf16.mxu0 %v5770
    %5911 = vmatpush1.bf16.msra.mxu0 %v5769
    %5912 = vmatprep.subr.bf16.mxu0 %v5764
    %5913 = vmatpush1.bf16.msra.mxu0 %v5763
    %5914 = vmatprep.subr.bf16.mxu0 0
    %5915 = vmatpush2.bf16.msra.mxu0 0
    %5916 = vmatprep.subr.bf16.mxu0 0
    %5917 = vmatpush2.bf16.msra.mxu0 0
    %5918 = vmatprep.subr.bf16.mxu0 0
    %5919 = vmatpush2.bf16.msra.mxu0 0
    %5920 = vmatprep.subr.bf16.mxu0 0
    %5921 = vmatpush2.bf16.msra.mxu0 0
    %5922 = vmatprep.subr.bf16.mxu0 0
    %5923 = vmatpush2.bf16.msra.mxu0 0
    %5924 = vmatprep.subr.bf16.mxu0 0
    %5925 = vmatpush2.bf16.msra.mxu0 0
    %5926 = vmatprep.subr.bf16.mxu0 0
    %5927 = vmatpush2.bf16.msra.mxu0 0
    %5928 = vmatprep.subr.bf16.mxu0 0
    %5929 = vmatpush2.bf16.msra.mxu0 0
    %5930 = vmatprep.mubr.bf16.mxu0 0
    %5931 = vmatmul.mubr.bf16.gmra.mxu0 %v5615
    %v5932 = vpop.f32.mrf.mxu0
    %v5933 = vadd.f32 0.0, %v5932
    %v5934 = vpop.f32.mrf.mxu0
    %v5935 = vadd.f32 0.0, %v5934
    %v5936 = vpop.f32.mrf.mxu0
    %v5937 = vpop.f32.mrf.mxu0
    %5938 = vdwg.mxu0
    %5939 = vmatprep.subr.bf16.mxu0 %v5808
    %5940 = vmatpush1.bf16.msra.mxu0 %v5807
    %5941 = vmatprep.subr.bf16.mxu0 %v5802
    %5942 = vmatpush1.bf16.msra.mxu0 %v5801
    %5943 = vmatprep.subr.bf16.mxu0 %v5796
    %5944 = vmatpush1.bf16.msra.mxu0 %v5795
    %5945 = vmatprep.subr.bf16.mxu0 %v5790
    %5946 = vmatpush1.bf16.msra.mxu0 %v5789
    %5947 = vmatprep.subr.bf16.mxu0 %v5784
    %5948 = vmatpush1.bf16.msra.mxu0 %v5783
    %5949 = vmatprep.subr.bf16.mxu0 %v5778
    %5950 = vmatpush1.bf16.msra.mxu0 %v5777
    %5951 = vmatprep.subr.bf16.mxu0 %v5772
    %5952 = vmatpush1.bf16.msra.mxu0 %v5771
    %5953 = vmatprep.subr.bf16.mxu0 %v5766
    %5954 = vmatpush1.bf16.msra.mxu0 %v5765
    %5955 = vmatprep.subr.bf16.mxu0 0
    %5956 = vmatpush2.bf16.msra.mxu0 0
    %5957 = vmatprep.subr.bf16.mxu0 0
    %5958 = vmatpush2.bf16.msra.mxu0 0
    %5959 = vmatprep.subr.bf16.mxu0 0
    %5960 = vmatpush2.bf16.msra.mxu0 0
    %5961 = vmatprep.subr.bf16.mxu0 0
    %5962 = vmatpush2.bf16.msra.mxu0 0
    %5963 = vmatprep.subr.bf16.mxu0 0
    %5964 = vmatpush2.bf16.msra.mxu0 0
    %5965 = vmatprep.subr.bf16.mxu0 0
    %5966 = vmatpush2.bf16.msra.mxu0 0
    %5967 = vmatprep.subr.bf16.mxu0 0
    %5968 = vmatpush2.bf16.msra.mxu0 0
    %5969 = vmatprep.subr.bf16.mxu0 0
    %5970 = vmatpush2.bf16.msra.mxu0 0
    %5971 = vmatprep.mubr.bf16.mxu0 0
    %5972 = vmatmul.mubr.bf16.gmra.mxu0 %v5615
    %v5973 = vpop.f32.mrf.mxu0
    %v5974 = vadd.f32 0.0, %v5973
    %v5975 = vpop.f32.mrf.mxu0
    %v5976 = vadd.f32 0.0, %v5975
    %v5977 = vpop.f32.mrf.mxu0
    %v5978 = vpop.f32.mrf.mxu0
    %5979 = vdwg.mxu0
    %v5980 = vadd.f32 %v5557, %v5892
    %v5981 = vadd.f32 %v5558, %v5894
    %v5982 = vadd.f32 %v5559, %v5933
    %v5983 = vadd.f32 %v5560, %v5935
    %v5984 = vadd.f32 %v5561, %v5974
    %v5985 = vadd.f32 %v5562, %v5976
    %s5986 = scalar_lea.vmem [#allocation8], 4608
    %v5987 = vld [vmem:[%s5986] sm:$0xff]
    %v5988 = vld [vmem:[%s5986 + $0x8] sm:$0xff]
    %v5989 = vld [vmem:[%s5986 + $0x10] sm:$0xff]
    %v5990 = vld [vmem:[%s5986 + $0x18] sm:$0xff]
    %v5991 = vld [vmem:[%s5986 + $0x20] sm:$0xff]
    %v5992 = vld [vmem:[%s5986 + $0x28] sm:$0xff]
    %v5993 = vld [vmem:[%s5986 + $0x30] sm:$0xff]
    %v5994 = vld [vmem:[%s5986 + $0x38] sm:$0xff]
    %v5995 = vld [vmem:[%s5986 + $0x40] sm:$0xff]
    %v5996 = vld [vmem:[%s5986 + $0x48] sm:$0xff]
    %v5997 = vld [vmem:[%s5986 + $0x50] sm:$0xff]
    %v5998 = vld [vmem:[%s5986 + $0x58] sm:$0xff]
    %v5999 = vld [vmem:[%s5986 + $0x60] sm:$0xff]
    %v6000 = vld [vmem:[%s5986 + $0x68] sm:$0xff]
    %v6001 = vld [vmem:[%s5986 + $0x70] sm:$0xff]
    %v6002 = vld [vmem:[%s5986 + $0x78] sm:$0xff]
    %v6003 = vld [vmem:[%s5986 + $0x80] sm:$0xff]
    %v6004 = vld [vmem:[%s5986 + $0x88] sm:$0xff]
    %v6005 = vld [vmem:[%s5986 + $0x90] sm:$0xff]
    %v6006 = vld [vmem:[%s5986 + $0x98] sm:$0xff]
    %v6007 = vld [vmem:[%s5986 + $0xa0] sm:$0xff]
    %v6008 = vld [vmem:[%s5986 + $0xa8] sm:$0xff]
    %v6009 = vld [vmem:[%s5986 + $0xb0] sm:$0xff]
    %v6010 = vld [vmem:[%s5986 + $0xb8] sm:$0xff]
    %v6011 = vld [vmem:[%s5986 + $0xc0] sm:$0xff]
    %v6012 = vld [vmem:[%s5986 + $0xc8] sm:$0xff]
    %v6013 = vld [vmem:[%s5986 + $0xd0] sm:$0xff]
    %v6014 = vld [vmem:[%s5986 + $0xd8] sm:$0xff]
    %v6015 = vld [vmem:[%s5986 + $0xe0] sm:$0xff]
    %v6016 = vld [vmem:[%s5986 + $0xe8] sm:$0xff]
    %v6017 = vld [vmem:[%s5986 + $0xf0] sm:$0xff]
    %v6018 = vld [vmem:[%s5986 + $0xf8] sm:$0xff]
    %v6019 = vld [vmem:[%s5986 + $0x100] sm:$0xff]
    %v6020 = vld [vmem:[%s5986 + $0x108] sm:$0xff]
    %v6021 = vld [vmem:[%s5986 + $0x110] sm:$0xff]
    %v6022 = vld [vmem:[%s5986 + $0x118] sm:$0xff]
    %v6023 = vld [vmem:[%s5986 + $0x120] sm:$0xff]
    %v6024 = vld [vmem:[%s5986 + $0x128] sm:$0xff]
    %v6025 = vld [vmem:[%s5986 + $0x130] sm:$0xff]
    %v6026 = vld [vmem:[%s5986 + $0x138] sm:$0xff]
    %v6027 = vld [vmem:[%s5986 + $0x140] sm:$0xff]
    %v6028 = vld [vmem:[%s5986 + $0x148] sm:$0xff]
    %v6029 = vld [vmem:[%s5986 + $0x150] sm:$0xff]
    %v6030 = vld [vmem:[%s5986 + $0x158] sm:$0xff]
    %v6031 = vld [vmem:[%s5986 + $0x160] sm:$0xff]
    %v6032 = vld [vmem:[%s5986 + $0x168] sm:$0xff]
    %v6033 = vld [vmem:[%s5986 + $0x170] sm:$0xff]
    %v6034 = vld [vmem:[%s5986 + $0x178] sm:$0xff]
    %v6035 = vrot.slane %v4343, 4
    %v6036 = vrot.slane %v4344, 3
    %v6037 = vsel %vm1018, %v6036, %v6035
    %v6038 = vpack.c.b16 %v6037, %v6037
    %v6088 = vunpack.c.l.b16 %v5987
    %v6089 = vunpack.c.h.b16 %v5987
    %v6090 = vunpack.c.l.b16 %v5988
    %v6091 = vunpack.c.h.b16 %v5988
    %v6092 = vunpack.c.l.b16 %v5989
    %v6093 = vunpack.c.h.b16 %v5989
    %v6094 = vunpack.c.l.b16 %v5990
    %v6095 = vunpack.c.h.b16 %v5990
    %v6096 = vunpack.c.l.b16 %v5991
    %v6097 = vunpack.c.h.b16 %v5991
    %v6098 = vunpack.c.l.b16 %v5992
    %v6099 = vunpack.c.h.b16 %v5992
    %v6100 = vunpack.c.l.b16 %v5993
    %v6101 = vunpack.c.h.b16 %v5993
    %v6102 = vunpack.c.l.b16 %v5994
    %v6103 = vunpack.c.h.b16 %v5994
    %v6104 = vunpack.c.l.b16 %v5995
    %v6105 = vunpack.c.h.b16 %v5995
    %v6106 = vunpack.c.l.b16 %v5996
    %v6107 = vunpack.c.h.b16 %v5996
    %v6108 = vunpack.c.l.b16 %v5997
    %v6109 = vunpack.c.h.b16 %v5997
    %v6110 = vunpack.c.l.b16 %v5998
    %v6111 = vunpack.c.h.b16 %v5998
    %v6112 = vunpack.c.l.b16 %v5999
    %v6113 = vunpack.c.h.b16 %v5999
    %v6114 = vunpack.c.l.b16 %v6000
    %v6115 = vunpack.c.h.b16 %v6000
    %v6116 = vunpack.c.l.b16 %v6001
    %v6117 = vunpack.c.h.b16 %v6001
    %v6118 = vunpack.c.l.b16 %v6002
    %v6119 = vunpack.c.h.b16 %v6002
    %v6120 = vunpack.c.l.b16 %v6003
    %v6121 = vunpack.c.h.b16 %v6003
    %v6122 = vunpack.c.l.b16 %v6004
    %v6123 = vunpack.c.h.b16 %v6004
    %v6124 = vunpack.c.l.b16 %v6005
    %v6125 = vunpack.c.h.b16 %v6005
    %v6126 = vunpack.c.l.b16 %v6006
    %v6127 = vunpack.c.h.b16 %v6006
    %v6128 = vunpack.c.l.b16 %v6007
    %v6129 = vunpack.c.h.b16 %v6007
    %v6130 = vunpack.c.l.b16 %v6008
    %v6131 = vunpack.c.h.b16 %v6008
    %v6132 = vunpack.c.l.b16 %v6009
    %v6133 = vunpack.c.h.b16 %v6009
    %v6134 = vunpack.c.l.b16 %v6010
    %v6135 = vunpack.c.h.b16 %v6010
    %v6136 = vunpack.c.l.b16 %v6011
    %v6137 = vunpack.c.h.b16 %v6011
    %v6138 = vunpack.c.l.b16 %v6012
    %v6139 = vunpack.c.h.b16 %v6012
    %v6140 = vunpack.c.l.b16 %v6013
    %v6141 = vunpack.c.h.b16 %v6013
    %v6142 = vunpack.c.l.b16 %v6014
    %v6143 = vunpack.c.h.b16 %v6014
    %v6144 = vunpack.c.l.b16 %v6015
    %v6145 = vunpack.c.h.b16 %v6015
    %v6146 = vunpack.c.l.b16 %v6016
    %v6147 = vunpack.c.h.b16 %v6016
    %v6148 = vunpack.c.l.b16 %v6017
    %v6149 = vunpack.c.h.b16 %v6017
    %v6150 = vunpack.c.l.b16 %v6018
    %v6151 = vunpack.c.h.b16 %v6018
    %v6152 = vunpack.c.l.b16 %v6019
    %v6153 = vunpack.c.h.b16 %v6019
    %v6154 = vunpack.c.l.b16 %v6020
    %v6155 = vunpack.c.h.b16 %v6020
    %v6156 = vunpack.c.l.b16 %v6021
    %v6157 = vunpack.c.h.b16 %v6021
    %v6158 = vunpack.c.l.b16 %v6022
    %v6159 = vunpack.c.h.b16 %v6022
    %v6160 = vunpack.c.l.b16 %v6023
    %v6161 = vunpack.c.h.b16 %v6023
    %v6162 = vunpack.c.l.b16 %v6024
    %v6163 = vunpack.c.h.b16 %v6024
    %v6164 = vunpack.c.l.b16 %v6025
    %v6165 = vunpack.c.h.b16 %v6025
    %v6166 = vunpack.c.l.b16 %v6026
    %v6167 = vunpack.c.h.b16 %v6026
    %v6168 = vunpack.c.l.b16 %v6027
    %v6169 = vunpack.c.h.b16 %v6027
    %v6170 = vunpack.c.l.b16 %v6028
    %v6171 = vunpack.c.h.b16 %v6028
    %v6172 = vunpack.c.l.b16 %v6029
    %v6173 = vunpack.c.h.b16 %v6029
    %v6174 = vunpack.c.l.b16 %v6030
    %v6175 = vunpack.c.h.b16 %v6030
    %v6176 = vunpack.c.l.b16 %v6031
    %v6177 = vunpack.c.h.b16 %v6031
    %v6178 = vunpack.c.l.b16 %v6032
    %v6179 = vunpack.c.h.b16 %v6032
    %v6180 = vunpack.c.l.b16 %v6033
    %v6181 = vunpack.c.h.b16 %v6033
    %v6182 = vunpack.c.l.b16 %v6034
    %v6183 = vunpack.c.h.b16 %v6034
    %v6184 = vpack.c.b16 %v6094, %v6088
    %v6185 = vpack.c.b16 %v6095, %v6089
    %v6186 = vpack.c.b16 %v6096, %v6090
    %v6187 = vpack.c.b16 %v6097, %v6091
    %v6188 = vpack.c.b16 %v6098, %v6092
    %v6189 = vpack.c.b16 %v6099, %v6093
    %v6190 = vpack.c.b16 %v6106, %v6100
    %v6191 = vpack.c.b16 %v6107, %v6101
    %v6192 = vpack.c.b16 %v6108, %v6102
    %v6193 = vpack.c.b16 %v6109, %v6103
    %v6194 = vpack.c.b16 %v6110, %v6104
    %v6195 = vpack.c.b16 %v6111, %v6105
    %v6196 = vpack.c.b16 %v6118, %v6112
    %v6197 = vpack.c.b16 %v6119, %v6113
    %v6198 = vpack.c.b16 %v6120, %v6114
    %v6199 = vpack.c.b16 %v6121, %v6115
    %v6200 = vpack.c.b16 %v6122, %v6116
    %v6201 = vpack.c.b16 %v6123, %v6117
    %v6202 = vpack.c.b16 %v6130, %v6124
    %v6203 = vpack.c.b16 %v6131, %v6125
    %v6204 = vpack.c.b16 %v6132, %v6126
    %v6205 = vpack.c.b16 %v6133, %v6127
    %v6206 = vpack.c.b16 %v6134, %v6128
    %v6207 = vpack.c.b16 %v6135, %v6129
    %v6208 = vpack.c.b16 %v6142, %v6136
    %v6209 = vpack.c.b16 %v6143, %v6137
    %v6210 = vpack.c.b16 %v6144, %v6138
    %v6211 = vpack.c.b16 %v6145, %v6139
    %v6212 = vpack.c.b16 %v6146, %v6140
    %v6213 = vpack.c.b16 %v6147, %v6141
    %v6214 = vpack.c.b16 %v6154, %v6148
    %v6215 = vpack.c.b16 %v6155, %v6149
    %v6216 = vpack.c.b16 %v6156, %v6150
    %v6217 = vpack.c.b16 %v6157, %v6151
    %v6218 = vpack.c.b16 %v6158, %v6152
    %v6219 = vpack.c.b16 %v6159, %v6153
    %v6220 = vpack.c.b16 %v6166, %v6160
    %v6221 = vpack.c.b16 %v6167, %v6161
    %v6222 = vpack.c.b16 %v6168, %v6162
    %v6223 = vpack.c.b16 %v6169, %v6163
    %v6224 = vpack.c.b16 %v6170, %v6164
    %v6225 = vpack.c.b16 %v6171, %v6165
    %v6226 = vpack.c.b16 %v6178, %v6172
    %v6227 = vpack.c.b16 %v6179, %v6173
    %v6228 = vpack.c.b16 %v6180, %v6174
    %v6229 = vpack.c.b16 %v6181, %v6175
    %v6230 = vpack.c.b16 %v6182, %v6176
    %v6231 = vpack.c.b16 %v6183, %v6177
    %6280 = vmatprep.subr.bf16.mxu0 %v6227
    %6281 = vmatpush1.bf16.msra.mxu0 %v6226
    %6282 = vmatprep.subr.bf16.mxu0 %v6221
    %6283 = vmatpush1.bf16.msra.mxu0 %v6220
    %6284 = vmatprep.subr.bf16.mxu0 %v6215
    %6285 = vmatpush1.bf16.msra.mxu0 %v6214
    %6286 = vmatprep.subr.bf16.mxu0 %v6209
    %6287 = vmatpush1.bf16.msra.mxu0 %v6208
    %6288 = vmatprep.subr.bf16.mxu0 %v6203
    %6289 = vmatpush1.bf16.msra.mxu0 %v6202
    %6290 = vmatprep.subr.bf16.mxu0 %v6197
    %6291 = vmatpush1.bf16.msra.mxu0 %v6196
    %6292 = vmatprep.subr.bf16.mxu0 %v6191
    %6293 = vmatpush1.bf16.msra.mxu0 %v6190
    %6294 = vmatprep.subr.bf16.mxu0 %v6185
    %6295 = vmatpush1.bf16.msra.mxu0 %v6184
    %6296 = vmatprep.subr.bf16.mxu0 0
    %6297 = vmatpush2.bf16.msra.mxu0 0
    %6298 = vmatprep.subr.bf16.mxu0 0
    %6299 = vmatpush2.bf16.msra.mxu0 0
    %6300 = vmatprep.subr.bf16.mxu0 0
    %6301 = vmatpush2.bf16.msra.mxu0 0
    %6302 = vmatprep.subr.bf16.mxu0 0
    %6303 = vmatpush2.bf16.msra.mxu0 0
    %6304 = vmatprep.subr.bf16.mxu0 0
    %6305 = vmatpush2.bf16.msra.mxu0 0
    %6306 = vmatprep.subr.bf16.mxu0 0
    %6307 = vmatpush2.bf16.msra.mxu0 0
    %6308 = vmatprep.subr.bf16.mxu0 0
    %6309 = vmatpush2.bf16.msra.mxu0 0
    %6310 = vmatprep.subr.bf16.mxu0 0
    %6311 = vmatpush2.bf16.msra.mxu0 0
    %6312 = vmatprep.mubr.bf16.mxu0 0
    %6313 = vmatmul.mubr.bf16.gmra.mxu0 %v6038
    %v6314 = vpop.f32.mrf.mxu0
    %v6315 = vadd.f32 0.0, %v6314
    %v6316 = vpop.f32.mrf.mxu0
    %v6317 = vadd.f32 0.0, %v6316
    %v6318 = vpop.f32.mrf.mxu0
    %v6319 = vpop.f32.mrf.mxu0
    %6320 = vdwg.mxu0
    %6321 = vmatprep.subr.bf16.mxu0 %v6229
    %6322 = vmatpush1.bf16.msra.mxu0 %v6228
    %6323 = vmatprep.subr.bf16.mxu0 %v6223
    %6324 = vmatpush1.bf16.msra.mxu0 %v6222
    %6325 = vmatprep.subr.bf16.mxu0 %v6217
    %6326 = vmatpush1.bf16.msra.mxu0 %v6216
    %6327 = vmatprep.subr.bf16.mxu0 %v6211
    %6328 = vmatpush1.bf16.msra.mxu0 %v6210
    %6329 = vmatprep.subr.bf16.mxu0 %v6205
    %6330 = vmatpush1.bf16.msra.mxu0 %v6204
    %6331 = vmatprep.subr.bf16.mxu0 %v6199
    %6332 = vmatpush1.bf16.msra.mxu0 %v6198
    %6333 = vmatprep.subr.bf16.mxu0 %v6193
    %6334 = vmatpush1.bf16.msra.mxu0 %v6192
    %6335 = vmatprep.subr.bf16.mxu0 %v6187
    %6336 = vmatpush1.bf16.msra.mxu0 %v6186
    %6337 = vmatprep.subr.bf16.mxu0 0
    %6338 = vmatpush2.bf16.msra.mxu0 0
    %6339 = vmatprep.subr.bf16.mxu0 0
    %6340 = vmatpush2.bf16.msra.mxu0 0
    %6341 = vmatprep.subr.bf16.mxu0 0
    %6342 = vmatpush2.bf16.msra.mxu0 0
    %6343 = vmatprep.subr.bf16.mxu0 0
    %6344 = vmatpush2.bf16.msra.mxu0 0
    %6345 = vmatprep.subr.bf16.mxu0 0
    %6346 = vmatpush2.bf16.msra.mxu0 0
    %6347 = vmatprep.subr.bf16.mxu0 0
    %6348 = vmatpush2.bf16.msra.mxu0 0
    %6349 = vmatprep.subr.bf16.mxu0 0
    %6350 = vmatpush2.bf16.msra.mxu0 0
    %6351 = vmatprep.subr.bf16.mxu0 0
    %6352 = vmatpush2.bf16.msra.mxu0 0
    %6353 = vmatprep.mubr.bf16.mxu0 0
    %6354 = vmatmul.mubr.bf16.gmra.mxu0 %v6038
    %v6355 = vpop.f32.mrf.mxu0
    %v6356 = vadd.f32 0.0, %v6355
    %v6357 = vpop.f32.mrf.mxu0
    %v6358 = vadd.f32 0.0, %v6357
    %v6359 = vpop.f32.mrf.mxu0
    %v6360 = vpop.f32.mrf.mxu0
    %6361 = vdwg.mxu0
    %6362 = vmatprep.subr.bf16.mxu0 %v6231
    %6363 = vmatpush1.bf16.msra.mxu0 %v6230
    %6364 = vmatprep.subr.bf16.mxu0 %v6225
    %6365 = vmatpush1.bf16.msra.mxu0 %v6224
    %6366 = vmatprep.subr.bf16.mxu0 %v6219
    %6367 = vmatpush1.bf16.msra.mxu0 %v6218
    %6368 = vmatprep.subr.bf16.mxu0 %v6213
    %6369 = vmatpush1.bf16.msra.mxu0 %v6212
    %6370 = vmatprep.subr.bf16.mxu0 %v6207
    %6371 = vmatpush1.bf16.msra.mxu0 %v6206
    %6372 = vmatprep.subr.bf16.mxu0 %v6201
    %6373 = vmatpush1.bf16.msra.mxu0 %v6200
    %6374 = vmatprep.subr.bf16.mxu0 %v6195
    %6375 = vmatpush1.bf16.msra.mxu0 %v6194
    %6376 = vmatprep.subr.bf16.mxu0 %v6189
    %6377 = vmatpush1.bf16.msra.mxu0 %v6188
    %6378 = vmatprep.subr.bf16.mxu0 0
    %6379 = vmatpush2.bf16.msra.mxu0 0
    %6380 = vmatprep.subr.bf16.mxu0 0
    %6381 = vmatpush2.bf16.msra.mxu0 0
    %6382 = vmatprep.subr.bf16.mxu0 0
    %6383 = vmatpush2.bf16.msra.mxu0 0
    %6384 = vmatprep.subr.bf16.mxu0 0
    %6385 = vmatpush2.bf16.msra.mxu0 0
    %6386 = vmatprep.subr.bf16.mxu0 0
    %6387 = vmatpush2.bf16.msra.mxu0 0
    %6388 = vmatprep.subr.bf16.mxu0 0
    %6389 = vmatpush2.bf16.msra.mxu0 0
    %6390 = vmatprep.subr.bf16.mxu0 0
    %6391 = vmatpush2.bf16.msra.mxu0 0
    %6392 = vmatprep.subr.bf16.mxu0 0
    %6393 = vmatpush2.bf16.msra.mxu0 0
    %6394 = vmatprep.mubr.bf16.mxu0 0
    %6395 = vmatmul.mubr.bf16.gmra.mxu0 %v6038
    %v6396 = vpop.f32.mrf.mxu0
    %v6397 = vadd.f32 0.0, %v6396
    %v6398 = vpop.f32.mrf.mxu0
    %v6399 = vadd.f32 0.0, %v6398
    %v6400 = vpop.f32.mrf.mxu0
    %v6401 = vpop.f32.mrf.mxu0
    %6402 = vdwg.mxu0
    %v6403 = vadd.f32 %v5980, %v6315
    %v6404 = vadd.f32 %v5981, %v6317
    %v6405 = vadd.f32 %v5982, %v6356
    %v6406 = vadd.f32 %v5983, %v6358
    %v6407 = vadd.f32 %v5984, %v6397
    %v6408 = vadd.f32 %v5985, %v6399
    %s6409 = scalar_lea.vmem [#allocation8], 4992
    %v6410 = vld [vmem:[%s6409] sm:$0xff]
    %v6411 = vld [vmem:[%s6409 + $0x8] sm:$0xff]
    %v6412 = vld [vmem:[%s6409 + $0x10] sm:$0xff]
    %v6413 = vld [vmem:[%s6409 + $0x18] sm:$0xff]
    %v6414 = vld [vmem:[%s6409 + $0x20] sm:$0xff]
    %v6415 = vld [vmem:[%s6409 + $0x28] sm:$0xff]
    %v6416 = vld [vmem:[%s6409 + $0x30] sm:$0xff]
    %v6417 = vld [vmem:[%s6409 + $0x38] sm:$0xff]
    %v6418 = vld [vmem:[%s6409 + $0x40] sm:$0xff]
    %v6419 = vld [vmem:[%s6409 + $0x48] sm:$0xff]
    %v6420 = vld [vmem:[%s6409 + $0x50] sm:$0xff]
    %v6421 = vld [vmem:[%s6409 + $0x58] sm:$0xff]
    %v6422 = vld [vmem:[%s6409 + $0x60] sm:$0xff]
    %v6423 = vld [vmem:[%s6409 + $0x68] sm:$0xff]
    %v6424 = vld [vmem:[%s6409 + $0x70] sm:$0xff]
    %v6425 = vld [vmem:[%s6409 + $0x78] sm:$0xff]
    %v6426 = vld [vmem:[%s6409 + $0x80] sm:$0xff]
    %v6427 = vld [vmem:[%s6409 + $0x88] sm:$0xff]
    %v6428 = vld [vmem:[%s6409 + $0x90] sm:$0xff]
    %v6429 = vld [vmem:[%s6409 + $0x98] sm:$0xff]
    %v6430 = vld [vmem:[%s6409 + $0xa0] sm:$0xff]
    %v6431 = vld [vmem:[%s6409 + $0xa8] sm:$0xff]
    %v6432 = vld [vmem:[%s6409 + $0xb0] sm:$0xff]
    %v6433 = vld [vmem:[%s6409 + $0xb8] sm:$0xff]
    %v6434 = vld [vmem:[%s6409 + $0xc0] sm:$0xff]
    %v6435 = vld [vmem:[%s6409 + $0xc8] sm:$0xff]
    %v6436 = vld [vmem:[%s6409 + $0xd0] sm:$0xff]
    %v6437 = vld [vmem:[%s6409 + $0xd8] sm:$0xff]
    %v6438 = vld [vmem:[%s6409 + $0xe0] sm:$0xff]
    %v6439 = vld [vmem:[%s6409 + $0xe8] sm:$0xff]
    %v6440 = vld [vmem:[%s6409 + $0xf0] sm:$0xff]
    %v6441 = vld [vmem:[%s6409 + $0xf8] sm:$0xff]
    %v6442 = vld [vmem:[%s6409 + $0x100] sm:$0xff]
    %v6443 = vld [vmem:[%s6409 + $0x108] sm:$0xff]
    %v6444 = vld [vmem:[%s6409 + $0x110] sm:$0xff]
    %v6445 = vld [vmem:[%s6409 + $0x118] sm:$0xff]
    %v6446 = vld [vmem:[%s6409 + $0x120] sm:$0xff]
    %v6447 = vld [vmem:[%s6409 + $0x128] sm:$0xff]
    %v6448 = vld [vmem:[%s6409 + $0x130] sm:$0xff]
    %v6449 = vld [vmem:[%s6409 + $0x138] sm:$0xff]
    %v6450 = vld [vmem:[%s6409 + $0x140] sm:$0xff]
    %v6451 = vld [vmem:[%s6409 + $0x148] sm:$0xff]
    %v6452 = vld [vmem:[%s6409 + $0x150] sm:$0xff]
    %v6453 = vld [vmem:[%s6409 + $0x158] sm:$0xff]
    %v6454 = vld [vmem:[%s6409 + $0x160] sm:$0xff]
    %v6455 = vld [vmem:[%s6409 + $0x168] sm:$0xff]
    %v6456 = vld [vmem:[%s6409 + $0x170] sm:$0xff]
    %v6457 = vld [vmem:[%s6409 + $0x178] sm:$0xff]
    %v6458 = vrot.slane %v4343, 5
    %v6459 = vrot.slane %v4344, 4
    %v6460 = vsel %vm1018, %v6459, %v6458
    %v6461 = vpack.c.b16 %v6460, %v6460
    %v6511 = vunpack.c.l.b16 %v6410
    %v6512 = vunpack.c.h.b16 %v6410
    %v6513 = vunpack.c.l.b16 %v6411
    %v6514 = vunpack.c.h.b16 %v6411
    %v6515 = vunpack.c.l.b16 %v6412
    %v6516 = vunpack.c.h.b16 %v6412
    %v6517 = vunpack.c.l.b16 %v6413
    %v6518 = vunpack.c.h.b16 %v6413
    %v6519 = vunpack.c.l.b16 %v6414
    %v6520 = vunpack.c.h.b16 %v6414
    %v6521 = vunpack.c.l.b16 %v6415
    %v6522 = vunpack.c.h.b16 %v6415
    %v6523 = vunpack.c.l.b16 %v6416
    %v6524 = vunpack.c.h.b16 %v6416
    %v6525 = vunpack.c.l.b16 %v6417
    %v6526 = vunpack.c.h.b16 %v6417
    %v6527 = vunpack.c.l.b16 %v6418
    %v6528 = vunpack.c.h.b16 %v6418
    %v6529 = vunpack.c.l.b16 %v6419
    %v6530 = vunpack.c.h.b16 %v6419
    %v6531 = vunpack.c.l.b16 %v6420
    %v6532 = vunpack.c.h.b16 %v6420
    %v6533 = vunpack.c.l.b16 %v6421
    %v6534 = vunpack.c.h.b16 %v6421
    %v6535 = vunpack.c.l.b16 %v6422
    %v6536 = vunpack.c.h.b16 %v6422
    %v6537 = vunpack.c.l.b16 %v6423
    %v6538 = vunpack.c.h.b16 %v6423
    %v6539 = vunpack.c.l.b16 %v6424
    %v6540 = vunpack.c.h.b16 %v6424
    %v6541 = vunpack.c.l.b16 %v6425
    %v6542 = vunpack.c.h.b16 %v6425
    %v6543 = vunpack.c.l.b16 %v6426
    %v6544 = vunpack.c.h.b16 %v6426
    %v6545 = vunpack.c.l.b16 %v6427
    %v6546 = vunpack.c.h.b16 %v6427
    %v6547 = vunpack.c.l.b16 %v6428
    %v6548 = vunpack.c.h.b16 %v6428
    %v6549 = vunpack.c.l.b16 %v6429
    %v6550 = vunpack.c.h.b16 %v6429
    %v6551 = vunpack.c.l.b16 %v6430
    %v6552 = vunpack.c.h.b16 %v6430
    %v6553 = vunpack.c.l.b16 %v6431
    %v6554 = vunpack.c.h.b16 %v6431
    %v6555 = vunpack.c.l.b16 %v6432
    %v6556 = vunpack.c.h.b16 %v6432
    %v6557 = vunpack.c.l.b16 %v6433
    %v6558 = vunpack.c.h.b16 %v6433
    %v6559 = vunpack.c.l.b16 %v6434
    %v6560 = vunpack.c.h.b16 %v6434
    %v6561 = vunpack.c.l.b16 %v6435
    %v6562 = vunpack.c.h.b16 %v6435
    %v6563 = vunpack.c.l.b16 %v6436
    %v6564 = vunpack.c.h.b16 %v6436
    %v6565 = vunpack.c.l.b16 %v6437
    %v6566 = vunpack.c.h.b16 %v6437
    %v6567 = vunpack.c.l.b16 %v6438
    %v6568 = vunpack.c.h.b16 %v6438
    %v6569 = vunpack.c.l.b16 %v6439
    %v6570 = vunpack.c.h.b16 %v6439
    %v6571 = vunpack.c.l.b16 %v6440
    %v6572 = vunpack.c.h.b16 %v6440
    %v6573 = vunpack.c.l.b16 %v6441
    %v6574 = vunpack.c.h.b16 %v6441
    %v6575 = vunpack.c.l.b16 %v6442
    %v6576 = vunpack.c.h.b16 %v6442
    %v6577 = vunpack.c.l.b16 %v6443
    %v6578 = vunpack.c.h.b16 %v6443
    %v6579 = vunpack.c.l.b16 %v6444
    %v6580 = vunpack.c.h.b16 %v6444
    %v6581 = vunpack.c.l.b16 %v6445
    %v6582 = vunpack.c.h.b16 %v6445
    %v6583 = vunpack.c.l.b16 %v6446
    %v6584 = vunpack.c.h.b16 %v6446
    %v6585 = vunpack.c.l.b16 %v6447
    %v6586 = vunpack.c.h.b16 %v6447
    %v6587 = vunpack.c.l.b16 %v6448
    %v6588 = vunpack.c.h.b16 %v6448
    %v6589 = vunpack.c.l.b16 %v6449
    %v6590 = vunpack.c.h.b16 %v6449
    %v6591 = vunpack.c.l.b16 %v6450
    %v6592 = vunpack.c.h.b16 %v6450
    %v6593 = vunpack.c.l.b16 %v6451
    %v6594 = vunpack.c.h.b16 %v6451
    %v6595 = vunpack.c.l.b16 %v6452
    %v6596 = vunpack.c.h.b16 %v6452
    %v6597 = vunpack.c.l.b16 %v6453
    %v6598 = vunpack.c.h.b16 %v6453
    %v6599 = vunpack.c.l.b16 %v6454
    %v6600 = vunpack.c.h.b16 %v6454
    %v6601 = vunpack.c.l.b16 %v6455
    %v6602 = vunpack.c.h.b16 %v6455
    %v6603 = vunpack.c.l.b16 %v6456
    %v6604 = vunpack.c.h.b16 %v6456
    %v6605 = vunpack.c.l.b16 %v6457
    %v6606 = vunpack.c.h.b16 %v6457
    %v6607 = vpack.c.b16 %v6517, %v6511
    %v6608 = vpack.c.b16 %v6518, %v6512
    %v6609 = vpack.c.b16 %v6519, %v6513
    %v6610 = vpack.c.b16 %v6520, %v6514
    %v6611 = vpack.c.b16 %v6521, %v6515
    %v6612 = vpack.c.b16 %v6522, %v6516
    %v6613 = vpack.c.b16 %v6529, %v6523
    %v6614 = vpack.c.b16 %v6530, %v6524
    %v6615 = vpack.c.b16 %v6531, %v6525
    %v6616 = vpack.c.b16 %v6532, %v6526
    %v6617 = vpack.c.b16 %v6533, %v6527
    %v6618 = vpack.c.b16 %v6534, %v6528
    %v6619 = vpack.c.b16 %v6541, %v6535
    %v6620 = vpack.c.b16 %v6542, %v6536
    %v6621 = vpack.c.b16 %v6543, %v6537
    %v6622 = vpack.c.b16 %v6544, %v6538
    %v6623 = vpack.c.b16 %v6545, %v6539
    %v6624 = vpack.c.b16 %v6546, %v6540
    %v6625 = vpack.c.b16 %v6553, %v6547
    %v6626 = vpack.c.b16 %v6554, %v6548
    %v6627 = vpack.c.b16 %v6555, %v6549
    %v6628 = vpack.c.b16 %v6556, %v6550
    %v6629 = vpack.c.b16 %v6557, %v6551
    %v6630 = vpack.c.b16 %v6558, %v6552
    %v6631 = vpack.c.b16 %v6565, %v6559
    %v6632 = vpack.c.b16 %v6566, %v6560
    %v6633 = vpack.c.b16 %v6567, %v6561
    %v6634 = vpack.c.b16 %v6568, %v6562
    %v6635 = vpack.c.b16 %v6569, %v6563
    %v6636 = vpack.c.b16 %v6570, %v6564
    %v6637 = vpack.c.b16 %v6577, %v6571
    %v6638 = vpack.c.b16 %v6578, %v6572
    %v6639 = vpack.c.b16 %v6579, %v6573
    %v6640 = vpack.c.b16 %v6580, %v6574
    %v6641 = vpack.c.b16 %v6581, %v6575
    %v6642 = vpack.c.b16 %v6582, %v6576
    %v6643 = vpack.c.b16 %v6589, %v6583
    %v6644 = vpack.c.b16 %v6590, %v6584
    %v6645 = vpack.c.b16 %v6591, %v6585
    %v6646 = vpack.c.b16 %v6592, %v6586
    %v6647 = vpack.c.b16 %v6593, %v6587
    %v6648 = vpack.c.b16 %v6594, %v6588
    %v6649 = vpack.c.b16 %v6601, %v6595
    %v6650 = vpack.c.b16 %v6602, %v6596
    %v6651 = vpack.c.b16 %v6603, %v6597
    %v6652 = vpack.c.b16 %v6604, %v6598
    %v6653 = vpack.c.b16 %v6605, %v6599
    %v6654 = vpack.c.b16 %v6606, %v6600
    %6703 = vmatprep.subr.bf16.mxu0 %v6650
    %6704 = vmatpush1.bf16.msra.mxu0 %v6649
    %6705 = vmatprep.subr.bf16.mxu0 %v6644
    %6706 = vmatpush1.bf16.msra.mxu0 %v6643
    %6707 = vmatprep.subr.bf16.mxu0 %v6638
    %6708 = vmatpush1.bf16.msra.mxu0 %v6637
    %6709 = vmatprep.subr.bf16.mxu0 %v6632
    %6710 = vmatpush1.bf16.msra.mxu0 %v6631
    %6711 = vmatprep.subr.bf16.mxu0 %v6626
    %6712 = vmatpush1.bf16.msra.mxu0 %v6625
    %6713 = vmatprep.subr.bf16.mxu0 %v6620
    %6714 = vmatpush1.bf16.msra.mxu0 %v6619
    %6715 = vmatprep.subr.bf16.mxu0 %v6614
    %6716 = vmatpush1.bf16.msra.mxu0 %v6613
    %6717 = vmatprep.subr.bf16.mxu0 %v6608
    %6718 = vmatpush1.bf16.msra.mxu0 %v6607
    %6719 = vmatprep.subr.bf16.mxu0 0
    %6720 = vmatpush2.bf16.msra.mxu0 0
    %6721 = vmatprep.subr.bf16.mxu0 0
    %6722 = vmatpush2.bf16.msra.mxu0 0
    %6723 = vmatprep.subr.bf16.mxu0 0
    %6724 = vmatpush2.bf16.msra.mxu0 0
    %6725 = vmatprep.subr.bf16.mxu0 0
    %6726 = vmatpush2.bf16.msra.mxu0 0
    %6727 = vmatprep.subr.bf16.mxu0 0
    %6728 = vmatpush2.bf16.msra.mxu0 0
    %6729 = vmatprep.subr.bf16.mxu0 0
    %6730 = vmatpush2.bf16.msra.mxu0 0
    %6731 = vmatprep.subr.bf16.mxu0 0
    %6732 = vmatpush2.bf16.msra.mxu0 0
    %6733 = vmatprep.subr.bf16.mxu0 0
    %6734 = vmatpush2.bf16.msra.mxu0 0
    %6735 = vmatprep.mubr.bf16.mxu0 0
    %6736 = vmatmul.mubr.bf16.gmra.mxu0 %v6461
    %v6737 = vpop.f32.mrf.mxu0
    %v6738 = vadd.f32 0.0, %v6737
    %v6739 = vpop.f32.mrf.mxu0
    %v6740 = vadd.f32 0.0, %v6739
    %v6741 = vpop.f32.mrf.mxu0
    %v6742 = vpop.f32.mrf.mxu0
    %6743 = vdwg.mxu0
    %6744 = vmatprep.subr.bf16.mxu0 %v6652
    %6745 = vmatpush1.bf16.msra.mxu0 %v6651
    %6746 = vmatprep.subr.bf16.mxu0 %v6646
    %6747 = vmatpush1.bf16.msra.mxu0 %v6645
    %6748 = vmatprep.subr.bf16.mxu0 %v6640
    %6749 = vmatpush1.bf16.msra.mxu0 %v6639
    %6750 = vmatprep.subr.bf16.mxu0 %v6634
    %6751 = vmatpush1.bf16.msra.mxu0 %v6633
    %6752 = vmatprep.subr.bf16.mxu0 %v6628
    %6753 = vmatpush1.bf16.msra.mxu0 %v6627
    %6754 = vmatprep.subr.bf16.mxu0 %v6622
    %6755 = vmatpush1.bf16.msra.mxu0 %v6621
    %6756 = vmatprep.subr.bf16.mxu0 %v6616
    %6757 = vmatpush1.bf16.msra.mxu0 %v6615
    %6758 = vmatprep.subr.bf16.mxu0 %v6610
    %6759 = vmatpush1.bf16.msra.mxu0 %v6609
    %6760 = vmatprep.subr.bf16.mxu0 0
    %6761 = vmatpush2.bf16.msra.mxu0 0
    %6762 = vmatprep.subr.bf16.mxu0 0
    %6763 = vmatpush2.bf16.msra.mxu0 0
    %6764 = vmatprep.subr.bf16.mxu0 0
    %6765 = vmatpush2.bf16.msra.mxu0 0
    %6766 = vmatprep.subr.bf16.mxu0 0
    %6767 = vmatpush2.bf16.msra.mxu0 0
    %6768 = vmatprep.subr.bf16.mxu0 0
    %6769 = vmatpush2.bf16.msra.mxu0 0
    %6770 = vmatprep.subr.bf16.mxu0 0
    %6771 = vmatpush2.bf16.msra.mxu0 0
    %6772 = vmatprep.subr.bf16.mxu0 0
    %6773 = vmatpush2.bf16.msra.mxu0 0
    %6774 = vmatprep.subr.bf16.mxu0 0
    %6775 = vmatpush2.bf16.msra.mxu0 0
    %6776 = vmatprep.mubr.bf16.mxu0 0
    %6777 = vmatmul.mubr.bf16.gmra.mxu0 %v6461
    %v6778 = vpop.f32.mrf.mxu0
    %v6779 = vadd.f32 0.0, %v6778
    %v6780 = vpop.f32.mrf.mxu0
    %v6781 = vadd.f32 0.0, %v6780
    %v6782 = vpop.f32.mrf.mxu0
    %v6783 = vpop.f32.mrf.mxu0
    %6784 = vdwg.mxu0
    %6785 = vmatprep.subr.bf16.mxu0 %v6654
    %6786 = vmatpush1.bf16.msra.mxu0 %v6653
    %6787 = vmatprep.subr.bf16.mxu0 %v6648
    %6788 = vmatpush1.bf16.msra.mxu0 %v6647
    %6789 = vmatprep.subr.bf16.mxu0 %v6642
    %6790 = vmatpush1.bf16.msra.mxu0 %v6641
    %6791 = vmatprep.subr.bf16.mxu0 %v6636
    %6792 = vmatpush1.bf16.msra.mxu0 %v6635
    %6793 = vmatprep.subr.bf16.mxu0 %v6630
    %6794 = vmatpush1.bf16.msra.mxu0 %v6629
    %6795 = vmatprep.subr.bf16.mxu0 %v6624
    %6796 = vmatpush1.bf16.msra.mxu0 %v6623
    %6797 = vmatprep.subr.bf16.mxu0 %v6618
    %6798 = vmatpush1.bf16.msra.mxu0 %v6617
    %6799 = vmatprep.subr.bf16.mxu0 %v6612
    %6800 = vmatpush1.bf16.msra.mxu0 %v6611
    %6801 = vmatprep.subr.bf16.mxu0 0
    %6802 = vmatpush2.bf16.msra.mxu0 0
    %6803 = vmatprep.subr.bf16.mxu0 0
    %6804 = vmatpush2.bf16.msra.mxu0 0
    %6805 = vmatprep.subr.bf16.mxu0 0
    %6806 = vmatpush2.bf16.msra.mxu0 0
    %6807 = vmatprep.subr.bf16.mxu0 0
    %6808 = vmatpush2.bf16.msra.mxu0 0
    %6809 = vmatprep.subr.bf16.mxu0 0
    %6810 = vmatpush2.bf16.msra.mxu0 0
    %6811 = vmatprep.subr.bf16.mxu0 0
    %6812 = vmatpush2.bf16.msra.mxu0 0
    %6813 = vmatprep.subr.bf16.mxu0 0
    %6814 = vmatpush2.bf16.msra.mxu0 0
    %6815 = vmatprep.subr.bf16.mxu0 0
    %6816 = vmatpush2.bf16.msra.mxu0 0
    %6817 = vmatprep.mubr.bf16.mxu0 0
    %6818 = vmatmul.mubr.bf16.gmra.mxu0 %v6461
    %v6819 = vpop.f32.mrf.mxu0
    %v6820 = vadd.f32 0.0, %v6819
    %v6821 = vpop.f32.mrf.mxu0
    %v6822 = vadd.f32 0.0, %v6821
    %v6823 = vpop.f32.mrf.mxu0
    %v6824 = vpop.f32.mrf.mxu0
    %6825 = vdwg.mxu0
    %v6826 = vadd.f32 %v6403, %v6738
    %v6827 = vadd.f32 %v6404, %v6740
    %v6828 = vadd.f32 %v6405, %v6779
    %v6829 = vadd.f32 %v6406, %v6781
    %v6830 = vadd.f32 %v6407, %v6820
    %v6831 = vadd.f32 %v6408, %v6822
    %s6832 = scalar_lea.vmem [#allocation8], 5376
    %v6833 = vld [vmem:[%s6832] sm:$0xff]
    %v6834 = vld [vmem:[%s6832 + $0x8] sm:$0xff]
    %v6835 = vld [vmem:[%s6832 + $0x10] sm:$0xff]
    %v6836 = vld [vmem:[%s6832 + $0x18] sm:$0xff]
    %v6837 = vld [vmem:[%s6832 + $0x20] sm:$0xff]
    %v6838 = vld [vmem:[%s6832 + $0x28] sm:$0xff]
    %v6839 = vld [vmem:[%s6832 + $0x30] sm:$0xff]
    %v6840 = vld [vmem:[%s6832 + $0x38] sm:$0xff]
    %v6841 = vld [vmem:[%s6832 + $0x40] sm:$0xff]
    %v6842 = vld [vmem:[%s6832 + $0x48] sm:$0xff]
    %v6843 = vld [vmem:[%s6832 + $0x50] sm:$0xff]
    %v6844 = vld [vmem:[%s6832 + $0x58] sm:$0xff]
    %v6845 = vld [vmem:[%s6832 + $0x60] sm:$0xff]
    %v6846 = vld [vmem:[%s6832 + $0x68] sm:$0xff]
    %v6847 = vld [vmem:[%s6832 + $0x70] sm:$0xff]
    %v6848 = vld [vmem:[%s6832 + $0x78] sm:$0xff]
    %v6849 = vld [vmem:[%s6832 + $0x80] sm:$0xff]
    %v6850 = vld [vmem:[%s6832 + $0x88] sm:$0xff]
    %v6851 = vld [vmem:[%s6832 + $0x90] sm:$0xff]
    %v6852 = vld [vmem:[%s6832 + $0x98] sm:$0xff]
    %v6853 = vld [vmem:[%s6832 + $0xa0] sm:$0xff]
    %v6854 = vld [vmem:[%s6832 + $0xa8] sm:$0xff]
    %v6855 = vld [vmem:[%s6832 + $0xb0] sm:$0xff]
    %v6856 = vld [vmem:[%s6832 + $0xb8] sm:$0xff]
    %v6857 = vld [vmem:[%s6832 + $0xc0] sm:$0xff]
    %v6858 = vld [vmem:[%s6832 + $0xc8] sm:$0xff]
    %v6859 = vld [vmem:[%s6832 + $0xd0] sm:$0xff]
    %v6860 = vld [vmem:[%s6832 + $0xd8] sm:$0xff]
    %v6861 = vld [vmem:[%s6832 + $0xe0] sm:$0xff]
    %v6862 = vld [vmem:[%s6832 + $0xe8] sm:$0xff]
    %v6863 = vld [vmem:[%s6832 + $0xf0] sm:$0xff]
    %v6864 = vld [vmem:[%s6832 + $0xf8] sm:$0xff]
    %v6865 = vld [vmem:[%s6832 + $0x100] sm:$0xff]
    %v6866 = vld [vmem:[%s6832 + $0x108] sm:$0xff]
    %v6867 = vld [vmem:[%s6832 + $0x110] sm:$0xff]
    %v6868 = vld [vmem:[%s6832 + $0x118] sm:$0xff]
    %v6869 = vld [vmem:[%s6832 + $0x120] sm:$0xff]
    %v6870 = vld [vmem:[%s6832 + $0x128] sm:$0xff]
    %v6871 = vld [vmem:[%s6832 + $0x130] sm:$0xff]
    %v6872 = vld [vmem:[%s6832 + $0x138] sm:$0xff]
    %v6873 = vld [vmem:[%s6832 + $0x140] sm:$0xff]
    %v6874 = vld [vmem:[%s6832 + $0x148] sm:$0xff]
    %v6875 = vld [vmem:[%s6832 + $0x150] sm:$0xff]
    %v6876 = vld [vmem:[%s6832 + $0x158] sm:$0xff]
    %v6877 = vld [vmem:[%s6832 + $0x160] sm:$0xff]
    %v6878 = vld [vmem:[%s6832 + $0x168] sm:$0xff]
    %v6879 = vld [vmem:[%s6832 + $0x170] sm:$0xff]
    %v6880 = vld [vmem:[%s6832 + $0x178] sm:$0xff]
    %v6881 = vrot.slane %v4343, 6
    %v6882 = vrot.slane %v4344, 5
    %v6883 = vsel %vm1018, %v6882, %v6881
    %v6884 = vpack.c.b16 %v6883, %v6883
    %v6934 = vunpack.c.l.b16 %v6833
    %v6935 = vunpack.c.h.b16 %v6833
    %v6936 = vunpack.c.l.b16 %v6834
    %v6937 = vunpack.c.h.b16 %v6834
    %v6938 = vunpack.c.l.b16 %v6835
    %v6939 = vunpack.c.h.b16 %v6835
    %v6940 = vunpack.c.l.b16 %v6836
    %v6941 = vunpack.c.h.b16 %v6836
    %v6942 = vunpack.c.l.b16 %v6837
    %v6943 = vunpack.c.h.b16 %v6837
    %v6944 = vunpack.c.l.b16 %v6838
    %v6945 = vunpack.c.h.b16 %v6838
    %v6946 = vunpack.c.l.b16 %v6839
    %v6947 = vunpack.c.h.b16 %v6839
    %v6948 = vunpack.c.l.b16 %v6840
    %v6949 = vunpack.c.h.b16 %v6840
    %v6950 = vunpack.c.l.b16 %v6841
    %v6951 = vunpack.c.h.b16 %v6841
    %v6952 = vunpack.c.l.b16 %v6842
    %v6953 = vunpack.c.h.b16 %v6842
    %v6954 = vunpack.c.l.b16 %v6843
    %v6955 = vunpack.c.h.b16 %v6843
    %v6956 = vunpack.c.l.b16 %v6844
    %v6957 = vunpack.c.h.b16 %v6844
    %v6958 = vunpack.c.l.b16 %v6845
    %v6959 = vunpack.c.h.b16 %v6845
    %v6960 = vunpack.c.l.b16 %v6846
    %v6961 = vunpack.c.h.b16 %v6846
    %v6962 = vunpack.c.l.b16 %v6847
    %v6963 = vunpack.c.h.b16 %v6847
    %v6964 = vunpack.c.l.b16 %v6848
    %v6965 = vunpack.c.h.b16 %v6848
    %v6966 = vunpack.c.l.b16 %v6849
    %v6967 = vunpack.c.h.b16 %v6849
    %v6968 = vunpack.c.l.b16 %v6850
    %v6969 = vunpack.c.h.b16 %v6850
    %v6970 = vunpack.c.l.b16 %v6851
    %v6971 = vunpack.c.h.b16 %v6851
    %v6972 = vunpack.c.l.b16 %v6852
    %v6973 = vunpack.c.h.b16 %v6852
    %v6974 = vunpack.c.l.b16 %v6853
    %v6975 = vunpack.c.h.b16 %v6853
    %v6976 = vunpack.c.l.b16 %v6854
    %v6977 = vunpack.c.h.b16 %v6854
    %v6978 = vunpack.c.l.b16 %v6855
    %v6979 = vunpack.c.h.b16 %v6855
    %v6980 = vunpack.c.l.b16 %v6856
    %v6981 = vunpack.c.h.b16 %v6856
    %v6982 = vunpack.c.l.b16 %v6857
    %v6983 = vunpack.c.h.b16 %v6857
    %v6984 = vunpack.c.l.b16 %v6858
    %v6985 = vunpack.c.h.b16 %v6858
    %v6986 = vunpack.c.l.b16 %v6859
    %v6987 = vunpack.c.h.b16 %v6859
    %v6988 = vunpack.c.l.b16 %v6860
    %v6989 = vunpack.c.h.b16 %v6860
    %v6990 = vunpack.c.l.b16 %v6861
    %v6991 = vunpack.c.h.b16 %v6861
    %v6992 = vunpack.c.l.b16 %v6862
    %v6993 = vunpack.c.h.b16 %v6862
    %v6994 = vunpack.c.l.b16 %v6863
    %v6995 = vunpack.c.h.b16 %v6863
    %v6996 = vunpack.c.l.b16 %v6864
    %v6997 = vunpack.c.h.b16 %v6864
    %v6998 = vunpack.c.l.b16 %v6865
    %v6999 = vunpack.c.h.b16 %v6865
    %v7000 = vunpack.c.l.b16 %v6866
    %v7001 = vunpack.c.h.b16 %v6866
    %v7002 = vunpack.c.l.b16 %v6867
    %v7003 = vunpack.c.h.b16 %v6867
    %v7004 = vunpack.c.l.b16 %v6868
    %v7005 = vunpack.c.h.b16 %v6868
    %v7006 = vunpack.c.l.b16 %v6869
    %v7007 = vunpack.c.h.b16 %v6869
    %v7008 = vunpack.c.l.b16 %v6870
    %v7009 = vunpack.c.h.b16 %v6870
    %v7010 = vunpack.c.l.b16 %v6871
    %v7011 = vunpack.c.h.b16 %v6871
    %v7012 = vunpack.c.l.b16 %v6872
    %v7013 = vunpack.c.h.b16 %v6872
    %v7014 = vunpack.c.l.b16 %v6873
    %v7015 = vunpack.c.h.b16 %v6873
    %v7016 = vunpack.c.l.b16 %v6874
    %v7017 = vunpack.c.h.b16 %v6874
    %v7018 = vunpack.c.l.b16 %v6875
    %v7019 = vunpack.c.h.b16 %v6875
    %v7020 = vunpack.c.l.b16 %v6876
    %v7021 = vunpack.c.h.b16 %v6876
    %v7022 = vunpack.c.l.b16 %v6877
    %v7023 = vunpack.c.h.b16 %v6877
    %v7024 = vunpack.c.l.b16 %v6878
    %v7025 = vunpack.c.h.b16 %v6878
    %v7026 = vunpack.c.l.b16 %v6879
    %v7027 = vunpack.c.h.b16 %v6879
    %v7028 = vunpack.c.l.b16 %v6880
    %v7029 = vunpack.c.h.b16 %v6880
    %v7030 = vpack.c.b16 %v6940, %v6934
    %v7031 = vpack.c.b16 %v6941, %v6935
    %v7032 = vpack.c.b16 %v6942, %v6936
    %v7033 = vpack.c.b16 %v6943, %v6937
    %v7034 = vpack.c.b16 %v6944, %v6938
    %v7035 = vpack.c.b16 %v6945, %v6939
    %v7036 = vpack.c.b16 %v6952, %v6946
    %v7037 = vpack.c.b16 %v6953, %v6947
    %v7038 = vpack.c.b16 %v6954, %v6948
    %v7039 = vpack.c.b16 %v6955, %v6949
    %v7040 = vpack.c.b16 %v6956, %v6950
    %v7041 = vpack.c.b16 %v6957, %v6951
    %v7042 = vpack.c.b16 %v6964, %v6958
    %v7043 = vpack.c.b16 %v6965, %v6959
    %v7044 = vpack.c.b16 %v6966, %v6960
    %v7045 = vpack.c.b16 %v6967, %v6961
    %v7046 = vpack.c.b16 %v6968, %v6962
    %v7047 = vpack.c.b16 %v6969, %v6963
    %v7048 = vpack.c.b16 %v6976, %v6970
    %v7049 = vpack.c.b16 %v6977, %v6971
    %v7050 = vpack.c.b16 %v6978, %v6972
    %v7051 = vpack.c.b16 %v6979, %v6973
    %v7052 = vpack.c.b16 %v6980, %v6974
    %v7053 = vpack.c.b16 %v6981, %v6975
    %v7054 = vpack.c.b16 %v6988, %v6982
    %v7055 = vpack.c.b16 %v6989, %v6983
    %v7056 = vpack.c.b16 %v6990, %v6984
    %v7057 = vpack.c.b16 %v6991, %v6985
    %v7058 = vpack.c.b16 %v6992, %v6986
    %v7059 = vpack.c.b16 %v6993, %v6987
    %v7060 = vpack.c.b16 %v7000, %v6994
    %v7061 = vpack.c.b16 %v7001, %v6995
    %v7062 = vpack.c.b16 %v7002, %v6996
    %v7063 = vpack.c.b16 %v7003, %v6997
    %v7064 = vpack.c.b16 %v7004, %v6998
    %v7065 = vpack.c.b16 %v7005, %v6999
    %v7066 = vpack.c.b16 %v7012, %v7006
    %v7067 = vpack.c.b16 %v7013, %v7007
    %v7068 = vpack.c.b16 %v7014, %v7008
    %v7069 = vpack.c.b16 %v7015, %v7009
    %v7070 = vpack.c.b16 %v7016, %v7010
    %v7071 = vpack.c.b16 %v7017, %v7011
    %v7072 = vpack.c.b16 %v7024, %v7018
    %v7073 = vpack.c.b16 %v7025, %v7019
    %v7074 = vpack.c.b16 %v7026, %v7020
    %v7075 = vpack.c.b16 %v7027, %v7021
    %v7076 = vpack.c.b16 %v7028, %v7022
    %v7077 = vpack.c.b16 %v7029, %v7023
    %7126 = vmatprep.subr.bf16.mxu0 %v7073
    %7127 = vmatpush1.bf16.msra.mxu0 %v7072
    %7128 = vmatprep.subr.bf16.mxu0 %v7067
    %7129 = vmatpush1.bf16.msra.mxu0 %v7066
    %7130 = vmatprep.subr.bf16.mxu0 %v7061
    %7131 = vmatpush1.bf16.msra.mxu0 %v7060
    %7132 = vmatprep.subr.bf16.mxu0 %v7055
    %7133 = vmatpush1.bf16.msra.mxu0 %v7054
    %7134 = vmatprep.subr.bf16.mxu0 %v7049
    %7135 = vmatpush1.bf16.msra.mxu0 %v7048
    %7136 = vmatprep.subr.bf16.mxu0 %v7043
    %7137 = vmatpush1.bf16.msra.mxu0 %v7042
    %7138 = vmatprep.subr.bf16.mxu0 %v7037
    %7139 = vmatpush1.bf16.msra.mxu0 %v7036
    %7140 = vmatprep.subr.bf16.mxu0 %v7031
    %7141 = vmatpush1.bf16.msra.mxu0 %v7030
    %7142 = vmatprep.subr.bf16.mxu0 0
    %7143 = vmatpush2.bf16.msra.mxu0 0
    %7144 = vmatprep.subr.bf16.mxu0 0
    %7145 = vmatpush2.bf16.msra.mxu0 0
    %7146 = vmatprep.subr.bf16.mxu0 0
    %7147 = vmatpush2.bf16.msra.mxu0 0
    %7148 = vmatprep.subr.bf16.mxu0 0
    %7149 = vmatpush2.bf16.msra.mxu0 0
    %7150 = vmatprep.subr.bf16.mxu0 0
    %7151 = vmatpush2.bf16.msra.mxu0 0
    %7152 = vmatprep.subr.bf16.mxu0 0
    %7153 = vmatpush2.bf16.msra.mxu0 0
    %7154 = vmatprep.subr.bf16.mxu0 0
    %7155 = vmatpush2.bf16.msra.mxu0 0
    %7156 = vmatprep.subr.bf16.mxu0 0
    %7157 = vmatpush2.bf16.msra.mxu0 0
    %7158 = vmatprep.mubr.bf16.mxu0 0
    %7159 = vmatmul.mubr.bf16.gmra.mxu0 %v6884
    %v7160 = vpop.f32.mrf.mxu0
    %v7161 = vadd.f32 0.0, %v7160
    %v7162 = vpop.f32.mrf.mxu0
    %v7163 = vadd.f32 0.0, %v7162
    %v7164 = vpop.f32.mrf.mxu0
    %v7165 = vpop.f32.mrf.mxu0
    %7166 = vdwg.mxu0
    %7167 = vmatprep.subr.bf16.mxu0 %v7075
    %7168 = vmatpush1.bf16.msra.mxu0 %v7074
    %7169 = vmatprep.subr.bf16.mxu0 %v7069
    %7170 = vmatpush1.bf16.msra.mxu0 %v7068
    %7171 = vmatprep.subr.bf16.mxu0 %v7063
    %7172 = vmatpush1.bf16.msra.mxu0 %v7062
    %7173 = vmatprep.subr.bf16.mxu0 %v7057
    %7174 = vmatpush1.bf16.msra.mxu0 %v7056
    %7175 = vmatprep.subr.bf16.mxu0 %v7051
    %7176 = vmatpush1.bf16.msra.mxu0 %v7050
    %7177 = vmatprep.subr.bf16.mxu0 %v7045
    %7178 = vmatpush1.bf16.msra.mxu0 %v7044
    %7179 = vmatprep.subr.bf16.mxu0 %v7039
    %7180 = vmatpush1.bf16.msra.mxu0 %v7038
    %7181 = vmatprep.subr.bf16.mxu0 %v7033
    %7182 = vmatpush1.bf16.msra.mxu0 %v7032
    %7183 = vmatprep.subr.bf16.mxu0 0
    %7184 = vmatpush2.bf16.msra.mxu0 0
    %7185 = vmatprep.subr.bf16.mxu0 0
    %7186 = vmatpush2.bf16.msra.mxu0 0
    %7187 = vmatprep.subr.bf16.mxu0 0
    %7188 = vmatpush2.bf16.msra.mxu0 0
    %7189 = vmatprep.subr.bf16.mxu0 0
    %7190 = vmatpush2.bf16.msra.mxu0 0
    %7191 = vmatprep.subr.bf16.mxu0 0
    %7192 = vmatpush2.bf16.msra.mxu0 0
    %7193 = vmatprep.subr.bf16.mxu0 0
    %7194 = vmatpush2.bf16.msra.mxu0 0
    %7195 = vmatprep.subr.bf16.mxu0 0
    %7196 = vmatpush2.bf16.msra.mxu0 0
    %7197 = vmatprep.subr.bf16.mxu0 0
    %7198 = vmatpush2.bf16.msra.mxu0 0
    %7199 = vmatprep.mubr.bf16.mxu0 0
    %7200 = vmatmul.mubr.bf16.gmra.mxu0 %v6884
    %v7201 = vpop.f32.mrf.mxu0
    %v7202 = vadd.f32 0.0, %v7201
    %v7203 = vpop.f32.mrf.mxu0
    %v7204 = vadd.f32 0.0, %v7203
    %v7205 = vpop.f32.mrf.mxu0
    %v7206 = vpop.f32.mrf.mxu0
    %7207 = vdwg.mxu0
    %7208 = vmatprep.subr.bf16.mxu0 %v7077
    %7209 = vmatpush1.bf16.msra.mxu0 %v7076
    %7210 = vmatprep.subr.bf16.mxu0 %v7071
    %7211 = vmatpush1.bf16.msra.mxu0 %v7070
    %7212 = vmatprep.subr.bf16.mxu0 %v7065
    %7213 = vmatpush1.bf16.msra.mxu0 %v7064
    %7214 = vmatprep.subr.bf16.mxu0 %v7059
    %7215 = vmatpush1.bf16.msra.mxu0 %v7058
    %7216 = vmatprep.subr.bf16.mxu0 %v7053
    %7217 = vmatpush1.bf16.msra.mxu0 %v7052
    %7218 = vmatprep.subr.bf16.mxu0 %v7047
    %7219 = vmatpush1.bf16.msra.mxu0 %v7046
    %7220 = vmatprep.subr.bf16.mxu0 %v7041
    %7221 = vmatpush1.bf16.msra.mxu0 %v7040
    %7222 = vmatprep.subr.bf16.mxu0 %v7035
    %7223 = vmatpush1.bf16.msra.mxu0 %v7034
    %7224 = vmatprep.subr.bf16.mxu0 0
    %7225 = vmatpush2.bf16.msra.mxu0 0
    %7226 = vmatprep.subr.bf16.mxu0 0
    %7227 = vmatpush2.bf16.msra.mxu0 0
    %7228 = vmatprep.subr.bf16.mxu0 0
    %7229 = vmatpush2.bf16.msra.mxu0 0
    %7230 = vmatprep.subr.bf16.mxu0 0
    %7231 = vmatpush2.bf16.msra.mxu0 0
    %7232 = vmatprep.subr.bf16.mxu0 0
    %7233 = vmatpush2.bf16.msra.mxu0 0
    %7234 = vmatprep.subr.bf16.mxu0 0
    %7235 = vmatpush2.bf16.msra.mxu0 0
    %7236 = vmatprep.subr.bf16.mxu0 0
    %7237 = vmatpush2.bf16.msra.mxu0 0
    %7238 = vmatprep.subr.bf16.mxu0 0
    %7239 = vmatpush2.bf16.msra.mxu0 0
    %7240 = vmatprep.mubr.bf16.mxu0 0
    %7241 = vmatmul.mubr.bf16.gmra.mxu0 %v6884
    %v7242 = vpop.f32.mrf.mxu0
    %v7243 = vadd.f32 0.0, %v7242
    %v7244 = vpop.f32.mrf.mxu0
    %v7245 = vadd.f32 0.0, %v7244
    %v7246 = vpop.f32.mrf.mxu0
    %v7247 = vpop.f32.mrf.mxu0
    %7248 = vdwg.mxu0
    %v7249 = vadd.f32 %v6826, %v7161
    %v7250 = vadd.f32 %v6827, %v7163
    %v7251 = vadd.f32 %v6828, %v7202
    %v7252 = vadd.f32 %v6829, %v7204
    %v7253 = vadd.f32 %v6830, %v7243
    %v7254 = vadd.f32 %v6831, %v7245
    %s7255 = scalar_lea.vmem [#allocation8], 5760
    %v7256 = vld [vmem:[%s7255] sm:$0xff]
    %v7257 = vld [vmem:[%s7255 + $0x8] sm:$0xff]
    %v7258 = vld [vmem:[%s7255 + $0x10] sm:$0xff]
    %v7259 = vld [vmem:[%s7255 + $0x18] sm:$0xff]
    %v7260 = vld [vmem:[%s7255 + $0x20] sm:$0xff]
    %v7261 = vld [vmem:[%s7255 + $0x28] sm:$0xff]
    %v7262 = vld [vmem:[%s7255 + $0x30] sm:$0xff]
    %v7263 = vld [vmem:[%s7255 + $0x38] sm:$0xff]
    %v7264 = vld [vmem:[%s7255 + $0x40] sm:$0xff]
    %v7265 = vld [vmem:[%s7255 + $0x48] sm:$0xff]
    %v7266 = vld [vmem:[%s7255 + $0x50] sm:$0xff]
    %v7267 = vld [vmem:[%s7255 + $0x58] sm:$0xff]
    %v7268 = vld [vmem:[%s7255 + $0x60] sm:$0xff]
    %v7269 = vld [vmem:[%s7255 + $0x68] sm:$0xff]
    %v7270 = vld [vmem:[%s7255 + $0x70] sm:$0xff]
    %v7271 = vld [vmem:[%s7255 + $0x78] sm:$0xff]
    %v7272 = vld [vmem:[%s7255 + $0x80] sm:$0xff]
    %v7273 = vld [vmem:[%s7255 + $0x88] sm:$0xff]
    %v7274 = vld [vmem:[%s7255 + $0x90] sm:$0xff]
    %v7275 = vld [vmem:[%s7255 + $0x98] sm:$0xff]
    %v7276 = vld [vmem:[%s7255 + $0xa0] sm:$0xff]
    %v7277 = vld [vmem:[%s7255 + $0xa8] sm:$0xff]
    %v7278 = vld [vmem:[%s7255 + $0xb0] sm:$0xff]
    %v7279 = vld [vmem:[%s7255 + $0xb8] sm:$0xff]
    %v7280 = vld [vmem:[%s7255 + $0xc0] sm:$0xff]
    %v7281 = vld [vmem:[%s7255 + $0xc8] sm:$0xff]
    %v7282 = vld [vmem:[%s7255 + $0xd0] sm:$0xff]
    %v7283 = vld [vmem:[%s7255 + $0xd8] sm:$0xff]
    %v7284 = vld [vmem:[%s7255 + $0xe0] sm:$0xff]
    %v7285 = vld [vmem:[%s7255 + $0xe8] sm:$0xff]
    %v7286 = vld [vmem:[%s7255 + $0xf0] sm:$0xff]
    %v7287 = vld [vmem:[%s7255 + $0xf8] sm:$0xff]
    %v7288 = vld [vmem:[%s7255 + $0x100] sm:$0xff]
    %v7289 = vld [vmem:[%s7255 + $0x108] sm:$0xff]
    %v7290 = vld [vmem:[%s7255 + $0x110] sm:$0xff]
    %v7291 = vld [vmem:[%s7255 + $0x118] sm:$0xff]
    %v7292 = vld [vmem:[%s7255 + $0x120] sm:$0xff]
    %v7293 = vld [vmem:[%s7255 + $0x128] sm:$0xff]
    %v7294 = vld [vmem:[%s7255 + $0x130] sm:$0xff]
    %v7295 = vld [vmem:[%s7255 + $0x138] sm:$0xff]
    %v7296 = vld [vmem:[%s7255 + $0x140] sm:$0xff]
    %v7297 = vld [vmem:[%s7255 + $0x148] sm:$0xff]
    %v7298 = vld [vmem:[%s7255 + $0x150] sm:$0xff]
    %v7299 = vld [vmem:[%s7255 + $0x158] sm:$0xff]
    %v7300 = vld [vmem:[%s7255 + $0x160] sm:$0xff]
    %v7301 = vld [vmem:[%s7255 + $0x168] sm:$0xff]
    %v7302 = vld [vmem:[%s7255 + $0x170] sm:$0xff]
    %v7303 = vld [vmem:[%s7255 + $0x178] sm:$0xff]
    %v7304 = vrot.slane %v4343, 7
    %v7305 = vrot.slane %v4344, 6
    %v7306 = vsel %vm1018, %v7305, %v7304
    %v7307 = vpack.c.b16 %v7306, %v7306
    %v7357 = vunpack.c.l.b16 %v7256
    %v7358 = vunpack.c.h.b16 %v7256
    %v7359 = vunpack.c.l.b16 %v7257
    %v7360 = vunpack.c.h.b16 %v7257
    %v7361 = vunpack.c.l.b16 %v7258
    %v7362 = vunpack.c.h.b16 %v7258
    %v7363 = vunpack.c.l.b16 %v7259
    %v7364 = vunpack.c.h.b16 %v7259
    %v7365 = vunpack.c.l.b16 %v7260
    %v7366 = vunpack.c.h.b16 %v7260
    %v7367 = vunpack.c.l.b16 %v7261
    %v7368 = vunpack.c.h.b16 %v7261
    %v7369 = vunpack.c.l.b16 %v7262
    %v7370 = vunpack.c.h.b16 %v7262
    %v7371 = vunpack.c.l.b16 %v7263
    %v7372 = vunpack.c.h.b16 %v7263
    %v7373 = vunpack.c.l.b16 %v7264
    %v7374 = vunpack.c.h.b16 %v7264
    %v7375 = vunpack.c.l.b16 %v7265
    %v7376 = vunpack.c.h.b16 %v7265
    %v7377 = vunpack.c.l.b16 %v7266
    %v7378 = vunpack.c.h.b16 %v7266
    %v7379 = vunpack.c.l.b16 %v7267
    %v7380 = vunpack.c.h.b16 %v7267
    %v7381 = vunpack.c.l.b16 %v7268
    %v7382 = vunpack.c.h.b16 %v7268
    %v7383 = vunpack.c.l.b16 %v7269
    %v7384 = vunpack.c.h.b16 %v7269
    %v7385 = vunpack.c.l.b16 %v7270
    %v7386 = vunpack.c.h.b16 %v7270
    %v7387 = vunpack.c.l.b16 %v7271
    %v7388 = vunpack.c.h.b16 %v7271
    %v7389 = vunpack.c.l.b16 %v7272
    %v7390 = vunpack.c.h.b16 %v7272
    %v7391 = vunpack.c.l.b16 %v7273
    %v7392 = vunpack.c.h.b16 %v7273
    %v7393 = vunpack.c.l.b16 %v7274
    %v7394 = vunpack.c.h.b16 %v7274
    %v7395 = vunpack.c.l.b16 %v7275
    %v7396 = vunpack.c.h.b16 %v7275
    %v7397 = vunpack.c.l.b16 %v7276
    %v7398 = vunpack.c.h.b16 %v7276
    %v7399 = vunpack.c.l.b16 %v7277
    %v7400 = vunpack.c.h.b16 %v7277
    %v7401 = vunpack.c.l.b16 %v7278
    %v7402 = vunpack.c.h.b16 %v7278
    %v7403 = vunpack.c.l.b16 %v7279
    %v7404 = vunpack.c.h.b16 %v7279
    %v7405 = vunpack.c.l.b16 %v7280
    %v7406 = vunpack.c.h.b16 %v7280
    %v7407 = vunpack.c.l.b16 %v7281
    %v7408 = vunpack.c.h.b16 %v7281
    %v7409 = vunpack.c.l.b16 %v7282
    %v7410 = vunpack.c.h.b16 %v7282
    %v7411 = vunpack.c.l.b16 %v7283
    %v7412 = vunpack.c.h.b16 %v7283
    %v7413 = vunpack.c.l.b16 %v7284
    %v7414 = vunpack.c.h.b16 %v7284
    %v7415 = vunpack.c.l.b16 %v7285
    %v7416 = vunpack.c.h.b16 %v7285
    %v7417 = vunpack.c.l.b16 %v7286
    %v7418 = vunpack.c.h.b16 %v7286
    %v7419 = vunpack.c.l.b16 %v7287
    %v7420 = vunpack.c.h.b16 %v7287
    %v7421 = vunpack.c.l.b16 %v7288
    %v7422 = vunpack.c.h.b16 %v7288
    %v7423 = vunpack.c.l.b16 %v7289
    %v7424 = vunpack.c.h.b16 %v7289
    %v7425 = vunpack.c.l.b16 %v7290
    %v7426 = vunpack.c.h.b16 %v7290
    %v7427 = vunpack.c.l.b16 %v7291
    %v7428 = vunpack.c.h.b16 %v7291
    %v7429 = vunpack.c.l.b16 %v7292
    %v7430 = vunpack.c.h.b16 %v7292
    %v7431 = vunpack.c.l.b16 %v7293
    %v7432 = vunpack.c.h.b16 %v7293
    %v7433 = vunpack.c.l.b16 %v7294
    %v7434 = vunpack.c.h.b16 %v7294
    %v7435 = vunpack.c.l.b16 %v7295
    %v7436 = vunpack.c.h.b16 %v7295
    %v7437 = vunpack.c.l.b16 %v7296
    %v7438 = vunpack.c.h.b16 %v7296
    %v7439 = vunpack.c.l.b16 %v7297
    %v7440 = vunpack.c.h.b16 %v7297
    %v7441 = vunpack.c.l.b16 %v7298
    %v7442 = vunpack.c.h.b16 %v7298
    %v7443 = vunpack.c.l.b16 %v7299
    %v7444 = vunpack.c.h.b16 %v7299
    %v7445 = vunpack.c.l.b16 %v7300
    %v7446 = vunpack.c.h.b16 %v7300
    %v7447 = vunpack.c.l.b16 %v7301
    %v7448 = vunpack.c.h.b16 %v7301
    %v7449 = vunpack.c.l.b16 %v7302
    %v7450 = vunpack.c.h.b16 %v7302
    %v7451 = vunpack.c.l.b16 %v7303
    %v7452 = vunpack.c.h.b16 %v7303
    %v7453 = vpack.c.b16 %v7363, %v7357
    %v7454 = vpack.c.b16 %v7364, %v7358
    %v7455 = vpack.c.b16 %v7365, %v7359
    %v7456 = vpack.c.b16 %v7366, %v7360
    %v7457 = vpack.c.b16 %v7367, %v7361
    %v7458 = vpack.c.b16 %v7368, %v7362
    %v7459 = vpack.c.b16 %v7375, %v7369
    %v7460 = vpack.c.b16 %v7376, %v7370
    %v7461 = vpack.c.b16 %v7377, %v7371
    %v7462 = vpack.c.b16 %v7378, %v7372
    %v7463 = vpack.c.b16 %v7379, %v7373
    %v7464 = vpack.c.b16 %v7380, %v7374
    %v7465 = vpack.c.b16 %v7387, %v7381
    %v7466 = vpack.c.b16 %v7388, %v7382
    %v7467 = vpack.c.b16 %v7389, %v7383
    %v7468 = vpack.c.b16 %v7390, %v7384
    %v7469 = vpack.c.b16 %v7391, %v7385
    %v7470 = vpack.c.b16 %v7392, %v7386
    %v7471 = vpack.c.b16 %v7399, %v7393
    %v7472 = vpack.c.b16 %v7400, %v7394
    %v7473 = vpack.c.b16 %v7401, %v7395
    %v7474 = vpack.c.b16 %v7402, %v7396
    %v7475 = vpack.c.b16 %v7403, %v7397
    %v7476 = vpack.c.b16 %v7404, %v7398
    %v7477 = vpack.c.b16 %v7411, %v7405
    %v7478 = vpack.c.b16 %v7412, %v7406
    %v7479 = vpack.c.b16 %v7413, %v7407
    %v7480 = vpack.c.b16 %v7414, %v7408
    %v7481 = vpack.c.b16 %v7415, %v7409
    %v7482 = vpack.c.b16 %v7416, %v7410
    %v7483 = vpack.c.b16 %v7423, %v7417
    %v7484 = vpack.c.b16 %v7424, %v7418
    %v7485 = vpack.c.b16 %v7425, %v7419
    %v7486 = vpack.c.b16 %v7426, %v7420
    %v7487 = vpack.c.b16 %v7427, %v7421
    %v7488 = vpack.c.b16 %v7428, %v7422
    %v7489 = vpack.c.b16 %v7435, %v7429
    %v7490 = vpack.c.b16 %v7436, %v7430
    %v7491 = vpack.c.b16 %v7437, %v7431
    %v7492 = vpack.c.b16 %v7438, %v7432
    %v7493 = vpack.c.b16 %v7439, %v7433
    %v7494 = vpack.c.b16 %v7440, %v7434
    %v7495 = vpack.c.b16 %v7447, %v7441
    %v7496 = vpack.c.b16 %v7448, %v7442
    %v7497 = vpack.c.b16 %v7449, %v7443
    %v7498 = vpack.c.b16 %v7450, %v7444
    %v7499 = vpack.c.b16 %v7451, %v7445
    %v7500 = vpack.c.b16 %v7452, %v7446
    %7549 = vmatprep.subr.bf16.mxu0 %v7496
    %7550 = vmatpush1.bf16.msra.mxu0 %v7495
    %7551 = vmatprep.subr.bf16.mxu0 %v7490
    %7552 = vmatpush1.bf16.msra.mxu0 %v7489
    %7553 = vmatprep.subr.bf16.mxu0 %v7484
    %7554 = vmatpush1.bf16.msra.mxu0 %v7483
    %7555 = vmatprep.subr.bf16.mxu0 %v7478
    %7556 = vmatpush1.bf16.msra.mxu0 %v7477
    %7557 = vmatprep.subr.bf16.mxu0 %v7472
    %7558 = vmatpush1.bf16.msra.mxu0 %v7471
    %7559 = vmatprep.subr.bf16.mxu0 %v7466
    %7560 = vmatpush1.bf16.msra.mxu0 %v7465
    %7561 = vmatprep.subr.bf16.mxu0 %v7460
    %7562 = vmatpush1.bf16.msra.mxu0 %v7459
    %7563 = vmatprep.subr.bf16.mxu0 %v7454
    %7564 = vmatpush1.bf16.msra.mxu0 %v7453
    %7565 = vmatprep.subr.bf16.mxu0 0
    %7566 = vmatpush2.bf16.msra.mxu0 0
    %7567 = vmatprep.subr.bf16.mxu0 0
    %7568 = vmatpush2.bf16.msra.mxu0 0
    %7569 = vmatprep.subr.bf16.mxu0 0
    %7570 = vmatpush2.bf16.msra.mxu0 0
    %7571 = vmatprep.subr.bf16.mxu0 0
    %7572 = vmatpush2.bf16.msra.mxu0 0
    %7573 = vmatprep.subr.bf16.mxu0 0
    %7574 = vmatpush2.bf16.msra.mxu0 0
    %7575 = vmatprep.subr.bf16.mxu0 0
    %7576 = vmatpush2.bf16.msra.mxu0 0
    %7577 = vmatprep.subr.bf16.mxu0 0
    %7578 = vmatpush2.bf16.msra.mxu0 0
    %7579 = vmatprep.subr.bf16.mxu0 0
    %7580 = vmatpush2.bf16.msra.mxu0 0
    %7581 = vmatprep.mubr.bf16.mxu0 0
    %7582 = vmatmul.mubr.bf16.gmra.mxu0 %v7307
    %v7583 = vpop.f32.mrf.mxu0
    %v7584 = vadd.f32 0.0, %v7583
    %v7585 = vpop.f32.mrf.mxu0
    %v7586 = vadd.f32 0.0, %v7585
    %v7587 = vpop.f32.mrf.mxu0
    %v7588 = vpop.f32.mrf.mxu0
    %7589 = vdwg.mxu0
    %7590 = vmatprep.subr.bf16.mxu0 %v7498
    %7591 = vmatpush1.bf16.msra.mxu0 %v7497
    %7592 = vmatprep.subr.bf16.mxu0 %v7492
    %7593 = vmatpush1.bf16.msra.mxu0 %v7491
    %7594 = vmatprep.subr.bf16.mxu0 %v7486
    %7595 = vmatpush1.bf16.msra.mxu0 %v7485
    %7596 = vmatprep.subr.bf16.mxu0 %v7480
    %7597 = vmatpush1.bf16.msra.mxu0 %v7479
    %7598 = vmatprep.subr.bf16.mxu0 %v7474
    %7599 = vmatpush1.bf16.msra.mxu0 %v7473
    %7600 = vmatprep.subr.bf16.mxu0 %v7468
    %7601 = vmatpush1.bf16.msra.mxu0 %v7467
    %7602 = vmatprep.subr.bf16.mxu0 %v7462
    %7603 = vmatpush1.bf16.msra.mxu0 %v7461
    %7604 = vmatprep.subr.bf16.mxu0 %v7456
    %7605 = vmatpush1.bf16.msra.mxu0 %v7455
    %7606 = vmatprep.subr.bf16.mxu0 0
    %7607 = vmatpush2.bf16.msra.mxu0 0
    %7608 = vmatprep.subr.bf16.mxu0 0
    %7609 = vmatpush2.bf16.msra.mxu0 0
    %7610 = vmatprep.subr.bf16.mxu0 0
    %7611 = vmatpush2.bf16.msra.mxu0 0
    %7612 = vmatprep.subr.bf16.mxu0 0
    %7613 = vmatpush2.bf16.msra.mxu0 0
    %7614 = vmatprep.subr.bf16.mxu0 0
    %7615 = vmatpush2.bf16.msra.mxu0 0
    %7616 = vmatprep.subr.bf16.mxu0 0
    %7617 = vmatpush2.bf16.msra.mxu0 0
    %7618 = vmatprep.subr.bf16.mxu0 0
    %7619 = vmatpush2.bf16.msra.mxu0 0
    %7620 = vmatprep.subr.bf16.mxu0 0
    %7621 = vmatpush2.bf16.msra.mxu0 0
    %7622 = vmatprep.mubr.bf16.mxu0 0
    %7623 = vmatmul.mubr.bf16.gmra.mxu0 %v7307
    %v7624 = vpop.f32.mrf.mxu0
    %v7625 = vadd.f32 0.0, %v7624
    %v7626 = vpop.f32.mrf.mxu0
    %v7627 = vadd.f32 0.0, %v7626
    %v7628 = vpop.f32.mrf.mxu0
    %v7629 = vpop.f32.mrf.mxu0
    %7630 = vdwg.mxu0
    %7631 = vmatprep.subr.bf16.mxu0 %v7500
    %7632 = vmatpush1.bf16.msra.mxu0 %v7499
    %7633 = vmatprep.subr.bf16.mxu0 %v7494
    %7634 = vmatpush1.bf16.msra.mxu0 %v7493
    %7635 = vmatprep.subr.bf16.mxu0 %v7488
    %7636 = vmatpush1.bf16.msra.mxu0 %v7487
    %7637 = vmatprep.subr.bf16.mxu0 %v7482
    %7638 = vmatpush1.bf16.msra.mxu0 %v7481
    %7639 = vmatprep.subr.bf16.mxu0 %v7476
    %7640 = vmatpush1.bf16.msra.mxu0 %v7475
    %7641 = vmatprep.subr.bf16.mxu0 %v7470
    %7642 = vmatpush1.bf16.msra.mxu0 %v7469
    %7643 = vmatprep.subr.bf16.mxu0 %v7464
    %7644 = vmatpush1.bf16.msra.mxu0 %v7463
    %7645 = vmatprep.subr.bf16.mxu0 %v7458
    %7646 = vmatpush1.bf16.msra.mxu0 %v7457
    %7647 = vmatprep.subr.bf16.mxu0 0
    %7648 = vmatpush2.bf16.msra.mxu0 0
    %7649 = vmatprep.subr.bf16.mxu0 0
    %7650 = vmatpush2.bf16.msra.mxu0 0
    %7651 = vmatprep.subr.bf16.mxu0 0
    %7652 = vmatpush2.bf16.msra.mxu0 0
    %7653 = vmatprep.subr.bf16.mxu0 0
    %7654 = vmatpush2.bf16.msra.mxu0 0
    %7655 = vmatprep.subr.bf16.mxu0 0
    %7656 = vmatpush2.bf16.msra.mxu0 0
    %7657 = vmatprep.subr.bf16.mxu0 0
    %7658 = vmatpush2.bf16.msra.mxu0 0
    %7659 = vmatprep.subr.bf16.mxu0 0
    %7660 = vmatpush2.bf16.msra.mxu0 0
    %7661 = vmatprep.subr.bf16.mxu0 0
    %7662 = vmatpush2.bf16.msra.mxu0 0
    %7663 = vmatprep.mubr.bf16.mxu0 0
    %7664 = vmatmul.mubr.bf16.gmra.mxu0 %v7307
    %v7665 = vpop.f32.mrf.mxu0
    %v7666 = vadd.f32 0.0, %v7665
    %v7667 = vpop.f32.mrf.mxu0
    %v7668 = vadd.f32 0.0, %v7667
    %v7669 = vpop.f32.mrf.mxu0
    %v7670 = vpop.f32.mrf.mxu0
    %7671 = vdwg.mxu0
    %v7672 = vadd.f32 %v7249, %v7584
    %v7673 = vadd.f32 %v7250, %v7586
    %v7674 = vadd.f32 %v7251, %v7625
    %v7675 = vadd.f32 %v7252, %v7627
    %v7676 = vadd.f32 %v7253, %v7666
    %v7677 = vadd.f32 %v7254, %v7668
    %v7678 = vpack.c.bf16 %v576, %v576
    %v7679 = vpack.c.bf16 %v912, %v912
    %s7680 = scalar_lea.vmem [#allocation8], 6144
    %v7681 = vld [vmem:[%s7680] sm:$0xff]
    %v7682 = vld [vmem:[%s7680 + $0x8] sm:$0xff]
    %v7683 = vld [vmem:[%s7680 + $0x10] sm:$0xff]
    %v7684 = vld [vmem:[%s7680 + $0x18] sm:$0xff]
    %v7685 = vld [vmem:[%s7680 + $0x20] sm:$0xff]
    %v7686 = vld [vmem:[%s7680 + $0x28] sm:$0xff]
    %v7687 = vld [vmem:[%s7680 + $0x30] sm:$0xff]
    %v7688 = vld [vmem:[%s7680 + $0x38] sm:$0xff]
    %v7689 = vld [vmem:[%s7680 + $0x40] sm:$0xff]
    %v7690 = vld [vmem:[%s7680 + $0x48] sm:$0xff]
    %v7691 = vld [vmem:[%s7680 + $0x50] sm:$0xff]
    %v7692 = vld [vmem:[%s7680 + $0x58] sm:$0xff]
    %v7693 = vld [vmem:[%s7680 + $0x60] sm:$0xff]
    %v7694 = vld [vmem:[%s7680 + $0x68] sm:$0xff]
    %v7695 = vld [vmem:[%s7680 + $0x70] sm:$0xff]
    %v7696 = vld [vmem:[%s7680 + $0x78] sm:$0xff]
    %v7697 = vld [vmem:[%s7680 + $0x80] sm:$0xff]
    %v7698 = vld [vmem:[%s7680 + $0x88] sm:$0xff]
    %v7699 = vld [vmem:[%s7680 + $0x90] sm:$0xff]
    %v7700 = vld [vmem:[%s7680 + $0x98] sm:$0xff]
    %v7701 = vld [vmem:[%s7680 + $0xa0] sm:$0xff]
    %v7702 = vld [vmem:[%s7680 + $0xa8] sm:$0xff]
    %v7703 = vld [vmem:[%s7680 + $0xb0] sm:$0xff]
    %v7704 = vld [vmem:[%s7680 + $0xb8] sm:$0xff]
    %v7705 = vld [vmem:[%s7680 + $0xc0] sm:$0xff]
    %v7706 = vld [vmem:[%s7680 + $0xc8] sm:$0xff]
    %v7707 = vld [vmem:[%s7680 + $0xd0] sm:$0xff]
    %v7708 = vld [vmem:[%s7680 + $0xd8] sm:$0xff]
    %v7709 = vld [vmem:[%s7680 + $0xe0] sm:$0xff]
    %v7710 = vld [vmem:[%s7680 + $0xe8] sm:$0xff]
    %v7711 = vld [vmem:[%s7680 + $0xf0] sm:$0xff]
    %v7712 = vld [vmem:[%s7680 + $0xf8] sm:$0xff]
    %v7713 = vld [vmem:[%s7680 + $0x100] sm:$0xff]
    %v7714 = vld [vmem:[%s7680 + $0x108] sm:$0xff]
    %v7715 = vld [vmem:[%s7680 + $0x110] sm:$0xff]
    %v7716 = vld [vmem:[%s7680 + $0x118] sm:$0xff]
    %v7717 = vld [vmem:[%s7680 + $0x120] sm:$0xff]
    %v7718 = vld [vmem:[%s7680 + $0x128] sm:$0xff]
    %v7719 = vld [vmem:[%s7680 + $0x130] sm:$0xff]
    %v7720 = vld [vmem:[%s7680 + $0x138] sm:$0xff]
    %v7721 = vld [vmem:[%s7680 + $0x140] sm:$0xff]
    %v7722 = vld [vmem:[%s7680 + $0x148] sm:$0xff]
    %v7723 = vld [vmem:[%s7680 + $0x150] sm:$0xff]
    %v7724 = vld [vmem:[%s7680 + $0x158] sm:$0xff]
    %v7725 = vld [vmem:[%s7680 + $0x160] sm:$0xff]
    %v7726 = vld [vmem:[%s7680 + $0x168] sm:$0xff]
    %v7727 = vld [vmem:[%s7680 + $0x170] sm:$0xff]
    %v7728 = vld [vmem:[%s7680 + $0x178] sm:$0xff]
    %v7731 = vunpack.c.l.b16 %v7678
    %v7732 = vunpack.c.l.b16 %v7679
    %v7733 = vrot.slane %v7732, 7
    %v7734 = vsel %vm1018, %v7733, %v7731
    %v7735 = vpack.c.b16 %v7734, %v7734
    %v7785 = vunpack.c.l.b16 %v7681
    %v7786 = vunpack.c.h.b16 %v7681
    %v7787 = vunpack.c.l.b16 %v7682
    %v7788 = vunpack.c.h.b16 %v7682
    %v7789 = vunpack.c.l.b16 %v7683
    %v7790 = vunpack.c.h.b16 %v7683
    %v7791 = vunpack.c.l.b16 %v7684
    %v7792 = vunpack.c.h.b16 %v7684
    %v7793 = vunpack.c.l.b16 %v7685
    %v7794 = vunpack.c.h.b16 %v7685
    %v7795 = vunpack.c.l.b16 %v7686
    %v7796 = vunpack.c.h.b16 %v7686
    %v7797 = vunpack.c.l.b16 %v7687
    %v7798 = vunpack.c.h.b16 %v7687
    %v7799 = vunpack.c.l.b16 %v7688
    %v7800 = vunpack.c.h.b16 %v7688
    %v7801 = vunpack.c.l.b16 %v7689
    %v7802 = vunpack.c.h.b16 %v7689
    %v7803 = vunpack.c.l.b16 %v7690
    %v7804 = vunpack.c.h.b16 %v7690
    %v7805 = vunpack.c.l.b16 %v7691
    %v7806 = vunpack.c.h.b16 %v7691
    %v7807 = vunpack.c.l.b16 %v7692
    %v7808 = vunpack.c.h.b16 %v7692
    %v7809 = vunpack.c.l.b16 %v7693
    %v7810 = vunpack.c.h.b16 %v7693
    %v7811 = vunpack.c.l.b16 %v7694
    %v7812 = vunpack.c.h.b16 %v7694
    %v7813 = vunpack.c.l.b16 %v7695
    %v7814 = vunpack.c.h.b16 %v7695
    %v7815 = vunpack.c.l.b16 %v7696
    %v7816 = vunpack.c.h.b16 %v7696
    %v7817 = vunpack.c.l.b16 %v7697
    %v7818 = vunpack.c.h.b16 %v7697
    %v7819 = vunpack.c.l.b16 %v7698
    %v7820 = vunpack.c.h.b16 %v7698
    %v7821 = vunpack.c.l.b16 %v7699
    %v7822 = vunpack.c.h.b16 %v7699
    %v7823 = vunpack.c.l.b16 %v7700
    %v7824 = vunpack.c.h.b16 %v7700
    %v7825 = vunpack.c.l.b16 %v7701
    %v7826 = vunpack.c.h.b16 %v7701
    %v7827 = vunpack.c.l.b16 %v7702
    %v7828 = vunpack.c.h.b16 %v7702
    %v7829 = vunpack.c.l.b16 %v7703
    %v7830 = vunpack.c.h.b16 %v7703
    %v7831 = vunpack.c.l.b16 %v7704
    %v7832 = vunpack.c.h.b16 %v7704
    %v7833 = vunpack.c.l.b16 %v7705
    %v7834 = vunpack.c.h.b16 %v7705
    %v7835 = vunpack.c.l.b16 %v7706
    %v7836 = vunpack.c.h.b16 %v7706
    %v7837 = vunpack.c.l.b16 %v7707
    %v7838 = vunpack.c.h.b16 %v7707
    %v7839 = vunpack.c.l.b16 %v7708
    %v7840 = vunpack.c.h.b16 %v7708
    %v7841 = vunpack.c.l.b16 %v7709
    %v7842 = vunpack.c.h.b16 %v7709
    %v7843 = vunpack.c.l.b16 %v7710
    %v7844 = vunpack.c.h.b16 %v7710
    %v7845 = vunpack.c.l.b16 %v7711
    %v7846 = vunpack.c.h.b16 %v7711
    %v7847 = vunpack.c.l.b16 %v7712
    %v7848 = vunpack.c.h.b16 %v7712
    %v7849 = vunpack.c.l.b16 %v7713
    %v7850 = vunpack.c.h.b16 %v7713
    %v7851 = vunpack.c.l.b16 %v7714
    %v7852 = vunpack.c.h.b16 %v7714
    %v7853 = vunpack.c.l.b16 %v7715
    %v7854 = vunpack.c.h.b16 %v7715
    %v7855 = vunpack.c.l.b16 %v7716
    %v7856 = vunpack.c.h.b16 %v7716
    %v7857 = vunpack.c.l.b16 %v7717
    %v7858 = vunpack.c.h.b16 %v7717
    %v7859 = vunpack.c.l.b16 %v7718
    %v7860 = vunpack.c.h.b16 %v7718
    %v7861 = vunpack.c.l.b16 %v7719
    %v7862 = vunpack.c.h.b16 %v7719
    %v7863 = vunpack.c.l.b16 %v7720
    %v7864 = vunpack.c.h.b16 %v7720
    %v7865 = vunpack.c.l.b16 %v7721
    %v7866 = vunpack.c.h.b16 %v7721
    %v7867 = vunpack.c.l.b16 %v7722
    %v7868 = vunpack.c.h.b16 %v7722
    %v7869 = vunpack.c.l.b16 %v7723
    %v7870 = vunpack.c.h.b16 %v7723
    %v7871 = vunpack.c.l.b16 %v7724
    %v7872 = vunpack.c.h.b16 %v7724
    %v7873 = vunpack.c.l.b16 %v7725
    %v7874 = vunpack.c.h.b16 %v7725
    %v7875 = vunpack.c.l.b16 %v7726
    %v7876 = vunpack.c.h.b16 %v7726
    %v7877 = vunpack.c.l.b16 %v7727
    %v7878 = vunpack.c.h.b16 %v7727
    %v7879 = vunpack.c.l.b16 %v7728
    %v7880 = vunpack.c.h.b16 %v7728
    %v7881 = vpack.c.b16 %v7791, %v7785
    %v7882 = vpack.c.b16 %v7792, %v7786
    %v7883 = vpack.c.b16 %v7793, %v7787
    %v7884 = vpack.c.b16 %v7794, %v7788
    %v7885 = vpack.c.b16 %v7795, %v7789
    %v7886 = vpack.c.b16 %v7796, %v7790
    %v7887 = vpack.c.b16 %v7803, %v7797
    %v7888 = vpack.c.b16 %v7804, %v7798
    %v7889 = vpack.c.b16 %v7805, %v7799
    %v7890 = vpack.c.b16 %v7806, %v7800
    %v7891 = vpack.c.b16 %v7807, %v7801
    %v7892 = vpack.c.b16 %v7808, %v7802
    %v7893 = vpack.c.b16 %v7815, %v7809
    %v7894 = vpack.c.b16 %v7816, %v7810
    %v7895 = vpack.c.b16 %v7817, %v7811
    %v7896 = vpack.c.b16 %v7818, %v7812
    %v7897 = vpack.c.b16 %v7819, %v7813
    %v7898 = vpack.c.b16 %v7820, %v7814
    %v7899 = vpack.c.b16 %v7827, %v7821
    %v7900 = vpack.c.b16 %v7828, %v7822
    %v7901 = vpack.c.b16 %v7829, %v7823
    %v7902 = vpack.c.b16 %v7830, %v7824
    %v7903 = vpack.c.b16 %v7831, %v7825
    %v7904 = vpack.c.b16 %v7832, %v7826
    %v7905 = vpack.c.b16 %v7839, %v7833
    %v7906 = vpack.c.b16 %v7840, %v7834
    %v7907 = vpack.c.b16 %v7841, %v7835
    %v7908 = vpack.c.b16 %v7842, %v7836
    %v7909 = vpack.c.b16 %v7843, %v7837
    %v7910 = vpack.c.b16 %v7844, %v7838
    %v7911 = vpack.c.b16 %v7851, %v7845
    %v7912 = vpack.c.b16 %v7852, %v7846
    %v7913 = vpack.c.b16 %v7853, %v7847
    %v7914 = vpack.c.b16 %v7854, %v7848
    %v7915 = vpack.c.b16 %v7855, %v7849
    %v7916 = vpack.c.b16 %v7856, %v7850
    %v7917 = vpack.c.b16 %v7863, %v7857
    %v7918 = vpack.c.b16 %v7864, %v7858
    %v7919 = vpack.c.b16 %v7865, %v7859
    %v7920 = vpack.c.b16 %v7866, %v7860
    %v7921 = vpack.c.b16 %v7867, %v7861
    %v7922 = vpack.c.b16 %v7868, %v7862
    %v7923 = vpack.c.b16 %v7875, %v7869
    %v7924 = vpack.c.b16 %v7876, %v7870
    %v7925 = vpack.c.b16 %v7877, %v7871
    %v7926 = vpack.c.b16 %v7878, %v7872
    %v7927 = vpack.c.b16 %v7879, %v7873
    %v7928 = vpack.c.b16 %v7880, %v7874
    %7977 = vmatprep.subr.bf16.mxu0 %v7924
    %7978 = vmatpush1.bf16.msra.mxu0 %v7923
    %7979 = vmatprep.subr.bf16.mxu0 %v7918
    %7980 = vmatpush1.bf16.msra.mxu0 %v7917
    %7981 = vmatprep.subr.bf16.mxu0 %v7912
    %7982 = vmatpush1.bf16.msra.mxu0 %v7911
    %7983 = vmatprep.subr.bf16.mxu0 %v7906
    %7984 = vmatpush1.bf16.msra.mxu0 %v7905
    %7985 = vmatprep.subr.bf16.mxu0 %v7900
    %7986 = vmatpush1.bf16.msra.mxu0 %v7899
    %7987 = vmatprep.subr.bf16.mxu0 %v7894
    %7988 = vmatpush1.bf16.msra.mxu0 %v7893
    %7989 = vmatprep.subr.bf16.mxu0 %v7888
    %7990 = vmatpush1.bf16.msra.mxu0 %v7887
    %7991 = vmatprep.subr.bf16.mxu0 %v7882
    %7992 = vmatpush1.bf16.msra.mxu0 %v7881
    %7993 = vmatprep.subr.bf16.mxu0 0
    %7994 = vmatpush2.bf16.msra.mxu0 0
    %7995 = vmatprep.subr.bf16.mxu0 0
    %7996 = vmatpush2.bf16.msra.mxu0 0
    %7997 = vmatprep.subr.bf16.mxu0 0
    %7998 = vmatpush2.bf16.msra.mxu0 0
    %7999 = vmatprep.subr.bf16.mxu0 0
    %8000 = vmatpush2.bf16.msra.mxu0 0
    %8001 = vmatprep.subr.bf16.mxu0 0
    %8002 = vmatpush2.bf16.msra.mxu0 0
    %8003 = vmatprep.subr.bf16.mxu0 0
    %8004 = vmatpush2.bf16.msra.mxu0 0
    %8005 = vmatprep.subr.bf16.mxu0 0
    %8006 = vmatpush2.bf16.msra.mxu0 0
    %8007 = vmatprep.subr.bf16.mxu0 0
    %8008 = vmatpush2.bf16.msra.mxu0 0
    %8009 = vmatprep.mubr.bf16.mxu0 0
    %8010 = vmatmul.mubr.bf16.gmra.mxu0 %v7735
    %v8011 = vpop.f32.mrf.mxu0
    %v8012 = vadd.f32 0.0, %v8011
    %v8013 = vpop.f32.mrf.mxu0
    %v8014 = vadd.f32 0.0, %v8013
    %v8015 = vpop.f32.mrf.mxu0
    %v8016 = vpop.f32.mrf.mxu0
    %8017 = vdwg.mxu0
    %8018 = vmatprep.subr.bf16.mxu0 %v7926
    %8019 = vmatpush1.bf16.msra.mxu0 %v7925
    %8020 = vmatprep.subr.bf16.mxu0 %v7920
    %8021 = vmatpush1.bf16.msra.mxu0 %v7919
    %8022 = vmatprep.subr.bf16.mxu0 %v7914
    %8023 = vmatpush1.bf16.msra.mxu0 %v7913
    %8024 = vmatprep.subr.bf16.mxu0 %v7908
    %8025 = vmatpush1.bf16.msra.mxu0 %v7907
    %8026 = vmatprep.subr.bf16.mxu0 %v7902
    %8027 = vmatpush1.bf16.msra.mxu0 %v7901
    %8028 = vmatprep.subr.bf16.mxu0 %v7896
    %8029 = vmatpush1.bf16.msra.mxu0 %v7895
    %8030 = vmatprep.subr.bf16.mxu0 %v7890
    %8031 = vmatpush1.bf16.msra.mxu0 %v7889
    %8032 = vmatprep.subr.bf16.mxu0 %v7884
    %8033 = vmatpush1.bf16.msra.mxu0 %v7883
    %8034 = vmatprep.subr.bf16.mxu0 0
    %8035 = vmatpush2.bf16.msra.mxu0 0
    %8036 = vmatprep.subr.bf16.mxu0 0
    %8037 = vmatpush2.bf16.msra.mxu0 0
    %8038 = vmatprep.subr.bf16.mxu0 0
    %8039 = vmatpush2.bf16.msra.mxu0 0
    %8040 = vmatprep.subr.bf16.mxu0 0
    %8041 = vmatpush2.bf16.msra.mxu0 0
    %8042 = vmatprep.subr.bf16.mxu0 0
    %8043 = vmatpush2.bf16.msra.mxu0 0
    %8044 = vmatprep.subr.bf16.mxu0 0
    %8045 = vmatpush2.bf16.msra.mxu0 0
    %8046 = vmatprep.subr.bf16.mxu0 0
    %8047 = vmatpush2.bf16.msra.mxu0 0
    %8048 = vmatprep.subr.bf16.mxu0 0
    %8049 = vmatpush2.bf16.msra.mxu0 0
    %8050 = vmatprep.mubr.bf16.mxu0 0
    %8051 = vmatmul.mubr.bf16.gmra.mxu0 %v7735
    %v8052 = vpop.f32.mrf.mxu0
    %v8053 = vadd.f32 0.0, %v8052
    %v8054 = vpop.f32.mrf.mxu0
    %v8055 = vadd.f32 0.0, %v8054
    %v8056 = vpop.f32.mrf.mxu0
    %v8057 = vpop.f32.mrf.mxu0
    %8058 = vdwg.mxu0
    %8059 = vmatprep.subr.bf16.mxu0 %v7928
    %8060 = vmatpush1.bf16.msra.mxu0 %v7927
    %8061 = vmatprep.subr.bf16.mxu0 %v7922
    %8062 = vmatpush1.bf16.msra.mxu0 %v7921
    %8063 = vmatprep.subr.bf16.mxu0 %v7916
    %8064 = vmatpush1.bf16.msra.mxu0 %v7915
    %8065 = vmatprep.subr.bf16.mxu0 %v7910
    %8066 = vmatpush1.bf16.msra.mxu0 %v7909
    %8067 = vmatprep.subr.bf16.mxu0 %v7904
    %8068 = vmatpush1.bf16.msra.mxu0 %v7903
    %8069 = vmatprep.subr.bf16.mxu0 %v7898
    %8070 = vmatpush1.bf16.msra.mxu0 %v7897
    %8071 = vmatprep.subr.bf16.mxu0 %v7892
    %8072 = vmatpush1.bf16.msra.mxu0 %v7891
    %8073 = vmatprep.subr.bf16.mxu0 %v7886
    %8074 = vmatpush1.bf16.msra.mxu0 %v7885
    %8075 = vmatprep.subr.bf16.mxu0 0
    %8076 = vmatpush2.bf16.msra.mxu0 0
    %8077 = vmatprep.subr.bf16.mxu0 0
    %8078 = vmatpush2.bf16.msra.mxu0 0
    %8079 = vmatprep.subr.bf16.mxu0 0
    %8080 = vmatpush2.bf16.msra.mxu0 0
    %8081 = vmatprep.subr.bf16.mxu0 0
    %8082 = vmatpush2.bf16.msra.mxu0 0
    %8083 = vmatprep.subr.bf16.mxu0 0
    %8084 = vmatpush2.bf16.msra.mxu0 0
    %8085 = vmatprep.subr.bf16.mxu0 0
    %8086 = vmatpush2.bf16.msra.mxu0 0
    %8087 = vmatprep.subr.bf16.mxu0 0
    %8088 = vmatpush2.bf16.msra.mxu0 0
    %8089 = vmatprep.subr.bf16.mxu0 0
    %8090 = vmatpush2.bf16.msra.mxu0 0
    %8091 = vmatprep.mubr.bf16.mxu0 0
    %8092 = vmatmul.mubr.bf16.gmra.mxu0 %v7735
    %v8093 = vpop.f32.mrf.mxu0
    %v8094 = vadd.f32 0.0, %v8093
    %v8095 = vpop.f32.mrf.mxu0
    %v8096 = vadd.f32 0.0, %v8095
    %v8097 = vpop.f32.mrf.mxu0
    %v8098 = vpop.f32.mrf.mxu0
    %8099 = vdwg.mxu0
    %v8100 = vadd.f32 %v7672, %v8012
    %v8101 = vadd.f32 %v7673, %v8014
    %v8102 = vadd.f32 %v7674, %v8053
    %v8103 = vadd.f32 %v7675, %v8055
    %v8104 = vadd.f32 %v7676, %v8094
    %v8105 = vadd.f32 %v7677, %v8096
    %s8106 = scalar_lea.vmem [#allocation8], 6528
    %v8107 = vld [vmem:[%s8106] sm:$0xff]
    %v8108 = vld [vmem:[%s8106 + $0x8] sm:$0xff]
    %v8109 = vld [vmem:[%s8106 + $0x10] sm:$0xff]
    %v8110 = vld [vmem:[%s8106 + $0x18] sm:$0xff]
    %v8111 = vld [vmem:[%s8106 + $0x20] sm:$0xff]
    %v8112 = vld [vmem:[%s8106 + $0x28] sm:$0xff]
    %v8113 = vld [vmem:[%s8106 + $0x30] sm:$0xff]
    %v8114 = vld [vmem:[%s8106 + $0x38] sm:$0xff]
    %v8115 = vld [vmem:[%s8106 + $0x40] sm:$0xff]
    %v8116 = vld [vmem:[%s8106 + $0x48] sm:$0xff]
    %v8117 = vld [vmem:[%s8106 + $0x50] sm:$0xff]
    %v8118 = vld [vmem:[%s8106 + $0x58] sm:$0xff]
    %v8119 = vld [vmem:[%s8106 + $0x60] sm:$0xff]
    %v8120 = vld [vmem:[%s8106 + $0x68] sm:$0xff]
    %v8121 = vld [vmem:[%s8106 + $0x70] sm:$0xff]
    %v8122 = vld [vmem:[%s8106 + $0x78] sm:$0xff]
    %v8123 = vld [vmem:[%s8106 + $0x80] sm:$0xff]
    %v8124 = vld [vmem:[%s8106 + $0x88] sm:$0xff]
    %v8125 = vld [vmem:[%s8106 + $0x90] sm:$0xff]
    %v8126 = vld [vmem:[%s8106 + $0x98] sm:$0xff]
    %v8127 = vld [vmem:[%s8106 + $0xa0] sm:$0xff]
    %v8128 = vld [vmem:[%s8106 + $0xa8] sm:$0xff]
    %v8129 = vld [vmem:[%s8106 + $0xb0] sm:$0xff]
    %v8130 = vld [vmem:[%s8106 + $0xb8] sm:$0xff]
    %v8131 = vld [vmem:[%s8106 + $0xc0] sm:$0xff]
    %v8132 = vld [vmem:[%s8106 + $0xc8] sm:$0xff]
    %v8133 = vld [vmem:[%s8106 + $0xd0] sm:$0xff]
    %v8134 = vld [vmem:[%s8106 + $0xd8] sm:$0xff]
    %v8135 = vld [vmem:[%s8106 + $0xe0] sm:$0xff]
    %v8136 = vld [vmem:[%s8106 + $0xe8] sm:$0xff]
    %v8137 = vld [vmem:[%s8106 + $0xf0] sm:$0xff]
    %v8138 = vld [vmem:[%s8106 + $0xf8] sm:$0xff]
    %v8139 = vld [vmem:[%s8106 + $0x100] sm:$0xff]
    %v8140 = vld [vmem:[%s8106 + $0x108] sm:$0xff]
    %v8141 = vld [vmem:[%s8106 + $0x110] sm:$0xff]
    %v8142 = vld [vmem:[%s8106 + $0x118] sm:$0xff]
    %v8143 = vld [vmem:[%s8106 + $0x120] sm:$0xff]
    %v8144 = vld [vmem:[%s8106 + $0x128] sm:$0xff]
    %v8145 = vld [vmem:[%s8106 + $0x130] sm:$0xff]
    %v8146 = vld [vmem:[%s8106 + $0x138] sm:$0xff]
    %v8147 = vld [vmem:[%s8106 + $0x140] sm:$0xff]
    %v8148 = vld [vmem:[%s8106 + $0x148] sm:$0xff]
    %v8149 = vld [vmem:[%s8106 + $0x150] sm:$0xff]
    %v8150 = vld [vmem:[%s8106 + $0x158] sm:$0xff]
    %v8151 = vld [vmem:[%s8106 + $0x160] sm:$0xff]
    %v8152 = vld [vmem:[%s8106 + $0x168] sm:$0xff]
    %v8153 = vld [vmem:[%s8106 + $0x170] sm:$0xff]
    %v8154 = vld [vmem:[%s8106 + $0x178] sm:$0xff]
    %v8155 = vrot.slane %v7731, 1
    %v8156 = vsel %vm1018, %v7732, %v8155
    %v8157 = vpack.c.b16 %v8156, %v8156
    %v8207 = vunpack.c.l.b16 %v8107
    %v8208 = vunpack.c.h.b16 %v8107
    %v8209 = vunpack.c.l.b16 %v8108
    %v8210 = vunpack.c.h.b16 %v8108
    %v8211 = vunpack.c.l.b16 %v8109
    %v8212 = vunpack.c.h.b16 %v8109
    %v8213 = vunpack.c.l.b16 %v8110
    %v8214 = vunpack.c.h.b16 %v8110
    %v8215 = vunpack.c.l.b16 %v8111
    %v8216 = vunpack.c.h.b16 %v8111
    %v8217 = vunpack.c.l.b16 %v8112
    %v8218 = vunpack.c.h.b16 %v8112
    %v8219 = vunpack.c.l.b16 %v8113
    %v8220 = vunpack.c.h.b16 %v8113
    %v8221 = vunpack.c.l.b16 %v8114
    %v8222 = vunpack.c.h.b16 %v8114
    %v8223 = vunpack.c.l.b16 %v8115
    %v8224 = vunpack.c.h.b16 %v8115
    %v8225 = vunpack.c.l.b16 %v8116
    %v8226 = vunpack.c.h.b16 %v8116
    %v8227 = vunpack.c.l.b16 %v8117
    %v8228 = vunpack.c.h.b16 %v8117
    %v8229 = vunpack.c.l.b16 %v8118
    %v8230 = vunpack.c.h.b16 %v8118
    %v8231 = vunpack.c.l.b16 %v8119
    %v8232 = vunpack.c.h.b16 %v8119
    %v8233 = vunpack.c.l.b16 %v8120
    %v8234 = vunpack.c.h.b16 %v8120
    %v8235 = vunpack.c.l.b16 %v8121
    %v8236 = vunpack.c.h.b16 %v8121
    %v8237 = vunpack.c.l.b16 %v8122
    %v8238 = vunpack.c.h.b16 %v8122
    %v8239 = vunpack.c.l.b16 %v8123
    %v8240 = vunpack.c.h.b16 %v8123
    %v8241 = vunpack.c.l.b16 %v8124
    %v8242 = vunpack.c.h.b16 %v8124
    %v8243 = vunpack.c.l.b16 %v8125
    %v8244 = vunpack.c.h.b16 %v8125
    %v8245 = vunpack.c.l.b16 %v8126
    %v8246 = vunpack.c.h.b16 %v8126
    %v8247 = vunpack.c.l.b16 %v8127
    %v8248 = vunpack.c.h.b16 %v8127
    %v8249 = vunpack.c.l.b16 %v8128
    %v8250 = vunpack.c.h.b16 %v8128
    %v8251 = vunpack.c.l.b16 %v8129
    %v8252 = vunpack.c.h.b16 %v8129
    %v8253 = vunpack.c.l.b16 %v8130
    %v8254 = vunpack.c.h.b16 %v8130
    %v8255 = vunpack.c.l.b16 %v8131
    %v8256 = vunpack.c.h.b16 %v8131
    %v8257 = vunpack.c.l.b16 %v8132
    %v8258 = vunpack.c.h.b16 %v8132
    %v8259 = vunpack.c.l.b16 %v8133
    %v8260 = vunpack.c.h.b16 %v8133
    %v8261 = vunpack.c.l.b16 %v8134
    %v8262 = vunpack.c.h.b16 %v8134
    %v8263 = vunpack.c.l.b16 %v8135
    %v8264 = vunpack.c.h.b16 %v8135
    %v8265 = vunpack.c.l.b16 %v8136
    %v8266 = vunpack.c.h.b16 %v8136
    %v8267 = vunpack.c.l.b16 %v8137
    %v8268 = vunpack.c.h.b16 %v8137
    %v8269 = vunpack.c.l.b16 %v8138
    %v8270 = vunpack.c.h.b16 %v8138
    %v8271 = vunpack.c.l.b16 %v8139
    %v8272 = vunpack.c.h.b16 %v8139
    %v8273 = vunpack.c.l.b16 %v8140
    %v8274 = vunpack.c.h.b16 %v8140
    %v8275 = vunpack.c.l.b16 %v8141
    %v8276 = vunpack.c.h.b16 %v8141
    %v8277 = vunpack.c.l.b16 %v8142
    %v8278 = vunpack.c.h.b16 %v8142
    %v8279 = vunpack.c.l.b16 %v8143
    %v8280 = vunpack.c.h.b16 %v8143
    %v8281 = vunpack.c.l.b16 %v8144
    %v8282 = vunpack.c.h.b16 %v8144
    %v8283 = vunpack.c.l.b16 %v8145
    %v8284 = vunpack.c.h.b16 %v8145
    %v8285 = vunpack.c.l.b16 %v8146
    %v8286 = vunpack.c.h.b16 %v8146
    %v8287 = vunpack.c.l.b16 %v8147
    %v8288 = vunpack.c.h.b16 %v8147
    %v8289 = vunpack.c.l.b16 %v8148
    %v8290 = vunpack.c.h.b16 %v8148
    %v8291 = vunpack.c.l.b16 %v8149
    %v8292 = vunpack.c.h.b16 %v8149
    %v8293 = vunpack.c.l.b16 %v8150
    %v8294 = vunpack.c.h.b16 %v8150
    %v8295 = vunpack.c.l.b16 %v8151
    %v8296 = vunpack.c.h.b16 %v8151
    %v8297 = vunpack.c.l.b16 %v8152
    %v8298 = vunpack.c.h.b16 %v8152
    %v8299 = vunpack.c.l.b16 %v8153
    %v8300 = vunpack.c.h.b16 %v8153
    %v8301 = vunpack.c.l.b16 %v8154
    %v8302 = vunpack.c.h.b16 %v8154
    %v8303 = vpack.c.b16 %v8213, %v8207
    %v8304 = vpack.c.b16 %v8214, %v8208
    %v8305 = vpack.c.b16 %v8215, %v8209
    %v8306 = vpack.c.b16 %v8216, %v8210
    %v8307 = vpack.c.b16 %v8217, %v8211
    %v8308 = vpack.c.b16 %v8218, %v8212
    %v8309 = vpack.c.b16 %v8225, %v8219
    %v8310 = vpack.c.b16 %v8226, %v8220
    %v8311 = vpack.c.b16 %v8227, %v8221
    %v8312 = vpack.c.b16 %v8228, %v8222
    %v8313 = vpack.c.b16 %v8229, %v8223
    %v8314 = vpack.c.b16 %v8230, %v8224
    %v8315 = vpack.c.b16 %v8237, %v8231
    %v8316 = vpack.c.b16 %v8238, %v8232
    %v8317 = vpack.c.b16 %v8239, %v8233
    %v8318 = vpack.c.b16 %v8240, %v8234
    %v8319 = vpack.c.b16 %v8241, %v8235
    %v8320 = vpack.c.b16 %v8242, %v8236
    %v8321 = vpack.c.b16 %v8249, %v8243
    %v8322 = vpack.c.b16 %v8250, %v8244
    %v8323 = vpack.c.b16 %v8251, %v8245
    %v8324 = vpack.c.b16 %v8252, %v8246
    %v8325 = vpack.c.b16 %v8253, %v8247
    %v8326 = vpack.c.b16 %v8254, %v8248
    %v8327 = vpack.c.b16 %v8261, %v8255
    %v8328 = vpack.c.b16 %v8262, %v8256
    %v8329 = vpack.c.b16 %v8263, %v8257
    %v8330 = vpack.c.b16 %v8264, %v8258
    %v8331 = vpack.c.b16 %v8265, %v8259
    %v8332 = vpack.c.b16 %v8266, %v8260
    %v8333 = vpack.c.b16 %v8273, %v8267
    %v8334 = vpack.c.b16 %v8274, %v8268
    %v8335 = vpack.c.b16 %v8275, %v8269
    %v8336 = vpack.c.b16 %v8276, %v8270
    %v8337 = vpack.c.b16 %v8277, %v8271
    %v8338 = vpack.c.b16 %v8278, %v8272
    %v8339 = vpack.c.b16 %v8285, %v8279
    %v8340 = vpack.c.b16 %v8286, %v8280
    %v8341 = vpack.c.b16 %v8287, %v8281
    %v8342 = vpack.c.b16 %v8288, %v8282
    %v8343 = vpack.c.b16 %v8289, %v8283
    %v8344 = vpack.c.b16 %v8290, %v8284
    %v8345 = vpack.c.b16 %v8297, %v8291
    %v8346 = vpack.c.b16 %v8298, %v8292
    %v8347 = vpack.c.b16 %v8299, %v8293
    %v8348 = vpack.c.b16 %v8300, %v8294
    %v8349 = vpack.c.b16 %v8301, %v8295
    %v8350 = vpack.c.b16 %v8302, %v8296
    %8399 = vmatprep.subr.bf16.mxu0 %v8346
    %8400 = vmatpush1.bf16.msra.mxu0 %v8345
    %8401 = vmatprep.subr.bf16.mxu0 %v8340
    %8402 = vmatpush1.bf16.msra.mxu0 %v8339
    %8403 = vmatprep.subr.bf16.mxu0 %v8334
    %8404 = vmatpush1.bf16.msra.mxu0 %v8333
    %8405 = vmatprep.subr.bf16.mxu0 %v8328
    %8406 = vmatpush1.bf16.msra.mxu0 %v8327
    %8407 = vmatprep.subr.bf16.mxu0 %v8322
    %8408 = vmatpush1.bf16.msra.mxu0 %v8321
    %8409 = vmatprep.subr.bf16.mxu0 %v8316
    %8410 = vmatpush1.bf16.msra.mxu0 %v8315
    %8411 = vmatprep.subr.bf16.mxu0 %v8310
    %8412 = vmatpush1.bf16.msra.mxu0 %v8309
    %8413 = vmatprep.subr.bf16.mxu0 %v8304
    %8414 = vmatpush1.bf16.msra.mxu0 %v8303
    %8415 = vmatprep.subr.bf16.mxu0 0
    %8416 = vmatpush2.bf16.msra.mxu0 0
    %8417 = vmatprep.subr.bf16.mxu0 0
    %8418 = vmatpush2.bf16.msra.mxu0 0
    %8419 = vmatprep.subr.bf16.mxu0 0
    %8420 = vmatpush2.bf16.msra.mxu0 0
    %8421 = vmatprep.subr.bf16.mxu0 0
    %8422 = vmatpush2.bf16.msra.mxu0 0
    %8423 = vmatprep.subr.bf16.mxu0 0
    %8424 = vmatpush2.bf16.msra.mxu0 0
    %8425 = vmatprep.subr.bf16.mxu0 0
    %8426 = vmatpush2.bf16.msra.mxu0 0
    %8427 = vmatprep.subr.bf16.mxu0 0
    %8428 = vmatpush2.bf16.msra.mxu0 0
    %8429 = vmatprep.subr.bf16.mxu0 0
    %8430 = vmatpush2.bf16.msra.mxu0 0
    %8431 = vmatprep.mubr.bf16.mxu0 0
    %8432 = vmatmul.mubr.bf16.gmra.mxu0 %v8157
    %v8433 = vpop.f32.mrf.mxu0
    %v8434 = vadd.f32 0.0, %v8433
    %v8435 = vpop.f32.mrf.mxu0
    %v8436 = vadd.f32 0.0, %v8435
    %v8437 = vpop.f32.mrf.mxu0
    %v8438 = vpop.f32.mrf.mxu0
    %8439 = vdwg.mxu0
    %8440 = vmatprep.subr.bf16.mxu0 %v8348
    %8441 = vmatpush1.bf16.msra.mxu0 %v8347
    %8442 = vmatprep.subr.bf16.mxu0 %v8342
    %8443 = vmatpush1.bf16.msra.mxu0 %v8341
    %8444 = vmatprep.subr.bf16.mxu0 %v8336
    %8445 = vmatpush1.bf16.msra.mxu0 %v8335
    %8446 = vmatprep.subr.bf16.mxu0 %v8330
    %8447 = vmatpush1.bf16.msra.mxu0 %v8329
    %8448 = vmatprep.subr.bf16.mxu0 %v8324
    %8449 = vmatpush1.bf16.msra.mxu0 %v8323
    %8450 = vmatprep.subr.bf16.mxu0 %v8318
    %8451 = vmatpush1.bf16.msra.mxu0 %v8317
    %8452 = vmatprep.subr.bf16.mxu0 %v8312
    %8453 = vmatpush1.bf16.msra.mxu0 %v8311
    %8454 = vmatprep.subr.bf16.mxu0 %v8306
    %8455 = vmatpush1.bf16.msra.mxu0 %v8305
    %8456 = vmatprep.subr.bf16.mxu0 0
    %8457 = vmatpush2.bf16.msra.mxu0 0
    %8458 = vmatprep.subr.bf16.mxu0 0
    %8459 = vmatpush2.bf16.msra.mxu0 0
    %8460 = vmatprep.subr.bf16.mxu0 0
    %8461 = vmatpush2.bf16.msra.mxu0 0
    %8462 = vmatprep.subr.bf16.mxu0 0
    %8463 = vmatpush2.bf16.msra.mxu0 0
    %8464 = vmatprep.subr.bf16.mxu0 0
    %8465 = vmatpush2.bf16.msra.mxu0 0
    %8466 = vmatprep.subr.bf16.mxu0 0
    %8467 = vmatpush2.bf16.msra.mxu0 0
    %8468 = vmatprep.subr.bf16.mxu0 0
    %8469 = vmatpush2.bf16.msra.mxu0 0
    %8470 = vmatprep.subr.bf16.mxu0 0
    %8471 = vmatpush2.bf16.msra.mxu0 0
    %8472 = vmatprep.mubr.bf16.mxu0 0
    %8473 = vmatmul.mubr.bf16.gmra.mxu0 %v8157
    %v8474 = vpop.f32.mrf.mxu0
    %v8475 = vadd.f32 0.0, %v8474
    %v8476 = vpop.f32.mrf.mxu0
    %v8477 = vadd.f32 0.0, %v8476
    %v8478 = vpop.f32.mrf.mxu0
    %v8479 = vpop.f32.mrf.mxu0
    %8480 = vdwg.mxu0
    %8481 = vmatprep.subr.bf16.mxu0 %v8350
    %8482 = vmatpush1.bf16.msra.mxu0 %v8349
    %8483 = vmatprep.subr.bf16.mxu0 %v8344
    %8484 = vmatpush1.bf16.msra.mxu0 %v8343
    %8485 = vmatprep.subr.bf16.mxu0 %v8338
    %8486 = vmatpush1.bf16.msra.mxu0 %v8337
    %8487 = vmatprep.subr.bf16.mxu0 %v8332
    %8488 = vmatpush1.bf16.msra.mxu0 %v8331
    %8489 = vmatprep.subr.bf16.mxu0 %v8326
    %8490 = vmatpush1.bf16.msra.mxu0 %v8325
    %8491 = vmatprep.subr.bf16.mxu0 %v8320
    %8492 = vmatpush1.bf16.msra.mxu0 %v8319
    %8493 = vmatprep.subr.bf16.mxu0 %v8314
    %8494 = vmatpush1.bf16.msra.mxu0 %v8313
    %8495 = vmatprep.subr.bf16.mxu0 %v8308
    %8496 = vmatpush1.bf16.msra.mxu0 %v8307
    %8497 = vmatprep.subr.bf16.mxu0 0
    %8498 = vmatpush2.bf16.msra.mxu0 0
    %8499 = vmatprep.subr.bf16.mxu0 0
    %8500 = vmatpush2.bf16.msra.mxu0 0
    %8501 = vmatprep.subr.bf16.mxu0 0
    %8502 = vmatpush2.bf16.msra.mxu0 0
    %8503 = vmatprep.subr.bf16.mxu0 0
    %8504 = vmatpush2.bf16.msra.mxu0 0
    %8505 = vmatprep.subr.bf16.mxu0 0
    %8506 = vmatpush2.bf16.msra.mxu0 0
    %8507 = vmatprep.subr.bf16.mxu0 0
    %8508 = vmatpush2.bf16.msra.mxu0 0
    %8509 = vmatprep.subr.bf16.mxu0 0
    %8510 = vmatpush2.bf16.msra.mxu0 0
    %8511 = vmatprep.subr.bf16.mxu0 0
    %8512 = vmatpush2.bf16.msra.mxu0 0
    %8513 = vmatprep.mubr.bf16.mxu0 0
    %8514 = vmatmul.mubr.bf16.gmra.mxu0 %v8157
    %v8515 = vpop.f32.mrf.mxu0
    %v8516 = vadd.f32 0.0, %v8515
    %v8517 = vpop.f32.mrf.mxu0
    %v8518 = vadd.f32 0.0, %v8517
    %v8519 = vpop.f32.mrf.mxu0
    %v8520 = vpop.f32.mrf.mxu0
    %8521 = vdwg.mxu0
    %v8522 = vadd.f32 %v8100, %v8434
    %v8523 = vadd.f32 %v8101, %v8436
    %v8524 = vadd.f32 %v8102, %v8475
    %v8525 = vadd.f32 %v8103, %v8477
    %v8526 = vadd.f32 %v8104, %v8516
    %v8527 = vadd.f32 %v8105, %v8518
    %s8528 = scalar_lea.vmem [#allocation8], 6912
    %v8529 = vld [vmem:[%s8528] sm:$0xff]
    %v8530 = vld [vmem:[%s8528 + $0x8] sm:$0xff]
    %v8531 = vld [vmem:[%s8528 + $0x10] sm:$0xff]
    %v8532 = vld [vmem:[%s8528 + $0x18] sm:$0xff]
    %v8533 = vld [vmem:[%s8528 + $0x20] sm:$0xff]
    %v8534 = vld [vmem:[%s8528 + $0x28] sm:$0xff]
    %v8535 = vld [vmem:[%s8528 + $0x30] sm:$0xff]
    %v8536 = vld [vmem:[%s8528 + $0x38] sm:$0xff]
    %v8537 = vld [vmem:[%s8528 + $0x40] sm:$0xff]
    %v8538 = vld [vmem:[%s8528 + $0x48] sm:$0xff]
    %v8539 = vld [vmem:[%s8528 + $0x50] sm:$0xff]
    %v8540 = vld [vmem:[%s8528 + $0x58] sm:$0xff]
    %v8541 = vld [vmem:[%s8528 + $0x60] sm:$0xff]
    %v8542 = vld [vmem:[%s8528 + $0x68] sm:$0xff]
    %v8543 = vld [vmem:[%s8528 + $0x70] sm:$0xff]
    %v8544 = vld [vmem:[%s8528 + $0x78] sm:$0xff]
    %v8545 = vld [vmem:[%s8528 + $0x80] sm:$0xff]
    %v8546 = vld [vmem:[%s8528 + $0x88] sm:$0xff]
    %v8547 = vld [vmem:[%s8528 + $0x90] sm:$0xff]
    %v8548 = vld [vmem:[%s8528 + $0x98] sm:$0xff]
    %v8549 = vld [vmem:[%s8528 + $0xa0] sm:$0xff]
    %v8550 = vld [vmem:[%s8528 + $0xa8] sm:$0xff]
    %v8551 = vld [vmem:[%s8528 + $0xb0] sm:$0xff]
    %v8552 = vld [vmem:[%s8528 + $0xb8] sm:$0xff]
    %v8553 = vld [vmem:[%s8528 + $0xc0] sm:$0xff]
    %v8554 = vld [vmem:[%s8528 + $0xc8] sm:$0xff]
    %v8555 = vld [vmem:[%s8528 + $0xd0] sm:$0xff]
    %v8556 = vld [vmem:[%s8528 + $0xd8] sm:$0xff]
    %v8557 = vld [vmem:[%s8528 + $0xe0] sm:$0xff]
    %v8558 = vld [vmem:[%s8528 + $0xe8] sm:$0xff]
    %v8559 = vld [vmem:[%s8528 + $0xf0] sm:$0xff]
    %v8560 = vld [vmem:[%s8528 + $0xf8] sm:$0xff]
    %v8561 = vld [vmem:[%s8528 + $0x100] sm:$0xff]
    %v8562 = vld [vmem:[%s8528 + $0x108] sm:$0xff]
    %v8563 = vld [vmem:[%s8528 + $0x110] sm:$0xff]
    %v8564 = vld [vmem:[%s8528 + $0x118] sm:$0xff]
    %v8565 = vld [vmem:[%s8528 + $0x120] sm:$0xff]
    %v8566 = vld [vmem:[%s8528 + $0x128] sm:$0xff]
    %v8567 = vld [vmem:[%s8528 + $0x130] sm:$0xff]
    %v8568 = vld [vmem:[%s8528 + $0x138] sm:$0xff]
    %v8569 = vld [vmem:[%s8528 + $0x140] sm:$0xff]
    %v8570 = vld [vmem:[%s8528 + $0x148] sm:$0xff]
    %v8571 = vld [vmem:[%s8528 + $0x150] sm:$0xff]
    %v8572 = vld [vmem:[%s8528 + $0x158] sm:$0xff]
    %v8573 = vld [vmem:[%s8528 + $0x160] sm:$0xff]
    %v8574 = vld [vmem:[%s8528 + $0x168] sm:$0xff]
    %v8575 = vld [vmem:[%s8528 + $0x170] sm:$0xff]
    %v8576 = vld [vmem:[%s8528 + $0x178] sm:$0xff]
    %v8577 = vrot.slane %v7731, 2
    %v8578 = vrot.slane %v7732, 1
    %v8579 = vsel %vm1018, %v8578, %v8577
    %v8580 = vpack.c.b16 %v8579, %v8579
    %v8630 = vunpack.c.l.b16 %v8529
    %v8631 = vunpack.c.h.b16 %v8529
    %v8632 = vunpack.c.l.b16 %v8530
    %v8633 = vunpack.c.h.b16 %v8530
    %v8634 = vunpack.c.l.b16 %v8531
    %v8635 = vunpack.c.h.b16 %v8531
    %v8636 = vunpack.c.l.b16 %v8532
    %v8637 = vunpack.c.h.b16 %v8532
    %v8638 = vunpack.c.l.b16 %v8533
    %v8639 = vunpack.c.h.b16 %v8533
    %v8640 = vunpack.c.l.b16 %v8534
    %v8641 = vunpack.c.h.b16 %v8534
    %v8642 = vunpack.c.l.b16 %v8535
    %v8643 = vunpack.c.h.b16 %v8535
    %v8644 = vunpack.c.l.b16 %v8536
    %v8645 = vunpack.c.h.b16 %v8536
    %v8646 = vunpack.c.l.b16 %v8537
    %v8647 = vunpack.c.h.b16 %v8537
    %v8648 = vunpack.c.l.b16 %v8538
    %v8649 = vunpack.c.h.b16 %v8538
    %v8650 = vunpack.c.l.b16 %v8539
    %v8651 = vunpack.c.h.b16 %v8539
    %v8652 = vunpack.c.l.b16 %v8540
    %v8653 = vunpack.c.h.b16 %v8540
    %v8654 = vunpack.c.l.b16 %v8541
    %v8655 = vunpack.c.h.b16 %v8541
    %v8656 = vunpack.c.l.b16 %v8542
    %v8657 = vunpack.c.h.b16 %v8542
    %v8658 = vunpack.c.l.b16 %v8543
    %v8659 = vunpack.c.h.b16 %v8543
    %v8660 = vunpack.c.l.b16 %v8544
    %v8661 = vunpack.c.h.b16 %v8544
    %v8662 = vunpack.c.l.b16 %v8545
    %v8663 = vunpack.c.h.b16 %v8545
    %v8664 = vunpack.c.l.b16 %v8546
    %v8665 = vunpack.c.h.b16 %v8546
    %v8666 = vunpack.c.l.b16 %v8547
    %v8667 = vunpack.c.h.b16 %v8547
    %v8668 = vunpack.c.l.b16 %v8548
    %v8669 = vunpack.c.h.b16 %v8548
    %v8670 = vunpack.c.l.b16 %v8549
    %v8671 = vunpack.c.h.b16 %v8549
    %v8672 = vunpack.c.l.b16 %v8550
    %v8673 = vunpack.c.h.b16 %v8550
    %v8674 = vunpack.c.l.b16 %v8551
    %v8675 = vunpack.c.h.b16 %v8551
    %v8676 = vunpack.c.l.b16 %v8552
    %v8677 = vunpack.c.h.b16 %v8552
    %v8678 = vunpack.c.l.b16 %v8553
    %v8679 = vunpack.c.h.b16 %v8553
    %v8680 = vunpack.c.l.b16 %v8554
    %v8681 = vunpack.c.h.b16 %v8554
    %v8682 = vunpack.c.l.b16 %v8555
    %v8683 = vunpack.c.h.b16 %v8555
    %v8684 = vunpack.c.l.b16 %v8556
    %v8685 = vunpack.c.h.b16 %v8556
    %v8686 = vunpack.c.l.b16 %v8557
    %v8687 = vunpack.c.h.b16 %v8557
    %v8688 = vunpack.c.l.b16 %v8558
    %v8689 = vunpack.c.h.b16 %v8558
    %v8690 = vunpack.c.l.b16 %v8559
    %v8691 = vunpack.c.h.b16 %v8559
    %v8692 = vunpack.c.l.b16 %v8560
    %v8693 = vunpack.c.h.b16 %v8560
    %v8694 = vunpack.c.l.b16 %v8561
    %v8695 = vunpack.c.h.b16 %v8561
    %v8696 = vunpack.c.l.b16 %v8562
    %v8697 = vunpack.c.h.b16 %v8562
    %v8698 = vunpack.c.l.b16 %v8563
    %v8699 = vunpack.c.h.b16 %v8563
    %v8700 = vunpack.c.l.b16 %v8564
    %v8701 = vunpack.c.h.b16 %v8564
    %v8702 = vunpack.c.l.b16 %v8565
    %v8703 = vunpack.c.h.b16 %v8565
    %v8704 = vunpack.c.l.b16 %v8566
    %v8705 = vunpack.c.h.b16 %v8566
    %v8706 = vunpack.c.l.b16 %v8567
    %v8707 = vunpack.c.h.b16 %v8567
    %v8708 = vunpack.c.l.b16 %v8568
    %v8709 = vunpack.c.h.b16 %v8568
    %v8710 = vunpack.c.l.b16 %v8569
    %v8711 = vunpack.c.h.b16 %v8569
    %v8712 = vunpack.c.l.b16 %v8570
    %v8713 = vunpack.c.h.b16 %v8570
    %v8714 = vunpack.c.l.b16 %v8571
    %v8715 = vunpack.c.h.b16 %v8571
    %v8716 = vunpack.c.l.b16 %v8572
    %v8717 = vunpack.c.h.b16 %v8572
    %v8718 = vunpack.c.l.b16 %v8573
    %v8719 = vunpack.c.h.b16 %v8573
    %v8720 = vunpack.c.l.b16 %v8574
    %v8721 = vunpack.c.h.b16 %v8574
    %v8722 = vunpack.c.l.b16 %v8575
    %v8723 = vunpack.c.h.b16 %v8575
    %v8724 = vunpack.c.l.b16 %v8576
    %v8725 = vunpack.c.h.b16 %v8576
    %v8726 = vpack.c.b16 %v8636, %v8630
    %v8727 = vpack.c.b16 %v8637, %v8631
    %v8728 = vpack.c.b16 %v8638, %v8632
    %v8729 = vpack.c.b16 %v8639, %v8633
    %v8730 = vpack.c.b16 %v8640, %v8634
    %v8731 = vpack.c.b16 %v8641, %v8635
    %v8732 = vpack.c.b16 %v8648, %v8642
    %v8733 = vpack.c.b16 %v8649, %v8643
    %v8734 = vpack.c.b16 %v8650, %v8644
    %v8735 = vpack.c.b16 %v8651, %v8645
    %v8736 = vpack.c.b16 %v8652, %v8646
    %v8737 = vpack.c.b16 %v8653, %v8647
    %v8738 = vpack.c.b16 %v8660, %v8654
    %v8739 = vpack.c.b16 %v8661, %v8655
    %v8740 = vpack.c.b16 %v8662, %v8656
    %v8741 = vpack.c.b16 %v8663, %v8657
    %v8742 = vpack.c.b16 %v8664, %v8658
    %v8743 = vpack.c.b16 %v8665, %v8659
    %v8744 = vpack.c.b16 %v8672, %v8666
    %v8745 = vpack.c.b16 %v8673, %v8667
    %v8746 = vpack.c.b16 %v8674, %v8668
    %v8747 = vpack.c.b16 %v8675, %v8669
    %v8748 = vpack.c.b16 %v8676, %v8670
    %v8749 = vpack.c.b16 %v8677, %v8671
    %v8750 = vpack.c.b16 %v8684, %v8678
    %v8751 = vpack.c.b16 %v8685, %v8679
    %v8752 = vpack.c.b16 %v8686, %v8680
    %v8753 = vpack.c.b16 %v8687, %v8681
    %v8754 = vpack.c.b16 %v8688, %v8682
    %v8755 = vpack.c.b16 %v8689, %v8683
    %v8756 = vpack.c.b16 %v8696, %v8690
    %v8757 = vpack.c.b16 %v8697, %v8691
    %v8758 = vpack.c.b16 %v8698, %v8692
    %v8759 = vpack.c.b16 %v8699, %v8693
    %v8760 = vpack.c.b16 %v8700, %v8694
    %v8761 = vpack.c.b16 %v8701, %v8695
    %v8762 = vpack.c.b16 %v8708, %v8702
    %v8763 = vpack.c.b16 %v8709, %v8703
    %v8764 = vpack.c.b16 %v8710, %v8704
    %v8765 = vpack.c.b16 %v8711, %v8705
    %v8766 = vpack.c.b16 %v8712, %v8706
    %v8767 = vpack.c.b16 %v8713, %v8707
    %v8768 = vpack.c.b16 %v8720, %v8714
    %v8769 = vpack.c.b16 %v8721, %v8715
    %v8770 = vpack.c.b16 %v8722, %v8716
    %v8771 = vpack.c.b16 %v8723, %v8717
    %v8772 = vpack.c.b16 %v8724, %v8718
    %v8773 = vpack.c.b16 %v8725, %v8719
    %8822 = vmatprep.subr.bf16.mxu0 %v8769
    %8823 = vmatpush1.bf16.msra.mxu0 %v8768
    %8824 = vmatprep.subr.bf16.mxu0 %v8763
    %8825 = vmatpush1.bf16.msra.mxu0 %v8762
    %8826 = vmatprep.subr.bf16.mxu0 %v8757
    %8827 = vmatpush1.bf16.msra.mxu0 %v8756
    %8828 = vmatprep.subr.bf16.mxu0 %v8751
    %8829 = vmatpush1.bf16.msra.mxu0 %v8750
    %8830 = vmatprep.subr.bf16.mxu0 %v8745
    %8831 = vmatpush1.bf16.msra.mxu0 %v8744
    %8832 = vmatprep.subr.bf16.mxu0 %v8739
    %8833 = vmatpush1.bf16.msra.mxu0 %v8738
    %8834 = vmatprep.subr.bf16.mxu0 %v8733
    %8835 = vmatpush1.bf16.msra.mxu0 %v8732
    %8836 = vmatprep.subr.bf16.mxu0 %v8727
    %8837 = vmatpush1.bf16.msra.mxu0 %v8726
    %8838 = vmatprep.subr.bf16.mxu0 0
    %8839 = vmatpush2.bf16.msra.mxu0 0
    %8840 = vmatprep.subr.bf16.mxu0 0
    %8841 = vmatpush2.bf16.msra.mxu0 0
    %8842 = vmatprep.subr.bf16.mxu0 0
    %8843 = vmatpush2.bf16.msra.mxu0 0
    %8844 = vmatprep.subr.bf16.mxu0 0
    %8845 = vmatpush2.bf16.msra.mxu0 0
    %8846 = vmatprep.subr.bf16.mxu0 0
    %8847 = vmatpush2.bf16.msra.mxu0 0
    %8848 = vmatprep.subr.bf16.mxu0 0
    %8849 = vmatpush2.bf16.msra.mxu0 0
    %8850 = vmatprep.subr.bf16.mxu0 0
    %8851 = vmatpush2.bf16.msra.mxu0 0
    %8852 = vmatprep.subr.bf16.mxu0 0
    %8853 = vmatpush2.bf16.msra.mxu0 0
    %8854 = vmatprep.mubr.bf16.mxu0 0
    %8855 = vmatmul.mubr.bf16.gmra.mxu0 %v8580
    %v8856 = vpop.f32.mrf.mxu0
    %v8857 = vadd.f32 0.0, %v8856
    %v8858 = vpop.f32.mrf.mxu0
    %v8859 = vadd.f32 0.0, %v8858
    %v8860 = vpop.f32.mrf.mxu0
    %v8861 = vpop.f32.mrf.mxu0
    %8862 = vdwg.mxu0
    %8863 = vmatprep.subr.bf16.mxu0 %v8771
    %8864 = vmatpush1.bf16.msra.mxu0 %v8770
    %8865 = vmatprep.subr.bf16.mxu0 %v8765
    %8866 = vmatpush1.bf16.msra.mxu0 %v8764
    %8867 = vmatprep.subr.bf16.mxu0 %v8759
    %8868 = vmatpush1.bf16.msra.mxu0 %v8758
    %8869 = vmatprep.subr.bf16.mxu0 %v8753
    %8870 = vmatpush1.bf16.msra.mxu0 %v8752
    %8871 = vmatprep.subr.bf16.mxu0 %v8747
    %8872 = vmatpush1.bf16.msra.mxu0 %v8746
    %8873 = vmatprep.subr.bf16.mxu0 %v8741
    %8874 = vmatpush1.bf16.msra.mxu0 %v8740
    %8875 = vmatprep.subr.bf16.mxu0 %v8735
    %8876 = vmatpush1.bf16.msra.mxu0 %v8734
    %8877 = vmatprep.subr.bf16.mxu0 %v8729
    %8878 = vmatpush1.bf16.msra.mxu0 %v8728
    %8879 = vmatprep.subr.bf16.mxu0 0
    %8880 = vmatpush2.bf16.msra.mxu0 0
    %8881 = vmatprep.subr.bf16.mxu0 0
    %8882 = vmatpush2.bf16.msra.mxu0 0
    %8883 = vmatprep.subr.bf16.mxu0 0
    %8884 = vmatpush2.bf16.msra.mxu0 0
    %8885 = vmatprep.subr.bf16.mxu0 0
    %8886 = vmatpush2.bf16.msra.mxu0 0
    %8887 = vmatprep.subr.bf16.mxu0 0
    %8888 = vmatpush2.bf16.msra.mxu0 0
    %8889 = vmatprep.subr.bf16.mxu0 0
    %8890 = vmatpush2.bf16.msra.mxu0 0
    %8891 = vmatprep.subr.bf16.mxu0 0
    %8892 = vmatpush2.bf16.msra.mxu0 0
    %8893 = vmatprep.subr.bf16.mxu0 0
    %8894 = vmatpush2.bf16.msra.mxu0 0
    %8895 = vmatprep.mubr.bf16.mxu0 0
    %8896 = vmatmul.mubr.bf16.gmra.mxu0 %v8580
    %v8897 = vpop.f32.mrf.mxu0
    %v8898 = vadd.f32 0.0, %v8897
    %v8899 = vpop.f32.mrf.mxu0
    %v8900 = vadd.f32 0.0, %v8899
    %v8901 = vpop.f32.mrf.mxu0
    %v8902 = vpop.f32.mrf.mxu0
    %8903 = vdwg.mxu0
    %8904 = vmatprep.subr.bf16.mxu0 %v8773
    %8905 = vmatpush1.bf16.msra.mxu0 %v8772
    %8906 = vmatprep.subr.bf16.mxu0 %v8767
    %8907 = vmatpush1.bf16.msra.mxu0 %v8766
    %8908 = vmatprep.subr.bf16.mxu0 %v8761
    %8909 = vmatpush1.bf16.msra.mxu0 %v8760
    %8910 = vmatprep.subr.bf16.mxu0 %v8755
    %8911 = vmatpush1.bf16.msra.mxu0 %v8754
    %8912 = vmatprep.subr.bf16.mxu0 %v8749
    %8913 = vmatpush1.bf16.msra.mxu0 %v8748
    %8914 = vmatprep.subr.bf16.mxu0 %v8743
    %8915 = vmatpush1.bf16.msra.mxu0 %v8742
    %8916 = vmatprep.subr.bf16.mxu0 %v8737
    %8917 = vmatpush1.bf16.msra.mxu0 %v8736
    %8918 = vmatprep.subr.bf16.mxu0 %v8731
    %8919 = vmatpush1.bf16.msra.mxu0 %v8730
    %8920 = vmatprep.subr.bf16.mxu0 0
    %8921 = vmatpush2.bf16.msra.mxu0 0
    %8922 = vmatprep.subr.bf16.mxu0 0
    %8923 = vmatpush2.bf16.msra.mxu0 0
    %8924 = vmatprep.subr.bf16.mxu0 0
    %8925 = vmatpush2.bf16.msra.mxu0 0
    %8926 = vmatprep.subr.bf16.mxu0 0
    %8927 = vmatpush2.bf16.msra.mxu0 0
    %8928 = vmatprep.subr.bf16.mxu0 0
    %8929 = vmatpush2.bf16.msra.mxu0 0
    %8930 = vmatprep.subr.bf16.mxu0 0
    %8931 = vmatpush2.bf16.msra.mxu0 0
    %8932 = vmatprep.subr.bf16.mxu0 0
    %8933 = vmatpush2.bf16.msra.mxu0 0
    %8934 = vmatprep.subr.bf16.mxu0 0
    %8935 = vmatpush2.bf16.msra.mxu0 0
    %8936 = vmatprep.mubr.bf16.mxu0 0
    %8937 = vmatmul.mubr.bf16.gmra.mxu0 %v8580
    %v8938 = vpop.f32.mrf.mxu0
    %v8939 = vadd.f32 0.0, %v8938
    %v8940 = vpop.f32.mrf.mxu0
    %v8941 = vadd.f32 0.0, %v8940
    %v8942 = vpop.f32.mrf.mxu0
    %v8943 = vpop.f32.mrf.mxu0
    %8944 = vdwg.mxu0
    %v8945 = vadd.f32 %v8522, %v8857
    %v8946 = vadd.f32 %v8523, %v8859
    %v8947 = vadd.f32 %v8524, %v8898
    %v8948 = vadd.f32 %v8525, %v8900
    %v8949 = vadd.f32 %v8526, %v8939
    %v8950 = vadd.f32 %v8527, %v8941
    %s8951 = scalar_lea.vmem [#allocation8], 7296
    %v8952 = vld [vmem:[%s8951] sm:$0xff]
    %v8953 = vld [vmem:[%s8951 + $0x8] sm:$0xff]
    %v8954 = vld [vmem:[%s8951 + $0x10] sm:$0xff]
    %v8955 = vld [vmem:[%s8951 + $0x18] sm:$0xff]
    %v8956 = vld [vmem:[%s8951 + $0x20] sm:$0xff]
    %v8957 = vld [vmem:[%s8951 + $0x28] sm:$0xff]
    %v8958 = vld [vmem:[%s8951 + $0x30] sm:$0xff]
    %v8959 = vld [vmem:[%s8951 + $0x38] sm:$0xff]
    %v8960 = vld [vmem:[%s8951 + $0x40] sm:$0xff]
    %v8961 = vld [vmem:[%s8951 + $0x48] sm:$0xff]
    %v8962 = vld [vmem:[%s8951 + $0x50] sm:$0xff]
    %v8963 = vld [vmem:[%s8951 + $0x58] sm:$0xff]
    %v8964 = vld [vmem:[%s8951 + $0x60] sm:$0xff]
    %v8965 = vld [vmem:[%s8951 + $0x68] sm:$0xff]
    %v8966 = vld [vmem:[%s8951 + $0x70] sm:$0xff]
    %v8967 = vld [vmem:[%s8951 + $0x78] sm:$0xff]
    %v8968 = vld [vmem:[%s8951 + $0x80] sm:$0xff]
    %v8969 = vld [vmem:[%s8951 + $0x88] sm:$0xff]
    %v8970 = vld [vmem:[%s8951 + $0x90] sm:$0xff]
    %v8971 = vld [vmem:[%s8951 + $0x98] sm:$0xff]
    %v8972 = vld [vmem:[%s8951 + $0xa0] sm:$0xff]
    %v8973 = vld [vmem:[%s8951 + $0xa8] sm:$0xff]
    %v8974 = vld [vmem:[%s8951 + $0xb0] sm:$0xff]
    %v8975 = vld [vmem:[%s8951 + $0xb8] sm:$0xff]
    %v8976 = vld [vmem:[%s8951 + $0xc0] sm:$0xff]
    %v8977 = vld [vmem:[%s8951 + $0xc8] sm:$0xff]
    %v8978 = vld [vmem:[%s8951 + $0xd0] sm:$0xff]
    %v8979 = vld [vmem:[%s8951 + $0xd8] sm:$0xff]
    %v8980 = vld [vmem:[%s8951 + $0xe0] sm:$0xff]
    %v8981 = vld [vmem:[%s8951 + $0xe8] sm:$0xff]
    %v8982 = vld [vmem:[%s8951 + $0xf0] sm:$0xff]
    %v8983 = vld [vmem:[%s8951 + $0xf8] sm:$0xff]
    %v8984 = vld [vmem:[%s8951 + $0x100] sm:$0xff]
    %v8985 = vld [vmem:[%s8951 + $0x108] sm:$0xff]
    %v8986 = vld [vmem:[%s8951 + $0x110] sm:$0xff]
    %v8987 = vld [vmem:[%s8951 + $0x118] sm:$0xff]
    %v8988 = vld [vmem:[%s8951 + $0x120] sm:$0xff]
    %v8989 = vld [vmem:[%s8951 + $0x128] sm:$0xff]
    %v8990 = vld [vmem:[%s8951 + $0x130] sm:$0xff]
    %v8991 = vld [vmem:[%s8951 + $0x138] sm:$0xff]
    %v8992 = vld [vmem:[%s8951 + $0x140] sm:$0xff]
    %v8993 = vld [vmem:[%s8951 + $0x148] sm:$0xff]
    %v8994 = vld [vmem:[%s8951 + $0x150] sm:$0xff]
    %v8995 = vld [vmem:[%s8951 + $0x158] sm:$0xff]
    %v8996 = vld [vmem:[%s8951 + $0x160] sm:$0xff]
    %v8997 = vld [vmem:[%s8951 + $0x168] sm:$0xff]
    %v8998 = vld [vmem:[%s8951 + $0x170] sm:$0xff]
    %v8999 = vld [vmem:[%s8951 + $0x178] sm:$0xff]
    %v9000 = vrot.slane %v7731, 3
    %v9001 = vrot.slane %v7732, 2
    %v9002 = vsel %vm1018, %v9001, %v9000
    %v9003 = vpack.c.b16 %v9002, %v9002
    %v9053 = vunpack.c.l.b16 %v8952
    %v9054 = vunpack.c.h.b16 %v8952
    %v9055 = vunpack.c.l.b16 %v8953
    %v9056 = vunpack.c.h.b16 %v8953
    %v9057 = vunpack.c.l.b16 %v8954
    %v9058 = vunpack.c.h.b16 %v8954
    %v9059 = vunpack.c.l.b16 %v8955
    %v9060 = vunpack.c.h.b16 %v8955
    %v9061 = vunpack.c.l.b16 %v8956
    %v9062 = vunpack.c.h.b16 %v8956
    %v9063 = vunpack.c.l.b16 %v8957
    %v9064 = vunpack.c.h.b16 %v8957
    %v9065 = vunpack.c.l.b16 %v8958
    %v9066 = vunpack.c.h.b16 %v8958
    %v9067 = vunpack.c.l.b16 %v8959
    %v9068 = vunpack.c.h.b16 %v8959
    %v9069 = vunpack.c.l.b16 %v8960
    %v9070 = vunpack.c.h.b16 %v8960
    %v9071 = vunpack.c.l.b16 %v8961
    %v9072 = vunpack.c.h.b16 %v8961
    %v9073 = vunpack.c.l.b16 %v8962
    %v9074 = vunpack.c.h.b16 %v8962
    %v9075 = vunpack.c.l.b16 %v8963
    %v9076 = vunpack.c.h.b16 %v8963
    %v9077 = vunpack.c.l.b16 %v8964
    %v9078 = vunpack.c.h.b16 %v8964
    %v9079 = vunpack.c.l.b16 %v8965
    %v9080 = vunpack.c.h.b16 %v8965
    %v9081 = vunpack.c.l.b16 %v8966
    %v9082 = vunpack.c.h.b16 %v8966
    %v9083 = vunpack.c.l.b16 %v8967
    %v9084 = vunpack.c.h.b16 %v8967
    %v9085 = vunpack.c.l.b16 %v8968
    %v9086 = vunpack.c.h.b16 %v8968
    %v9087 = vunpack.c.l.b16 %v8969
    %v9088 = vunpack.c.h.b16 %v8969
    %v9089 = vunpack.c.l.b16 %v8970
    %v9090 = vunpack.c.h.b16 %v8970
    %v9091 = vunpack.c.l.b16 %v8971
    %v9092 = vunpack.c.h.b16 %v8971
    %v9093 = vunpack.c.l.b16 %v8972
    %v9094 = vunpack.c.h.b16 %v8972
    %v9095 = vunpack.c.l.b16 %v8973
    %v9096 = vunpack.c.h.b16 %v8973
    %v9097 = vunpack.c.l.b16 %v8974
    %v9098 = vunpack.c.h.b16 %v8974
    %v9099 = vunpack.c.l.b16 %v8975
    %v9100 = vunpack.c.h.b16 %v8975
    %v9101 = vunpack.c.l.b16 %v8976
    %v9102 = vunpack.c.h.b16 %v8976
    %v9103 = vunpack.c.l.b16 %v8977
    %v9104 = vunpack.c.h.b16 %v8977
    %v9105 = vunpack.c.l.b16 %v8978
    %v9106 = vunpack.c.h.b16 %v8978
    %v9107 = vunpack.c.l.b16 %v8979
    %v9108 = vunpack.c.h.b16 %v8979
    %v9109 = vunpack.c.l.b16 %v8980
    %v9110 = vunpack.c.h.b16 %v8980
    %v9111 = vunpack.c.l.b16 %v8981
    %v9112 = vunpack.c.h.b16 %v8981
    %v9113 = vunpack.c.l.b16 %v8982
    %v9114 = vunpack.c.h.b16 %v8982
    %v9115 = vunpack.c.l.b16 %v8983
    %v9116 = vunpack.c.h.b16 %v8983
    %v9117 = vunpack.c.l.b16 %v8984
    %v9118 = vunpack.c.h.b16 %v8984
    %v9119 = vunpack.c.l.b16 %v8985
    %v9120 = vunpack.c.h.b16 %v8985
    %v9121 = vunpack.c.l.b16 %v8986
    %v9122 = vunpack.c.h.b16 %v8986
    %v9123 = vunpack.c.l.b16 %v8987
    %v9124 = vunpack.c.h.b16 %v8987
    %v9125 = vunpack.c.l.b16 %v8988
    %v9126 = vunpack.c.h.b16 %v8988
    %v9127 = vunpack.c.l.b16 %v8989
    %v9128 = vunpack.c.h.b16 %v8989
    %v9129 = vunpack.c.l.b16 %v8990
    %v9130 = vunpack.c.h.b16 %v8990
    %v9131 = vunpack.c.l.b16 %v8991
    %v9132 = vunpack.c.h.b16 %v8991
    %v9133 = vunpack.c.l.b16 %v8992
    %v9134 = vunpack.c.h.b16 %v8992
    %v9135 = vunpack.c.l.b16 %v8993
    %v9136 = vunpack.c.h.b16 %v8993
    %v9137 = vunpack.c.l.b16 %v8994
    %v9138 = vunpack.c.h.b16 %v8994
    %v9139 = vunpack.c.l.b16 %v8995
    %v9140 = vunpack.c.h.b16 %v8995
    %v9141 = vunpack.c.l.b16 %v8996
    %v9142 = vunpack.c.h.b16 %v8996
    %v9143 = vunpack.c.l.b16 %v8997
    %v9144 = vunpack.c.h.b16 %v8997
    %v9145 = vunpack.c.l.b16 %v8998
    %v9146 = vunpack.c.h.b16 %v8998
    %v9147 = vunpack.c.l.b16 %v8999
    %v9148 = vunpack.c.h.b16 %v8999
    %v9149 = vpack.c.b16 %v9059, %v9053
    %v9150 = vpack.c.b16 %v9060, %v9054
    %v9151 = vpack.c.b16 %v9061, %v9055
    %v9152 = vpack.c.b16 %v9062, %v9056
    %v9153 = vpack.c.b16 %v9063, %v9057
    %v9154 = vpack.c.b16 %v9064, %v9058
    %v9155 = vpack.c.b16 %v9071, %v9065
    %v9156 = vpack.c.b16 %v9072, %v9066
    %v9157 = vpack.c.b16 %v9073, %v9067
    %v9158 = vpack.c.b16 %v9074, %v9068
    %v9159 = vpack.c.b16 %v9075, %v9069
    %v9160 = vpack.c.b16 %v9076, %v9070
    %v9161 = vpack.c.b16 %v9083, %v9077
    %v9162 = vpack.c.b16 %v9084, %v9078
    %v9163 = vpack.c.b16 %v9085, %v9079
    %v9164 = vpack.c.b16 %v9086, %v9080
    %v9165 = vpack.c.b16 %v9087, %v9081
    %v9166 = vpack.c.b16 %v9088, %v9082
    %v9167 = vpack.c.b16 %v9095, %v9089
    %v9168 = vpack.c.b16 %v9096, %v9090
    %v9169 = vpack.c.b16 %v9097, %v9091
    %v9170 = vpack.c.b16 %v9098, %v9092
    %v9171 = vpack.c.b16 %v9099, %v9093
    %v9172 = vpack.c.b16 %v9100, %v9094
    %v9173 = vpack.c.b16 %v9107, %v9101
    %v9174 = vpack.c.b16 %v9108, %v9102
    %v9175 = vpack.c.b16 %v9109, %v9103
    %v9176 = vpack.c.b16 %v9110, %v9104
    %v9177 = vpack.c.b16 %v9111, %v9105
    %v9178 = vpack.c.b16 %v9112, %v9106
    %v9179 = vpack.c.b16 %v9119, %v9113
    %v9180 = vpack.c.b16 %v9120, %v9114
    %v9181 = vpack.c.b16 %v9121, %v9115
    %v9182 = vpack.c.b16 %v9122, %v9116
    %v9183 = vpack.c.b16 %v9123, %v9117
    %v9184 = vpack.c.b16 %v9124, %v9118
    %v9185 = vpack.c.b16 %v9131, %v9125
    %v9186 = vpack.c.b16 %v9132, %v9126
    %v9187 = vpack.c.b16 %v9133, %v9127
    %v9188 = vpack.c.b16 %v9134, %v9128
    %v9189 = vpack.c.b16 %v9135, %v9129
    %v9190 = vpack.c.b16 %v9136, %v9130
    %v9191 = vpack.c.b16 %v9143, %v9137
    %v9192 = vpack.c.b16 %v9144, %v9138
    %v9193 = vpack.c.b16 %v9145, %v9139
    %v9194 = vpack.c.b16 %v9146, %v9140
    %v9195 = vpack.c.b16 %v9147, %v9141
    %v9196 = vpack.c.b16 %v9148, %v9142
    %9245 = vmatprep.subr.bf16.mxu0 %v9192
    %9246 = vmatpush1.bf16.msra.mxu0 %v9191
    %9247 = vmatprep.subr.bf16.mxu0 %v9186
    %9248 = vmatpush1.bf16.msra.mxu0 %v9185
    %9249 = vmatprep.subr.bf16.mxu0 %v9180
    %9250 = vmatpush1.bf16.msra.mxu0 %v9179
    %9251 = vmatprep.subr.bf16.mxu0 %v9174
    %9252 = vmatpush1.bf16.msra.mxu0 %v9173
    %9253 = vmatprep.subr.bf16.mxu0 %v9168
    %9254 = vmatpush1.bf16.msra.mxu0 %v9167
    %9255 = vmatprep.subr.bf16.mxu0 %v9162
    %9256 = vmatpush1.bf16.msra.mxu0 %v9161
    %9257 = vmatprep.subr.bf16.mxu0 %v9156
    %9258 = vmatpush1.bf16.msra.mxu0 %v9155
    %9259 = vmatprep.subr.bf16.mxu0 %v9150
    %9260 = vmatpush1.bf16.msra.mxu0 %v9149
    %9261 = vmatprep.subr.bf16.mxu0 0
    %9262 = vmatpush2.bf16.msra.mxu0 0
    %9263 = vmatprep.subr.bf16.mxu0 0
    %9264 = vmatpush2.bf16.msra.mxu0 0
    %9265 = vmatprep.subr.bf16.mxu0 0
    %9266 = vmatpush2.bf16.msra.mxu0 0
    %9267 = vmatprep.subr.bf16.mxu0 0
    %9268 = vmatpush2.bf16.msra.mxu0 0
    %9269 = vmatprep.subr.bf16.mxu0 0
    %9270 = vmatpush2.bf16.msra.mxu0 0
    %9271 = vmatprep.subr.bf16.mxu0 0
    %9272 = vmatpush2.bf16.msra.mxu0 0
    %9273 = vmatprep.subr.bf16.mxu0 0
    %9274 = vmatpush2.bf16.msra.mxu0 0
    %9275 = vmatprep.subr.bf16.mxu0 0
    %9276 = vmatpush2.bf16.msra.mxu0 0
    %9277 = vmatprep.mubr.bf16.mxu0 0
    %9278 = vmatmul.mubr.bf16.gmra.mxu0 %v9003
    %v9279 = vpop.f32.mrf.mxu0
    %v9280 = vadd.f32 0.0, %v9279
    %v9281 = vpop.f32.mrf.mxu0
    %v9282 = vadd.f32 0.0, %v9281
    %v9283 = vpop.f32.mrf.mxu0
    %v9284 = vpop.f32.mrf.mxu0
    %9285 = vdwg.mxu0
    %9286 = vmatprep.subr.bf16.mxu0 %v9194
    %9287 = vmatpush1.bf16.msra.mxu0 %v9193
    %9288 = vmatprep.subr.bf16.mxu0 %v9188
    %9289 = vmatpush1.bf16.msra.mxu0 %v9187
    %9290 = vmatprep.subr.bf16.mxu0 %v9182
    %9291 = vmatpush1.bf16.msra.mxu0 %v9181
    %9292 = vmatprep.subr.bf16.mxu0 %v9176
    %9293 = vmatpush1.bf16.msra.mxu0 %v9175
    %9294 = vmatprep.subr.bf16.mxu0 %v9170
    %9295 = vmatpush1.bf16.msra.mxu0 %v9169
    %9296 = vmatprep.subr.bf16.mxu0 %v9164
    %9297 = vmatpush1.bf16.msra.mxu0 %v9163
    %9298 = vmatprep.subr.bf16.mxu0 %v9158
    %9299 = vmatpush1.bf16.msra.mxu0 %v9157
    %9300 = vmatprep.subr.bf16.mxu0 %v9152
    %9301 = vmatpush1.bf16.msra.mxu0 %v9151
    %9302 = vmatprep.subr.bf16.mxu0 0
    %9303 = vmatpush2.bf16.msra.mxu0 0
    %9304 = vmatprep.subr.bf16.mxu0 0
    %9305 = vmatpush2.bf16.msra.mxu0 0
    %9306 = vmatprep.subr.bf16.mxu0 0
    %9307 = vmatpush2.bf16.msra.mxu0 0
    %9308 = vmatprep.subr.bf16.mxu0 0
    %9309 = vmatpush2.bf16.msra.mxu0 0
    %9310 = vmatprep.subr.bf16.mxu0 0
    %9311 = vmatpush2.bf16.msra.mxu0 0
    %9312 = vmatprep.subr.bf16.mxu0 0
    %9313 = vmatpush2.bf16.msra.mxu0 0
    %9314 = vmatprep.subr.bf16.mxu0 0
    %9315 = vmatpush2.bf16.msra.mxu0 0
    %9316 = vmatprep.subr.bf16.mxu0 0
    %9317 = vmatpush2.bf16.msra.mxu0 0
    %9318 = vmatprep.mubr.bf16.mxu0 0
    %9319 = vmatmul.mubr.bf16.gmra.mxu0 %v9003
    %v9320 = vpop.f32.mrf.mxu0
    %v9321 = vadd.f32 0.0, %v9320
    %v9322 = vpop.f32.mrf.mxu0
    %v9323 = vadd.f32 0.0, %v9322
    %v9324 = vpop.f32.mrf.mxu0
    %v9325 = vpop.f32.mrf.mxu0
    %9326 = vdwg.mxu0
    %9327 = vmatprep.subr.bf16.mxu0 %v9196
    %9328 = vmatpush1.bf16.msra.mxu0 %v9195
    %9329 = vmatprep.subr.bf16.mxu0 %v9190
    %9330 = vmatpush1.bf16.msra.mxu0 %v9189
    %9331 = vmatprep.subr.bf16.mxu0 %v9184
    %9332 = vmatpush1.bf16.msra.mxu0 %v9183
    %9333 = vmatprep.subr.bf16.mxu0 %v9178
    %9334 = vmatpush1.bf16.msra.mxu0 %v9177
    %9335 = vmatprep.subr.bf16.mxu0 %v9172
    %9336 = vmatpush1.bf16.msra.mxu0 %v9171
    %9337 = vmatprep.subr.bf16.mxu0 %v9166
    %9338 = vmatpush1.bf16.msra.mxu0 %v9165
    %9339 = vmatprep.subr.bf16.mxu0 %v9160
    %9340 = vmatpush1.bf16.msra.mxu0 %v9159
    %9341 = vmatprep.subr.bf16.mxu0 %v9154
    %9342 = vmatpush1.bf16.msra.mxu0 %v9153
    %9343 = vmatprep.subr.bf16.mxu0 0
    %9344 = vmatpush2.bf16.msra.mxu0 0
    %9345 = vmatprep.subr.bf16.mxu0 0
    %9346 = vmatpush2.bf16.msra.mxu0 0
    %9347 = vmatprep.subr.bf16.mxu0 0
    %9348 = vmatpush2.bf16.msra.mxu0 0
    %9349 = vmatprep.subr.bf16.mxu0 0
    %9350 = vmatpush2.bf16.msra.mxu0 0
    %9351 = vmatprep.subr.bf16.mxu0 0
    %9352 = vmatpush2.bf16.msra.mxu0 0
    %9353 = vmatprep.subr.bf16.mxu0 0
    %9354 = vmatpush2.bf16.msra.mxu0 0
    %9355 = vmatprep.subr.bf16.mxu0 0
    %9356 = vmatpush2.bf16.msra.mxu0 0
    %9357 = vmatprep.subr.bf16.mxu0 0
    %9358 = vmatpush2.bf16.msra.mxu0 0
    %9359 = vmatprep.mubr.bf16.mxu0 0
    %9360 = vmatmul.mubr.bf16.gmra.mxu0 %v9003
    %v9361 = vpop.f32.mrf.mxu0
    %v9362 = vadd.f32 0.0, %v9361
    %v9363 = vpop.f32.mrf.mxu0
    %v9364 = vadd.f32 0.0, %v9363
    %v9365 = vpop.f32.mrf.mxu0
    %v9366 = vpop.f32.mrf.mxu0
    %9367 = vdwg.mxu0
    %v9368 = vadd.f32 %v8945, %v9280
    %v9369 = vadd.f32 %v8946, %v9282
    %v9370 = vadd.f32 %v8947, %v9321
    %v9371 = vadd.f32 %v8948, %v9323
    %v9372 = vadd.f32 %v8949, %v9362
    %v9373 = vadd.f32 %v8950, %v9364
    %s9374 = scalar_lea.vmem [#allocation8], 7680
    %v9375 = vld [vmem:[%s9374] sm:$0xff]
    %v9376 = vld [vmem:[%s9374 + $0x8] sm:$0xff]
    %v9377 = vld [vmem:[%s9374 + $0x10] sm:$0xff]
    %v9378 = vld [vmem:[%s9374 + $0x18] sm:$0xff]
    %v9379 = vld [vmem:[%s9374 + $0x20] sm:$0xff]
    %v9380 = vld [vmem:[%s9374 + $0x28] sm:$0xff]
    %v9381 = vld [vmem:[%s9374 + $0x30] sm:$0xff]
    %v9382 = vld [vmem:[%s9374 + $0x38] sm:$0xff]
    %v9383 = vld [vmem:[%s9374 + $0x40] sm:$0xff]
    %v9384 = vld [vmem:[%s9374 + $0x48] sm:$0xff]
    %v9385 = vld [vmem:[%s9374 + $0x50] sm:$0xff]
    %v9386 = vld [vmem:[%s9374 + $0x58] sm:$0xff]
    %v9387 = vld [vmem:[%s9374 + $0x60] sm:$0xff]
    %v9388 = vld [vmem:[%s9374 + $0x68] sm:$0xff]
    %v9389 = vld [vmem:[%s9374 + $0x70] sm:$0xff]
    %v9390 = vld [vmem:[%s9374 + $0x78] sm:$0xff]
    %v9391 = vld [vmem:[%s9374 + $0x80] sm:$0xff]
    %v9392 = vld [vmem:[%s9374 + $0x88] sm:$0xff]
    %v9393 = vld [vmem:[%s9374 + $0x90] sm:$0xff]
    %v9394 = vld [vmem:[%s9374 + $0x98] sm:$0xff]
    %v9395 = vld [vmem:[%s9374 + $0xa0] sm:$0xff]
    %v9396 = vld [vmem:[%s9374 + $0xa8] sm:$0xff]
    %v9397 = vld [vmem:[%s9374 + $0xb0] sm:$0xff]
    %v9398 = vld [vmem:[%s9374 + $0xb8] sm:$0xff]
    %v9399 = vld [vmem:[%s9374 + $0xc0] sm:$0xff]
    %v9400 = vld [vmem:[%s9374 + $0xc8] sm:$0xff]
    %v9401 = vld [vmem:[%s9374 + $0xd0] sm:$0xff]
    %v9402 = vld [vmem:[%s9374 + $0xd8] sm:$0xff]
    %v9403 = vld [vmem:[%s9374 + $0xe0] sm:$0xff]
    %v9404 = vld [vmem:[%s9374 + $0xe8] sm:$0xff]
    %v9405 = vld [vmem:[%s9374 + $0xf0] sm:$0xff]
    %v9406 = vld [vmem:[%s9374 + $0xf8] sm:$0xff]
    %v9407 = vld [vmem:[%s9374 + $0x100] sm:$0xff]
    %v9408 = vld [vmem:[%s9374 + $0x108] sm:$0xff]
    %v9409 = vld [vmem:[%s9374 + $0x110] sm:$0xff]
    %v9410 = vld [vmem:[%s9374 + $0x118] sm:$0xff]
    %v9411 = vld [vmem:[%s9374 + $0x120] sm:$0xff]
    %v9412 = vld [vmem:[%s9374 + $0x128] sm:$0xff]
    %v9413 = vld [vmem:[%s9374 + $0x130] sm:$0xff]
    %v9414 = vld [vmem:[%s9374 + $0x138] sm:$0xff]
    %v9415 = vld [vmem:[%s9374 + $0x140] sm:$0xff]
    %v9416 = vld [vmem:[%s9374 + $0x148] sm:$0xff]
    %v9417 = vld [vmem:[%s9374 + $0x150] sm:$0xff]
    %v9418 = vld [vmem:[%s9374 + $0x158] sm:$0xff]
    %v9419 = vld [vmem:[%s9374 + $0x160] sm:$0xff]
    %v9420 = vld [vmem:[%s9374 + $0x168] sm:$0xff]
    %v9421 = vld [vmem:[%s9374 + $0x170] sm:$0xff]
    %v9422 = vld [vmem:[%s9374 + $0x178] sm:$0xff]
    %v9423 = vrot.slane %v7731, 4
    %v9424 = vrot.slane %v7732, 3
    %v9425 = vsel %vm1018, %v9424, %v9423
    %v9426 = vpack.c.b16 %v9425, %v9425
    %v9476 = vunpack.c.l.b16 %v9375
    %v9477 = vunpack.c.h.b16 %v9375
    %v9478 = vunpack.c.l.b16 %v9376
    %v9479 = vunpack.c.h.b16 %v9376
    %v9480 = vunpack.c.l.b16 %v9377
    %v9481 = vunpack.c.h.b16 %v9377
    %v9482 = vunpack.c.l.b16 %v9378
    %v9483 = vunpack.c.h.b16 %v9378
    %v9484 = vunpack.c.l.b16 %v9379
    %v9485 = vunpack.c.h.b16 %v9379
    %v9486 = vunpack.c.l.b16 %v9380
    %v9487 = vunpack.c.h.b16 %v9380
    %v9488 = vunpack.c.l.b16 %v9381
    %v9489 = vunpack.c.h.b16 %v9381
    %v9490 = vunpack.c.l.b16 %v9382
    %v9491 = vunpack.c.h.b16 %v9382
    %v9492 = vunpack.c.l.b16 %v9383
    %v9493 = vunpack.c.h.b16 %v9383
    %v9494 = vunpack.c.l.b16 %v9384
    %v9495 = vunpack.c.h.b16 %v9384
    %v9496 = vunpack.c.l.b16 %v9385
    %v9497 = vunpack.c.h.b16 %v9385
    %v9498 = vunpack.c.l.b16 %v9386
    %v9499 = vunpack.c.h.b16 %v9386
    %v9500 = vunpack.c.l.b16 %v9387
    %v9501 = vunpack.c.h.b16 %v9387
    %v9502 = vunpack.c.l.b16 %v9388
    %v9503 = vunpack.c.h.b16 %v9388
    %v9504 = vunpack.c.l.b16 %v9389
    %v9505 = vunpack.c.h.b16 %v9389
    %v9506 = vunpack.c.l.b16 %v9390
    %v9507 = vunpack.c.h.b16 %v9390
    %v9508 = vunpack.c.l.b16 %v9391
    %v9509 = vunpack.c.h.b16 %v9391
    %v9510 = vunpack.c.l.b16 %v9392
    %v9511 = vunpack.c.h.b16 %v9392
    %v9512 = vunpack.c.l.b16 %v9393
    %v9513 = vunpack.c.h.b16 %v9393
    %v9514 = vunpack.c.l.b16 %v9394
    %v9515 = vunpack.c.h.b16 %v9394
    %v9516 = vunpack.c.l.b16 %v9395
    %v9517 = vunpack.c.h.b16 %v9395
    %v9518 = vunpack.c.l.b16 %v9396
    %v9519 = vunpack.c.h.b16 %v9396
    %v9520 = vunpack.c.l.b16 %v9397
    %v9521 = vunpack.c.h.b16 %v9397
    %v9522 = vunpack.c.l.b16 %v9398
    %v9523 = vunpack.c.h.b16 %v9398
    %v9524 = vunpack.c.l.b16 %v9399
    %v9525 = vunpack.c.h.b16 %v9399
    %v9526 = vunpack.c.l.b16 %v9400
    %v9527 = vunpack.c.h.b16 %v9400
    %v9528 = vunpack.c.l.b16 %v9401
    %v9529 = vunpack.c.h.b16 %v9401
    %v9530 = vunpack.c.l.b16 %v9402
    %v9531 = vunpack.c.h.b16 %v9402
    %v9532 = vunpack.c.l.b16 %v9403
    %v9533 = vunpack.c.h.b16 %v9403
    %v9534 = vunpack.c.l.b16 %v9404
    %v9535 = vunpack.c.h.b16 %v9404
    %v9536 = vunpack.c.l.b16 %v9405
    %v9537 = vunpack.c.h.b16 %v9405
    %v9538 = vunpack.c.l.b16 %v9406
    %v9539 = vunpack.c.h.b16 %v9406
    %v9540 = vunpack.c.l.b16 %v9407
    %v9541 = vunpack.c.h.b16 %v9407
    %v9542 = vunpack.c.l.b16 %v9408
    %v9543 = vunpack.c.h.b16 %v9408
    %v9544 = vunpack.c.l.b16 %v9409
    %v9545 = vunpack.c.h.b16 %v9409
    %v9546 = vunpack.c.l.b16 %v9410
    %v9547 = vunpack.c.h.b16 %v9410
    %v9548 = vunpack.c.l.b16 %v9411
    %v9549 = vunpack.c.h.b16 %v9411
    %v9550 = vunpack.c.l.b16 %v9412
    %v9551 = vunpack.c.h.b16 %v9412
    %v9552 = vunpack.c.l.b16 %v9413
    %v9553 = vunpack.c.h.b16 %v9413
    %v9554 = vunpack.c.l.b16 %v9414
    %v9555 = vunpack.c.h.b16 %v9414
    %v9556 = vunpack.c.l.b16 %v9415
    %v9557 = vunpack.c.h.b16 %v9415
    %v9558 = vunpack.c.l.b16 %v9416
    %v9559 = vunpack.c.h.b16 %v9416
    %v9560 = vunpack.c.l.b16 %v9417
    %v9561 = vunpack.c.h.b16 %v9417
    %v9562 = vunpack.c.l.b16 %v9418
    %v9563 = vunpack.c.h.b16 %v9418
    %v9564 = vunpack.c.l.b16 %v9419
    %v9565 = vunpack.c.h.b16 %v9419
    %v9566 = vunpack.c.l.b16 %v9420
    %v9567 = vunpack.c.h.b16 %v9420
    %v9568 = vunpack.c.l.b16 %v9421
    %v9569 = vunpack.c.h.b16 %v9421
    %v9570 = vunpack.c.l.b16 %v9422
    %v9571 = vunpack.c.h.b16 %v9422
    %v9572 = vpack.c.b16 %v9482, %v9476
    %v9573 = vpack.c.b16 %v9483, %v9477
    %v9574 = vpack.c.b16 %v9484, %v9478
    %v9575 = vpack.c.b16 %v9485, %v9479
    %v9576 = vpack.c.b16 %v9486, %v9480
    %v9577 = vpack.c.b16 %v9487, %v9481
    %v9578 = vpack.c.b16 %v9494, %v9488
    %v9579 = vpack.c.b16 %v9495, %v9489
    %v9580 = vpack.c.b16 %v9496, %v9490
    %v9581 = vpack.c.b16 %v9497, %v9491
    %v9582 = vpack.c.b16 %v9498, %v9492
    %v9583 = vpack.c.b16 %v9499, %v9493
    %v9584 = vpack.c.b16 %v9506, %v9500
    %v9585 = vpack.c.b16 %v9507, %v9501
    %v9586 = vpack.c.b16 %v9508, %v9502
    %v9587 = vpack.c.b16 %v9509, %v9503
    %v9588 = vpack.c.b16 %v9510, %v9504
    %v9589 = vpack.c.b16 %v9511, %v9505
    %v9590 = vpack.c.b16 %v9518, %v9512
    %v9591 = vpack.c.b16 %v9519, %v9513
    %v9592 = vpack.c.b16 %v9520, %v9514
    %v9593 = vpack.c.b16 %v9521, %v9515
    %v9594 = vpack.c.b16 %v9522, %v9516
    %v9595 = vpack.c.b16 %v9523, %v9517
    %v9596 = vpack.c.b16 %v9530, %v9524
    %v9597 = vpack.c.b16 %v9531, %v9525
    %v9598 = vpack.c.b16 %v9532, %v9526
    %v9599 = vpack.c.b16 %v9533, %v9527
    %v9600 = vpack.c.b16 %v9534, %v9528
    %v9601 = vpack.c.b16 %v9535, %v9529
    %v9602 = vpack.c.b16 %v9542, %v9536
    %v9603 = vpack.c.b16 %v9543, %v9537
    %v9604 = vpack.c.b16 %v9544, %v9538
    %v9605 = vpack.c.b16 %v9545, %v9539
    %v9606 = vpack.c.b16 %v9546, %v9540
    %v9607 = vpack.c.b16 %v9547, %v9541
    %v9608 = vpack.c.b16 %v9554, %v9548
    %v9609 = vpack.c.b16 %v9555, %v9549
    %v9610 = vpack.c.b16 %v9556, %v9550
    %v9611 = vpack.c.b16 %v9557, %v9551
    %v9612 = vpack.c.b16 %v9558, %v9552
    %v9613 = vpack.c.b16 %v9559, %v9553
    %v9614 = vpack.c.b16 %v9566, %v9560
    %v9615 = vpack.c.b16 %v9567, %v9561
    %v9616 = vpack.c.b16 %v9568, %v9562
    %v9617 = vpack.c.b16 %v9569, %v9563
    %v9618 = vpack.c.b16 %v9570, %v9564
    %v9619 = vpack.c.b16 %v9571, %v9565
    %9668 = vmatprep.subr.bf16.mxu0 %v9615
    %9669 = vmatpush1.bf16.msra.mxu0 %v9614
    %9670 = vmatprep.subr.bf16.mxu0 %v9609
    %9671 = vmatpush1.bf16.msra.mxu0 %v9608
    %9672 = vmatprep.subr.bf16.mxu0 %v9603
    %9673 = vmatpush1.bf16.msra.mxu0 %v9602
    %9674 = vmatprep.subr.bf16.mxu0 %v9597
    %9675 = vmatpush1.bf16.msra.mxu0 %v9596
    %9676 = vmatprep.subr.bf16.mxu0 %v9591
    %9677 = vmatpush1.bf16.msra.mxu0 %v9590
    %9678 = vmatprep.subr.bf16.mxu0 %v9585
    %9679 = vmatpush1.bf16.msra.mxu0 %v9584
    %9680 = vmatprep.subr.bf16.mxu0 %v9579
    %9681 = vmatpush1.bf16.msra.mxu0 %v9578
    %9682 = vmatprep.subr.bf16.mxu0 %v9573
    %9683 = vmatpush1.bf16.msra.mxu0 %v9572
    %9684 = vmatprep.subr.bf16.mxu0 0
    %9685 = vmatpush2.bf16.msra.mxu0 0
    %9686 = vmatprep.subr.bf16.mxu0 0
    %9687 = vmatpush2.bf16.msra.mxu0 0
    %9688 = vmatprep.subr.bf16.mxu0 0
    %9689 = vmatpush2.bf16.msra.mxu0 0
    %9690 = vmatprep.subr.bf16.mxu0 0
    %9691 = vmatpush2.bf16.msra.mxu0 0
    %9692 = vmatprep.subr.bf16.mxu0 0
    %9693 = vmatpush2.bf16.msra.mxu0 0
    %9694 = vmatprep.subr.bf16.mxu0 0
    %9695 = vmatpush2.bf16.msra.mxu0 0
    %9696 = vmatprep.subr.bf16.mxu0 0
    %9697 = vmatpush2.bf16.msra.mxu0 0
    %9698 = vmatprep.subr.bf16.mxu0 0
    %9699 = vmatpush2.bf16.msra.mxu0 0
    %9700 = vmatprep.mubr.bf16.mxu0 0
    %9701 = vmatmul.mubr.bf16.gmra.mxu0 %v9426
    %v9702 = vpop.f32.mrf.mxu0
    %v9703 = vadd.f32 0.0, %v9702
    %v9704 = vpop.f32.mrf.mxu0
    %v9705 = vadd.f32 0.0, %v9704
    %v9706 = vpop.f32.mrf.mxu0
    %v9707 = vpop.f32.mrf.mxu0
    %9708 = vdwg.mxu0
    %9709 = vmatprep.subr.bf16.mxu0 %v9617
    %9710 = vmatpush1.bf16.msra.mxu0 %v9616
    %9711 = vmatprep.subr.bf16.mxu0 %v9611
    %9712 = vmatpush1.bf16.msra.mxu0 %v9610
    %9713 = vmatprep.subr.bf16.mxu0 %v9605
    %9714 = vmatpush1.bf16.msra.mxu0 %v9604
    %9715 = vmatprep.subr.bf16.mxu0 %v9599
    %9716 = vmatpush1.bf16.msra.mxu0 %v9598
    %9717 = vmatprep.subr.bf16.mxu0 %v9593
    %9718 = vmatpush1.bf16.msra.mxu0 %v9592
    %9719 = vmatprep.subr.bf16.mxu0 %v9587
    %9720 = vmatpush1.bf16.msra.mxu0 %v9586
    %9721 = vmatprep.subr.bf16.mxu0 %v9581
    %9722 = vmatpush1.bf16.msra.mxu0 %v9580
    %9723 = vmatprep.subr.bf16.mxu0 %v9575
    %9724 = vmatpush1.bf16.msra.mxu0 %v9574
    %9725 = vmatprep.subr.bf16.mxu0 0
    %9726 = vmatpush2.bf16.msra.mxu0 0
    %9727 = vmatprep.subr.bf16.mxu0 0
    %9728 = vmatpush2.bf16.msra.mxu0 0
    %9729 = vmatprep.subr.bf16.mxu0 0
    %9730 = vmatpush2.bf16.msra.mxu0 0
    %9731 = vmatprep.subr.bf16.mxu0 0
    %9732 = vmatpush2.bf16.msra.mxu0 0
    %9733 = vmatprep.subr.bf16.mxu0 0
    %9734 = vmatpush2.bf16.msra.mxu0 0
    %9735 = vmatprep.subr.bf16.mxu0 0
    %9736 = vmatpush2.bf16.msra.mxu0 0
    %9737 = vmatprep.subr.bf16.mxu0 0
    %9738 = vmatpush2.bf16.msra.mxu0 0
    %9739 = vmatprep.subr.bf16.mxu0 0
    %9740 = vmatpush2.bf16.msra.mxu0 0
    %9741 = vmatprep.mubr.bf16.mxu0 0
    %9742 = vmatmul.mubr.bf16.gmra.mxu0 %v9426
    %v9743 = vpop.f32.mrf.mxu0
    %v9744 = vadd.f32 0.0, %v9743
    %v9745 = vpop.f32.mrf.mxu0
    %v9746 = vadd.f32 0.0, %v9745
    %v9747 = vpop.f32.mrf.mxu0
    %v9748 = vpop.f32.mrf.mxu0
    %9749 = vdwg.mxu0
    %9750 = vmatprep.subr.bf16.mxu0 %v9619
    %9751 = vmatpush1.bf16.msra.mxu0 %v9618
    %9752 = vmatprep.subr.bf16.mxu0 %v9613
    %9753 = vmatpush1.bf16.msra.mxu0 %v9612
    %9754 = vmatprep.subr.bf16.mxu0 %v9607
    %9755 = vmatpush1.bf16.msra.mxu0 %v9606
    %9756 = vmatprep.subr.bf16.mxu0 %v9601
    %9757 = vmatpush1.bf16.msra.mxu0 %v9600
    %9758 = vmatprep.subr.bf16.mxu0 %v9595
    %9759 = vmatpush1.bf16.msra.mxu0 %v9594
    %9760 = vmatprep.subr.bf16.mxu0 %v9589
    %9761 = vmatpush1.bf16.msra.mxu0 %v9588
    %9762 = vmatprep.subr.bf16.mxu0 %v9583
    %9763 = vmatpush1.bf16.msra.mxu0 %v9582
    %9764 = vmatprep.subr.bf16.mxu0 %v9577
    %9765 = vmatpush1.bf16.msra.mxu0 %v9576
    %9766 = vmatprep.subr.bf16.mxu0 0
    %9767 = vmatpush2.bf16.msra.mxu0 0
    %9768 = vmatprep.subr.bf16.mxu0 0
    %9769 = vmatpush2.bf16.msra.mxu0 0
    %9770 = vmatprep.subr.bf16.mxu0 0
    %9771 = vmatpush2.bf16.msra.mxu0 0
    %9772 = vmatprep.subr.bf16.mxu0 0
    %9773 = vmatpush2.bf16.msra.mxu0 0
    %9774 = vmatprep.subr.bf16.mxu0 0
    %9775 = vmatpush2.bf16.msra.mxu0 0
    %9776 = vmatprep.subr.bf16.mxu0 0
    %9777 = vmatpush2.bf16.msra.mxu0 0
    %9778 = vmatprep.subr.bf16.mxu0 0
    %9779 = vmatpush2.bf16.msra.mxu0 0
    %9780 = vmatprep.subr.bf16.mxu0 0
    %9781 = vmatpush2.bf16.msra.mxu0 0
    %9782 = vmatprep.mubr.bf16.mxu0 0
    %9783 = vmatmul.mubr.bf16.gmra.mxu0 %v9426
    %v9784 = vpop.f32.mrf.mxu0
    %v9785 = vadd.f32 0.0, %v9784
    %v9786 = vpop.f32.mrf.mxu0
    %v9787 = vadd.f32 0.0, %v9786
    %v9788 = vpop.f32.mrf.mxu0
    %v9789 = vpop.f32.mrf.mxu0
    %9790 = vdwg.mxu0
    %v9791 = vadd.f32 %v9368, %v9703
    %v9792 = vadd.f32 %v9369, %v9705
    %v9793 = vadd.f32 %v9370, %v9744
    %v9794 = vadd.f32 %v9371, %v9746
    %v9795 = vadd.f32 %v9372, %v9785
    %v9796 = vadd.f32 %v9373, %v9787
    %s9797 = scalar_lea.vmem [#allocation8], 8064
    %v9798 = vld [vmem:[%s9797] sm:$0xff]
    %v9799 = vld [vmem:[%s9797 + $0x8] sm:$0xff]
    %v9800 = vld [vmem:[%s9797 + $0x10] sm:$0xff]
    %v9801 = vld [vmem:[%s9797 + $0x18] sm:$0xff]
    %v9802 = vld [vmem:[%s9797 + $0x20] sm:$0xff]
    %v9803 = vld [vmem:[%s9797 + $0x28] sm:$0xff]
    %v9804 = vld [vmem:[%s9797 + $0x30] sm:$0xff]
    %v9805 = vld [vmem:[%s9797 + $0x38] sm:$0xff]
    %v9806 = vld [vmem:[%s9797 + $0x40] sm:$0xff]
    %v9807 = vld [vmem:[%s9797 + $0x48] sm:$0xff]
    %v9808 = vld [vmem:[%s9797 + $0x50] sm:$0xff]
    %v9809 = vld [vmem:[%s9797 + $0x58] sm:$0xff]
    %v9810 = vld [vmem:[%s9797 + $0x60] sm:$0xff]
    %v9811 = vld [vmem:[%s9797 + $0x68] sm:$0xff]
    %v9812 = vld [vmem:[%s9797 + $0x70] sm:$0xff]
    %v9813 = vld [vmem:[%s9797 + $0x78] sm:$0xff]
    %v9814 = vld [vmem:[%s9797 + $0x80] sm:$0xff]
    %v9815 = vld [vmem:[%s9797 + $0x88] sm:$0xff]
    %v9816 = vld [vmem:[%s9797 + $0x90] sm:$0xff]
    %v9817 = vld [vmem:[%s9797 + $0x98] sm:$0xff]
    %v9818 = vld [vmem:[%s9797 + $0xa0] sm:$0xff]
    %v9819 = vld [vmem:[%s9797 + $0xa8] sm:$0xff]
    %v9820 = vld [vmem:[%s9797 + $0xb0] sm:$0xff]
    %v9821 = vld [vmem:[%s9797 + $0xb8] sm:$0xff]
    %v9822 = vld [vmem:[%s9797 + $0xc0] sm:$0xff]
    %v9823 = vld [vmem:[%s9797 + $0xc8] sm:$0xff]
    %v9824 = vld [vmem:[%s9797 + $0xd0] sm:$0xff]
    %v9825 = vld [vmem:[%s9797 + $0xd8] sm:$0xff]
    %v9826 = vld [vmem:[%s9797 + $0xe0] sm:$0xff]
    %v9827 = vld [vmem:[%s9797 + $0xe8] sm:$0xff]
    %v9828 = vld [vmem:[%s9797 + $0xf0] sm:$0xff]
    %v9829 = vld [vmem:[%s9797 + $0xf8] sm:$0xff]
    %v9830 = vld [vmem:[%s9797 + $0x100] sm:$0xff]
    %v9831 = vld [vmem:[%s9797 + $0x108] sm:$0xff]
    %v9832 = vld [vmem:[%s9797 + $0x110] sm:$0xff]
    %v9833 = vld [vmem:[%s9797 + $0x118] sm:$0xff]
    %v9834 = vld [vmem:[%s9797 + $0x120] sm:$0xff]
    %v9835 = vld [vmem:[%s9797 + $0x128] sm:$0xff]
    %v9836 = vld [vmem:[%s9797 + $0x130] sm:$0xff]
    %v9837 = vld [vmem:[%s9797 + $0x138] sm:$0xff]
    %v9838 = vld [vmem:[%s9797 + $0x140] sm:$0xff]
    %v9839 = vld [vmem:[%s9797 + $0x148] sm:$0xff]
    %v9840 = vld [vmem:[%s9797 + $0x150] sm:$0xff]
    %v9841 = vld [vmem:[%s9797 + $0x158] sm:$0xff]
    %v9842 = vld [vmem:[%s9797 + $0x160] sm:$0xff]
    %v9843 = vld [vmem:[%s9797 + $0x168] sm:$0xff]
    %v9844 = vld [vmem:[%s9797 + $0x170] sm:$0xff]
    %v9845 = vld [vmem:[%s9797 + $0x178] sm:$0xff]
    %v9846 = vrot.slane %v7731, 5
    %v9847 = vrot.slane %v7732, 4
    %v9848 = vsel %vm1018, %v9847, %v9846
    %v9849 = vpack.c.b16 %v9848, %v9848
    %v9899 = vunpack.c.l.b16 %v9798
    %v9900 = vunpack.c.h.b16 %v9798
    %v9901 = vunpack.c.l.b16 %v9799
    %v9902 = vunpack.c.h.b16 %v9799
    %v9903 = vunpack.c.l.b16 %v9800
    %v9904 = vunpack.c.h.b16 %v9800
    %v9905 = vunpack.c.l.b16 %v9801
    %v9906 = vunpack.c.h.b16 %v9801
    %v9907 = vunpack.c.l.b16 %v9802
    %v9908 = vunpack.c.h.b16 %v9802
    %v9909 = vunpack.c.l.b16 %v9803
    %v9910 = vunpack.c.h.b16 %v9803
    %v9911 = vunpack.c.l.b16 %v9804
    %v9912 = vunpack.c.h.b16 %v9804
    %v9913 = vunpack.c.l.b16 %v9805
    %v9914 = vunpack.c.h.b16 %v9805
    %v9915 = vunpack.c.l.b16 %v9806
    %v9916 = vunpack.c.h.b16 %v9806
    %v9917 = vunpack.c.l.b16 %v9807
    %v9918 = vunpack.c.h.b16 %v9807
    %v9919 = vunpack.c.l.b16 %v9808
    %v9920 = vunpack.c.h.b16 %v9808
    %v9921 = vunpack.c.l.b16 %v9809
    %v9922 = vunpack.c.h.b16 %v9809
    %v9923 = vunpack.c.l.b16 %v9810
    %v9924 = vunpack.c.h.b16 %v9810
    %v9925 = vunpack.c.l.b16 %v9811
    %v9926 = vunpack.c.h.b16 %v9811
    %v9927 = vunpack.c.l.b16 %v9812
    %v9928 = vunpack.c.h.b16 %v9812
    %v9929 = vunpack.c.l.b16 %v9813
    %v9930 = vunpack.c.h.b16 %v9813
    %v9931 = vunpack.c.l.b16 %v9814
    %v9932 = vunpack.c.h.b16 %v9814
    %v9933 = vunpack.c.l.b16 %v9815
    %v9934 = vunpack.c.h.b16 %v9815
    %v9935 = vunpack.c.l.b16 %v9816
    %v9936 = vunpack.c.h.b16 %v9816
    %v9937 = vunpack.c.l.b16 %v9817
    %v9938 = vunpack.c.h.b16 %v9817
    %v9939 = vunpack.c.l.b16 %v9818
    %v9940 = vunpack.c.h.b16 %v9818
    %v9941 = vunpack.c.l.b16 %v9819
    %v9942 = vunpack.c.h.b16 %v9819
    %v9943 = vunpack.c.l.b16 %v9820
    %v9944 = vunpack.c.h.b16 %v9820
    %v9945 = vunpack.c.l.b16 %v9821
    %v9946 = vunpack.c.h.b16 %v9821
    %v9947 = vunpack.c.l.b16 %v9822
    %v9948 = vunpack.c.h.b16 %v9822
    %v9949 = vunpack.c.l.b16 %v9823
    %v9950 = vunpack.c.h.b16 %v9823
    %v9951 = vunpack.c.l.b16 %v9824
    %v9952 = vunpack.c.h.b16 %v9824
    %v9953 = vunpack.c.l.b16 %v9825
    %v9954 = vunpack.c.h.b16 %v9825
    %v9955 = vunpack.c.l.b16 %v9826
    %v9956 = vunpack.c.h.b16 %v9826
    %v9957 = vunpack.c.l.b16 %v9827
    %v9958 = vunpack.c.h.b16 %v9827
    %v9959 = vunpack.c.l.b16 %v9828
    %v9960 = vunpack.c.h.b16 %v9828
    %v9961 = vunpack.c.l.b16 %v9829
    %v9962 = vunpack.c.h.b16 %v9829
    %v9963 = vunpack.c.l.b16 %v9830
    %v9964 = vunpack.c.h.b16 %v9830
    %v9965 = vunpack.c.l.b16 %v9831
    %v9966 = vunpack.c.h.b16 %v9831
    %v9967 = vunpack.c.l.b16 %v9832
    %v9968 = vunpack.c.h.b16 %v9832
    %v9969 = vunpack.c.l.b16 %v9833
    %v9970 = vunpack.c.h.b16 %v9833
    %v9971 = vunpack.c.l.b16 %v9834
    %v9972 = vunpack.c.h.b16 %v9834
    %v9973 = vunpack.c.l.b16 %v9835
    %v9974 = vunpack.c.h.b16 %v9835
    %v9975 = vunpack.c.l.b16 %v9836
    %v9976 = vunpack.c.h.b16 %v9836
    %v9977 = vunpack.c.l.b16 %v9837
    %v9978 = vunpack.c.h.b16 %v9837
    %v9979 = vunpack.c.l.b16 %v9838
    %v9980 = vunpack.c.h.b16 %v9838
    %v9981 = vunpack.c.l.b16 %v9839
    %v9982 = vunpack.c.h.b16 %v9839
    %v9983 = vunpack.c.l.b16 %v9840
    %v9984 = vunpack.c.h.b16 %v9840
    %v9985 = vunpack.c.l.b16 %v9841
    %v9986 = vunpack.c.h.b16 %v9841
    %v9987 = vunpack.c.l.b16 %v9842
    %v9988 = vunpack.c.h.b16 %v9842
    %v9989 = vunpack.c.l.b16 %v9843
    %v9990 = vunpack.c.h.b16 %v9843
    %v9991 = vunpack.c.l.b16 %v9844
    %v9992 = vunpack.c.h.b16 %v9844
    %v9993 = vunpack.c.l.b16 %v9845
    %v9994 = vunpack.c.h.b16 %v9845
    %v9995 = vpack.c.b16 %v9905, %v9899
    %v9996 = vpack.c.b16 %v9906, %v9900
    %v9997 = vpack.c.b16 %v9907, %v9901
    %v9998 = vpack.c.b16 %v9908, %v9902
    %v9999 = vpack.c.b16 %v9909, %v9903
    %v10000 = vpack.c.b16 %v9910, %v9904
    %v10001 = vpack.c.b16 %v9917, %v9911
    %v10002 = vpack.c.b16 %v9918, %v9912
    %v10003 = vpack.c.b16 %v9919, %v9913
    %v10004 = vpack.c.b16 %v9920, %v9914
    %v10005 = vpack.c.b16 %v9921, %v9915
    %v10006 = vpack.c.b16 %v9922, %v9916
    %v10007 = vpack.c.b16 %v9929, %v9923
    %v10008 = vpack.c.b16 %v9930, %v9924
    %v10009 = vpack.c.b16 %v9931, %v9925
    %v10010 = vpack.c.b16 %v9932, %v9926
    %v10011 = vpack.c.b16 %v9933, %v9927
    %v10012 = vpack.c.b16 %v9934, %v9928
    %v10013 = vpack.c.b16 %v9941, %v9935
    %v10014 = vpack.c.b16 %v9942, %v9936
    %v10015 = vpack.c.b16 %v9943, %v9937
    %v10016 = vpack.c.b16 %v9944, %v9938
    %v10017 = vpack.c.b16 %v9945, %v9939
    %v10018 = vpack.c.b16 %v9946, %v9940
    %v10019 = vpack.c.b16 %v9953, %v9947
    %v10020 = vpack.c.b16 %v9954, %v9948
    %v10021 = vpack.c.b16 %v9955, %v9949
    %v10022 = vpack.c.b16 %v9956, %v9950
    %v10023 = vpack.c.b16 %v9957, %v9951
    %v10024 = vpack.c.b16 %v9958, %v9952
    %v10025 = vpack.c.b16 %v9965, %v9959
    %v10026 = vpack.c.b16 %v9966, %v9960
    %v10027 = vpack.c.b16 %v9967, %v9961
    %v10028 = vpack.c.b16 %v9968, %v9962
    %v10029 = vpack.c.b16 %v9969, %v9963
    %v10030 = vpack.c.b16 %v9970, %v9964
    %v10031 = vpack.c.b16 %v9977, %v9971
    %v10032 = vpack.c.b16 %v9978, %v9972
    %v10033 = vpack.c.b16 %v9979, %v9973
    %v10034 = vpack.c.b16 %v9980, %v9974
    %v10035 = vpack.c.b16 %v9981, %v9975
    %v10036 = vpack.c.b16 %v9982, %v9976
    %v10037 = vpack.c.b16 %v9989, %v9983
    %v10038 = vpack.c.b16 %v9990, %v9984
    %v10039 = vpack.c.b16 %v9991, %v9985
    %v10040 = vpack.c.b16 %v9992, %v9986
    %v10041 = vpack.c.b16 %v9993, %v9987
    %v10042 = vpack.c.b16 %v9994, %v9988
    %10091 = vmatprep.subr.bf16.mxu0 %v10038
    %10092 = vmatpush1.bf16.msra.mxu0 %v10037
    %10093 = vmatprep.subr.bf16.mxu0 %v10032
    %10094 = vmatpush1.bf16.msra.mxu0 %v10031
    %10095 = vmatprep.subr.bf16.mxu0 %v10026
    %10096 = vmatpush1.bf16.msra.mxu0 %v10025
    %10097 = vmatprep.subr.bf16.mxu0 %v10020
    %10098 = vmatpush1.bf16.msra.mxu0 %v10019
    %10099 = vmatprep.subr.bf16.mxu0 %v10014
    %10100 = vmatpush1.bf16.msra.mxu0 %v10013
    %10101 = vmatprep.subr.bf16.mxu0 %v10008
    %10102 = vmatpush1.bf16.msra.mxu0 %v10007
    %10103 = vmatprep.subr.bf16.mxu0 %v10002
    %10104 = vmatpush1.bf16.msra.mxu0 %v10001
    %10105 = vmatprep.subr.bf16.mxu0 %v9996
    %10106 = vmatpush1.bf16.msra.mxu0 %v9995
    %10107 = vmatprep.subr.bf16.mxu0 0
    %10108 = vmatpush2.bf16.msra.mxu0 0
    %10109 = vmatprep.subr.bf16.mxu0 0
    %10110 = vmatpush2.bf16.msra.mxu0 0
    %10111 = vmatprep.subr.bf16.mxu0 0
    %10112 = vmatpush2.bf16.msra.mxu0 0
    %10113 = vmatprep.subr.bf16.mxu0 0
    %10114 = vmatpush2.bf16.msra.mxu0 0
    %10115 = vmatprep.subr.bf16.mxu0 0
    %10116 = vmatpush2.bf16.msra.mxu0 0
    %10117 = vmatprep.subr.bf16.mxu0 0
    %10118 = vmatpush2.bf16.msra.mxu0 0
    %10119 = vmatprep.subr.bf16.mxu0 0
    %10120 = vmatpush2.bf16.msra.mxu0 0
    %10121 = vmatprep.subr.bf16.mxu0 0
    %10122 = vmatpush2.bf16.msra.mxu0 0
    %10123 = vmatprep.mubr.bf16.mxu0 0
    %10124 = vmatmul.mubr.bf16.gmra.mxu0 %v9849
    %v10125 = vpop.f32.mrf.mxu0
    %v10126 = vadd.f32 0.0, %v10125
    %v10127 = vpop.f32.mrf.mxu0
    %v10128 = vadd.f32 0.0, %v10127
    %v10129 = vpop.f32.mrf.mxu0
    %v10130 = vpop.f32.mrf.mxu0
    %10131 = vdwg.mxu0
    %10132 = vmatprep.subr.bf16.mxu0 %v10040
    %10133 = vmatpush1.bf16.msra.mxu0 %v10039
    %10134 = vmatprep.subr.bf16.mxu0 %v10034
    %10135 = vmatpush1.bf16.msra.mxu0 %v10033
    %10136 = vmatprep.subr.bf16.mxu0 %v10028
    %10137 = vmatpush1.bf16.msra.mxu0 %v10027
    %10138 = vmatprep.subr.bf16.mxu0 %v10022
    %10139 = vmatpush1.bf16.msra.mxu0 %v10021
    %10140 = vmatprep.subr.bf16.mxu0 %v10016
    %10141 = vmatpush1.bf16.msra.mxu0 %v10015
    %10142 = vmatprep.subr.bf16.mxu0 %v10010
    %10143 = vmatpush1.bf16.msra.mxu0 %v10009
    %10144 = vmatprep.subr.bf16.mxu0 %v10004
    %10145 = vmatpush1.bf16.msra.mxu0 %v10003
    %10146 = vmatprep.subr.bf16.mxu0 %v9998
    %10147 = vmatpush1.bf16.msra.mxu0 %v9997
    %10148 = vmatprep.subr.bf16.mxu0 0
    %10149 = vmatpush2.bf16.msra.mxu0 0
    %10150 = vmatprep.subr.bf16.mxu0 0
    %10151 = vmatpush2.bf16.msra.mxu0 0
    %10152 = vmatprep.subr.bf16.mxu0 0
    %10153 = vmatpush2.bf16.msra.mxu0 0
    %10154 = vmatprep.subr.bf16.mxu0 0
    %10155 = vmatpush2.bf16.msra.mxu0 0
    %10156 = vmatprep.subr.bf16.mxu0 0
    %10157 = vmatpush2.bf16.msra.mxu0 0
    %10158 = vmatprep.subr.bf16.mxu0 0
    %10159 = vmatpush2.bf16.msra.mxu0 0
    %10160 = vmatprep.subr.bf16.mxu0 0
    %10161 = vmatpush2.bf16.msra.mxu0 0
    %10162 = vmatprep.subr.bf16.mxu0 0
    %10163 = vmatpush2.bf16.msra.mxu0 0
    %10164 = vmatprep.mubr.bf16.mxu0 0
    %10165 = vmatmul.mubr.bf16.gmra.mxu0 %v9849
    %v10166 = vpop.f32.mrf.mxu0
    %v10167 = vadd.f32 0.0, %v10166
    %v10168 = vpop.f32.mrf.mxu0
    %v10169 = vadd.f32 0.0, %v10168
    %v10170 = vpop.f32.mrf.mxu0
    %v10171 = vpop.f32.mrf.mxu0
    %10172 = vdwg.mxu0
    %10173 = vmatprep.subr.bf16.mxu0 %v10042
    %10174 = vmatpush1.bf16.msra.mxu0 %v10041
    %10175 = vmatprep.subr.bf16.mxu0 %v10036
    %10176 = vmatpush1.bf16.msra.mxu0 %v10035
    %10177 = vmatprep.subr.bf16.mxu0 %v10030
    %10178 = vmatpush1.bf16.msra.mxu0 %v10029
    %10179 = vmatprep.subr.bf16.mxu0 %v10024
    %10180 = vmatpush1.bf16.msra.mxu0 %v10023
    %10181 = vmatprep.subr.bf16.mxu0 %v10018
    %10182 = vmatpush1.bf16.msra.mxu0 %v10017
    %10183 = vmatprep.subr.bf16.mxu0 %v10012
    %10184 = vmatpush1.bf16.msra.mxu0 %v10011
    %10185 = vmatprep.subr.bf16.mxu0 %v10006
    %10186 = vmatpush1.bf16.msra.mxu0 %v10005
    %10187 = vmatprep.subr.bf16.mxu0 %v10000
    %10188 = vmatpush1.bf16.msra.mxu0 %v9999
    %10189 = vmatprep.subr.bf16.mxu0 0
    %10190 = vmatpush2.bf16.msra.mxu0 0
    %10191 = vmatprep.subr.bf16.mxu0 0
    %10192 = vmatpush2.bf16.msra.mxu0 0
    %10193 = vmatprep.subr.bf16.mxu0 0
    %10194 = vmatpush2.bf16.msra.mxu0 0
    %10195 = vmatprep.subr.bf16.mxu0 0
    %10196 = vmatpush2.bf16.msra.mxu0 0
    %10197 = vmatprep.subr.bf16.mxu0 0
    %10198 = vmatpush2.bf16.msra.mxu0 0
    %10199 = vmatprep.subr.bf16.mxu0 0
    %10200 = vmatpush2.bf16.msra.mxu0 0
    %10201 = vmatprep.subr.bf16.mxu0 0
    %10202 = vmatpush2.bf16.msra.mxu0 0
    %10203 = vmatprep.subr.bf16.mxu0 0
    %10204 = vmatpush2.bf16.msra.mxu0 0
    %10205 = vmatprep.mubr.bf16.mxu0 0
    %10206 = vmatmul.mubr.bf16.gmra.mxu0 %v9849
    %v10207 = vpop.f32.mrf.mxu0
    %v10208 = vadd.f32 0.0, %v10207
    %v10209 = vpop.f32.mrf.mxu0
    %v10210 = vadd.f32 0.0, %v10209
    %v10211 = vpop.f32.mrf.mxu0
    %v10212 = vpop.f32.mrf.mxu0
    %10213 = vdwg.mxu0
    %v10214 = vadd.f32 %v9791, %v10126
    %v10215 = vadd.f32 %v9792, %v10128
    %v10216 = vadd.f32 %v9793, %v10167
    %v10217 = vadd.f32 %v9794, %v10169
    %v10218 = vadd.f32 %v9795, %v10208
    %v10219 = vadd.f32 %v9796, %v10210
    %s10220 = scalar_lea.vmem [#allocation8], 8448
    %v10221 = vld [vmem:[%s10220] sm:$0xff]
    %v10222 = vld [vmem:[%s10220 + $0x8] sm:$0xff]
    %v10223 = vld [vmem:[%s10220 + $0x10] sm:$0xff]
    %v10224 = vld [vmem:[%s10220 + $0x18] sm:$0xff]
    %v10225 = vld [vmem:[%s10220 + $0x20] sm:$0xff]
    %v10226 = vld [vmem:[%s10220 + $0x28] sm:$0xff]
    %v10227 = vld [vmem:[%s10220 + $0x30] sm:$0xff]
    %v10228 = vld [vmem:[%s10220 + $0x38] sm:$0xff]
    %v10229 = vld [vmem:[%s10220 + $0x40] sm:$0xff]
    %v10230 = vld [vmem:[%s10220 + $0x48] sm:$0xff]
    %v10231 = vld [vmem:[%s10220 + $0x50] sm:$0xff]
    %v10232 = vld [vmem:[%s10220 + $0x58] sm:$0xff]
    %v10233 = vld [vmem:[%s10220 + $0x60] sm:$0xff]
    %v10234 = vld [vmem:[%s10220 + $0x68] sm:$0xff]
    %v10235 = vld [vmem:[%s10220 + $0x70] sm:$0xff]
    %v10236 = vld [vmem:[%s10220 + $0x78] sm:$0xff]
    %v10237 = vld [vmem:[%s10220 + $0x80] sm:$0xff]
    %v10238 = vld [vmem:[%s10220 + $0x88] sm:$0xff]
    %v10239 = vld [vmem:[%s10220 + $0x90] sm:$0xff]
    %v10240 = vld [vmem:[%s10220 + $0x98] sm:$0xff]
    %v10241 = vld [vmem:[%s10220 + $0xa0] sm:$0xff]
    %v10242 = vld [vmem:[%s10220 + $0xa8] sm:$0xff]
    %v10243 = vld [vmem:[%s10220 + $0xb0] sm:$0xff]
    %v10244 = vld [vmem:[%s10220 + $0xb8] sm:$0xff]
    %v10245 = vld [vmem:[%s10220 + $0xc0] sm:$0xff]
    %v10246 = vld [vmem:[%s10220 + $0xc8] sm:$0xff]
    %v10247 = vld [vmem:[%s10220 + $0xd0] sm:$0xff]
    %v10248 = vld [vmem:[%s10220 + $0xd8] sm:$0xff]
    %v10249 = vld [vmem:[%s10220 + $0xe0] sm:$0xff]
    %v10250 = vld [vmem:[%s10220 + $0xe8] sm:$0xff]
    %v10251 = vld [vmem:[%s10220 + $0xf0] sm:$0xff]
    %v10252 = vld [vmem:[%s10220 + $0xf8] sm:$0xff]
    %v10253 = vld [vmem:[%s10220 + $0x100] sm:$0xff]
    %v10254 = vld [vmem:[%s10220 + $0x108] sm:$0xff]
    %v10255 = vld [vmem:[%s10220 + $0x110] sm:$0xff]
    %v10256 = vld [vmem:[%s10220 + $0x118] sm:$0xff]
    %v10257 = vld [vmem:[%s10220 + $0x120] sm:$0xff]
    %v10258 = vld [vmem:[%s10220 + $0x128] sm:$0xff]
    %v10259 = vld [vmem:[%s10220 + $0x130] sm:$0xff]
    %v10260 = vld [vmem:[%s10220 + $0x138] sm:$0xff]
    %v10261 = vld [vmem:[%s10220 + $0x140] sm:$0xff]
    %v10262 = vld [vmem:[%s10220 + $0x148] sm:$0xff]
    %v10263 = vld [vmem:[%s10220 + $0x150] sm:$0xff]
    %v10264 = vld [vmem:[%s10220 + $0x158] sm:$0xff]
    %v10265 = vld [vmem:[%s10220 + $0x160] sm:$0xff]
    %v10266 = vld [vmem:[%s10220 + $0x168] sm:$0xff]
    %v10267 = vld [vmem:[%s10220 + $0x170] sm:$0xff]
    %v10268 = vld [vmem:[%s10220 + $0x178] sm:$0xff]
    %v10269 = vrot.slane %v7731, 6
    %v10270 = vrot.slane %v7732, 5
    %v10271 = vsel %vm1018, %v10270, %v10269
    %v10272 = vpack.c.b16 %v10271, %v10271
    %v10322 = vunpack.c.l.b16 %v10221
    %v10323 = vunpack.c.h.b16 %v10221
    %v10324 = vunpack.c.l.b16 %v10222
    %v10325 = vunpack.c.h.b16 %v10222
    %v10326 = vunpack.c.l.b16 %v10223
    %v10327 = vunpack.c.h.b16 %v10223
    %v10328 = vunpack.c.l.b16 %v10224
    %v10329 = vunpack.c.h.b16 %v10224
    %v10330 = vunpack.c.l.b16 %v10225
    %v10331 = vunpack.c.h.b16 %v10225
    %v10332 = vunpack.c.l.b16 %v10226
    %v10333 = vunpack.c.h.b16 %v10226
    %v10334 = vunpack.c.l.b16 %v10227
    %v10335 = vunpack.c.h.b16 %v10227
    %v10336 = vunpack.c.l.b16 %v10228
    %v10337 = vunpack.c.h.b16 %v10228
    %v10338 = vunpack.c.l.b16 %v10229
    %v10339 = vunpack.c.h.b16 %v10229
    %v10340 = vunpack.c.l.b16 %v10230
    %v10341 = vunpack.c.h.b16 %v10230
    %v10342 = vunpack.c.l.b16 %v10231
    %v10343 = vunpack.c.h.b16 %v10231
    %v10344 = vunpack.c.l.b16 %v10232
    %v10345 = vunpack.c.h.b16 %v10232
    %v10346 = vunpack.c.l.b16 %v10233
    %v10347 = vunpack.c.h.b16 %v10233
    %v10348 = vunpack.c.l.b16 %v10234
    %v10349 = vunpack.c.h.b16 %v10234
    %v10350 = vunpack.c.l.b16 %v10235
    %v10351 = vunpack.c.h.b16 %v10235
    %v10352 = vunpack.c.l.b16 %v10236
    %v10353 = vunpack.c.h.b16 %v10236
    %v10354 = vunpack.c.l.b16 %v10237
    %v10355 = vunpack.c.h.b16 %v10237
    %v10356 = vunpack.c.l.b16 %v10238
    %v10357 = vunpack.c.h.b16 %v10238
    %v10358 = vunpack.c.l.b16 %v10239
    %v10359 = vunpack.c.h.b16 %v10239
    %v10360 = vunpack.c.l.b16 %v10240
    %v10361 = vunpack.c.h.b16 %v10240
    %v10362 = vunpack.c.l.b16 %v10241
    %v10363 = vunpack.c.h.b16 %v10241
    %v10364 = vunpack.c.l.b16 %v10242
    %v10365 = vunpack.c.h.b16 %v10242
    %v10366 = vunpack.c.l.b16 %v10243
    %v10367 = vunpack.c.h.b16 %v10243
    %v10368 = vunpack.c.l.b16 %v10244
    %v10369 = vunpack.c.h.b16 %v10244
    %v10370 = vunpack.c.l.b16 %v10245
    %v10371 = vunpack.c.h.b16 %v10245
    %v10372 = vunpack.c.l.b16 %v10246
    %v10373 = vunpack.c.h.b16 %v10246
    %v10374 = vunpack.c.l.b16 %v10247
    %v10375 = vunpack.c.h.b16 %v10247
    %v10376 = vunpack.c.l.b16 %v10248
    %v10377 = vunpack.c.h.b16 %v10248
    %v10378 = vunpack.c.l.b16 %v10249
    %v10379 = vunpack.c.h.b16 %v10249
    %v10380 = vunpack.c.l.b16 %v10250
    %v10381 = vunpack.c.h.b16 %v10250
    %v10382 = vunpack.c.l.b16 %v10251
    %v10383 = vunpack.c.h.b16 %v10251
    %v10384 = vunpack.c.l.b16 %v10252
    %v10385 = vunpack.c.h.b16 %v10252
    %v10386 = vunpack.c.l.b16 %v10253
    %v10387 = vunpack.c.h.b16 %v10253
    %v10388 = vunpack.c.l.b16 %v10254
    %v10389 = vunpack.c.h.b16 %v10254
    %v10390 = vunpack.c.l.b16 %v10255
    %v10391 = vunpack.c.h.b16 %v10255
    %v10392 = vunpack.c.l.b16 %v10256
    %v10393 = vunpack.c.h.b16 %v10256
    %v10394 = vunpack.c.l.b16 %v10257
    %v10395 = vunpack.c.h.b16 %v10257
    %v10396 = vunpack.c.l.b16 %v10258
    %v10397 = vunpack.c.h.b16 %v10258
    %v10398 = vunpack.c.l.b16 %v10259
    %v10399 = vunpack.c.h.b16 %v10259
    %v10400 = vunpack.c.l.b16 %v10260
    %v10401 = vunpack.c.h.b16 %v10260
    %v10402 = vunpack.c.l.b16 %v10261
    %v10403 = vunpack.c.h.b16 %v10261
    %v10404 = vunpack.c.l.b16 %v10262
    %v10405 = vunpack.c.h.b16 %v10262
    %v10406 = vunpack.c.l.b16 %v10263
    %v10407 = vunpack.c.h.b16 %v10263
    %v10408 = vunpack.c.l.b16 %v10264
    %v10409 = vunpack.c.h.b16 %v10264
    %v10410 = vunpack.c.l.b16 %v10265
    %v10411 = vunpack.c.h.b16 %v10265
    %v10412 = vunpack.c.l.b16 %v10266
    %v10413 = vunpack.c.h.b16 %v10266
    %v10414 = vunpack.c.l.b16 %v10267
    %v10415 = vunpack.c.h.b16 %v10267
    %v10416 = vunpack.c.l.b16 %v10268
    %v10417 = vunpack.c.h.b16 %v10268
    %v10418 = vpack.c.b16 %v10328, %v10322
    %v10419 = vpack.c.b16 %v10329, %v10323
    %v10420 = vpack.c.b16 %v10330, %v10324
    %v10421 = vpack.c.b16 %v10331, %v10325
    %v10422 = vpack.c.b16 %v10332, %v10326
    %v10423 = vpack.c.b16 %v10333, %v10327
    %v10424 = vpack.c.b16 %v10340, %v10334
    %v10425 = vpack.c.b16 %v10341, %v10335
    %v10426 = vpack.c.b16 %v10342, %v10336
    %v10427 = vpack.c.b16 %v10343, %v10337
    %v10428 = vpack.c.b16 %v10344, %v10338
    %v10429 = vpack.c.b16 %v10345, %v10339
    %v10430 = vpack.c.b16 %v10352, %v10346
    %v10431 = vpack.c.b16 %v10353, %v10347
    %v10432 = vpack.c.b16 %v10354, %v10348
    %v10433 = vpack.c.b16 %v10355, %v10349
    %v10434 = vpack.c.b16 %v10356, %v10350
    %v10435 = vpack.c.b16 %v10357, %v10351
    %v10436 = vpack.c.b16 %v10364, %v10358
    %v10437 = vpack.c.b16 %v10365, %v10359
    %v10438 = vpack.c.b16 %v10366, %v10360
    %v10439 = vpack.c.b16 %v10367, %v10361
    %v10440 = vpack.c.b16 %v10368, %v10362
    %v10441 = vpack.c.b16 %v10369, %v10363
    %v10442 = vpack.c.b16 %v10376, %v10370
    %v10443 = vpack.c.b16 %v10377, %v10371
    %v10444 = vpack.c.b16 %v10378, %v10372
    %v10445 = vpack.c.b16 %v10379, %v10373
    %v10446 = vpack.c.b16 %v10380, %v10374
    %v10447 = vpack.c.b16 %v10381, %v10375
    %v10448 = vpack.c.b16 %v10388, %v10382
    %v10449 = vpack.c.b16 %v10389, %v10383
    %v10450 = vpack.c.b16 %v10390, %v10384
    %v10451 = vpack.c.b16 %v10391, %v10385
    %v10452 = vpack.c.b16 %v10392, %v10386
    %v10453 = vpack.c.b16 %v10393, %v10387
    %v10454 = vpack.c.b16 %v10400, %v10394
    %v10455 = vpack.c.b16 %v10401, %v10395
    %v10456 = vpack.c.b16 %v10402, %v10396
    %v10457 = vpack.c.b16 %v10403, %v10397
    %v10458 = vpack.c.b16 %v10404, %v10398
    %v10459 = vpack.c.b16 %v10405, %v10399
    %v10460 = vpack.c.b16 %v10412, %v10406
    %v10461 = vpack.c.b16 %v10413, %v10407
    %v10462 = vpack.c.b16 %v10414, %v10408
    %v10463 = vpack.c.b16 %v10415, %v10409
    %v10464 = vpack.c.b16 %v10416, %v10410
    %v10465 = vpack.c.b16 %v10417, %v10411
    %10514 = vmatprep.subr.bf16.mxu0 %v10461
    %10515 = vmatpush1.bf16.msra.mxu0 %v10460
    %10516 = vmatprep.subr.bf16.mxu0 %v10455
    %10517 = vmatpush1.bf16.msra.mxu0 %v10454
    %10518 = vmatprep.subr.bf16.mxu0 %v10449
    %10519 = vmatpush1.bf16.msra.mxu0 %v10448
    %10520 = vmatprep.subr.bf16.mxu0 %v10443
    %10521 = vmatpush1.bf16.msra.mxu0 %v10442
    %10522 = vmatprep.subr.bf16.mxu0 %v10437
    %10523 = vmatpush1.bf16.msra.mxu0 %v10436
    %10524 = vmatprep.subr.bf16.mxu0 %v10431
    %10525 = vmatpush1.bf16.msra.mxu0 %v10430
    %10526 = vmatprep.subr.bf16.mxu0 %v10425
    %10527 = vmatpush1.bf16.msra.mxu0 %v10424
    %10528 = vmatprep.subr.bf16.mxu0 %v10419
    %10529 = vmatpush1.bf16.msra.mxu0 %v10418
    %10530 = vmatprep.subr.bf16.mxu0 0
    %10531 = vmatpush2.bf16.msra.mxu0 0
    %10532 = vmatprep.subr.bf16.mxu0 0
    %10533 = vmatpush2.bf16.msra.mxu0 0
    %10534 = vmatprep.subr.bf16.mxu0 0
    %10535 = vmatpush2.bf16.msra.mxu0 0
    %10536 = vmatprep.subr.bf16.mxu0 0
    %10537 = vmatpush2.bf16.msra.mxu0 0
    %10538 = vmatprep.subr.bf16.mxu0 0
    %10539 = vmatpush2.bf16.msra.mxu0 0
    %10540 = vmatprep.subr.bf16.mxu0 0
    %10541 = vmatpush2.bf16.msra.mxu0 0
    %10542 = vmatprep.subr.bf16.mxu0 0
    %10543 = vmatpush2.bf16.msra.mxu0 0
    %10544 = vmatprep.subr.bf16.mxu0 0
    %10545 = vmatpush2.bf16.msra.mxu0 0
    %10546 = vmatprep.mubr.bf16.mxu0 0
    %10547 = vmatmul.mubr.bf16.gmra.mxu0 %v10272
    %v10548 = vpop.f32.mrf.mxu0
    %v10549 = vadd.f32 0.0, %v10548
    %v10550 = vpop.f32.mrf.mxu0
    %v10551 = vadd.f32 0.0, %v10550
    %v10552 = vpop.f32.mrf.mxu0
    %v10553 = vpop.f32.mrf.mxu0
    %10554 = vdwg.mxu0
    %10555 = vmatprep.subr.bf16.mxu0 %v10463
    %10556 = vmatpush1.bf16.msra.mxu0 %v10462
    %10557 = vmatprep.subr.bf16.mxu0 %v10457
    %10558 = vmatpush1.bf16.msra.mxu0 %v10456
    %10559 = vmatprep.subr.bf16.mxu0 %v10451
    %10560 = vmatpush1.bf16.msra.mxu0 %v10450
    %10561 = vmatprep.subr.bf16.mxu0 %v10445
    %10562 = vmatpush1.bf16.msra.mxu0 %v10444
    %10563 = vmatprep.subr.bf16.mxu0 %v10439
    %10564 = vmatpush1.bf16.msra.mxu0 %v10438
    %10565 = vmatprep.subr.bf16.mxu0 %v10433
    %10566 = vmatpush1.bf16.msra.mxu0 %v10432
    %10567 = vmatprep.subr.bf16.mxu0 %v10427
    %10568 = vmatpush1.bf16.msra.mxu0 %v10426
    %10569 = vmatprep.subr.bf16.mxu0 %v10421
    %10570 = vmatpush1.bf16.msra.mxu0 %v10420
    %10571 = vmatprep.subr.bf16.mxu0 0
    %10572 = vmatpush2.bf16.msra.mxu0 0
    %10573 = vmatprep.subr.bf16.mxu0 0
    %10574 = vmatpush2.bf16.msra.mxu0 0
    %10575 = vmatprep.subr.bf16.mxu0 0
    %10576 = vmatpush2.bf16.msra.mxu0 0
    %10577 = vmatprep.subr.bf16.mxu0 0
    %10578 = vmatpush2.bf16.msra.mxu0 0
    %10579 = vmatprep.subr.bf16.mxu0 0
    %10580 = vmatpush2.bf16.msra.mxu0 0
    %10581 = vmatprep.subr.bf16.mxu0 0
    %10582 = vmatpush2.bf16.msra.mxu0 0
    %10583 = vmatprep.subr.bf16.mxu0 0
    %10584 = vmatpush2.bf16.msra.mxu0 0
    %10585 = vmatprep.subr.bf16.mxu0 0
    %10586 = vmatpush2.bf16.msra.mxu0 0
    %10587 = vmatprep.mubr.bf16.mxu0 0
    %10588 = vmatmul.mubr.bf16.gmra.mxu0 %v10272
    %v10589 = vpop.f32.mrf.mxu0
    %v10590 = vadd.f32 0.0, %v10589
    %v10591 = vpop.f32.mrf.mxu0
    %v10592 = vadd.f32 0.0, %v10591
    %v10593 = vpop.f32.mrf.mxu0
    %v10594 = vpop.f32.mrf.mxu0
    %10595 = vdwg.mxu0
    %10596 = vmatprep.subr.bf16.mxu0 %v10465
    %10597 = vmatpush1.bf16.msra.mxu0 %v10464
    %10598 = vmatprep.subr.bf16.mxu0 %v10459
    %10599 = vmatpush1.bf16.msra.mxu0 %v10458
    %10600 = vmatprep.subr.bf16.mxu0 %v10453
    %10601 = vmatpush1.bf16.msra.mxu0 %v10452
    %10602 = vmatprep.subr.bf16.mxu0 %v10447
    %10603 = vmatpush1.bf16.msra.mxu0 %v10446
    %10604 = vmatprep.subr.bf16.mxu0 %v10441
    %10605 = vmatpush1.bf16.msra.mxu0 %v10440
    %10606 = vmatprep.subr.bf16.mxu0 %v10435
    %10607 = vmatpush1.bf16.msra.mxu0 %v10434
    %10608 = vmatprep.subr.bf16.mxu0 %v10429
    %10609 = vmatpush1.bf16.msra.mxu0 %v10428
    %10610 = vmatprep.subr.bf16.mxu0 %v10423
    %10611 = vmatpush1.bf16.msra.mxu0 %v10422
    %10612 = vmatprep.subr.bf16.mxu0 0
    %10613 = vmatpush2.bf16.msra.mxu0 0
    %10614 = vmatprep.subr.bf16.mxu0 0
    %10615 = vmatpush2.bf16.msra.mxu0 0
    %10616 = vmatprep.subr.bf16.mxu0 0
    %10617 = vmatpush2.bf16.msra.mxu0 0
    %10618 = vmatprep.subr.bf16.mxu0 0
    %10619 = vmatpush2.bf16.msra.mxu0 0
    %10620 = vmatprep.subr.bf16.mxu0 0
    %10621 = vmatpush2.bf16.msra.mxu0 0
    %10622 = vmatprep.subr.bf16.mxu0 0
    %10623 = vmatpush2.bf16.msra.mxu0 0
    %10624 = vmatprep.subr.bf16.mxu0 0
    %10625 = vmatpush2.bf16.msra.mxu0 0
    %10626 = vmatprep.subr.bf16.mxu0 0
    %10627 = vmatpush2.bf16.msra.mxu0 0
    %10628 = vmatprep.mubr.bf16.mxu0 0
    %10629 = vmatmul.mubr.bf16.gmra.mxu0 %v10272
    %v10630 = vpop.f32.mrf.mxu0
    %v10631 = vadd.f32 0.0, %v10630
    %v10632 = vpop.f32.mrf.mxu0
    %v10633 = vadd.f32 0.0, %v10632
    %v10634 = vpop.f32.mrf.mxu0
    %v10635 = vpop.f32.mrf.mxu0
    %10636 = vdwg.mxu0
    %v10637 = vadd.f32 %v10214, %v10549
    %v10638 = vadd.f32 %v10215, %v10551
    %v10639 = vadd.f32 %v10216, %v10590
    %v10640 = vadd.f32 %v10217, %v10592
    %v10641 = vadd.f32 %v10218, %v10631
    %v10642 = vadd.f32 %v10219, %v10633
    %s10643 = scalar_lea.vmem [#allocation8], 8832
    %v10644 = vld [vmem:[%s10643] sm:$0xff]
    %v10645 = vld [vmem:[%s10643 + $0x8] sm:$0xff]
    %v10646 = vld [vmem:[%s10643 + $0x10] sm:$0xff]
    %v10647 = vld [vmem:[%s10643 + $0x18] sm:$0xff]
    %v10648 = vld [vmem:[%s10643 + $0x20] sm:$0xff]
    %v10649 = vld [vmem:[%s10643 + $0x28] sm:$0xff]
    %v10650 = vld [vmem:[%s10643 + $0x30] sm:$0xff]
    %v10651 = vld [vmem:[%s10643 + $0x38] sm:$0xff]
    %v10652 = vld [vmem:[%s10643 + $0x40] sm:$0xff]
    %v10653 = vld [vmem:[%s10643 + $0x48] sm:$0xff]
    %v10654 = vld [vmem:[%s10643 + $0x50] sm:$0xff]
    %v10655 = vld [vmem:[%s10643 + $0x58] sm:$0xff]
    %v10656 = vld [vmem:[%s10643 + $0x60] sm:$0xff]
    %v10657 = vld [vmem:[%s10643 + $0x68] sm:$0xff]
    %v10658 = vld [vmem:[%s10643 + $0x70] sm:$0xff]
    %v10659 = vld [vmem:[%s10643 + $0x78] sm:$0xff]
    %v10660 = vld [vmem:[%s10643 + $0x80] sm:$0xff]
    %v10661 = vld [vmem:[%s10643 + $0x88] sm:$0xff]
    %v10662 = vld [vmem:[%s10643 + $0x90] sm:$0xff]
    %v10663 = vld [vmem:[%s10643 + $0x98] sm:$0xff]
    %v10664 = vld [vmem:[%s10643 + $0xa0] sm:$0xff]
    %v10665 = vld [vmem:[%s10643 + $0xa8] sm:$0xff]
    %v10666 = vld [vmem:[%s10643 + $0xb0] sm:$0xff]
    %v10667 = vld [vmem:[%s10643 + $0xb8] sm:$0xff]
    %v10668 = vld [vmem:[%s10643 + $0xc0] sm:$0xff]
    %v10669 = vld [vmem:[%s10643 + $0xc8] sm:$0xff]
    %v10670 = vld [vmem:[%s10643 + $0xd0] sm:$0xff]
    %v10671 = vld [vmem:[%s10643 + $0xd8] sm:$0xff]
    %v10672 = vld [vmem:[%s10643 + $0xe0] sm:$0xff]
    %v10673 = vld [vmem:[%s10643 + $0xe8] sm:$0xff]
    %v10674 = vld [vmem:[%s10643 + $0xf0] sm:$0xff]
    %v10675 = vld [vmem:[%s10643 + $0xf8] sm:$0xff]
    %v10676 = vld [vmem:[%s10643 + $0x100] sm:$0xff]
    %v10677 = vld [vmem:[%s10643 + $0x108] sm:$0xff]
    %v10678 = vld [vmem:[%s10643 + $0x110] sm:$0xff]
    %v10679 = vld [vmem:[%s10643 + $0x118] sm:$0xff]
    %v10680 = vld [vmem:[%s10643 + $0x120] sm:$0xff]
    %v10681 = vld [vmem:[%s10643 + $0x128] sm:$0xff]
    %v10682 = vld [vmem:[%s10643 + $0x130] sm:$0xff]
    %v10683 = vld [vmem:[%s10643 + $0x138] sm:$0xff]
    %v10684 = vld [vmem:[%s10643 + $0x140] sm:$0xff]
    %v10685 = vld [vmem:[%s10643 + $0x148] sm:$0xff]
    %v10686 = vld [vmem:[%s10643 + $0x150] sm:$0xff]
    %v10687 = vld [vmem:[%s10643 + $0x158] sm:$0xff]
    %v10688 = vld [vmem:[%s10643 + $0x160] sm:$0xff]
    %v10689 = vld [vmem:[%s10643 + $0x168] sm:$0xff]
    %v10690 = vld [vmem:[%s10643 + $0x170] sm:$0xff]
    %v10691 = vld [vmem:[%s10643 + $0x178] sm:$0xff]
    %v10692 = vrot.slane %v7731, 7
    %v10693 = vrot.slane %v7732, 6
    %v10694 = vsel %vm1018, %v10693, %v10692
    %v10695 = vpack.c.b16 %v10694, %v10694
    %v10745 = vunpack.c.l.b16 %v10644
    %v10746 = vunpack.c.h.b16 %v10644
    %v10747 = vunpack.c.l.b16 %v10645
    %v10748 = vunpack.c.h.b16 %v10645
    %v10749 = vunpack.c.l.b16 %v10646
    %v10750 = vunpack.c.h.b16 %v10646
    %v10751 = vunpack.c.l.b16 %v10647
    %v10752 = vunpack.c.h.b16 %v10647
    %v10753 = vunpack.c.l.b16 %v10648
    %v10754 = vunpack.c.h.b16 %v10648
    %v10755 = vunpack.c.l.b16 %v10649
    %v10756 = vunpack.c.h.b16 %v10649
    %v10757 = vunpack.c.l.b16 %v10650
    %v10758 = vunpack.c.h.b16 %v10650
    %v10759 = vunpack.c.l.b16 %v10651
    %v10760 = vunpack.c.h.b16 %v10651
    %v10761 = vunpack.c.l.b16 %v10652
    %v10762 = vunpack.c.h.b16 %v10652
    %v10763 = vunpack.c.l.b16 %v10653
    %v10764 = vunpack.c.h.b16 %v10653
    %v10765 = vunpack.c.l.b16 %v10654
    %v10766 = vunpack.c.h.b16 %v10654
    %v10767 = vunpack.c.l.b16 %v10655
    %v10768 = vunpack.c.h.b16 %v10655
    %v10769 = vunpack.c.l.b16 %v10656
    %v10770 = vunpack.c.h.b16 %v10656
    %v10771 = vunpack.c.l.b16 %v10657
    %v10772 = vunpack.c.h.b16 %v10657
    %v10773 = vunpack.c.l.b16 %v10658
    %v10774 = vunpack.c.h.b16 %v10658
    %v10775 = vunpack.c.l.b16 %v10659
    %v10776 = vunpack.c.h.b16 %v10659
    %v10777 = vunpack.c.l.b16 %v10660
    %v10778 = vunpack.c.h.b16 %v10660
    %v10779 = vunpack.c.l.b16 %v10661
    %v10780 = vunpack.c.h.b16 %v10661
    %v10781 = vunpack.c.l.b16 %v10662
    %v10782 = vunpack.c.h.b16 %v10662
    %v10783 = vunpack.c.l.b16 %v10663
    %v10784 = vunpack.c.h.b16 %v10663
    %v10785 = vunpack.c.l.b16 %v10664
    %v10786 = vunpack.c.h.b16 %v10664
    %v10787 = vunpack.c.l.b16 %v10665
    %v10788 = vunpack.c.h.b16 %v10665
    %v10789 = vunpack.c.l.b16 %v10666
    %v10790 = vunpack.c.h.b16 %v10666
    %v10791 = vunpack.c.l.b16 %v10667
    %v10792 = vunpack.c.h.b16 %v10667
    %v10793 = vunpack.c.l.b16 %v10668
    %v10794 = vunpack.c.h.b16 %v10668
    %v10795 = vunpack.c.l.b16 %v10669
    %v10796 = vunpack.c.h.b16 %v10669
    %v10797 = vunpack.c.l.b16 %v10670
    %v10798 = vunpack.c.h.b16 %v10670
    %v10799 = vunpack.c.l.b16 %v10671
    %v10800 = vunpack.c.h.b16 %v10671
    %v10801 = vunpack.c.l.b16 %v10672
    %v10802 = vunpack.c.h.b16 %v10672
    %v10803 = vunpack.c.l.b16 %v10673
    %v10804 = vunpack.c.h.b16 %v10673
    %v10805 = vunpack.c.l.b16 %v10674
    %v10806 = vunpack.c.h.b16 %v10674
    %v10807 = vunpack.c.l.b16 %v10675
    %v10808 = vunpack.c.h.b16 %v10675
    %v10809 = vunpack.c.l.b16 %v10676
    %v10810 = vunpack.c.h.b16 %v10676
    %v10811 = vunpack.c.l.b16 %v10677
    %v10812 = vunpack.c.h.b16 %v10677
    %v10813 = vunpack.c.l.b16 %v10678
    %v10814 = vunpack.c.h.b16 %v10678
    %v10815 = vunpack.c.l.b16 %v10679
    %v10816 = vunpack.c.h.b16 %v10679
    %v10817 = vunpack.c.l.b16 %v10680
    %v10818 = vunpack.c.h.b16 %v10680
    %v10819 = vunpack.c.l.b16 %v10681
    %v10820 = vunpack.c.h.b16 %v10681
    %v10821 = vunpack.c.l.b16 %v10682
    %v10822 = vunpack.c.h.b16 %v10682
    %v10823 = vunpack.c.l.b16 %v10683
    %v10824 = vunpack.c.h.b16 %v10683
    %v10825 = vunpack.c.l.b16 %v10684
    %v10826 = vunpack.c.h.b16 %v10684
    %v10827 = vunpack.c.l.b16 %v10685
    %v10828 = vunpack.c.h.b16 %v10685
    %v10829 = vunpack.c.l.b16 %v10686
    %v10830 = vunpack.c.h.b16 %v10686
    %v10831 = vunpack.c.l.b16 %v10687
    %v10832 = vunpack.c.h.b16 %v10687
    %v10833 = vunpack.c.l.b16 %v10688
    %v10834 = vunpack.c.h.b16 %v10688
    %v10835 = vunpack.c.l.b16 %v10689
    %v10836 = vunpack.c.h.b16 %v10689
    %v10837 = vunpack.c.l.b16 %v10690
    %v10838 = vunpack.c.h.b16 %v10690
    %v10839 = vunpack.c.l.b16 %v10691
    %v10840 = vunpack.c.h.b16 %v10691
    %v10841 = vpack.c.b16 %v10751, %v10745
    %v10842 = vpack.c.b16 %v10752, %v10746
    %v10843 = vpack.c.b16 %v10753, %v10747
    %v10844 = vpack.c.b16 %v10754, %v10748
    %v10845 = vpack.c.b16 %v10755, %v10749
    %v10846 = vpack.c.b16 %v10756, %v10750
    %v10847 = vpack.c.b16 %v10763, %v10757
    %v10848 = vpack.c.b16 %v10764, %v10758
    %v10849 = vpack.c.b16 %v10765, %v10759
    %v10850 = vpack.c.b16 %v10766, %v10760
    %v10851 = vpack.c.b16 %v10767, %v10761
    %v10852 = vpack.c.b16 %v10768, %v10762
    %v10853 = vpack.c.b16 %v10775, %v10769
    %v10854 = vpack.c.b16 %v10776, %v10770
    %v10855 = vpack.c.b16 %v10777, %v10771
    %v10856 = vpack.c.b16 %v10778, %v10772
    %v10857 = vpack.c.b16 %v10779, %v10773
    %v10858 = vpack.c.b16 %v10780, %v10774
    %v10859 = vpack.c.b16 %v10787, %v10781
    %v10860 = vpack.c.b16 %v10788, %v10782
    %v10861 = vpack.c.b16 %v10789, %v10783
    %v10862 = vpack.c.b16 %v10790, %v10784
    %v10863 = vpack.c.b16 %v10791, %v10785
    %v10864 = vpack.c.b16 %v10792, %v10786
    %v10865 = vpack.c.b16 %v10799, %v10793
    %v10866 = vpack.c.b16 %v10800, %v10794
    %v10867 = vpack.c.b16 %v10801, %v10795
    %v10868 = vpack.c.b16 %v10802, %v10796
    %v10869 = vpack.c.b16 %v10803, %v10797
    %v10870 = vpack.c.b16 %v10804, %v10798
    %v10871 = vpack.c.b16 %v10811, %v10805
    %v10872 = vpack.c.b16 %v10812, %v10806
    %v10873 = vpack.c.b16 %v10813, %v10807
    %v10874 = vpack.c.b16 %v10814, %v10808
    %v10875 = vpack.c.b16 %v10815, %v10809
    %v10876 = vpack.c.b16 %v10816, %v10810
    %v10877 = vpack.c.b16 %v10823, %v10817
    %v10878 = vpack.c.b16 %v10824, %v10818
    %v10879 = vpack.c.b16 %v10825, %v10819
    %v10880 = vpack.c.b16 %v10826, %v10820
    %v10881 = vpack.c.b16 %v10827, %v10821
    %v10882 = vpack.c.b16 %v10828, %v10822
    %v10883 = vpack.c.b16 %v10835, %v10829
    %v10884 = vpack.c.b16 %v10836, %v10830
    %v10885 = vpack.c.b16 %v10837, %v10831
    %v10886 = vpack.c.b16 %v10838, %v10832
    %v10887 = vpack.c.b16 %v10839, %v10833
    %v10888 = vpack.c.b16 %v10840, %v10834
    %10937 = vmatprep.subr.bf16.mxu0 %v10884
    %10938 = vmatpush1.bf16.msra.mxu0 %v10883
    %10939 = vmatprep.subr.bf16.mxu0 %v10878
    %10940 = vmatpush1.bf16.msra.mxu0 %v10877
    %10941 = vmatprep.subr.bf16.mxu0 %v10872
    %10942 = vmatpush1.bf16.msra.mxu0 %v10871
    %10943 = vmatprep.subr.bf16.mxu0 %v10866
    %10944 = vmatpush1.bf16.msra.mxu0 %v10865
    %10945 = vmatprep.subr.bf16.mxu0 %v10860
    %10946 = vmatpush1.bf16.msra.mxu0 %v10859
    %10947 = vmatprep.subr.bf16.mxu0 %v10854
    %10948 = vmatpush1.bf16.msra.mxu0 %v10853
    %10949 = vmatprep.subr.bf16.mxu0 %v10848
    %10950 = vmatpush1.bf16.msra.mxu0 %v10847
    %10951 = vmatprep.subr.bf16.mxu0 %v10842
    %10952 = vmatpush1.bf16.msra.mxu0 %v10841
    %10953 = vmatprep.subr.bf16.mxu0 0
    %10954 = vmatpush2.bf16.msra.mxu0 0
    %10955 = vmatprep.subr.bf16.mxu0 0
    %10956 = vmatpush2.bf16.msra.mxu0 0
    %10957 = vmatprep.subr.bf16.mxu0 0
    %10958 = vmatpush2.bf16.msra.mxu0 0
    %10959 = vmatprep.subr.bf16.mxu0 0
    %10960 = vmatpush2.bf16.msra.mxu0 0
    %10961 = vmatprep.subr.bf16.mxu0 0
    %10962 = vmatpush2.bf16.msra.mxu0 0
    %10963 = vmatprep.subr.bf16.mxu0 0
    %10964 = vmatpush2.bf16.msra.mxu0 0
    %10965 = vmatprep.subr.bf16.mxu0 0
    %10966 = vmatpush2.bf16.msra.mxu0 0
    %10967 = vmatprep.subr.bf16.mxu0 0
    %10968 = vmatpush2.bf16.msra.mxu0 0
    %10969 = vmatprep.mubr.bf16.mxu0 0
    %10970 = vmatmul.mubr.bf16.gmra.mxu0 %v10695
    %v10971 = vpop.f32.mrf.mxu0
    %v10972 = vadd.f32 0.0, %v10971
    %v10973 = vpop.f32.mrf.mxu0
    %v10974 = vadd.f32 0.0, %v10973
    %v10975 = vpop.f32.mrf.mxu0
    %v10976 = vpop.f32.mrf.mxu0
    %10977 = vdwg.mxu0
    %10978 = vmatprep.subr.bf16.mxu0 %v10886
    %10979 = vmatpush1.bf16.msra.mxu0 %v10885
    %10980 = vmatprep.subr.bf16.mxu0 %v10880
    %10981 = vmatpush1.bf16.msra.mxu0 %v10879
    %10982 = vmatprep.subr.bf16.mxu0 %v10874
    %10983 = vmatpush1.bf16.msra.mxu0 %v10873
    %10984 = vmatprep.subr.bf16.mxu0 %v10868
    %10985 = vmatpush1.bf16.msra.mxu0 %v10867
    %10986 = vmatprep.subr.bf16.mxu0 %v10862
    %10987 = vmatpush1.bf16.msra.mxu0 %v10861
    %10988 = vmatprep.subr.bf16.mxu0 %v10856
    %10989 = vmatpush1.bf16.msra.mxu0 %v10855
    %10990 = vmatprep.subr.bf16.mxu0 %v10850
    %10991 = vmatpush1.bf16.msra.mxu0 %v10849
    %10992 = vmatprep.subr.bf16.mxu0 %v10844
    %10993 = vmatpush1.bf16.msra.mxu0 %v10843
    %10994 = vmatprep.subr.bf16.mxu0 0
    %10995 = vmatpush2.bf16.msra.mxu0 0
    %10996 = vmatprep.subr.bf16.mxu0 0
    %10997 = vmatpush2.bf16.msra.mxu0 0
    %10998 = vmatprep.subr.bf16.mxu0 0
    %10999 = vmatpush2.bf16.msra.mxu0 0
    %11000 = vmatprep.subr.bf16.mxu0 0
    %11001 = vmatpush2.bf16.msra.mxu0 0
    %11002 = vmatprep.subr.bf16.mxu0 0
    %11003 = vmatpush2.bf16.msra.mxu0 0
    %11004 = vmatprep.subr.bf16.mxu0 0
    %11005 = vmatpush2.bf16.msra.mxu0 0
    %11006 = vmatprep.subr.bf16.mxu0 0
    %11007 = vmatpush2.bf16.msra.mxu0 0
    %11008 = vmatprep.subr.bf16.mxu0 0
    %11009 = vmatpush2.bf16.msra.mxu0 0
    %11010 = vmatprep.mubr.bf16.mxu0 0
    %11011 = vmatmul.mubr.bf16.gmra.mxu0 %v10695
    %v11012 = vpop.f32.mrf.mxu0
    %v11013 = vadd.f32 0.0, %v11012
    %v11014 = vpop.f32.mrf.mxu0
    %v11015 = vadd.f32 0.0, %v11014
    %v11016 = vpop.f32.mrf.mxu0
    %v11017 = vpop.f32.mrf.mxu0
    %11018 = vdwg.mxu0
    %11019 = vmatprep.subr.bf16.mxu0 %v10888
    %11020 = vmatpush1.bf16.msra.mxu0 %v10887
    %11021 = vmatprep.subr.bf16.mxu0 %v10882
    %11022 = vmatpush1.bf16.msra.mxu0 %v10881
    %11023 = vmatprep.subr.bf16.mxu0 %v10876
    %11024 = vmatpush1.bf16.msra.mxu0 %v10875
    %11025 = vmatprep.subr.bf16.mxu0 %v10870
    %11026 = vmatpush1.bf16.msra.mxu0 %v10869
    %11027 = vmatprep.subr.bf16.mxu0 %v10864
    %11028 = vmatpush1.bf16.msra.mxu0 %v10863
    %11029 = vmatprep.subr.bf16.mxu0 %v10858
    %11030 = vmatpush1.bf16.msra.mxu0 %v10857
    %11031 = vmatprep.subr.bf16.mxu0 %v10852
    %11032 = vmatpush1.bf16.msra.mxu0 %v10851
    %11033 = vmatprep.subr.bf16.mxu0 %v10846
    %11034 = vmatpush1.bf16.msra.mxu0 %v10845
    %11035 = vmatprep.subr.bf16.mxu0 0
    %11036 = vmatpush2.bf16.msra.mxu0 0
    %11037 = vmatprep.subr.bf16.mxu0 0
    %11038 = vmatpush2.bf16.msra.mxu0 0
    %11039 = vmatprep.subr.bf16.mxu0 0
    %11040 = vmatpush2.bf16.msra.mxu0 0
    %11041 = vmatprep.subr.bf16.mxu0 0
    %11042 = vmatpush2.bf16.msra.mxu0 0
    %11043 = vmatprep.subr.bf16.mxu0 0
    %11044 = vmatpush2.bf16.msra.mxu0 0
    %11045 = vmatprep.subr.bf16.mxu0 0
    %11046 = vmatpush2.bf16.msra.mxu0 0
    %11047 = vmatprep.subr.bf16.mxu0 0
    %11048 = vmatpush2.bf16.msra.mxu0 0
    %11049 = vmatprep.subr.bf16.mxu0 0
    %11050 = vmatpush2.bf16.msra.mxu0 0
    %11051 = vmatprep.mubr.bf16.mxu0 0
    %11052 = vmatmul.mubr.bf16.gmra.mxu0 %v10695
    %v11053 = vpop.f32.mrf.mxu0
    %v11054 = vadd.f32 0.0, %v11053
    %v11055 = vpop.f32.mrf.mxu0
    %v11056 = vadd.f32 0.0, %v11055
    %v11057 = vpop.f32.mrf.mxu0
    %v11058 = vpop.f32.mrf.mxu0
    %11059 = vdwg.mxu0
    %v11060 = vadd.f32 %v10637, %v10972
    %v11061 = vadd.f32 %v10638, %v10974
    %v11062 = vadd.f32 %v10639, %v11013
    %v11063 = vadd.f32 %v10640, %v11015
    %v11064 = vadd.f32 %v10641, %v11054
    %v11065 = vadd.f32 %v10642, %v11056
    %v11066 = vpack.c.bf16 %v577, %v577
    %v11067 = vpack.c.bf16 %v913, %v913
    %s11068 = scalar_lea.vmem [#allocation8], 9216
    %v11069 = vld [vmem:[%s11068] sm:$0xff]
    %v11070 = vld [vmem:[%s11068 + $0x8] sm:$0xff]
    %v11071 = vld [vmem:[%s11068 + $0x10] sm:$0xff]
    %v11072 = vld [vmem:[%s11068 + $0x18] sm:$0xff]
    %v11073 = vld [vmem:[%s11068 + $0x20] sm:$0xff]
    %v11074 = vld [vmem:[%s11068 + $0x28] sm:$0xff]
    %v11075 = vld [vmem:[%s11068 + $0x30] sm:$0xff]
    %v11076 = vld [vmem:[%s11068 + $0x38] sm:$0xff]
    %v11077 = vld [vmem:[%s11068 + $0x40] sm:$0xff]
    %v11078 = vld [vmem:[%s11068 + $0x48] sm:$0xff]
    %v11079 = vld [vmem:[%s11068 + $0x50] sm:$0xff]
    %v11080 = vld [vmem:[%s11068 + $0x58] sm:$0xff]
    %v11081 = vld [vmem:[%s11068 + $0x60] sm:$0xff]
    %v11082 = vld [vmem:[%s11068 + $0x68] sm:$0xff]
    %v11083 = vld [vmem:[%s11068 + $0x70] sm:$0xff]
    %v11084 = vld [vmem:[%s11068 + $0x78] sm:$0xff]
    %v11085 = vld [vmem:[%s11068 + $0x80] sm:$0xff]
    %v11086 = vld [vmem:[%s11068 + $0x88] sm:$0xff]
    %v11087 = vld [vmem:[%s11068 + $0x90] sm:$0xff]
    %v11088 = vld [vmem:[%s11068 + $0x98] sm:$0xff]
    %v11089 = vld [vmem:[%s11068 + $0xa0] sm:$0xff]
    %v11090 = vld [vmem:[%s11068 + $0xa8] sm:$0xff]
    %v11091 = vld [vmem:[%s11068 + $0xb0] sm:$0xff]
    %v11092 = vld [vmem:[%s11068 + $0xb8] sm:$0xff]
    %v11093 = vld [vmem:[%s11068 + $0xc0] sm:$0xff]
    %v11094 = vld [vmem:[%s11068 + $0xc8] sm:$0xff]
    %v11095 = vld [vmem:[%s11068 + $0xd0] sm:$0xff]
    %v11096 = vld [vmem:[%s11068 + $0xd8] sm:$0xff]
    %v11097 = vld [vmem:[%s11068 + $0xe0] sm:$0xff]
    %v11098 = vld [vmem:[%s11068 + $0xe8] sm:$0xff]
    %v11099 = vld [vmem:[%s11068 + $0xf0] sm:$0xff]
    %v11100 = vld [vmem:[%s11068 + $0xf8] sm:$0xff]
    %v11101 = vld [vmem:[%s11068 + $0x100] sm:$0xff]
    %v11102 = vld [vmem:[%s11068 + $0x108] sm:$0xff]
    %v11103 = vld [vmem:[%s11068 + $0x110] sm:$0xff]
    %v11104 = vld [vmem:[%s11068 + $0x118] sm:$0xff]
    %v11105 = vld [vmem:[%s11068 + $0x120] sm:$0xff]
    %v11106 = vld [vmem:[%s11068 + $0x128] sm:$0xff]
    %v11107 = vld [vmem:[%s11068 + $0x130] sm:$0xff]
    %v11108 = vld [vmem:[%s11068 + $0x138] sm:$0xff]
    %v11109 = vld [vmem:[%s11068 + $0x140] sm:$0xff]
    %v11110 = vld [vmem:[%s11068 + $0x148] sm:$0xff]
    %v11111 = vld [vmem:[%s11068 + $0x150] sm:$0xff]
    %v11112 = vld [vmem:[%s11068 + $0x158] sm:$0xff]
    %v11113 = vld [vmem:[%s11068 + $0x160] sm:$0xff]
    %v11114 = vld [vmem:[%s11068 + $0x168] sm:$0xff]
    %v11115 = vld [vmem:[%s11068 + $0x170] sm:$0xff]
    %v11116 = vld [vmem:[%s11068 + $0x178] sm:$0xff]
    %v11119 = vunpack.c.l.b16 %v11066
    %v11120 = vunpack.c.l.b16 %v11067
    %v11121 = vrot.slane %v11120, 7
    %v11122 = vsel %vm1018, %v11121, %v11119
    %v11123 = vpack.c.b16 %v11122, %v11122
    %v11173 = vunpack.c.l.b16 %v11069
    %v11174 = vunpack.c.h.b16 %v11069
    %v11175 = vunpack.c.l.b16 %v11070
    %v11176 = vunpack.c.h.b16 %v11070
    %v11177 = vunpack.c.l.b16 %v11071
    %v11178 = vunpack.c.h.b16 %v11071
    %v11179 = vunpack.c.l.b16 %v11072
    %v11180 = vunpack.c.h.b16 %v11072
    %v11181 = vunpack.c.l.b16 %v11073
    %v11182 = vunpack.c.h.b16 %v11073
    %v11183 = vunpack.c.l.b16 %v11074
    %v11184 = vunpack.c.h.b16 %v11074
    %v11185 = vunpack.c.l.b16 %v11075
    %v11186 = vunpack.c.h.b16 %v11075
    %v11187 = vunpack.c.l.b16 %v11076
    %v11188 = vunpack.c.h.b16 %v11076
    %v11189 = vunpack.c.l.b16 %v11077
    %v11190 = vunpack.c.h.b16 %v11077
    %v11191 = vunpack.c.l.b16 %v11078
    %v11192 = vunpack.c.h.b16 %v11078
    %v11193 = vunpack.c.l.b16 %v11079
    %v11194 = vunpack.c.h.b16 %v11079
    %v11195 = vunpack.c.l.b16 %v11080
    %v11196 = vunpack.c.h.b16 %v11080
    %v11197 = vunpack.c.l.b16 %v11081
    %v11198 = vunpack.c.h.b16 %v11081
    %v11199 = vunpack.c.l.b16 %v11082
    %v11200 = vunpack.c.h.b16 %v11082
    %v11201 = vunpack.c.l.b16 %v11083
    %v11202 = vunpack.c.h.b16 %v11083
    %v11203 = vunpack.c.l.b16 %v11084
    %v11204 = vunpack.c.h.b16 %v11084
    %v11205 = vunpack.c.l.b16 %v11085
    %v11206 = vunpack.c.h.b16 %v11085
    %v11207 = vunpack.c.l.b16 %v11086
    %v11208 = vunpack.c.h.b16 %v11086
    %v11209 = vunpack.c.l.b16 %v11087
    %v11210 = vunpack.c.h.b16 %v11087
    %v11211 = vunpack.c.l.b16 %v11088
    %v11212 = vunpack.c.h.b16 %v11088
    %v11213 = vunpack.c.l.b16 %v11089
    %v11214 = vunpack.c.h.b16 %v11089
    %v11215 = vunpack.c.l.b16 %v11090
    %v11216 = vunpack.c.h.b16 %v11090
    %v11217 = vunpack.c.l.b16 %v11091
    %v11218 = vunpack.c.h.b16 %v11091
    %v11219 = vunpack.c.l.b16 %v11092
    %v11220 = vunpack.c.h.b16 %v11092
    %v11221 = vunpack.c.l.b16 %v11093
    %v11222 = vunpack.c.h.b16 %v11093
    %v11223 = vunpack.c.l.b16 %v11094
    %v11224 = vunpack.c.h.b16 %v11094
    %v11225 = vunpack.c.l.b16 %v11095
    %v11226 = vunpack.c.h.b16 %v11095
    %v11227 = vunpack.c.l.b16 %v11096
    %v11228 = vunpack.c.h.b16 %v11096
    %v11229 = vunpack.c.l.b16 %v11097
    %v11230 = vunpack.c.h.b16 %v11097
    %v11231 = vunpack.c.l.b16 %v11098
    %v11232 = vunpack.c.h.b16 %v11098
    %v11233 = vunpack.c.l.b16 %v11099
    %v11234 = vunpack.c.h.b16 %v11099
    %v11235 = vunpack.c.l.b16 %v11100
    %v11236 = vunpack.c.h.b16 %v11100
    %v11237 = vunpack.c.l.b16 %v11101
    %v11238 = vunpack.c.h.b16 %v11101
    %v11239 = vunpack.c.l.b16 %v11102
    %v11240 = vunpack.c.h.b16 %v11102
    %v11241 = vunpack.c.l.b16 %v11103
    %v11242 = vunpack.c.h.b16 %v11103
    %v11243 = vunpack.c.l.b16 %v11104
    %v11244 = vunpack.c.h.b16 %v11104
    %v11245 = vunpack.c.l.b16 %v11105
    %v11246 = vunpack.c.h.b16 %v11105
    %v11247 = vunpack.c.l.b16 %v11106
    %v11248 = vunpack.c.h.b16 %v11106
    %v11249 = vunpack.c.l.b16 %v11107
    %v11250 = vunpack.c.h.b16 %v11107
    %v11251 = vunpack.c.l.b16 %v11108
    %v11252 = vunpack.c.h.b16 %v11108
    %v11253 = vunpack.c.l.b16 %v11109
    %v11254 = vunpack.c.h.b16 %v11109
    %v11255 = vunpack.c.l.b16 %v11110
    %v11256 = vunpack.c.h.b16 %v11110
    %v11257 = vunpack.c.l.b16 %v11111
    %v11258 = vunpack.c.h.b16 %v11111
    %v11259 = vunpack.c.l.b16 %v11112
    %v11260 = vunpack.c.h.b16 %v11112
    %v11261 = vunpack.c.l.b16 %v11113
    %v11262 = vunpack.c.h.b16 %v11113
    %v11263 = vunpack.c.l.b16 %v11114
    %v11264 = vunpack.c.h.b16 %v11114
    %v11265 = vunpack.c.l.b16 %v11115
    %v11266 = vunpack.c.h.b16 %v11115
    %v11267 = vunpack.c.l.b16 %v11116
    %v11268 = vunpack.c.h.b16 %v11116
    %v11269 = vpack.c.b16 %v11179, %v11173
    %v11270 = vpack.c.b16 %v11180, %v11174
    %v11271 = vpack.c.b16 %v11181, %v11175
    %v11272 = vpack.c.b16 %v11182, %v11176
    %v11273 = vpack.c.b16 %v11183, %v11177
    %v11274 = vpack.c.b16 %v11184, %v11178
    %v11275 = vpack.c.b16 %v11191, %v11185
    %v11276 = vpack.c.b16 %v11192, %v11186
    %v11277 = vpack.c.b16 %v11193, %v11187
    %v11278 = vpack.c.b16 %v11194, %v11188
    %v11279 = vpack.c.b16 %v11195, %v11189
    %v11280 = vpack.c.b16 %v11196, %v11190
    %v11281 = vpack.c.b16 %v11203, %v11197
    %v11282 = vpack.c.b16 %v11204, %v11198
    %v11283 = vpack.c.b16 %v11205, %v11199
    %v11284 = vpack.c.b16 %v11206, %v11200
    %v11285 = vpack.c.b16 %v11207, %v11201
    %v11286 = vpack.c.b16 %v11208, %v11202
    %v11287 = vpack.c.b16 %v11215, %v11209
    %v11288 = vpack.c.b16 %v11216, %v11210
    %v11289 = vpack.c.b16 %v11217, %v11211
    %v11290 = vpack.c.b16 %v11218, %v11212
    %v11291 = vpack.c.b16 %v11219, %v11213
    %v11292 = vpack.c.b16 %v11220, %v11214
    %v11293 = vpack.c.b16 %v11227, %v11221
    %v11294 = vpack.c.b16 %v11228, %v11222
    %v11295 = vpack.c.b16 %v11229, %v11223
    %v11296 = vpack.c.b16 %v11230, %v11224
    %v11297 = vpack.c.b16 %v11231, %v11225
    %v11298 = vpack.c.b16 %v11232, %v11226
    %v11299 = vpack.c.b16 %v11239, %v11233
    %v11300 = vpack.c.b16 %v11240, %v11234
    %v11301 = vpack.c.b16 %v11241, %v11235
    %v11302 = vpack.c.b16 %v11242, %v11236
    %v11303 = vpack.c.b16 %v11243, %v11237
    %v11304 = vpack.c.b16 %v11244, %v11238
    %v11305 = vpack.c.b16 %v11251, %v11245
    %v11306 = vpack.c.b16 %v11252, %v11246
    %v11307 = vpack.c.b16 %v11253, %v11247
    %v11308 = vpack.c.b16 %v11254, %v11248
    %v11309 = vpack.c.b16 %v11255, %v11249
    %v11310 = vpack.c.b16 %v11256, %v11250
    %v11311 = vpack.c.b16 %v11263, %v11257
    %v11312 = vpack.c.b16 %v11264, %v11258
    %v11313 = vpack.c.b16 %v11265, %v11259
    %v11314 = vpack.c.b16 %v11266, %v11260
    %v11315 = vpack.c.b16 %v11267, %v11261
    %v11316 = vpack.c.b16 %v11268, %v11262
    %11365 = vmatprep.subr.bf16.mxu0 %v11312
    %11366 = vmatpush1.bf16.msra.mxu0 %v11311
    %11367 = vmatprep.subr.bf16.mxu0 %v11306
    %11368 = vmatpush1.bf16.msra.mxu0 %v11305
    %11369 = vmatprep.subr.bf16.mxu0 %v11300
    %11370 = vmatpush1.bf16.msra.mxu0 %v11299
    %11371 = vmatprep.subr.bf16.mxu0 %v11294
    %11372 = vmatpush1.bf16.msra.mxu0 %v11293
    %11373 = vmatprep.subr.bf16.mxu0 %v11288
    %11374 = vmatpush1.bf16.msra.mxu0 %v11287
    %11375 = vmatprep.subr.bf16.mxu0 %v11282
    %11376 = vmatpush1.bf16.msra.mxu0 %v11281
    %11377 = vmatprep.subr.bf16.mxu0 %v11276
    %11378 = vmatpush1.bf16.msra.mxu0 %v11275
    %11379 = vmatprep.subr.bf16.mxu0 %v11270
    %11380 = vmatpush1.bf16.msra.mxu0 %v11269
    %11381 = vmatprep.subr.bf16.mxu0 0
    %11382 = vmatpush2.bf16.msra.mxu0 0
    %11383 = vmatprep.subr.bf16.mxu0 0
    %11384 = vmatpush2.bf16.msra.mxu0 0
    %11385 = vmatprep.subr.bf16.mxu0 0
    %11386 = vmatpush2.bf16.msra.mxu0 0
    %11387 = vmatprep.subr.bf16.mxu0 0
    %11388 = vmatpush2.bf16.msra.mxu0 0
    %11389 = vmatprep.subr.bf16.mxu0 0
    %11390 = vmatpush2.bf16.msra.mxu0 0
    %11391 = vmatprep.subr.bf16.mxu0 0
    %11392 = vmatpush2.bf16.msra.mxu0 0
    %11393 = vmatprep.subr.bf16.mxu0 0
    %11394 = vmatpush2.bf16.msra.mxu0 0
    %11395 = vmatprep.subr.bf16.mxu0 0
    %11396 = vmatpush2.bf16.msra.mxu0 0
    %11397 = vmatprep.mubr.bf16.mxu0 0
    %11398 = vmatmul.mubr.bf16.gmra.mxu0 %v11123
    %v11399 = vpop.f32.mrf.mxu0
    %v11400 = vadd.f32 0.0, %v11399
    %v11401 = vpop.f32.mrf.mxu0
    %v11402 = vadd.f32 0.0, %v11401
    %v11403 = vpop.f32.mrf.mxu0
    %v11404 = vpop.f32.mrf.mxu0
    %11405 = vdwg.mxu0
    %11406 = vmatprep.subr.bf16.mxu0 %v11314
    %11407 = vmatpush1.bf16.msra.mxu0 %v11313
    %11408 = vmatprep.subr.bf16.mxu0 %v11308
    %11409 = vmatpush1.bf16.msra.mxu0 %v11307
    %11410 = vmatprep.subr.bf16.mxu0 %v11302
    %11411 = vmatpush1.bf16.msra.mxu0 %v11301
    %11412 = vmatprep.subr.bf16.mxu0 %v11296
    %11413 = vmatpush1.bf16.msra.mxu0 %v11295
    %11414 = vmatprep.subr.bf16.mxu0 %v11290
    %11415 = vmatpush1.bf16.msra.mxu0 %v11289
    %11416 = vmatprep.subr.bf16.mxu0 %v11284
    %11417 = vmatpush1.bf16.msra.mxu0 %v11283
    %11418 = vmatprep.subr.bf16.mxu0 %v11278
    %11419 = vmatpush1.bf16.msra.mxu0 %v11277
    %11420 = vmatprep.subr.bf16.mxu0 %v11272
    %11421 = vmatpush1.bf16.msra.mxu0 %v11271
    %11422 = vmatprep.subr.bf16.mxu0 0
    %11423 = vmatpush2.bf16.msra.mxu0 0
    %11424 = vmatprep.subr.bf16.mxu0 0
    %11425 = vmatpush2.bf16.msra.mxu0 0
    %11426 = vmatprep.subr.bf16.mxu0 0
    %11427 = vmatpush2.bf16.msra.mxu0 0
    %11428 = vmatprep.subr.bf16.mxu0 0
    %11429 = vmatpush2.bf16.msra.mxu0 0
    %11430 = vmatprep.subr.bf16.mxu0 0
    %11431 = vmatpush2.bf16.msra.mxu0 0
    %11432 = vmatprep.subr.bf16.mxu0 0
    %11433 = vmatpush2.bf16.msra.mxu0 0
    %11434 = vmatprep.subr.bf16.mxu0 0
    %11435 = vmatpush2.bf16.msra.mxu0 0
    %11436 = vmatprep.subr.bf16.mxu0 0
    %11437 = vmatpush2.bf16.msra.mxu0 0
    %11438 = vmatprep.mubr.bf16.mxu0 0
    %11439 = vmatmul.mubr.bf16.gmra.mxu0 %v11123
    %v11440 = vpop.f32.mrf.mxu0
    %v11441 = vadd.f32 0.0, %v11440
    %v11442 = vpop.f32.mrf.mxu0
    %v11443 = vadd.f32 0.0, %v11442
    %v11444 = vpop.f32.mrf.mxu0
    %v11445 = vpop.f32.mrf.mxu0
    %11446 = vdwg.mxu0
    %11447 = vmatprep.subr.bf16.mxu0 %v11316
    %11448 = vmatpush1.bf16.msra.mxu0 %v11315
    %11449 = vmatprep.subr.bf16.mxu0 %v11310
    %11450 = vmatpush1.bf16.msra.mxu0 %v11309
    %11451 = vmatprep.subr.bf16.mxu0 %v11304
    %11452 = vmatpush1.bf16.msra.mxu0 %v11303
    %11453 = vmatprep.subr.bf16.mxu0 %v11298
    %11454 = vmatpush1.bf16.msra.mxu0 %v11297
    %11455 = vmatprep.subr.bf16.mxu0 %v11292
    %11456 = vmatpush1.bf16.msra.mxu0 %v11291
    %11457 = vmatprep.subr.bf16.mxu0 %v11286
    %11458 = vmatpush1.bf16.msra.mxu0 %v11285
    %11459 = vmatprep.subr.bf16.mxu0 %v11280
    %11460 = vmatpush1.bf16.msra.mxu0 %v11279
    %11461 = vmatprep.subr.bf16.mxu0 %v11274
    %11462 = vmatpush1.bf16.msra.mxu0 %v11273
    %11463 = vmatprep.subr.bf16.mxu0 0
    %11464 = vmatpush2.bf16.msra.mxu0 0
    %11465 = vmatprep.subr.bf16.mxu0 0
    %11466 = vmatpush2.bf16.msra.mxu0 0
    %11467 = vmatprep.subr.bf16.mxu0 0
    %11468 = vmatpush2.bf16.msra.mxu0 0
    %11469 = vmatprep.subr.bf16.mxu0 0
    %11470 = vmatpush2.bf16.msra.mxu0 0
    %11471 = vmatprep.subr.bf16.mxu0 0
    %11472 = vmatpush2.bf16.msra.mxu0 0
    %11473 = vmatprep.subr.bf16.mxu0 0
    %11474 = vmatpush2.bf16.msra.mxu0 0
    %11475 = vmatprep.subr.bf16.mxu0 0
    %11476 = vmatpush2.bf16.msra.mxu0 0
    %11477 = vmatprep.subr.bf16.mxu0 0
    %11478 = vmatpush2.bf16.msra.mxu0 0
    %11479 = vmatprep.mubr.bf16.mxu0 0
    %11480 = vmatmul.mubr.bf16.gmra.mxu0 %v11123
    %v11481 = vpop.f32.mrf.mxu0
    %v11482 = vadd.f32 0.0, %v11481
    %v11483 = vpop.f32.mrf.mxu0
    %v11484 = vadd.f32 0.0, %v11483
    %v11485 = vpop.f32.mrf.mxu0
    %v11486 = vpop.f32.mrf.mxu0
    %11487 = vdwg.mxu0
    %v11488 = vadd.f32 %v11060, %v11400
    %v11489 = vadd.f32 %v11061, %v11402
    %v11490 = vadd.f32 %v11062, %v11441
    %v11491 = vadd.f32 %v11063, %v11443
    %v11492 = vadd.f32 %v11064, %v11482
    %v11493 = vadd.f32 %v11065, %v11484
    %v11494 = vld [vmem:[#allocation10] sm:$0x3f]
    %v11496 = vlaneseq
    %v11497 = vshrl.u32 %v11496, 7
    %v11498 = vsub.s32 0, %v11497
    %v11499 = vrot.slane %v11494, %v11498
    %v11500 = vlaneseq
    %v11501 = vshrl.u32 %v11500, 7
    %v11502 = vsub.s32 1, %v11501
    %v11503 = vrot.slane %v11494, %v11502
    %v11504 = vlaneseq
    %v11505 = vshrl.u32 %v11504, 7
    %v11506 = vsub.s32 2, %v11505
    %v11507 = vrot.slane %v11494, %v11506
    %v11508 = vlaneseq
    %v11509 = vshrl.u32 %v11508, 7
    %v11510 = vsub.s32 3, %v11509
    %v11511 = vrot.slane %v11494, %v11510
    %v11512 = vlaneseq
    %v11513 = vshrl.u32 %v11512, 7
    %v11514 = vsub.s32 4, %v11513
    %v11515 = vrot.slane %v11494, %v11514
    %v11516 = vlaneseq
    %v11517 = vshrl.u32 %v11516, 7
    %v11518 = vsub.s32 5, %v11517
    %v11519 = vrot.slane %v11494, %v11518
    %v11526 = vmul.f32 %v11488, %v11499
    %v11527 = vmul.f32 %v11489, %v11503
    %v11528 = vmul.f32 %v11490, %v11507
    %v11529 = vmul.f32 %v11491, %v11511
    %v11530 = vmul.f32 %v11492, %v11515
    %v11531 = vmul.f32 %v11493, %v11519
    %v11532 = vld [vmem:[#allocation11] sm:$0x3f]
    %v11534 = vlaneseq
    %v11535 = vshrl.u32 %v11534, 7
    %v11536 = vsub.s32 0, %v11535
    %v11537 = vrot.slane %v11532, %v11536
    %v11538 = vlaneseq
    %v11539 = vshrl.u32 %v11538, 7
    %v11540 = vsub.s32 1, %v11539
    %v11541 = vrot.slane %v11532, %v11540
    %v11542 = vlaneseq
    %v11543 = vshrl.u32 %v11542, 7
    %v11544 = vsub.s32 2, %v11543
    %v11545 = vrot.slane %v11532, %v11544
    %v11546 = vlaneseq
    %v11547 = vshrl.u32 %v11546, 7
    %v11548 = vsub.s32 3, %v11547
    %v11549 = vrot.slane %v11532, %v11548
    %v11550 = vlaneseq
    %v11551 = vshrl.u32 %v11550, 7
    %v11552 = vsub.s32 4, %v11551
    %v11553 = vrot.slane %v11532, %v11552
    %v11554 = vlaneseq
    %v11555 = vshrl.u32 %v11554, 7
    %v11556 = vsub.s32 5, %v11555
    %v11557 = vrot.slane %v11532, %v11556
    %v11564 = vadd.f32 %v11526, %v11537
    %v11565 = vadd.f32 %v11527, %v11541
    %v11566 = vadd.f32 %v11528, %v11545
    %v11567 = vadd.f32 %v11529, %v11549
    %v11568 = vadd.f32 %v11530, %v11553
    %v11569 = vadd.f32 %v11531, %v11557
    %v11570 = vmax.f32 %v11564, 0.0
    %v11571 = vmax.f32 %v11565, 0.0
    %v11572 = vmax.f32 %v11566, 0.0
    %v11573 = vmax.f32 %v11567, 0.0
    %v11574 = vmax.f32 %v11568, 0.0
    %v11575 = vmax.f32 %v11569, 0.0
    %v11576 = vpack.c.bf16 %v11570, %v11570
    %v11577 = vpack.c.bf16 %v11571, %v11571
    %v11578 = vpack.c.bf16 %v11572, %v11572
    %v11579 = vpack.c.bf16 %v11573, %v11573
    %v11580 = vpack.c.bf16 %v11574, %v11574
    %v11581 = vpack.c.bf16 %v11575, %v11575
    %v11582 = vld [vmem:[%s8] sm:$0xf]
    %v11583 = vld [vmem:[%s8 + $0x4] sm:$0xf]
    %v11584 = vld [vmem:[%s8 + $0x8] sm:$0xf]
    %v11585 = vld [vmem:[%s8 + $0xc] sm:$0xf]
    %v11586 = vld [vmem:[%s8 + $0x10] sm:$0xf]
    %v11587 = vld [vmem:[%s8 + $0x14] sm:$0xf]
    %v11588 = vld [vmem:[%s8 + $0x18] sm:$0xf]
    %v11589 = vld [vmem:[%s8 + $0x1c] sm:$0xf]
    %v11590 = vld [vmem:[%s8 + $0x20] sm:$0xf]
    %v11591 = vld [vmem:[%s8 + $0x24] sm:$0xf]
    %v11592 = vld [vmem:[%s8 + $0x28] sm:$0xf]
    %v11593 = vld [vmem:[%s8 + $0x2c] sm:$0xf]
    %v11594 = vld [vmem:[%s8 + $0x30] sm:$0xf]
    %v11595 = vld [vmem:[%s8 + $0x34] sm:$0xf]
    %v11596 = vld [vmem:[%s8 + $0x38] sm:$0xf]
    %v11597 = vld [vmem:[%s8 + $0x3c] sm:$0xf]
    %v11598 = vld [vmem:[%s8 + $0x40] sm:$0xf]
    %v11599 = vld [vmem:[%s8 + $0x44] sm:$0xf]
    %v11600 = vld [vmem:[%s8 + $0x48] sm:$0xf]
    %v11601 = vld [vmem:[%s8 + $0x4c] sm:$0xf]
    %v11602 = vld [vmem:[%s8 + $0x50] sm:$0xf]
    %v11603 = vld [vmem:[%s8 + $0x54] sm:$0xf]
    %v11604 = vld [vmem:[%s8 + $0x58] sm:$0xf]
    %v11605 = vld [vmem:[%s8 + $0x5c] sm:$0xf]
    %v11606 = vld [vmem:[%s8 + $0x60] sm:$0xf]
    %v11607 = vld [vmem:[%s8 + $0x64] sm:$0xf]
    %v11608 = vld [vmem:[%s8 + $0x68] sm:$0xf]
    %v11609 = vld [vmem:[%s8 + $0x6c] sm:$0xf]
    %v11610 = vld [vmem:[%s8 + $0x70] sm:$0xf]
    %v11611 = vld [vmem:[%s8 + $0x74] sm:$0xf]
    %v11612 = vld [vmem:[%s8 + $0x78] sm:$0xf]
    %v11613 = vld [vmem:[%s8 + $0x7c] sm:$0xf]
    %v11614 = vld [vmem:[%s8 + $0x80] sm:$0xf]
    %v11615 = vld [vmem:[%s8 + $0x84] sm:$0xf]
    %v11616 = vld [vmem:[%s8 + $0x88] sm:$0xf]
    %v11617 = vld [vmem:[%s8 + $0x8c] sm:$0xf]
    %v11618 = vld [vmem:[%s8 + $0x90] sm:$0xf]
    %v11619 = vld [vmem:[%s8 + $0x94] sm:$0xf]
    %v11620 = vld [vmem:[%s8 + $0x98] sm:$0xf]
    %v11621 = vld [vmem:[%s8 + $0x9c] sm:$0xf]
    %v11622 = vld [vmem:[%s8 + $0xa0] sm:$0xf]
    %v11623 = vld [vmem:[%s8 + $0xa4] sm:$0xf]
    %v11624 = vld [vmem:[%s8 + $0xa8] sm:$0xf]
    %v11625 = vld [vmem:[%s8 + $0xac] sm:$0xf]
    %v11626 = vld [vmem:[%s8 + $0xb0] sm:$0xf]
    %v11627 = vld [vmem:[%s8 + $0xb4] sm:$0xf]
    %v11628 = vld [vmem:[%s8 + $0xb8] sm:$0xf]
    %v11629 = vld [vmem:[%s8 + $0xbc] sm:$0xf]
    %v11630 = vld [vmem:[%s8 + $0xc0] sm:$0xf]
    %v11631 = vld [vmem:[%s8 + $0xc4] sm:$0xf]
    %v11632 = vld [vmem:[%s8 + $0xc8] sm:$0xf]
    %v11633 = vld [vmem:[%s8 + $0xcc] sm:$0xf]
    %v11634 = vld [vmem:[%s8 + $0xd0] sm:$0xf]
    %v11635 = vld [vmem:[%s8 + $0xd4] sm:$0xf]
    %v11636 = vld [vmem:[%s8 + $0xd8] sm:$0xf]
    %v11637 = vld [vmem:[%s8 + $0xdc] sm:$0xf]
    %v11638 = vld [vmem:[%s8 + $0xe0] sm:$0xf]
    %v11639 = vld [vmem:[%s8 + $0xe4] sm:$0xf]
    %v11640 = vld [vmem:[%s8 + $0xe8] sm:$0xf]
    %v11641 = vld [vmem:[%s8 + $0xec] sm:$0xf]
    %v11642 = vld [vmem:[%s8 + $0xf0] sm:$0xf]
    %v11643 = vld [vmem:[%s8 + $0xf4] sm:$0xf]
    %v11644 = vld [vmem:[%s8 + $0xf8] sm:$0xf]
    %v11645 = vld [vmem:[%s8 + $0xfc] sm:$0xf]
    %v11646 = vld [vmem:[%s8 + $0x100] sm:$0xf]
    %v11647 = vld [vmem:[%s8 + $0x104] sm:$0xf]
    %v11648 = vld [vmem:[%s8 + $0x108] sm:$0xf]
    %v11649 = vld [vmem:[%s8 + $0x10c] sm:$0xf]
    %v11650 = vld [vmem:[%s8 + $0x110] sm:$0xf]
    %v11651 = vld [vmem:[%s8 + $0x114] sm:$0xf]
    %v11652 = vld [vmem:[%s8 + $0x118] sm:$0xf]
    %v11653 = vld [vmem:[%s8 + $0x11c] sm:$0xf]
    %v11654 = vld [vmem:[%s8 + $0x120] sm:$0xf]
    %v11655 = vld [vmem:[%s8 + $0x124] sm:$0xf]
    %v11656 = vld [vmem:[%s8 + $0x128] sm:$0xf]
    %v11657 = vld [vmem:[%s8 + $0x12c] sm:$0xf]
    %v11658 = vld [vmem:[%s8 + $0x130] sm:$0xf]
    %v11659 = vld [vmem:[%s8 + $0x134] sm:$0xf]
    %v11660 = vld [vmem:[%s8 + $0x138] sm:$0xf]
    %v11661 = vld [vmem:[%s8 + $0x13c] sm:$0xf]
    %v11662 = vld [vmem:[%s8 + $0x140] sm:$0xf]
    %v11663 = vld [vmem:[%s8 + $0x144] sm:$0xf]
    %v11664 = vld [vmem:[%s8 + $0x148] sm:$0xf]
    %v11665 = vld [vmem:[%s8 + $0x14c] sm:$0xf]
    %v11666 = vld [vmem:[%s8 + $0x150] sm:$0xf]
    %v11667 = vld [vmem:[%s8 + $0x154] sm:$0xf]
    %v11668 = vld [vmem:[%s8 + $0x158] sm:$0xf]
    %v11669 = vld [vmem:[%s8 + $0x15c] sm:$0xf]
    %v11670 = vld [vmem:[%s8 + $0x160] sm:$0xf]
    %v11671 = vld [vmem:[%s8 + $0x164] sm:$0xf]
    %v11672 = vld [vmem:[%s8 + $0x168] sm:$0xf]
    %v11673 = vld [vmem:[%s8 + $0x16c] sm:$0xf]
    %v11674 = vld [vmem:[%s8 + $0x170] sm:$0xf]
    %v11675 = vld [vmem:[%s8 + $0x174] sm:$0xf]
    %v11676 = vld [vmem:[%s8 + $0x178] sm:$0xf]
    %v11677 = vld [vmem:[%s8 + $0x17c] sm:$0xf]
    %v11678 = vld [vmem:[#allocation13] sm:$0x1]
    %v11680 = vlaneseq
    %v11681 = vshrl.u32 %v11680, 7
    %v11682 = vsub.s32 0, %v11681
    %v11683 = vrot.slane %v11678, %v11682
    %v11781 = vunpack.c.l.b16 %v11582
    %v11782 = vunpack.c.l.b16 %v11583
    %v11783 = vunpack.c.l.b16 %v11584
    %v11784 = vunpack.c.l.b16 %v11585
    %v11785 = vunpack.c.l.b16 %v11586
    %v11786 = vunpack.c.l.b16 %v11587
    %v11787 = vunpack.c.l.b16 %v11588
    %v11788 = vunpack.c.l.b16 %v11589
    %v11789 = vunpack.c.l.b16 %v11590
    %v11790 = vunpack.c.l.b16 %v11591
    %v11791 = vunpack.c.l.b16 %v11592
    %v11792 = vunpack.c.l.b16 %v11593
    %v11793 = vunpack.c.l.b16 %v11594
    %v11794 = vunpack.c.l.b16 %v11595
    %v11795 = vunpack.c.l.b16 %v11596
    %v11796 = vunpack.c.l.b16 %v11597
    %v11797 = vunpack.c.l.b16 %v11598
    %v11798 = vunpack.c.l.b16 %v11599
    %v11799 = vunpack.c.l.b16 %v11600
    %v11800 = vunpack.c.l.b16 %v11601
    %v11801 = vunpack.c.l.b16 %v11602
    %v11802 = vunpack.c.l.b16 %v11603
    %v11803 = vunpack.c.l.b16 %v11604
    %v11804 = vunpack.c.l.b16 %v11605
    %v11805 = vunpack.c.l.b16 %v11606
    %v11806 = vunpack.c.l.b16 %v11607
    %v11807 = vunpack.c.l.b16 %v11608
    %v11808 = vunpack.c.l.b16 %v11609
    %v11809 = vunpack.c.l.b16 %v11610
    %v11810 = vunpack.c.l.b16 %v11611
    %v11811 = vunpack.c.l.b16 %v11612
    %v11812 = vunpack.c.l.b16 %v11613
    %v11813 = vunpack.c.l.b16 %v11614
    %v11814 = vunpack.c.l.b16 %v11615
    %v11815 = vunpack.c.l.b16 %v11616
    %v11816 = vunpack.c.l.b16 %v11617
    %v11817 = vunpack.c.l.b16 %v11618
    %v11818 = vunpack.c.l.b16 %v11619
    %v11819 = vunpack.c.l.b16 %v11620
    %v11820 = vunpack.c.l.b16 %v11621
    %v11821 = vunpack.c.l.b16 %v11622
    %v11822 = vunpack.c.l.b16 %v11623
    %v11823 = vunpack.c.l.b16 %v11624
    %v11824 = vunpack.c.l.b16 %v11625
    %v11825 = vunpack.c.l.b16 %v11626
    %v11826 = vunpack.c.l.b16 %v11627
    %v11827 = vunpack.c.l.b16 %v11628
    %v11828 = vunpack.c.l.b16 %v11629
    %v11829 = vunpack.c.l.b16 %v11630
    %v11830 = vunpack.c.l.b16 %v11631
    %v11831 = vunpack.c.l.b16 %v11632
    %v11832 = vunpack.c.l.b16 %v11633
    %v11833 = vunpack.c.l.b16 %v11634
    %v11834 = vunpack.c.l.b16 %v11635
    %v11835 = vunpack.c.l.b16 %v11636
    %v11836 = vunpack.c.l.b16 %v11637
    %v11837 = vunpack.c.l.b16 %v11638
    %v11838 = vunpack.c.l.b16 %v11639
    %v11839 = vunpack.c.l.b16 %v11640
    %v11840 = vunpack.c.l.b16 %v11641
    %v11841 = vunpack.c.l.b16 %v11642
    %v11842 = vunpack.c.l.b16 %v11643
    %v11843 = vunpack.c.l.b16 %v11644
    %v11844 = vunpack.c.l.b16 %v11645
    %v11845 = vunpack.c.l.b16 %v11646
    %v11846 = vunpack.c.l.b16 %v11647
    %v11847 = vunpack.c.l.b16 %v11648
    %v11848 = vunpack.c.l.b16 %v11649
    %v11849 = vunpack.c.l.b16 %v11650
    %v11850 = vunpack.c.l.b16 %v11651
    %v11851 = vunpack.c.l.b16 %v11652
    %v11852 = vunpack.c.l.b16 %v11653
    %v11853 = vunpack.c.l.b16 %v11654
    %v11854 = vunpack.c.l.b16 %v11655
    %v11855 = vunpack.c.l.b16 %v11656
    %v11856 = vunpack.c.l.b16 %v11657
    %v11857 = vunpack.c.l.b16 %v11658
    %v11858 = vunpack.c.l.b16 %v11659
    %v11859 = vunpack.c.l.b16 %v11660
    %v11860 = vunpack.c.l.b16 %v11661
    %v11861 = vunpack.c.l.b16 %v11662
    %v11862 = vunpack.c.l.b16 %v11663
    %v11863 = vunpack.c.l.b16 %v11664
    %v11864 = vunpack.c.l.b16 %v11665
    %v11865 = vunpack.c.l.b16 %v11666
    %v11866 = vunpack.c.l.b16 %v11667
    %v11867 = vunpack.c.l.b16 %v11668
    %v11868 = vunpack.c.l.b16 %v11669
    %v11869 = vunpack.c.l.b16 %v11670
    %v11870 = vunpack.c.l.b16 %v11671
    %v11871 = vunpack.c.l.b16 %v11672
    %v11872 = vunpack.c.l.b16 %v11673
    %v11873 = vunpack.c.l.b16 %v11674
    %v11874 = vunpack.c.l.b16 %v11675
    %v11875 = vunpack.c.l.b16 %v11676
    %v11876 = vunpack.c.l.b16 %v11677
    %v11877 = vpack.c.b16 %v11782, %v11781
    %v11878 = vpack.c.b16 %v11784, %v11783
    %v11879 = vpack.c.b16 %v11786, %v11785
    %v11880 = vpack.c.b16 %v11788, %v11787
    %v11881 = vpack.c.b16 %v11790, %v11789
    %v11882 = vpack.c.b16 %v11792, %v11791
    %v11883 = vpack.c.b16 %v11794, %v11793
    %v11884 = vpack.c.b16 %v11796, %v11795
    %v11885 = vpack.c.b16 %v11798, %v11797
    %v11886 = vpack.c.b16 %v11800, %v11799
    %v11887 = vpack.c.b16 %v11802, %v11801
    %v11888 = vpack.c.b16 %v11804, %v11803
    %v11889 = vpack.c.b16 %v11806, %v11805
    %v11890 = vpack.c.b16 %v11808, %v11807
    %v11891 = vpack.c.b16 %v11810, %v11809
    %v11892 = vpack.c.b16 %v11812, %v11811
    %v11893 = vpack.c.b16 %v11814, %v11813
    %v11894 = vpack.c.b16 %v11816, %v11815
    %v11895 = vpack.c.b16 %v11818, %v11817
    %v11896 = vpack.c.b16 %v11820, %v11819
    %v11897 = vpack.c.b16 %v11822, %v11821
    %v11898 = vpack.c.b16 %v11824, %v11823
    %v11899 = vpack.c.b16 %v11826, %v11825
    %v11900 = vpack.c.b16 %v11828, %v11827
    %v11901 = vpack.c.b16 %v11830, %v11829
    %v11902 = vpack.c.b16 %v11832, %v11831
    %v11903 = vpack.c.b16 %v11834, %v11833
    %v11904 = vpack.c.b16 %v11836, %v11835
    %v11905 = vpack.c.b16 %v11838, %v11837
    %v11906 = vpack.c.b16 %v11840, %v11839
    %v11907 = vpack.c.b16 %v11842, %v11841
    %v11908 = vpack.c.b16 %v11844, %v11843
    %v11909 = vpack.c.b16 %v11846, %v11845
    %v11910 = vpack.c.b16 %v11848, %v11847
    %v11911 = vpack.c.b16 %v11850, %v11849
    %v11912 = vpack.c.b16 %v11852, %v11851
    %v11913 = vpack.c.b16 %v11854, %v11853
    %v11914 = vpack.c.b16 %v11856, %v11855
    %v11915 = vpack.c.b16 %v11858, %v11857
    %v11916 = vpack.c.b16 %v11860, %v11859
    %v11917 = vpack.c.b16 %v11862, %v11861
    %v11918 = vpack.c.b16 %v11864, %v11863
    %v11919 = vpack.c.b16 %v11866, %v11865
    %v11920 = vpack.c.b16 %v11868, %v11867
    %v11921 = vpack.c.b16 %v11870, %v11869
    %v11922 = vpack.c.b16 %v11872, %v11871
    %v11923 = vpack.c.b16 %v11874, %v11873
    %v11924 = vpack.c.b16 %v11876, %v11875
    %11973 = vmatprep.subr.bf16.mxu0 0
    %11974 = vmatpush1.bf16.msra.mxu0 %v11884
    %11975 = vmatprep.subr.bf16.mxu0 0
    %11976 = vmatpush1.bf16.msra.mxu0 %v11883
    %11977 = vmatprep.subr.bf16.mxu0 0
    %11978 = vmatpush1.bf16.msra.mxu0 %v11882
    %11979 = vmatprep.subr.bf16.mxu0 0
    %11980 = vmatpush1.bf16.msra.mxu0 %v11881
    %11981 = vmatprep.subr.bf16.mxu0 0
    %11982 = vmatpush1.bf16.msra.mxu0 %v11880
    %11983 = vmatprep.subr.bf16.mxu0 0
    %11984 = vmatpush1.bf16.msra.mxu0 %v11879
    %11985 = vmatprep.subr.bf16.mxu0 0
    %11986 = vmatpush1.bf16.msra.mxu0 %v11878
    %11987 = vmatprep.subr.bf16.mxu0 0
    %11988 = vmatpush1.bf16.msra.mxu0 %v11877
    %11989 = vmatprep.subr.bf16.mxu0 0
    %11990 = vmatpush2.bf16.msra.mxu0 %v11892
    %11991 = vmatprep.subr.bf16.mxu0 0
    %11992 = vmatpush2.bf16.msra.mxu0 %v11891
    %11993 = vmatprep.subr.bf16.mxu0 0
    %11994 = vmatpush2.bf16.msra.mxu0 %v11890
    %11995 = vmatprep.subr.bf16.mxu0 0
    %11996 = vmatpush2.bf16.msra.mxu0 %v11889
    %11997 = vmatprep.subr.bf16.mxu0 0
    %11998 = vmatpush2.bf16.msra.mxu0 %v11888
    %11999 = vmatprep.subr.bf16.mxu0 0
    %12000 = vmatpush2.bf16.msra.mxu0 %v11887
    %12001 = vmatprep.subr.bf16.mxu0 0
    %12002 = vmatpush2.bf16.msra.mxu0 %v11886
    %12003 = vmatprep.subr.bf16.mxu0 0
    %12004 = vmatpush2.bf16.msra.mxu0 %v11885
    %12005 = vmatprep.mubr.bf16.mxu0 %v11577
    %12006 = vmatmul.mubr.bf16.gmra.mxu0 %v11576
    %v12007 = vpop.f32.mrf.mxu0
    %v12008 = vadd.f32 %v11683, %v12007
    %v12009 = vpop.f32.mrf.mxu0
    %v12010 = vpop.f32.mrf.mxu0
    %v12011 = vpop.f32.mrf.mxu0
    %12012 = vdwg.mxu0
    %12013 = vmatprep.subr.bf16.mxu0 0
    %12014 = vmatpush1.bf16.msra.mxu0 %v11900
    %12015 = vmatprep.subr.bf16.mxu0 0
    %12016 = vmatpush1.bf16.msra.mxu0 %v11899
    %12017 = vmatprep.subr.bf16.mxu0 0
    %12018 = vmatpush1.bf16.msra.mxu0 %v11898
    %12019 = vmatprep.subr.bf16.mxu0 0
    %12020 = vmatpush1.bf16.msra.mxu0 %v11897
    %12021 = vmatprep.subr.bf16.mxu0 0
    %12022 = vmatpush1.bf16.msra.mxu0 %v11896
    %12023 = vmatprep.subr.bf16.mxu0 0
    %12024 = vmatpush1.bf16.msra.mxu0 %v11895
    %12025 = vmatprep.subr.bf16.mxu0 0
    %12026 = vmatpush1.bf16.msra.mxu0 %v11894
    %12027 = vmatprep.subr.bf16.mxu0 0
    %12028 = vmatpush1.bf16.msra.mxu0 %v11893
    %12029 = vmatprep.subr.bf16.mxu0 0
    %12030 = vmatpush2.bf16.msra.mxu0 %v11908
    %12031 = vmatprep.subr.bf16.mxu0 0
    %12032 = vmatpush2.bf16.msra.mxu0 %v11907
    %12033 = vmatprep.subr.bf16.mxu0 0
    %12034 = vmatpush2.bf16.msra.mxu0 %v11906
    %12035 = vmatprep.subr.bf16.mxu0 0
    %12036 = vmatpush2.bf16.msra.mxu0 %v11905
    %12037 = vmatprep.subr.bf16.mxu0 0
    %12038 = vmatpush2.bf16.msra.mxu0 %v11904
    %12039 = vmatprep.subr.bf16.mxu0 0
    %12040 = vmatpush2.bf16.msra.mxu0 %v11903
    %12041 = vmatprep.subr.bf16.mxu0 0
    %12042 = vmatpush2.bf16.msra.mxu0 %v11902
    %12043 = vmatprep.subr.bf16.mxu0 0
    %12044 = vmatpush2.bf16.msra.mxu0 %v11901
    %12045 = vmatprep.mubr.bf16.mxu0 %v11579
    %12046 = vmatmul.mubr.bf16.gmra.mxu0 %v11578
    %v12047 = vpop.f32.mrf.mxu0
    %v12048 = vadd.f32 %v12008, %v12047
    %v12049 = vpop.f32.mrf.mxu0
    %v12050 = vpop.f32.mrf.mxu0
    %v12051 = vpop.f32.mrf.mxu0
    %12052 = vdwg.mxu0
    %12053 = vmatprep.subr.bf16.mxu0 0
    %12054 = vmatpush1.bf16.msra.mxu0 %v11916
    %12055 = vmatprep.subr.bf16.mxu0 0
    %12056 = vmatpush1.bf16.msra.mxu0 %v11915
    %12057 = vmatprep.subr.bf16.mxu0 0
    %12058 = vmatpush1.bf16.msra.mxu0 %v11914
    %12059 = vmatprep.subr.bf16.mxu0 0
    %12060 = vmatpush1.bf16.msra.mxu0 %v11913
    %12061 = vmatprep.subr.bf16.mxu0 0
    %12062 = vmatpush1.bf16.msra.mxu0 %v11912
    %12063 = vmatprep.subr.bf16.mxu0 0
    %12064 = vmatpush1.bf16.msra.mxu0 %v11911
    %12065 = vmatprep.subr.bf16.mxu0 0
    %12066 = vmatpush1.bf16.msra.mxu0 %v11910
    %12067 = vmatprep.subr.bf16.mxu0 0
    %12068 = vmatpush1.bf16.msra.mxu0 %v11909
    %12069 = vmatprep.subr.bf16.mxu0 0
    %12070 = vmatpush2.bf16.msra.mxu0 %v11924
    %12071 = vmatprep.subr.bf16.mxu0 0
    %12072 = vmatpush2.bf16.msra.mxu0 %v11923
    %12073 = vmatprep.subr.bf16.mxu0 0
    %12074 = vmatpush2.bf16.msra.mxu0 %v11922
    %12075 = vmatprep.subr.bf16.mxu0 0
    %12076 = vmatpush2.bf16.msra.mxu0 %v11921
    %12077 = vmatprep.subr.bf16.mxu0 0
    %12078 = vmatpush2.bf16.msra.mxu0 %v11920
    %12079 = vmatprep.subr.bf16.mxu0 0
    %12080 = vmatpush2.bf16.msra.mxu0 %v11919
    %12081 = vmatprep.subr.bf16.mxu0 0
    %12082 = vmatpush2.bf16.msra.mxu0 %v11918
    %12083 = vmatprep.subr.bf16.mxu0 0
    %12084 = vmatpush2.bf16.msra.mxu0 %v11917
    %12085 = vmatprep.mubr.bf16.mxu0 %v11581
    %12086 = vmatmul.mubr.bf16.gmra.mxu0 %v11580
    %v12087 = vpop.f32.mrf.mxu0
    %v12088 = vadd.f32 %v12048, %v12087
    %v12089 = vpop.f32.mrf.mxu0
    %v12090 = vpop.f32.mrf.mxu0
    %v12091 = vpop.f32.mrf.mxu0
    %12092 = vdwg.mxu0
    %vm12093 = vcmask 74752
    %12094 = vst.msk [vmem:[#allocation14] sm:$0x3] %vm12093, %v12088
    // Predicated region
    $region70: #{inception_aux_forward.1} parent=1 // pred_check
      _
    $region71: #{inception_aux_forward.1} parent=1 // pred_check_branch
      %12096 = sbr.rel (0) target = $region73
    $region72: #{inception_aux_forward.1} parent=1 // pred_region
      %s12098 = ssub.s32 32, 32
      %12099 = vsyncadd [#allocation4], %s12098
      %s12101 = sshll.u32 [#allocation14], 4
      %s12102 = int_to_ptr.vmem [resolvable:$true] %s12101
      %12104 = dma.vmem_to_hbm [thread:$0]  %s12102, 32, %s10, [#allocation4]
    $region73: #{inception_aux_forward.1} parent=1 // pred_fallthru
      _
    // Predicated region
    $region74: #{inception_aux_forward.1} parent=1 // pred_check
      _
    $region75: #{inception_aux_forward.1} parent=1 // pred_check_branch
      %12106 = sbr.rel (0) target = $region77
    $region76: #{inception_aux_forward.1} parent=1 // pred_region
      %12107 = dma.done [#allocation4], 32
    $region77: #{inception_aux_forward.1} parent=1 // pred_fallthru
      _
    %12108 = vsyncpa [#allocation3], 1
    %12109 = vsyncpa [#allocation6], 1
    %12110 = vsyncpa [#allocation9], 1
    %12111 = vsyncpa [#allocation12], 1
    %12112 = vsyncpa [#allocation4], 1

</llo_original>
